<compile_context>
chip_gen: v7x
topology: tpu7x:2x2x1
jax: 0.10.0
libtpu: 0.0.40
codegen_flags: <defaults>
</compile_context>

<pallas_src>
import functools
import math

import jax
import jax.numpy as jnp
from jax.experimental import pallas as pl
from jax.experimental.pallas import tpu as pltpu

BN_EPS = 1e-5
LANE = 128  # padded channel width (lane-dense layout)

_PARALLEL1 = pltpu.CompilerParams(dimension_semantics=("parallel",))


# ---------------------------------------------------------------------------
# helpers
# ---------------------------------------------------------------------------
def _pick_tm(m):
    """Largest tile (<=256, multiple of 16 when possible) that divides m,
    preferring >=2 grid steps so a v7x megacore can split the work."""
    if m <= 16:
        return m
    for tm in (256, 128, 64, 32, 16):
        if m % tm == 0 and m // tm >= 2:
            return tm
    for tm in (256, 128, 64, 32, 16, 8):
        if m % tm == 0:
            return tm
    return m


def _space_to_depth(x):
    """(N, H, W, C) -> (N, H//2, W//2, 4C); channel order (py, px, c)."""
    n, h, w, c = x.shape
    x = x.reshape(n, h // 2, 2, w // 2, 2, c)
    x = jnp.transpose(x, (0, 1, 3, 2, 4, 5))
    return x.reshape(n, h // 2, w // 2, 4 * c)


# ---------------------------------------------------------------------------
# Pallas kernels
# ---------------------------------------------------------------------------
def _conv1_kernel(x_ref, w_ref, b_ref, o_ref, *, hs, ho, wo, cs):
    """7x7 / stride-2 conv (+folded BN +ReLU) on a space-to-depth input.

    x_ref: (1, hs, ws, cs) with hs = ho+3, ws = wo+3, cs = 4*3.
    w_ref: (4, 4, cs, LANE) per-tap weights (invalid parities are zero).
    Input is read from HBM once; the 16 taps are accumulated in-register.
    """
    x = x_ref[0]                                       # (hs, ws, cs)
    acc = jnp.zeros((ho * wo, o_ref.shape[-1]), jnp.float32)
    for qx in range(4):
        # One small sublane shift per qx; after flattening (H, W)->rows, every
        # qy tap is an 8-aligned contiguous row range (no further relayouts).
        xq = x[:, qx:qx + wo, :].reshape(hs * wo, cs)  # (hs*wo, cs)
        for qy in range(4):
            a = xq[qy * wo: qy * wo + ho * wo, :]      # (ho*wo, cs), aligned
            acc = acc + jnp.dot(a, w_ref[qy, qx],
                                preferred_element_type=jnp.float32)
    acc = jnp.maximum(acc + b_ref[...], 0.0)
    o_ref[0] = acc.astype(o_ref.dtype)


def _maxpool_kernel(x_ref, o_ref, *, ho, wo, c):
    """3x3 / stride-2 / pad-1 max pool on a space-to-depth input.

    x_ref: (1, ho+1, wo+1, 4c).  9 taps = lane-group selects + one 1-sublane
    shift (reused by 3 taps) + 8 jnp.maximum ops (pure VPU).
    """
    x = x_ref[0]                       # (ho+1, wo+1, 4c)
    x0 = x[:, 0:wo, :]                 # aligned truncation
    x1 = x[:, 1:wo + 1, :]             # single 1-sublane shift
    # (qy, source, parity-channel-group) for the 9 taps of the 3x3 window.
    taps = ((0, x0, 0), (0, x0, 1), (0, x0, 2), (0, x0, 3),
            (0, x1, 0), (0, x1, 2),
            (1, x0, 0), (1, x0, 1),
            (1, x1, 0))
    m = None
    for qy, src, p in taps:
        v = src[qy:qy + ho, :, p * c:(p + 1) * c]      # lane-aligned group
        m = v if m is None else jnp.maximum(m, v)
    o_ref[0] = m.astype(o_ref.dtype)


def _dual1x1_pool_kernel(x_ref, w1_ref, b1_ref, w2_ref, b2_ref, o_ref, *, c_in):
    """(1x1 conv+BN+ReLU) -> (1x1 conv+BN+ReLU) -> 2x2 avg-pool, fused.

    The input tile is space-to-depth flattened pixels (TM, 4*c_in); the pool
    becomes a pure channel-group mean in the epilogue (no spatial indexing).
    Weights stay resident in VMEM across the whole grid (index (0, 0)).
    """
    acc = None
    for p in range(4):
        xp = x_ref[:, p * c_in:(p + 1) * c_in]         # lane-aligned group
        h = jnp.dot(xp, w1_ref[...], preferred_element_type=jnp.float32)
        h = jnp.maximum(h + b1_ref[...], 0.0).astype(jnp.bfloat16)
        y = jnp.dot(h, w2_ref[...], preferred_element_type=jnp.float32)
        y = jnp.maximum(y + b2_ref[...], 0.0)
        acc = y if acc is None else acc + y
    o_ref[...] = (acc * 0.25).astype(o_ref.dtype)


def _dual1x1_kernel(x_ref, w1_ref, b1_ref, w2_ref, b2_ref, o_ref):
    """Two chained (1x1 conv+BN+ReLU) layers in one kernel (no pooling)."""
    h = jnp.dot(x_ref[...], w1_ref[...], preferred_element_type=jnp.float32)
    h = jnp.maximum(h + b1_ref[...], 0.0).astype(jnp.bfloat16)
    y = jnp.dot(h, w2_ref[...], preferred_element_type=jnp.float32)
    y = jnp.maximum(y + b2_ref[...], 0.0)
    o_ref[...] = y.astype(o_ref.dtype)


def _head_kernel(x_ref, wf_ref, bf_ref, wc_ref, bc_ref, o_ref, *, inv_hw):
    """global avg-pool -> (fc + BN1d + ReLU) -> classifier, fused."""
    v = jnp.sum(x_ref[...].astype(jnp.float32), axis=1) * inv_hw   # (N, C)
    h = jnp.dot(v.astype(jnp.bfloat16), wf_ref[...],
                preferred_element_type=jnp.float32)
    h = jnp.maximum(h + bf_ref[...], 0.0).astype(jnp.bfloat16)
    y = jnp.dot(h, wc_ref[...], preferred_element_type=jnp.float32)
    o_ref[...] = y + bc_ref[...]


# ---------------------------------------------------------------------------
# Kernel wrappers
# ---------------------------------------------------------------------------
def conv1_7x7_s2_p3(x, w, b):
    """ConvLayer(3, c0, 7, stride=2, padding=3) + BN + ReLU."""
    n, h, ww, _ = x.shape
    ho, wo = h // 2, ww // 2
    xp = jnp.pad(x, ((0, 0), (3, 3), (3, 3), (0, 0)))      # zero padding
    xs = _space_to_depth(xp)                                # (n, ho+3, wo+3, 12)
    hs, ws, cs = xs.shape[1], xs.shape[2], xs.shape[3]
    out = pl.pallas_call(
        functools.partial(_conv1_kernel, hs=hs, ho=ho, wo=wo, cs=cs),
        out_shape=jax.ShapeDtypeStruct((n, ho * wo, LANE), jnp.bfloat16),
        grid=(n,),
        in_specs=[
            pl.BlockSpec((1, hs, ws, cs), lambda i: (i, 0, 0, 0)),
            pl.BlockSpec((4, 4, cs, LANE), lambda i: (0, 0, 0, 0)),
            pl.BlockSpec((1, LANE), lambda i: (0, 0)),
        ],
        out_specs=pl.BlockSpec((1, ho * wo, LANE), lambda i: (i, 0, 0)),
        compiler_params=_PARALLEL1,
    )(xs, w, b)
    return out.reshape(n, ho, wo, LANE)


def maxpool_3x3_s2_p1(x):
    """MaxPool2d(3, stride=2, padding=1).  Zero padding == -inf padding here
    because the input is post-ReLU (>= 0)."""
    n, h, w, c = x.shape
    ho, wo = h // 2, w // 2
    xs = _space_to_depth(jnp.pad(x, ((0, 0), (1, 1), (1, 1), (0, 0))))
    return pl.pallas_call(
        functools.partial(_maxpool_kernel, ho=ho, wo=wo, c=c),
        out_shape=jax.ShapeDtypeStruct((n, ho, wo, c), x.dtype),
        grid=(n,),
        in_specs=[pl.BlockSpec((1, ho + 1, wo + 1, 4 * c),
                               lambda i: (i, 0, 0, 0))],
        out_specs=pl.BlockSpec((1, ho, wo, c), lambda i: (i, 0, 0, 0)),
        compiler_params=_PARALLEL1,
    )(xs)


def stage_1x1_pair_avgpool(x, w1, b1, w2, b2):
    """block(1x1) + Conv1x1 + AvgPool2d(2,2) fused into one pallas_call."""
    n, h, w, c = x.shape
    ho, wo = h // 2, w // 2
    m = n * ho * wo
    xs = _space_to_depth(x).reshape(m, 4 * c)
    tm = _pick_tm(m)
    out = pl.pallas_call(
        functools.partial(_dual1x1_pool_kernel, c_in=c),
        out_shape=jax.ShapeDtypeStruct((m, LANE), jnp.bfloat16),
        grid=(m // tm,),
        in_specs=[
            pl.BlockSpec((tm, 4 * c), lambda i: (i, 0)),
            pl.BlockSpec((c, LANE), lambda i: (0, 0)),
            pl.BlockSpec((1, LANE), lambda i: (0, 0)),
            pl.BlockSpec((LANE, LANE), lambda i: (0, 0)),
            pl.BlockSpec((1, LANE), lambda i: (0, 0)),
        ],
        out_specs=pl.BlockSpec((tm, LANE), lambda i: (i, 0)),
        compiler_params=_PARALLEL1,
    )(xs, w1, b1, w2, b2)
    return out.reshape(n, ho, wo, LANE)


def stage_1x1_pair(x, w1, b1, w2, b2):
    """block(1x1) + Conv1x1 fused (no spatial reduction)."""
    n, h, w, c = x.shape
    m = n * h * w
    tm = _pick_tm(m)
    out = pl.pallas_call(
        _dual1x1_kernel,
        out_shape=jax.ShapeDtypeStruct((m, LANE), jnp.bfloat16),
        grid=(m // tm,),
        in_specs=[
            pl.BlockSpec((tm, c), lambda i: (i, 0)),
            pl.BlockSpec((c, LANE), lambda i: (0, 0)),
            pl.BlockSpec((1, LANE), lambda i: (0, 0)),
            pl.BlockSpec((LANE, LANE), lambda i: (0, 0)),
            pl.BlockSpec((1, LANE), lambda i: (0, 0)),
        ],
        out_specs=pl.BlockSpec((tm, LANE), lambda i: (i, 0)),
        compiler_params=_PARALLEL1,
    )(x.reshape(m, c), w1, b1, w2, b2)
    return out.reshape(n, h, w, LANE)


def head(x, wf, bf, wc, bc):
    """global avg-pool + fc(+BN1d+ReLU) + classifier; smallest tensors in the
    net, so a single full-array invocation (f32 logits out)."""
    n, h, w, c = x.shape
    return pl.pallas_call(
        functools.partial(_head_kernel, inv_hw=1.0 / float(h * w)),
        out_shape=jax.ShapeDtypeStruct((n, LANE), jnp.float32),
    )(x.reshape(n, h * w, c), wf, bf, wc, bc)


# ---------------------------------------------------------------------------
# Parameter construction (mirrors _init_params); weights are pre-padded to a
# lane-dense layout and pre-scaled by the folded BN scale, stored bf16.
# ---------------------------------------------------------------------------
def kaiming_conv(key, kh, kw, cin, cout):
    fan_out = cout * kh * kw
    std = math.sqrt(2.0 / fan_out)
    return std * jax.random.normal(key, (kh, kw, cin, cout), jnp.float32)


def bn_scale(c):
    # gamma=1, beta=0, running_mean=0, running_var=1 (inference mode)
    return jnp.full((c,), 1.0 / math.sqrt(1.0 + BN_EPS), jnp.float32)


def zero_bias():
    return jnp.zeros((1, LANE), jnp.float32)


def pack_1x1(key, cin, cout):
    w = kaiming_conv(key, 1, 1, cin, cout).reshape(cin, cout)
    w = w * bn_scale(cout)[None, :]
    wp = jnp.zeros((LANE, LANE), jnp.float32).at[:cin, :cout].set(w)
    return wp.astype(jnp.bfloat16), zero_bias()


def pack_linear(key, cin, cout, scale):
    w = 0.01 * jax.random.normal(key, (cin, cout), jnp.float32) * scale[None, :]
    wp = jnp.zeros((LANE, LANE), jnp.float32).at[:cin, :cout].set(w)
    return wp.astype(jnp.bfloat16), zero_bias()


def pack_conv1(key, cout):
    """7x7 conv weight -> space-to-depth tap layout (4, 4, 12, LANE)."""
    w77 = kaiming_conv(key, 7, 7, 3, cout) * bn_scale(cout)[None, None, None, :]
    wp = jnp.zeros((4, 4, 12, LANE), jnp.float32)
    for dy in range(7):
        for dx in range(7):
            qy, py, qx, px = dy // 2, dy % 2, dx // 2, dx % 2
            o = py * 6 + px * 3
            wp = wp.at[qy, qx, o:o + 3, :cout].set(w77[dy, dx])
    return wp.astype(jnp.bfloat16), zero_bias()


def init_params(key, channels, feature_dim, num_classes):
    c0, c1, c2, c3 = channels
    ks = jax.random.split(key, 9)
    p = {}
    # conv1: ConvLayer(3, c0, 7, stride=2, padding=3) + BN + ReLU
    p["conv1_w"], p["conv1_b"] = pack_conv1(ks[0], c0)
    # conv2: block(c0->c1) + Conv1x1(c1,c1) (+ avgpool fused in-kernel)
    p["blk2_w"], p["blk2_b"] = pack_1x1(ks[1], c0, c1)
    p["tr2_w"], p["tr2_b"] = pack_1x1(ks[2], c1, c1)
    # conv3: block(c1->c2) + Conv1x1(c2,c2) (+ avgpool fused in-kernel)
    p["blk3_w"], p["blk3_b"] = pack_1x1(ks[3], c1, c2)
    p["tr3_w"], p["tr3_b"] = pack_1x1(ks[4], c2, c2)
    # conv4: block(c2->c3) ; conv5: Conv1x1(c3, c3)
    p["blk4_w"], p["blk4_b"] = pack_1x1(ks[5], c2, c3)
    p["conv5_w"], p["conv5_b"] = pack_1x1(ks[6], c3, c3)
    # fc: Linear(c3, feature_dim) + BN1d + ReLU (folded); classifier: Linear
    p["fc_w"], p["fc_b"] = pack_linear(ks[7], c3, feature_dim,
                                       bn_scale(feature_dim))
    p["cls_w"], p["cls_b"] = pack_linear(ks[8], feature_dim, num_classes,
                                         jnp.ones((num_classes,), jnp.float32))
    return p


# ---------------------------------------------------------------------------
# Forward pass (OSNet.forward, loss='softmax') -- 6 pallas_calls total.
# ---------------------------------------------------------------------------
@functools.partial(jax.jit, static_argnames=("num_classes",))
def osnet_forward(p, x_nchw, *, num_classes):
    x = jnp.transpose(x_nchw, (0, 2, 3, 1)).astype(jnp.bfloat16)  # NCHW->NHWC
    # featuremaps
    x = conv1_7x7_s2_p3(x, p["conv1_w"], p["conv1_b"])
    x = maxpool_3x3_s2_p1(x)
    x = stage_1x1_pair_avgpool(x, p["blk2_w"], p["blk2_b"],
                               p["tr2_w"], p["tr2_b"])
    x = stage_1x1_pair_avgpool(x, p["blk3_w"], p["blk3_b"],
                               p["tr3_w"], p["tr3_b"])
    x = stage_1x1_pair(x, p["blk4_w"], p["blk4_b"],
                       p["conv5_w"], p["conv5_b"])
    # head: global avg pool -> fc(+BN+ReLU) -> classifier, one kernel
    y = head(x, p["fc_w"], p["fc_b"], p["cls_w"], p["cls_b"])
    return y[:, :num_classes]


# ---------------------------------------------------------------------------
if __name__ == "__main__":
    NUM_CLASSES = 10
    CHANNELS = (8, 16, 24, 32)   # channels[0..3], small for the demo
    FEATURE_DIM = 32

    key = jax.random.PRNGKey(0)
    kx, kp = jax.random.split(key)
    x = jax.random.normal(kx, (2, 3, 32, 32), jnp.float32)   # NCHW like PyTorch

    params = init_params(kp, CHANNELS, FEATURE_DIM, NUM_CLASSES)
    y = osnet_forward(params, x, num_classes=NUM_CLASSES)
    y = jax.block_until_ready(y)

    assert y.shape == (2, NUM_CLASSES), y.shape
    assert jnp.all(jnp.isfinite(y))
    print("KERNEL_OK")
</pallas_src>

<mosaic_0001>
module attributes {stable_mosaic.version = 11 : i64} {
  func.func @_conv1_kernel(%arg0: i32, %arg1: memref<1x19x19x12xbf16, #tpu.memory_space<vmem>>, %arg2: memref<4x4x12x128xbf16, #tpu.memory_space<vmem>>, %arg3: memref<1x128xf32, #tpu.memory_space<vmem>>, %arg4: memref<1x256x128xbf16, #tpu.memory_space<vmem>>) attributes {dimension_semantics = [#tpu.dimension_semantics<parallel>], iteration_bounds = array<i64: 2>, scalar_prefetch = 0 : i64, scratch_operands = 0 : i64, tpu.core_type = #tpu.core_type<tc>, window_params = [{transform_indices = @transform_0, window_bounds = array<i64: 1, 19, 19, 12>}, {pipeline_mode = #tpu.pipeline_mode<synchronous>, transform_indices = @transform_1, window_bounds = array<i64: 4, 4, 12, 128>}, {pipeline_mode = #tpu.pipeline_mode<synchronous>, transform_indices = @transform_2, window_bounds = array<i64: 1, 128>}, {transform_indices = @transform_3, window_bounds = array<i64: 1, 256, 128>}]} {
    %c0 = arith.constant 0 : index
    %c0_0 = arith.constant 0 : index
    %c0_1 = arith.constant 0 : index
    %c0_2 = arith.constant 0 : index
    %0 = vector.load %arg1[%c0, %c0_0, %c0_1, %c0_2] : memref<1x19x19x12xbf16, #tpu.memory_space<vmem>>, vector<1x19x19x12xbf16>
    %1 = vector.shape_cast %0 : vector<1x19x19x12xbf16> to vector<19x19x12xbf16>
    %cst = arith.constant 0.000000e+00 : f32
    %2 = vector.broadcast %cst : f32 to vector<256x128xf32>
    %3 = vector.extract_strided_slice %1 {offsets = [0, 0, 0], sizes = [19, 16, 12], strides = [1, 1, 1]} : vector<19x19x12xbf16> to vector<19x16x12xbf16>
    %4 = vector.shape_cast %3 : vector<19x16x12xbf16> to vector<304x12xbf16>
    %5 = vector.extract_strided_slice %4 {offsets = [0, 0], sizes = [256, 12], strides = [1, 1]} : vector<304x12xbf16> to vector<256x12xbf16>
    %c0_3 = arith.constant 0 : index
    %c0_4 = arith.constant 0 : index
    %c0_5 = arith.constant 0 : index
    %c0_6 = arith.constant 0 : index
    %6 = vector.load %arg2[%c0_3, %c0_4, %c0_5, %c0_6] : memref<4x4x12x128xbf16, #tpu.memory_space<vmem>>, vector<1x1x12x128xbf16>
    %7 = vector.shape_cast %6 : vector<1x1x12x128xbf16> to vector<12x128xbf16>
    %cst_7 = arith.constant dense<0.000000e+00> : vector<256x128xf32>
    %8 = tpu.matmul %5, %7, %cst_7 {dimension_numbers = #tpu.dot_dimension_numbers<[1], [0], [0], [1], [0, 0, 1, 1], [], []>} : vector<256x12xbf16>, vector<12x128xbf16>, vector<256x128xf32> -> vector<256x128xf32>
    %9 = arith.addf %2, %8 : vector<256x128xf32>
    %10 = vector.extract_strided_slice %4 {offsets = [16, 0], sizes = [256, 12], strides = [1, 1]} : vector<304x12xbf16> to vector<256x12xbf16>
    %c1 = arith.constant 1 : index
    %c0_8 = arith.constant 0 : index
    %c0_9 = arith.constant 0 : index
    %c0_10 = arith.constant 0 : index
    %11 = vector.load %arg2[%c1, %c0_8, %c0_9, %c0_10] : memref<4x4x12x128xbf16, #tpu.memory_space<vmem>>, vector<1x1x12x128xbf16>
    %12 = vector.shape_cast %11 : vector<1x1x12x128xbf16> to vector<12x128xbf16>
    %cst_11 = arith.constant dense<0.000000e+00> : vector<256x128xf32>
    %13 = tpu.matmul %10, %12, %cst_11 {dimension_numbers = #tpu.dot_dimension_numbers<[1], [0], [0], [1], [0, 0, 1, 1], [], []>} : vector<256x12xbf16>, vector<12x128xbf16>, vector<256x128xf32> -> vector<256x128xf32>
    %14 = arith.addf %9, %13 : vector<256x128xf32>
    %15 = vector.extract_strided_slice %4 {offsets = [32, 0], sizes = [256, 12], strides = [1, 1]} : vector<304x12xbf16> to vector<256x12xbf16>
    %c2 = arith.constant 2 : index
    %c0_12 = arith.constant 0 : index
    %c0_13 = arith.constant 0 : index
    %c0_14 = arith.constant 0 : index
    %16 = vector.load %arg2[%c2, %c0_12, %c0_13, %c0_14] : memref<4x4x12x128xbf16, #tpu.memory_space<vmem>>, vector<1x1x12x128xbf16>
    %17 = vector.shape_cast %16 : vector<1x1x12x128xbf16> to vector<12x128xbf16>
    %cst_15 = arith.constant dense<0.000000e+00> : vector<256x128xf32>
    %18 = tpu.matmul %15, %17, %cst_15 {dimension_numbers = #tpu.dot_dimension_numbers<[1], [0], [0], [1], [0, 0, 1, 1], [], []>} : vector<256x12xbf16>, vector<12x128xbf16>, vector<256x128xf32> -> vector<256x128xf32>
    %19 = arith.addf %14, %18 : vector<256x128xf32>
    %20 = vector.extract_strided_slice %4 {offsets = [48, 0], sizes = [256, 12], strides = [1, 1]} : vector<304x12xbf16> to vector<256x12xbf16>
    %c3 = arith.constant 3 : index
    %c0_16 = arith.constant 0 : index
    %c0_17 = arith.constant 0 : index
    %c0_18 = arith.constant 0 : index
    %21 = vector.load %arg2[%c3, %c0_16, %c0_17, %c0_18] : memref<4x4x12x128xbf16, #tpu.memory_space<vmem>>, vector<1x1x12x128xbf16>
    %22 = vector.shape_cast %21 : vector<1x1x12x128xbf16> to vector<12x128xbf16>
    %cst_19 = arith.constant dense<0.000000e+00> : vector<256x128xf32>
    %23 = tpu.matmul %20, %22, %cst_19 {dimension_numbers = #tpu.dot_dimension_numbers<[1], [0], [0], [1], [0, 0, 1, 1], [], []>} : vector<256x12xbf16>, vector<12x128xbf16>, vector<256x128xf32> -> vector<256x128xf32>
    %24 = arith.addf %19, %23 : vector<256x128xf32>
    %25 = vector.extract_strided_slice %1 {offsets = [0, 1, 0], sizes = [19, 16, 12], strides = [1, 1, 1]} : vector<19x19x12xbf16> to vector<19x16x12xbf16>
    %26 = vector.shape_cast %25 : vector<19x16x12xbf16> to vector<304x12xbf16>
    %27 = vector.extract_strided_slice %26 {offsets = [0, 0], sizes = [256, 12], strides = [1, 1]} : vector<304x12xbf16> to vector<256x12xbf16>
    %c0_20 = arith.constant 0 : index
    %c1_21 = arith.constant 1 : index
    %c0_22 = arith.constant 0 : index
    %c0_23 = arith.constant 0 : index
    %28 = vector.load %arg2[%c0_20, %c1_21, %c0_22, %c0_23] : memref<4x4x12x128xbf16, #tpu.memory_space<vmem>>, vector<1x1x12x128xbf16>
    %29 = vector.shape_cast %28 : vector<1x1x12x128xbf16> to vector<12x128xbf16>
    %cst_24 = arith.constant dense<0.000000e+00> : vector<256x128xf32>
    %30 = tpu.matmul %27, %29, %cst_24 {dimension_numbers = #tpu.dot_dimension_numbers<[1], [0], [0], [1], [0, 0, 1, 1], [], []>} : vector<256x12xbf16>, vector<12x128xbf16>, vector<256x128xf32> -> vector<256x128xf32>
    %31 = arith.addf %24, %30 : vector<256x128xf32>
    %32 = vector.extract_strided_slice %26 {offsets = [16, 0], sizes = [256, 12], strides = [1, 1]} : vector<304x12xbf16> to vector<256x12xbf16>
    %c1_25 = arith.constant 1 : index
    %c1_26 = arith.constant 1 : index
    %c0_27 = arith.constant 0 : index
    %c0_28 = arith.constant 0 : index
    %33 = vector.load %arg2[%c1_25, %c1_26, %c0_27, %c0_28] : memref<4x4x12x128xbf16, #tpu.memory_space<vmem>>, vector<1x1x12x128xbf16>
    %34 = vector.shape_cast %33 : vector<1x1x12x128xbf16> to vector<12x128xbf16>
    %cst_29 = arith.constant dense<0.000000e+00> : vector<256x128xf32>
    %35 = tpu.matmul %32, %34, %cst_29 {dimension_numbers = #tpu.dot_dimension_numbers<[1], [0], [0], [1], [0, 0, 1, 1], [], []>} : vector<256x12xbf16>, vector<12x128xbf16>, vector<256x128xf32> -> vector<256x128xf32>
    %36 = arith.addf %31, %35 : vector<256x128xf32>
    %37 = vector.extract_strided_slice %26 {offsets = [32, 0], sizes = [256, 12], strides = [1, 1]} : vector<304x12xbf16> to vector<256x12xbf16>
    %c2_30 = arith.constant 2 : index
    %c1_31 = arith.constant 1 : index
    %c0_32 = arith.constant 0 : index
    %c0_33 = arith.constant 0 : index
    %38 = vector.load %arg2[%c2_30, %c1_31, %c0_32, %c0_33] : memref<4x4x12x128xbf16, #tpu.memory_space<vmem>>, vector<1x1x12x128xbf16>
    %39 = vector.shape_cast %38 : vector<1x1x12x128xbf16> to vector<12x128xbf16>
    %cst_34 = arith.constant dense<0.000000e+00> : vector<256x128xf32>
    %40 = tpu.matmul %37, %39, %cst_34 {dimension_numbers = #tpu.dot_dimension_numbers<[1], [0], [0], [1], [0, 0, 1, 1], [], []>} : vector<256x12xbf16>, vector<12x128xbf16>, vector<256x128xf32> -> vector<256x128xf32>
    %41 = arith.addf %36, %40 : vector<256x128xf32>
    %42 = vector.extract_strided_slice %26 {offsets = [48, 0], sizes = [256, 12], strides = [1, 1]} : vector<304x12xbf16> to vector<256x12xbf16>
    %c3_35 = arith.constant 3 : index
    %c1_36 = arith.constant 1 : index
    %c0_37 = arith.constant 0 : index
    %c0_38 = arith.constant 0 : index
    %43 = vector.load %arg2[%c3_35, %c1_36, %c0_37, %c0_38] : memref<4x4x12x128xbf16, #tpu.memory_space<vmem>>, vector<1x1x12x128xbf16>
    %44 = vector.shape_cast %43 : vector<1x1x12x128xbf16> to vector<12x128xbf16>
    %cst_39 = arith.constant dense<0.000000e+00> : vector<256x128xf32>
    %45 = tpu.matmul %42, %44, %cst_39 {dimension_numbers = #tpu.dot_dimension_numbers<[1], [0], [0], [1], [0, 0, 1, 1], [], []>} : vector<256x12xbf16>, vector<12x128xbf16>, vector<256x128xf32> -> vector<256x128xf32>
    %46 = arith.addf %41, %45 : vector<256x128xf32>
    %47 = vector.extract_strided_slice %1 {offsets = [0, 2, 0], sizes = [19, 16, 12], strides = [1, 1, 1]} : vector<19x19x12xbf16> to vector<19x16x12xbf16>
    %48 = vector.shape_cast %47 : vector<19x16x12xbf16> to vector<304x12xbf16>
    %49 = vector.extract_strided_slice %48 {offsets = [0, 0], sizes = [256, 12], strides = [1, 1]} : vector<304x12xbf16> to vector<256x12xbf16>
    %c0_40 = arith.constant 0 : index
    %c2_41 = arith.constant 2 : index
    %c0_42 = arith.constant 0 : index
    %c0_43 = arith.constant 0 : index
    %50 = vector.load %arg2[%c0_40, %c2_41, %c0_42, %c0_43] : memref<4x4x12x128xbf16, #tpu.memory_space<vmem>>, vector<1x1x12x128xbf16>
    %51 = vector.shape_cast %50 : vector<1x1x12x128xbf16> to vector<12x128xbf16>
    %cst_44 = arith.constant dense<0.000000e+00> : vector<256x128xf32>
    %52 = tpu.matmul %49, %51, %cst_44 {dimension_numbers = #tpu.dot_dimension_numbers<[1], [0], [0], [1], [0, 0, 1, 1], [], []>} : vector<256x12xbf16>, vector<12x128xbf16>, vector<256x128xf32> -> vector<256x128xf32>
    %53 = arith.addf %46, %52 : vector<256x128xf32>
    %54 = vector.extract_strided_slice %48 {offsets = [16, 0], sizes = [256, 12], strides = [1, 1]} : vector<304x12xbf16> to vector<256x12xbf16>
    %c1_45 = arith.constant 1 : index
    %c2_46 = arith.constant 2 : index
    %c0_47 = arith.constant 0 : index
    %c0_48 = arith.constant 0 : index
    %55 = vector.load %arg2[%c1_45, %c2_46, %c0_47, %c0_48] : memref<4x4x12x128xbf16, #tpu.memory_space<vmem>>, vector<1x1x12x128xbf16>
    %56 = vector.shape_cast %55 : vector<1x1x12x128xbf16> to vector<12x128xbf16>
    %cst_49 = arith.constant dense<0.000000e+00> : vector<256x128xf32>
    %57 = tpu.matmul %54, %56, %cst_49 {dimension_numbers = #tpu.dot_dimension_numbers<[1], [0], [0], [1], [0, 0, 1, 1], [], []>} : vector<256x12xbf16>, vector<12x128xbf16>, vector<256x128xf32> -> vector<256x128xf32>
    %58 = arith.addf %53, %57 : vector<256x128xf32>
    %59 = vector.extract_strided_slice %48 {offsets = [32, 0], sizes = [256, 12], strides = [1, 1]} : vector<304x12xbf16> to vector<256x12xbf16>
    %c2_50 = arith.constant 2 : index
    %c2_51 = arith.constant 2 : index
    %c0_52 = arith.constant 0 : index
    %c0_53 = arith.constant 0 : index
    %60 = vector.load %arg2[%c2_50, %c2_51, %c0_52, %c0_53] : memref<4x4x12x128xbf16, #tpu.memory_space<vmem>>, vector<1x1x12x128xbf16>
    %61 = vector.shape_cast %60 : vector<1x1x12x128xbf16> to vector<12x128xbf16>
    %cst_54 = arith.constant dense<0.000000e+00> : vector<256x128xf32>
    %62 = tpu.matmul %59, %61, %cst_54 {dimension_numbers = #tpu.dot_dimension_numbers<[1], [0], [0], [1], [0, 0, 1, 1], [], []>} : vector<256x12xbf16>, vector<12x128xbf16>, vector<256x128xf32> -> vector<256x128xf32>
    %63 = arith.addf %58, %62 : vector<256x128xf32>
    %64 = vector.extract_strided_slice %48 {offsets = [48, 0], sizes = [256, 12], strides = [1, 1]} : vector<304x12xbf16> to vector<256x12xbf16>
    %c3_55 = arith.constant 3 : index
    %c2_56 = arith.constant 2 : index
    %c0_57 = arith.constant 0 : index
    %c0_58 = arith.constant 0 : index
    %65 = vector.load %arg2[%c3_55, %c2_56, %c0_57, %c0_58] : memref<4x4x12x128xbf16, #tpu.memory_space<vmem>>, vector<1x1x12x128xbf16>
    %66 = vector.shape_cast %65 : vector<1x1x12x128xbf16> to vector<12x128xbf16>
    %cst_59 = arith.constant dense<0.000000e+00> : vector<256x128xf32>
    %67 = tpu.matmul %64, %66, %cst_59 {dimension_numbers = #tpu.dot_dimension_numbers<[1], [0], [0], [1], [0, 0, 1, 1], [], []>} : vector<256x12xbf16>, vector<12x128xbf16>, vector<256x128xf32> -> vector<256x128xf32>
    %68 = arith.addf %63, %67 : vector<256x128xf32>
    %69 = vector.extract_strided_slice %1 {offsets = [0, 3, 0], sizes = [19, 16, 12], strides = [1, 1, 1]} : vector<19x19x12xbf16> to vector<19x16x12xbf16>
    %70 = vector.shape_cast %69 : vector<19x16x12xbf16> to vector<304x12xbf16>
    %71 = vector.extract_strided_slice %70 {offsets = [0, 0], sizes = [256, 12], strides = [1, 1]} : vector<304x12xbf16> to vector<256x12xbf16>
    %c0_60 = arith.constant 0 : index
    %c3_61 = arith.constant 3 : index
    %c0_62 = arith.constant 0 : index
    %c0_63 = arith.constant 0 : index
    %72 = vector.load %arg2[%c0_60, %c3_61, %c0_62, %c0_63] : memref<4x4x12x128xbf16, #tpu.memory_space<vmem>>, vector<1x1x12x128xbf16>
    %73 = vector.shape_cast %72 : vector<1x1x12x128xbf16> to vector<12x128xbf16>
    %cst_64 = arith.constant dense<0.000000e+00> : vector<256x128xf32>
    %74 = tpu.matmul %71, %73, %cst_64 {dimension_numbers = #tpu.dot_dimension_numbers<[1], [0], [0], [1], [0, 0, 1, 1], [], []>} : vector<256x12xbf16>, vector<12x128xbf16>, vector<256x128xf32> -> vector<256x128xf32>
    %75 = arith.addf %68, %74 : vector<256x128xf32>
    %76 = vector.extract_strided_slice %70 {offsets = [16, 0], sizes = [256, 12], strides = [1, 1]} : vector<304x12xbf16> to vector<256x12xbf16>
    %c1_65 = arith.constant 1 : index
    %c3_66 = arith.constant 3 : index
    %c0_67 = arith.constant 0 : index
    %c0_68 = arith.constant 0 : index
    %77 = vector.load %arg2[%c1_65, %c3_66, %c0_67, %c0_68] : memref<4x4x12x128xbf16, #tpu.memory_space<vmem>>, vector<1x1x12x128xbf16>
    %78 = vector.shape_cast %77 : vector<1x1x12x128xbf16> to vector<12x128xbf16>
    %cst_69 = arith.constant dense<0.000000e+00> : vector<256x128xf32>
    %79 = tpu.matmul %76, %78, %cst_69 {dimension_numbers = #tpu.dot_dimension_numbers<[1], [0], [0], [1], [0, 0, 1, 1], [], []>} : vector<256x12xbf16>, vector<12x128xbf16>, vector<256x128xf32> -> vector<256x128xf32>
    %80 = arith.addf %75, %79 : vector<256x128xf32>
    %81 = vector.extract_strided_slice %70 {offsets = [32, 0], sizes = [256, 12], strides = [1, 1]} : vector<304x12xbf16> to vector<256x12xbf16>
    %c2_70 = arith.constant 2 : index
    %c3_71 = arith.constant 3 : index
    %c0_72 = arith.constant 0 : index
    %c0_73 = arith.constant 0 : index
    %82 = vector.load %arg2[%c2_70, %c3_71, %c0_72, %c0_73] : memref<4x4x12x128xbf16, #tpu.memory_space<vmem>>, vector<1x1x12x128xbf16>
    %83 = vector.shape_cast %82 : vector<1x1x12x128xbf16> to vector<12x128xbf16>
    %cst_74 = arith.constant dense<0.000000e+00> : vector<256x128xf32>
    %84 = tpu.matmul %81, %83, %cst_74 {dimension_numbers = #tpu.dot_dimension_numbers<[1], [0], [0], [1], [0, 0, 1, 1], [], []>} : vector<256x12xbf16>, vector<12x128xbf16>, vector<256x128xf32> -> vector<256x128xf32>
    %85 = arith.addf %80, %84 : vector<256x128xf32>
    %86 = vector.extract_strided_slice %70 {offsets = [48, 0], sizes = [256, 12], strides = [1, 1]} : vector<304x12xbf16> to vector<256x12xbf16>
    %c3_75 = arith.constant 3 : index
    %c3_76 = arith.constant 3 : index
    %c0_77 = arith.constant 0 : index
    %c0_78 = arith.constant 0 : index
    %87 = vector.load %arg2[%c3_75, %c3_76, %c0_77, %c0_78] : memref<4x4x12x128xbf16, #tpu.memory_space<vmem>>, vector<1x1x12x128xbf16>
    %88 = vector.shape_cast %87 : vector<1x1x12x128xbf16> to vector<12x128xbf16>
    %cst_79 = arith.constant dense<0.000000e+00> : vector<256x128xf32>
    %89 = tpu.matmul %86, %88, %cst_79 {dimension_numbers = #tpu.dot_dimension_numbers<[1], [0], [0], [1], [0, 0, 1, 1], [], []>} : vector<256x12xbf16>, vector<12x128xbf16>, vector<256x128xf32> -> vector<256x128xf32>
    %90 = arith.addf %85, %89 : vector<256x128xf32>
    %c0_80 = arith.constant 0 : index
    %c0_81 = arith.constant 0 : index
    %91 = vector.load %arg3[%c0_80, %c0_81] : memref<1x128xf32, #tpu.memory_space<vmem>>, vector<1x128xf32>
    %92 = vector.broadcast %91 : vector<1x128xf32> to vector<256x128xf32>
    %93 = arith.addf %90, %92 : vector<256x128xf32>
    %cst_82 = arith.constant 0.000000e+00 : f32
    %94 = vector.broadcast %cst_82 : f32 to vector<256x128xf32>
    %95 = arith.maximumf %93, %94 : vector<256x128xf32>
    %96 = arith.truncf %95 : vector<256x128xf32> to vector<256x128xbf16>
    %c0_83 = arith.constant 0 : index
    %c0_84 = arith.constant 0 : index
    %c0_85 = arith.constant 0 : index
    %97 = vector.load %arg4[%c0_83, %c0_84, %c0_85] : memref<1x256x128xbf16, #tpu.memory_space<vmem>>, vector<1x256x128xbf16>
    %98 = vector.shape_cast %97 : vector<1x256x128xbf16> to vector<256x128xbf16>
    %99 = vector.shape_cast %96 : vector<256x128xbf16> to vector<1x256x128xbf16>
    tpu.vector_store %arg4[%c0_83, %c0_84, %c0_85], %99 {strides = array<i32>} : memref<1x256x128xbf16, #tpu.memory_space<vmem>>, vector<1x256x128xbf16>,
    return
  }
  func.func @transform_0(%arg0: i32) -> (i32, i32, i32, i32) {
    %c0_i32 = arith.constant 0 : i32
    %c0_i32_0 = arith.constant 0 : i32
    %c0_i32_1 = arith.constant 0 : i32
    %c0_i32_2 = arith.constant 0 : i32
    return %arg0, %c0_i32, %c0_i32_0, %c0_i32_1 : i32, i32, i32, i32
  }
  func.func @transform_1(%arg0: i32) -> (i32, i32, i32, i32) {
    %c0_i32 = arith.constant 0 : i32
    %c0_i32_0 = arith.constant 0 : i32
    %c0_i32_1 = arith.constant 0 : i32
    %c0_i32_2 = arith.constant 0 : i32
    %c0_i32_3 = arith.constant 0 : i32
    return %c0_i32, %c0_i32_0, %c0_i32_1, %c0_i32_2 : i32, i32, i32, i32
  }
  func.func @transform_2(%arg0: i32) -> (i32, i32) {
    %c0_i32 = arith.constant 0 : i32
    %c0_i32_0 = arith.constant 0 : i32
    %c0_i32_1 = arith.constant 0 : i32
    return %c0_i32, %c0_i32_0 : i32, i32
  }
  func.func @transform_3(%arg0: i32) -> (i32, i32, i32) {
    %c0_i32 = arith.constant 0 : i32
    %c0_i32_0 = arith.constant 0 : i32
    %c0_i32_1 = arith.constant 0 : i32
    return %arg0, %c0_i32, %c0_i32_0 : i32, i32, i32
  }
}

module attributes {stable_mosaic.version = 11 : i64} {
  func.func @_maxpool_kernel(%arg0: i32, %arg1: memref<1x9x9x512xbf16, #tpu.memory_space<vmem>>, %arg2: memref<1x8x8x128xbf16, #tpu.memory_space<vmem>>) attributes {dimension_semantics = [#tpu.dimension_semantics<parallel>], iteration_bounds = array<i64: 2>, scalar_prefetch = 0 : i64, scratch_operands = 0 : i64, tpu.core_type = #tpu.core_type<tc>, window_params = [{transform_indices = @transform_0, window_bounds = array<i64: 1, 9, 9, 512>}, {transform_indices = @transform_1, window_bounds = array<i64: 1, 8, 8, 128>}]} {
    %c0 = arith.constant 0 : index
    %c0_0 = arith.constant 0 : index
    %c0_1 = arith.constant 0 : index
    %c0_2 = arith.constant 0 : index
    %0 = vector.load %arg1[%c0, %c0_0, %c0_1, %c0_2] : memref<1x9x9x512xbf16, #tpu.memory_space<vmem>>, vector<1x9x9x512xbf16>
    %1 = vector.shape_cast %0 : vector<1x9x9x512xbf16> to vector<9x9x512xbf16>
    %2 = vector.extract_strided_slice %1 {offsets = [0, 0, 0], sizes = [9, 8, 512], strides = [1, 1, 1]} : vector<9x9x512xbf16> to vector<9x8x512xbf16>
    %3 = vector.extract_strided_slice %1 {offsets = [0, 1, 0], sizes = [9, 8, 512], strides = [1, 1, 1]} : vector<9x9x512xbf16> to vector<9x8x512xbf16>
    %4 = vector.extract_strided_slice %2 {offsets = [0, 0, 0], sizes = [8, 8, 128], strides = [1, 1, 1]} : vector<9x8x512xbf16> to vector<8x8x128xbf16>
    %5 = vector.extract_strided_slice %2 {offsets = [0, 0, 128], sizes = [8, 8, 128], strides = [1, 1, 1]} : vector<9x8x512xbf16> to vector<8x8x128xbf16>
    %6 = arith.maximumf %4, %5 : vector<8x8x128xbf16>
    %7 = vector.extract_strided_slice %2 {offsets = [0, 0, 256], sizes = [8, 8, 128], strides = [1, 1, 1]} : vector<9x8x512xbf16> to vector<8x8x128xbf16>
    %8 = arith.maximumf %6, %7 : vector<8x8x128xbf16>
    %9 = vector.extract_strided_slice %2 {offsets = [0, 0, 384], sizes = [8, 8, 128], strides = [1, 1, 1]} : vector<9x8x512xbf16> to vector<8x8x128xbf16>
    %10 = arith.maximumf %8, %9 : vector<8x8x128xbf16>
    %11 = vector.extract_strided_slice %3 {offsets = [0, 0, 0], sizes = [8, 8, 128], strides = [1, 1, 1]} : vector<9x8x512xbf16> to vector<8x8x128xbf16>
    %12 = arith.maximumf %10, %11 : vector<8x8x128xbf16>
    %13 = vector.extract_strided_slice %3 {offsets = [0, 0, 256], sizes = [8, 8, 128], strides = [1, 1, 1]} : vector<9x8x512xbf16> to vector<8x8x128xbf16>
    %14 = arith.maximumf %12, %13 : vector<8x8x128xbf16>
    %15 = vector.extract_strided_slice %2 {offsets = [1, 0, 0], sizes = [8, 8, 128], strides = [1, 1, 1]} : vector<9x8x512xbf16> to vector<8x8x128xbf16>
    %16 = arith.maximumf %14, %15 : vector<8x8x128xbf16>
    %17 = vector.extract_strided_slice %2 {offsets = [1, 0, 128], sizes = [8, 8, 128], strides = [1, 1, 1]} : vector<9x8x512xbf16> to vector<8x8x128xbf16>
    %18 = arith.maximumf %16, %17 : vector<8x8x128xbf16>
    %19 = vector.extract_strided_slice %3 {offsets = [1, 0, 0], sizes = [8, 8, 128], strides = [1, 1, 1]} : vector<9x8x512xbf16> to vector<8x8x128xbf16>
    %20 = arith.maximumf %18, %19 : vector<8x8x128xbf16>
    %c0_3 = arith.constant 0 : index
    %c0_4 = arith.constant 0 : index
    %c0_5 = arith.constant 0 : index
    %c0_6 = arith.constant 0 : index
    %21 = vector.load %arg2[%c0_3, %c0_4, %c0_5, %c0_6] : memref<1x8x8x128xbf16, #tpu.memory_space<vmem>>, vector<1x8x8x128xbf16>
    %22 = vector.shape_cast %21 : vector<1x8x8x128xbf16> to vector<8x8x128xbf16>
    %23 = vector.shape_cast %20 : vector<8x8x128xbf16> to vector<1x8x8x128xbf16>
    tpu.vector_store %arg2[%c0_3, %c0_4, %c0_5, %c0_6], %23 {strides = array<i32>} : memref<1x8x8x128xbf16, #tpu.memory_space<vmem>>, vector<1x8x8x128xbf16>,
    return
  }
  func.func @transform_0(%arg0: i32) -> (i32, i32, i32, i32) {
    %c0_i32 = arith.constant 0 : i32
    %c0_i32_0 = arith.constant 0 : i32
    %c0_i32_1 = arith.constant 0 : i32
    %c0_i32_2 = arith.constant 0 : i32
    return %arg0, %c0_i32, %c0_i32_0, %c0_i32_1 : i32, i32, i32, i32
  }
  func.func @transform_1(%arg0: i32) -> (i32, i32, i32, i32) {
    %c0_i32 = arith.constant 0 : i32
    %c0_i32_0 = arith.constant 0 : i32
    %c0_i32_1 = arith.constant 0 : i32
    %c0_i32_2 = arith.constant 0 : i32
    return %arg0, %c0_i32, %c0_i32_0, %c0_i32_1 : i32, i32, i32, i32
  }
}

module attributes {stable_mosaic.version = 11 : i64} {
  func.func @_dual1x1_pool_kernel(%arg0: i32, %arg1: memref<16x512xbf16, #tpu.memory_space<vmem>>, %arg2: memref<128x128xbf16, #tpu.memory_space<vmem>>, %arg3: memref<1x128xf32, #tpu.memory_space<vmem>>, %arg4: memref<128x128xbf16, #tpu.memory_space<vmem>>, %arg5: memref<1x128xf32, #tpu.memory_space<vmem>>, %arg6: memref<16x128xbf16, #tpu.memory_space<vmem>>) attributes {dimension_semantics = [#tpu.dimension_semantics<parallel>], iteration_bounds = array<i64: 2>, scalar_prefetch = 0 : i64, scratch_operands = 0 : i64, tpu.core_type = #tpu.core_type<tc>, window_params = [{transform_indices = @transform_0, window_bounds = array<i64: 16, 512>}, {pipeline_mode = #tpu.pipeline_mode<synchronous>, transform_indices = @transform_1, window_bounds = array<i64: 128, 128>}, {pipeline_mode = #tpu.pipeline_mode<synchronous>, transform_indices = @transform_2, window_bounds = array<i64: 1, 128>}, {pipeline_mode = #tpu.pipeline_mode<synchronous>, transform_indices = @transform_3, window_bounds = array<i64: 128, 128>}, {pipeline_mode = #tpu.pipeline_mode<synchronous>, transform_indices = @transform_4, window_bounds = array<i64: 1, 128>}, {transform_indices = @transform_5, window_bounds = array<i64: 16, 128>}]} {
    %c0 = arith.constant 0 : index
    %c0_0 = arith.constant 0 : index
    %0 = vector.load %arg1[%c0, %c0_0] : memref<16x512xbf16, #tpu.memory_space<vmem>>, vector<16x128xbf16>
    %c0_1 = arith.constant 0 : index
    %c0_2 = arith.constant 0 : index
    %1 = vector.load %arg2[%c0_1, %c0_2] : memref<128x128xbf16, #tpu.memory_space<vmem>>, vector<128x128xbf16>
    %cst = arith.constant dense<0.000000e+00> : vector<16x128xf32>
    %2 = tpu.matmul %0, %1, %cst {dimension_numbers = #tpu.dot_dimension_numbers<[1], [0], [0], [1], [0, 0, 1, 1], [], []>} : vector<16x128xbf16>, vector<128x128xbf16>, vector<16x128xf32> -> vector<16x128xf32>
    %c0_3 = arith.constant 0 : index
    %c0_4 = arith.constant 0 : index
    %3 = vector.load %arg3[%c0_3, %c0_4] : memref<1x128xf32, #tpu.memory_space<vmem>>, vector<1x128xf32>
    %4 = vector.broadcast %3 : vector<1x128xf32> to vector<16x128xf32>
    %5 = arith.addf %2, %4 : vector<16x128xf32>
    %cst_5 = arith.constant 0.000000e+00 : f32
    %6 = vector.broadcast %cst_5 : f32 to vector<16x128xf32>
    %7 = arith.maximumf %5, %6 : vector<16x128xf32>
    %8 = arith.truncf %7 : vector<16x128xf32> to vector<16x128xbf16>
    %c0_6 = arith.constant 0 : index
    %c0_7 = arith.constant 0 : index
    %9 = vector.load %arg4[%c0_6, %c0_7] : memref<128x128xbf16, #tpu.memory_space<vmem>>, vector<128x128xbf16>
    %cst_8 = arith.constant dense<0.000000e+00> : vector<16x128xf32>
    %10 = tpu.matmul %8, %9, %cst_8 {dimension_numbers = #tpu.dot_dimension_numbers<[1], [0], [0], [1], [0, 0, 1, 1], [], []>} : vector<16x128xbf16>, vector<128x128xbf16>, vector<16x128xf32> -> vector<16x128xf32>
    %c0_9 = arith.constant 0 : index
    %c0_10 = arith.constant 0 : index
    %11 = vector.load %arg5[%c0_9, %c0_10] : memref<1x128xf32, #tpu.memory_space<vmem>>, vector<1x128xf32>
    %12 = vector.broadcast %11 : vector<1x128xf32> to vector<16x128xf32>
    %13 = arith.addf %10, %12 : vector<16x128xf32>
    %cst_11 = arith.constant 0.000000e+00 : f32
    %14 = vector.broadcast %cst_11 : f32 to vector<16x128xf32>
    %15 = arith.maximumf %13, %14 : vector<16x128xf32>
    %c0_12 = arith.constant 0 : index
    %c128 = arith.constant 128 : index
    %16 = vector.load %arg1[%c0_12, %c128] : memref<16x512xbf16, #tpu.memory_space<vmem>>, vector<16x128xbf16>
    %c0_13 = arith.constant 0 : index
    %c0_14 = arith.constant 0 : index
    %17 = vector.load %arg2[%c0_13, %c0_14] : memref<128x128xbf16, #tpu.memory_space<vmem>>, vector<128x128xbf16>
    %cst_15 = arith.constant dense<0.000000e+00> : vector<16x128xf32>
    %18 = tpu.matmul %16, %17, %cst_15 {dimension_numbers = #tpu.dot_dimension_numbers<[1], [0], [0], [1], [0, 0, 1, 1], [], []>} : vector<16x128xbf16>, vector<128x128xbf16>, vector<16x128xf32> -> vector<16x128xf32>
    %c0_16 = arith.constant 0 : index
    %c0_17 = arith.constant 0 : index
    %19 = vector.load %arg3[%c0_16, %c0_17] : memref<1x128xf32, #tpu.memory_space<vmem>>, vector<1x128xf32>
    %20 = vector.broadcast %19 : vector<1x128xf32> to vector<16x128xf32>
    %21 = arith.addf %18, %20 : vector<16x128xf32>
    %cst_18 = arith.constant 0.000000e+00 : f32
    %22 = vector.broadcast %cst_18 : f32 to vector<16x128xf32>
    %23 = arith.maximumf %21, %22 : vector<16x128xf32>
    %24 = arith.truncf %23 : vector<16x128xf32> to vector<16x128xbf16>
    %c0_19 = arith.constant 0 : index
    %c0_20 = arith.constant 0 : index
    %25 = vector.load %arg4[%c0_19, %c0_20] : memref<128x128xbf16, #tpu.memory_space<vmem>>, vector<128x128xbf16>
    %cst_21 = arith.constant dense<0.000000e+00> : vector<16x128xf32>
    %26 = tpu.matmul %24, %25, %cst_21 {dimension_numbers = #tpu.dot_dimension_numbers<[1], [0], [0], [1], [0, 0, 1, 1], [], []>} : vector<16x128xbf16>, vector<128x128xbf16>, vector<16x128xf32> -> vector<16x128xf32>
    %c0_22 = arith.constant 0 : index
    %c0_23 = arith.constant 0 : index
    %27 = vector.load %arg5[%c0_22, %c0_23] : memref<1x128xf32, #tpu.memory_space<vmem>>, vector<1x128xf32>
    %28 = vector.broadcast %27 : vector<1x128xf32> to vector<16x128xf32>
    %29 = arith.addf %26, %28 : vector<16x128xf32>
    %cst_24 = arith.constant 0.000000e+00 : f32
    %30 = vector.broadcast %cst_24 : f32 to vector<16x128xf32>
    %31 = arith.maximumf %29, %30 : vector<16x128xf32>
    %32 = arith.addf %15, %31 : vector<16x128xf32>
    %c0_25 = arith.constant 0 : index
    %c256 = arith.constant 256 : index
    %33 = vector.load %arg1[%c0_25, %c256] : memref<16x512xbf16, #tpu.memory_space<vmem>>, vector<16x128xbf16>
    %c0_26 = arith.constant 0 : index
    %c0_27 = arith.constant 0 : index
    %34 = vector.load %arg2[%c0_26, %c0_27] : memref<128x128xbf16, #tpu.memory_space<vmem>>, vector<128x128xbf16>
    %cst_28 = arith.constant dense<0.000000e+00> : vector<16x128xf32>
    %35 = tpu.matmul %33, %34, %cst_28 {dimension_numbers = #tpu.dot_dimension_numbers<[1], [0], [0], [1], [0, 0, 1, 1], [], []>} : vector<16x128xbf16>, vector<128x128xbf16>, vector<16x128xf32> -> vector<16x128xf32>
    %c0_29 = arith.constant 0 : index
    %c0_30 = arith.constant 0 : index
    %36 = vector.load %arg3[%c0_29, %c0_30] : memref<1x128xf32, #tpu.memory_space<vmem>>, vector<1x128xf32>
    %37 = vector.broadcast %36 : vector<1x128xf32> to vector<16x128xf32>
    %38 = arith.addf %35, %37 : vector<16x128xf32>
    %cst_31 = arith.constant 0.000000e+00 : f32
    %39 = vector.broadcast %cst_31 : f32 to vector<16x128xf32>
    %40 = arith.maximumf %38, %39 : vector<16x128xf32>
    %41 = arith.truncf %40 : vector<16x128xf32> to vector<16x128xbf16>
    %c0_32 = arith.constant 0 : index
    %c0_33 = arith.constant 0 : index
    %42 = vector.load %arg4[%c0_32, %c0_33] : memref<128x128xbf16, #tpu.memory_space<vmem>>, vector<128x128xbf16>
    %cst_34 = arith.constant dense<0.000000e+00> : vector<16x128xf32>
    %43 = tpu.matmul %41, %42, %cst_34 {dimension_numbers = #tpu.dot_dimension_numbers<[1], [0], [0], [1], [0, 0, 1, 1], [], []>} : vector<16x128xbf16>, vector<128x128xbf16>, vector<16x128xf32> -> vector<16x128xf32>
    %c0_35 = arith.constant 0 : index
    %c0_36 = arith.constant 0 : index
    %44 = vector.load %arg5[%c0_35, %c0_36] : memref<1x128xf32, #tpu.memory_space<vmem>>, vector<1x128xf32>
    %45 = vector.broadcast %44 : vector<1x128xf32> to vector<16x128xf32>
    %46 = arith.addf %43, %45 : vector<16x128xf32>
    %cst_37 = arith.constant 0.000000e+00 : f32
    %47 = vector.broadcast %cst_37 : f32 to vector<16x128xf32>
    %48 = arith.maximumf %46, %47 : vector<16x128xf32>
    %49 = arith.addf %32, %48 : vector<16x128xf32>
    %c0_38 = arith.constant 0 : index
    %c384 = arith.constant 384 : index
    %50 = vector.load %arg1[%c0_38, %c384] : memref<16x512xbf16, #tpu.memory_space<vmem>>, vector<16x128xbf16>
    %c0_39 = arith.constant 0 : index
    %c0_40 = arith.constant 0 : index
    %51 = vector.load %arg2[%c0_39, %c0_40] : memref<128x128xbf16, #tpu.memory_space<vmem>>, vector<128x128xbf16>
    %cst_41 = arith.constant dense<0.000000e+00> : vector<16x128xf32>
    %52 = tpu.matmul %50, %51, %cst_41 {dimension_numbers = #tpu.dot_dimension_numbers<[1], [0], [0], [1], [0, 0, 1, 1], [], []>} : vector<16x128xbf16>, vector<128x128xbf16>, vector<16x128xf32> -> vector<16x128xf32>
    %c0_42 = arith.constant 0 : index
    %c0_43 = arith.constant 0 : index
    %53 = vector.load %arg3[%c0_42, %c0_43] : memref<1x128xf32, #tpu.memory_space<vmem>>, vector<1x128xf32>
    %54 = vector.broadcast %53 : vector<1x128xf32> to vector<16x128xf32>
    %55 = arith.addf %52, %54 : vector<16x128xf32>
    %cst_44 = arith.constant 0.000000e+00 : f32
    %56 = vector.broadcast %cst_44 : f32 to vector<16x128xf32>
    %57 = arith.maximumf %55, %56 : vector<16x128xf32>
    %58 = arith.truncf %57 : vector<16x128xf32> to vector<16x128xbf16>
    %c0_45 = arith.constant 0 : index
    %c0_46 = arith.constant 0 : index
    %59 = vector.load %arg4[%c0_45, %c0_46] : memref<128x128xbf16, #tpu.memory_space<vmem>>, vector<128x128xbf16>
    %cst_47 = arith.constant dense<0.000000e+00> : vector<16x128xf32>
    %60 = tpu.matmul %58, %59, %cst_47 {dimension_numbers = #tpu.dot_dimension_numbers<[1], [0], [0], [1], [0, 0, 1, 1], [], []>} : vector<16x128xbf16>, vector<128x128xbf16>, vector<16x128xf32> -> vector<16x128xf32>
    %c0_48 = arith.constant 0 : index
    %c0_49 = arith.constant 0 : index
    %61 = vector.load %arg5[%c0_48, %c0_49] : memref<1x128xf32, #tpu.memory_space<vmem>>, vector<1x128xf32>
    %62 = vector.broadcast %61 : vector<1x128xf32> to vector<16x128xf32>
    %63 = arith.addf %60, %62 : vector<16x128xf32>
    %cst_50 = arith.constant 0.000000e+00 : f32
    %64 = vector.broadcast %cst_50 : f32 to vector<16x128xf32>
    %65 = arith.maximumf %63, %64 : vector<16x128xf32>
    %66 = arith.addf %49, %65 : vector<16x128xf32>
    %cst_51 = arith.constant 2.500000e-01 : f32
    %67 = vector.broadcast %cst_51 : f32 to vector<16x128xf32>
    %68 = arith.mulf %66, %67 : vector<16x128xf32>
    %69 = arith.truncf %68 : vector<16x128xf32> to vector<16x128xbf16>
    %c0_52 = arith.constant 0 : index
    %c0_53 = arith.constant 0 : index
    %70 = vector.load %arg6[%c0_52, %c0_53] : memref<16x128xbf16, #tpu.memory_space<vmem>>, vector<16x128xbf16>
    tpu.vector_store %arg6[%c0_52, %c0_53], %69 {strides = array<i32>} : memref<16x128xbf16, #tpu.memory_space<vmem>>, vector<16x128xbf16>,
    return
  }
  func.func @transform_0(%arg0: i32) -> (i32, i32) {
    %c0_i32 = arith.constant 0 : i32
    %c0_i32_0 = arith.constant 0 : i32
    return %arg0, %c0_i32 : i32, i32
  }
  func.func @transform_1(%arg0: i32) -> (i32, i32) {
    %c0_i32 = arith.constant 0 : i32
    %c0_i32_0 = arith.constant 0 : i32
    %c0_i32_1 = arith.constant 0 : i32
    return %c0_i32, %c0_i32_0 : i32, i32
  }
  func.func @transform_2(%arg0: i32) -> (i32, i32) {
    %c0_i32 = arith.constant 0 : i32
    %c0_i32_0 = arith.constant 0 : i32
    %c0_i32_1 = arith.constant 0 : i32
    return %c0_i32, %c0_i32_0 : i32, i32
  }
  func.func @transform_3(%arg0: i32) -> (i32, i32) {
    %c0_i32 = arith.constant 0 : i32
    %c0_i32_0 = arith.constant 0 : i32
    %c0_i32_1 = arith.constant 0 : i32
    return %c0_i32, %c0_i32_0 : i32, i32
  }
  func.func @transform_4(%arg0: i32) -> (i32, i32) {
    %c0_i32 = arith.constant 0 : i32
    %c0_i32_0 = arith.constant 0 : i32
    %c0_i32_1 = arith.constant 0 : i32
    return %c0_i32, %c0_i32_0 : i32, i32
  }
  func.func @transform_5(%arg0: i32) -> (i32, i32) {
    %c0_i32 = arith.constant 0 : i32
    %c0_i32_0 = arith.constant 0 : i32
    return %arg0, %c0_i32 : i32, i32
  }
}

module attributes {stable_mosaic.version = 11 : i64} {
  func.func @_dual1x1_pool_kernel(%arg0: i32, %arg1: memref<8x512xbf16, #tpu.memory_space<vmem>>, %arg2: memref<128x128xbf16, #tpu.memory_space<vmem>>, %arg3: memref<1x128xf32, #tpu.memory_space<vmem>>, %arg4: memref<128x128xbf16, #tpu.memory_space<vmem>>, %arg5: memref<1x128xf32, #tpu.memory_space<vmem>>, %arg6: memref<8x128xbf16, #tpu.memory_space<vmem>>) attributes {dimension_semantics = [#tpu.dimension_semantics<parallel>], iteration_bounds = array<i64: 1>, scalar_prefetch = 0 : i64, scratch_operands = 0 : i64, tpu.core_type = #tpu.core_type<tc>, window_params = [{transform_indices = @transform_0, window_bounds = array<i64: 8, 512>}, {pipeline_mode = #tpu.pipeline_mode<synchronous>, transform_indices = @transform_1, window_bounds = array<i64: 128, 128>}, {pipeline_mode = #tpu.pipeline_mode<synchronous>, transform_indices = @transform_2, window_bounds = array<i64: 1, 128>}, {pipeline_mode = #tpu.pipeline_mode<synchronous>, transform_indices = @transform_3, window_bounds = array<i64: 128, 128>}, {pipeline_mode = #tpu.pipeline_mode<synchronous>, transform_indices = @transform_4, window_bounds = array<i64: 1, 128>}, {transform_indices = @transform_5, window_bounds = array<i64: 8, 128>}]} {
    %c0 = arith.constant 0 : index
    %c0_0 = arith.constant 0 : index
    %0 = vector.load %arg1[%c0, %c0_0] : memref<8x512xbf16, #tpu.memory_space<vmem>>, vector<8x128xbf16>
    %c0_1 = arith.constant 0 : index
    %c0_2 = arith.constant 0 : index
    %1 = vector.load %arg2[%c0_1, %c0_2] : memref<128x128xbf16, #tpu.memory_space<vmem>>, vector<128x128xbf16>
    %cst = arith.constant dense<0.000000e+00> : vector<8x128xf32>
    %2 = tpu.matmul %0, %1, %cst {dimension_numbers = #tpu.dot_dimension_numbers<[1], [0], [0], [1], [0, 0, 1, 1], [], []>} : vector<8x128xbf16>, vector<128x128xbf16>, vector<8x128xf32> -> vector<8x128xf32>
    %c0_3 = arith.constant 0 : index
    %c0_4 = arith.constant 0 : index
    %3 = vector.load %arg3[%c0_3, %c0_4] : memref<1x128xf32, #tpu.memory_space<vmem>>, vector<1x128xf32>
    %4 = vector.broadcast %3 : vector<1x128xf32> to vector<8x128xf32>
    %5 = arith.addf %2, %4 : vector<8x128xf32>
    %cst_5 = arith.constant 0.000000e+00 : f32
    %6 = vector.broadcast %cst_5 : f32 to vector<8x128xf32>
    %7 = arith.maximumf %5, %6 : vector<8x128xf32>
    %8 = arith.truncf %7 : vector<8x128xf32> to vector<8x128xbf16>
    %c0_6 = arith.constant 0 : index
    %c0_7 = arith.constant 0 : index
    %9 = vector.load %arg4[%c0_6, %c0_7] : memref<128x128xbf16, #tpu.memory_space<vmem>>, vector<128x128xbf16>
    %cst_8 = arith.constant dense<0.000000e+00> : vector<8x128xf32>
    %10 = tpu.matmul %8, %9, %cst_8 {dimension_numbers = #tpu.dot_dimension_numbers<[1], [0], [0], [1], [0, 0, 1, 1], [], []>} : vector<8x128xbf16>, vector<128x128xbf16>, vector<8x128xf32> -> vector<8x128xf32>
    %c0_9 = arith.constant 0 : index
    %c0_10 = arith.constant 0 : index
    %11 = vector.load %arg5[%c0_9, %c0_10] : memref<1x128xf32, #tpu.memory_space<vmem>>, vector<1x128xf32>
    %12 = vector.broadcast %11 : vector<1x128xf32> to vector<8x128xf32>
    %13 = arith.addf %10, %12 : vector<8x128xf32>
    %cst_11 = arith.constant 0.000000e+00 : f32
    %14 = vector.broadcast %cst_11 : f32 to vector<8x128xf32>
    %15 = arith.maximumf %13, %14 : vector<8x128xf32>
    %c0_12 = arith.constant 0 : index
    %c128 = arith.constant 128 : index
    %16 = vector.load %arg1[%c0_12, %c128] : memref<8x512xbf16, #tpu.memory_space<vmem>>, vector<8x128xbf16>
    %c0_13 = arith.constant 0 : index
    %c0_14 = arith.constant 0 : index
    %17 = vector.load %arg2[%c0_13, %c0_14] : memref<128x128xbf16, #tpu.memory_space<vmem>>, vector<128x128xbf16>
    %cst_15 = arith.constant dense<0.000000e+00> : vector<8x128xf32>
    %18 = tpu.matmul %16, %17, %cst_15 {dimension_numbers = #tpu.dot_dimension_numbers<[1], [0], [0], [1], [0, 0, 1, 1], [], []>} : vector<8x128xbf16>, vector<128x128xbf16>, vector<8x128xf32> -> vector<8x128xf32>
    %c0_16 = arith.constant 0 : index
    %c0_17 = arith.constant 0 : index
    %19 = vector.load %arg3[%c0_16, %c0_17] : memref<1x128xf32, #tpu.memory_space<vmem>>, vector<1x128xf32>
    %20 = vector.broadcast %19 : vector<1x128xf32> to vector<8x128xf32>
    %21 = arith.addf %18, %20 : vector<8x128xf32>
    %cst_18 = arith.constant 0.000000e+00 : f32
    %22 = vector.broadcast %cst_18 : f32 to vector<8x128xf32>
    %23 = arith.maximumf %21, %22 : vector<8x128xf32>
    %24 = arith.truncf %23 : vector<8x128xf32> to vector<8x128xbf16>
    %c0_19 = arith.constant 0 : index
    %c0_20 = arith.constant 0 : index
    %25 = vector.load %arg4[%c0_19, %c0_20] : memref<128x128xbf16, #tpu.memory_space<vmem>>, vector<128x128xbf16>
    %cst_21 = arith.constant dense<0.000000e+00> : vector<8x128xf32>
    %26 = tpu.matmul %24, %25, %cst_21 {dimension_numbers = #tpu.dot_dimension_numbers<[1], [0], [0], [1], [0, 0, 1, 1], [], []>} : vector<8x128xbf16>, vector<128x128xbf16>, vector<8x128xf32> -> vector<8x128xf32>
    %c0_22 = arith.constant 0 : index
    %c0_23 = arith.constant 0 : index
    %27 = vector.load %arg5[%c0_22, %c0_23] : memref<1x128xf32, #tpu.memory_space<vmem>>, vector<1x128xf32>
    %28 = vector.broadcast %27 : vector<1x128xf32> to vector<8x128xf32>
    %29 = arith.addf %26, %28 : vector<8x128xf32>
    %cst_24 = arith.constant 0.000000e+00 : f32
    %30 = vector.broadcast %cst_24 : f32 to vector<8x128xf32>
    %31 = arith.maximumf %29, %30 : vector<8x128xf32>
    %32 = arith.addf %15, %31 : vector<8x128xf32>
    %c0_25 = arith.constant 0 : index
    %c256 = arith.constant 256 : index
    %33 = vector.load %arg1[%c0_25, %c256] : memref<8x512xbf16, #tpu.memory_space<vmem>>, vector<8x128xbf16>
    %c0_26 = arith.constant 0 : index
    %c0_27 = arith.constant 0 : index
    %34 = vector.load %arg2[%c0_26, %c0_27] : memref<128x128xbf16, #tpu.memory_space<vmem>>, vector<128x128xbf16>
    %cst_28 = arith.constant dense<0.000000e+00> : vector<8x128xf32>
    %35 = tpu.matmul %33, %34, %cst_28 {dimension_numbers = #tpu.dot_dimension_numbers<[1], [0], [0], [1], [0, 0, 1, 1], [], []>} : vector<8x128xbf16>, vector<128x128xbf16>, vector<8x128xf32> -> vector<8x128xf32>
    %c0_29 = arith.constant 0 : index
    %c0_30 = arith.constant 0 : index
    %36 = vector.load %arg3[%c0_29, %c0_30] : memref<1x128xf32, #tpu.memory_space<vmem>>, vector<1x128xf32>
    %37 = vector.broadcast %36 : vector<1x128xf32> to vector<8x128xf32>
    %38 = arith.addf %35, %37 : vector<8x128xf32>
    %cst_31 = arith.constant 0.000000e+00 : f32
    %39 = vector.broadcast %cst_31 : f32 to vector<8x128xf32>
    %40 = arith.maximumf %38, %39 : vector<8x128xf32>
    %41 = arith.truncf %40 : vector<8x128xf32> to vector<8x128xbf16>
    %c0_32 = arith.constant 0 : index
    %c0_33 = arith.constant 0 : index
    %42 = vector.load %arg4[%c0_32, %c0_33] : memref<128x128xbf16, #tpu.memory_space<vmem>>, vector<128x128xbf16>
    %cst_34 = arith.constant dense<0.000000e+00> : vector<8x128xf32>
    %43 = tpu.matmul %41, %42, %cst_34 {dimension_numbers = #tpu.dot_dimension_numbers<[1], [0], [0], [1], [0, 0, 1, 1], [], []>} : vector<8x128xbf16>, vector<128x128xbf16>, vector<8x128xf32> -> vector<8x128xf32>
    %c0_35 = arith.constant 0 : index
    %c0_36 = arith.constant 0 : index
    %44 = vector.load %arg5[%c0_35, %c0_36] : memref<1x128xf32, #tpu.memory_space<vmem>>, vector<1x128xf32>
    %45 = vector.broadcast %44 : vector<1x128xf32> to vector<8x128xf32>
    %46 = arith.addf %43, %45 : vector<8x128xf32>
    %cst_37 = arith.constant 0.000000e+00 : f32
    %47 = vector.broadcast %cst_37 : f32 to vector<8x128xf32>
    %48 = arith.maximumf %46, %47 : vector<8x128xf32>
    %49 = arith.addf %32, %48 : vector<8x128xf32>
    %c0_38 = arith.constant 0 : index
    %c384 = arith.constant 384 : index
    %50 = vector.load %arg1[%c0_38, %c384] : memref<8x512xbf16, #tpu.memory_space<vmem>>, vector<8x128xbf16>
    %c0_39 = arith.constant 0 : index
    %c0_40 = arith.constant 0 : index
    %51 = vector.load %arg2[%c0_39, %c0_40] : memref<128x128xbf16, #tpu.memory_space<vmem>>, vector<128x128xbf16>
    %cst_41 = arith.constant dense<0.000000e+00> : vector<8x128xf32>
    %52 = tpu.matmul %50, %51, %cst_41 {dimension_numbers = #tpu.dot_dimension_numbers<[1], [0], [0], [1], [0, 0, 1, 1], [], []>} : vector<8x128xbf16>, vector<128x128xbf16>, vector<8x128xf32> -> vector<8x128xf32>
    %c0_42 = arith.constant 0 : index
    %c0_43 = arith.constant 0 : index
    %53 = vector.load %arg3[%c0_42, %c0_43] : memref<1x128xf32, #tpu.memory_space<vmem>>, vector<1x128xf32>
    %54 = vector.broadcast %53 : vector<1x128xf32> to vector<8x128xf32>
    %55 = arith.addf %52, %54 : vector<8x128xf32>
    %cst_44 = arith.constant 0.000000e+00 : f32
    %56 = vector.broadcast %cst_44 : f32 to vector<8x128xf32>
    %57 = arith.maximumf %55, %56 : vector<8x128xf32>
    %58 = arith.truncf %57 : vector<8x128xf32> to vector<8x128xbf16>
    %c0_45 = arith.constant 0 : index
    %c0_46 = arith.constant 0 : index
    %59 = vector.load %arg4[%c0_45, %c0_46] : memref<128x128xbf16, #tpu.memory_space<vmem>>, vector<128x128xbf16>
    %cst_47 = arith.constant dense<0.000000e+00> : vector<8x128xf32>
    %60 = tpu.matmul %58, %59, %cst_47 {dimension_numbers = #tpu.dot_dimension_numbers<[1], [0], [0], [1], [0, 0, 1, 1], [], []>} : vector<8x128xbf16>, vector<128x128xbf16>, vector<8x128xf32> -> vector<8x128xf32>
    %c0_48 = arith.constant 0 : index
    %c0_49 = arith.constant 0 : index
    %61 = vector.load %arg5[%c0_48, %c0_49] : memref<1x128xf32, #tpu.memory_space<vmem>>, vector<1x128xf32>
    %62 = vector.broadcast %61 : vector<1x128xf32> to vector<8x128xf32>
    %63 = arith.addf %60, %62 : vector<8x128xf32>
    %cst_50 = arith.constant 0.000000e+00 : f32
    %64 = vector.broadcast %cst_50 : f32 to vector<8x128xf32>
    %65 = arith.maximumf %63, %64 : vector<8x128xf32>
    %66 = arith.addf %49, %65 : vector<8x128xf32>
    %cst_51 = arith.constant 2.500000e-01 : f32
    %67 = vector.broadcast %cst_51 : f32 to vector<8x128xf32>
    %68 = arith.mulf %66, %67 : vector<8x128xf32>
    %69 = arith.truncf %68 : vector<8x128xf32> to vector<8x128xbf16>
    %c0_52 = arith.constant 0 : index
    %c0_53 = arith.constant 0 : index
    %70 = vector.load %arg6[%c0_52, %c0_53] : memref<8x128xbf16, #tpu.memory_space<vmem>>, vector<8x128xbf16>
    tpu.vector_store %arg6[%c0_52, %c0_53], %69 {strides = array<i32>} : memref<8x128xbf16, #tpu.memory_space<vmem>>, vector<8x128xbf16>,
    return
  }
  func.func @transform_0(%arg0: i32) -> (i32, i32) {
    %c0_i32 = arith.constant 0 : i32
    %c0_i32_0 = arith.constant 0 : i32
    return %arg0, %c0_i32 : i32, i32
  }
  func.func @transform_1(%arg0: i32) -> (i32, i32) {
    %c0_i32 = arith.constant 0 : i32
    %c0_i32_0 = arith.constant 0 : i32
    %c0_i32_1 = arith.constant 0 : i32
    return %c0_i32, %c0_i32_0 : i32, i32
  }
  func.func @transform_2(%arg0: i32) -> (i32, i32) {
    %c0_i32 = arith.constant 0 : i32
    %c0_i32_0 = arith.constant 0 : i32
    %c0_i32_1 = arith.constant 0 : i32
    return %c0_i32, %c0_i32_0 : i32, i32
  }
  func.func @transform_3(%arg0: i32) -> (i32, i32) {
    %c0_i32 = arith.constant 0 : i32
    %c0_i32_0 = arith.constant 0 : i32
    %c0_i32_1 = arith.constant 0 : i32
    return %c0_i32, %c0_i32_0 : i32, i32
  }
  func.func @transform_4(%arg0: i32) -> (i32, i32) {
    %c0_i32 = arith.constant 0 : i32
    %c0_i32_0 = arith.constant 0 : i32
    %c0_i32_1 = arith.constant 0 : i32
    return %c0_i32, %c0_i32_0 : i32, i32
  }
  func.func @transform_5(%arg0: i32) -> (i32, i32) {
    %c0_i32 = arith.constant 0 : i32
    %c0_i32_0 = arith.constant 0 : i32
    return %arg0, %c0_i32 : i32, i32
  }
}

module attributes {stable_mosaic.version = 11 : i64} {
  func.func @_dual1x1_kernel(%arg0: i32, %arg1: memref<8x128xbf16, #tpu.memory_space<vmem>>, %arg2: memref<128x128xbf16, #tpu.memory_space<vmem>>, %arg3: memref<1x128xf32, #tpu.memory_space<vmem>>, %arg4: memref<128x128xbf16, #tpu.memory_space<vmem>>, %arg5: memref<1x128xf32, #tpu.memory_space<vmem>>, %arg6: memref<8x128xbf16, #tpu.memory_space<vmem>>) attributes {dimension_semantics = [#tpu.dimension_semantics<parallel>], iteration_bounds = array<i64: 1>, scalar_prefetch = 0 : i64, scratch_operands = 0 : i64, tpu.core_type = #tpu.core_type<tc>, window_params = [{transform_indices = @transform_0, window_bounds = array<i64: 8, 128>}, {pipeline_mode = #tpu.pipeline_mode<synchronous>, transform_indices = @transform_1, window_bounds = array<i64: 128, 128>}, {pipeline_mode = #tpu.pipeline_mode<synchronous>, transform_indices = @transform_2, window_bounds = array<i64: 1, 128>}, {pipeline_mode = #tpu.pipeline_mode<synchronous>, transform_indices = @transform_3, window_bounds = array<i64: 128, 128>}, {pipeline_mode = #tpu.pipeline_mode<synchronous>, transform_indices = @transform_4, window_bounds = array<i64: 1, 128>}, {transform_indices = @transform_5, window_bounds = array<i64: 8, 128>}]} {
    %c0 = arith.constant 0 : index
    %c0_0 = arith.constant 0 : index
    %0 = vector.load %arg1[%c0, %c0_0] : memref<8x128xbf16, #tpu.memory_space<vmem>>, vector<8x128xbf16>
    %c0_1 = arith.constant 0 : index
    %c0_2 = arith.constant 0 : index
    %1 = vector.load %arg2[%c0_1, %c0_2] : memref<128x128xbf16, #tpu.memory_space<vmem>>, vector<128x128xbf16>
    %cst = arith.constant dense<0.000000e+00> : vector<8x128xf32>
    %2 = tpu.matmul %0, %1, %cst {dimension_numbers = #tpu.dot_dimension_numbers<[1], [0], [0], [1], [0, 0, 1, 1], [], []>} : vector<8x128xbf16>, vector<128x128xbf16>, vector<8x128xf32> -> vector<8x128xf32>
    %c0_3 = arith.constant 0 : index
    %c0_4 = arith.constant 0 : index
    %3 = vector.load %arg3[%c0_3, %c0_4] : memref<1x128xf32, #tpu.memory_space<vmem>>, vector<1x128xf32>
    %4 = vector.broadcast %3 : vector<1x128xf32> to vector<8x128xf32>
    %5 = arith.addf %2, %4 : vector<8x128xf32>
    %cst_5 = arith.constant 0.000000e+00 : f32
    %6 = vector.broadcast %cst_5 : f32 to vector<8x128xf32>
    %7 = arith.maximumf %5, %6 : vector<8x128xf32>
    %8 = arith.truncf %7 : vector<8x128xf32> to vector<8x128xbf16>
    %c0_6 = arith.constant 0 : index
    %c0_7 = arith.constant 0 : index
    %9 = vector.load %arg4[%c0_6, %c0_7] : memref<128x128xbf16, #tpu.memory_space<vmem>>, vector<128x128xbf16>
    %cst_8 = arith.constant dense<0.000000e+00> : vector<8x128xf32>
    %10 = tpu.matmul %8, %9, %cst_8 {dimension_numbers = #tpu.dot_dimension_numbers<[1], [0], [0], [1], [0, 0, 1, 1], [], []>} : vector<8x128xbf16>, vector<128x128xbf16>, vector<8x128xf32> -> vector<8x128xf32>
    %c0_9 = arith.constant 0 : index
    %c0_10 = arith.constant 0 : index
    %11 = vector.load %arg5[%c0_9, %c0_10] : memref<1x128xf32, #tpu.memory_space<vmem>>, vector<1x128xf32>
    %12 = vector.broadcast %11 : vector<1x128xf32> to vector<8x128xf32>
    %13 = arith.addf %10, %12 : vector<8x128xf32>
    %cst_11 = arith.constant 0.000000e+00 : f32
    %14 = vector.broadcast %cst_11 : f32 to vector<8x128xf32>
    %15 = arith.maximumf %13, %14 : vector<8x128xf32>
    %16 = arith.truncf %15 : vector<8x128xf32> to vector<8x128xbf16>
    %c0_12 = arith.constant 0 : index
    %c0_13 = arith.constant 0 : index
    %17 = vector.load %arg6[%c0_12, %c0_13] : memref<8x128xbf16, #tpu.memory_space<vmem>>, vector<8x128xbf16>
    tpu.vector_store %arg6[%c0_12, %c0_13], %16 {strides = array<i32>} : memref<8x128xbf16, #tpu.memory_space<vmem>>, vector<8x128xbf16>,
    return
  }
  func.func @transform_0(%arg0: i32) -> (i32, i32) {
    %c0_i32 = arith.constant 0 : i32
    %c0_i32_0 = arith.constant 0 : i32
    return %arg0, %c0_i32 : i32, i32
  }
  func.func @transform_1(%arg0: i32) -> (i32, i32) {
    %c0_i32 = arith.constant 0 : i32
    %c0_i32_0 = arith.constant 0 : i32
    %c0_i32_1 = arith.constant 0 : i32
    return %c0_i32, %c0_i32_0 : i32, i32
  }
  func.func @transform_2(%arg0: i32) -> (i32, i32) {
    %c0_i32 = arith.constant 0 : i32
    %c0_i32_0 = arith.constant 0 : i32
    %c0_i32_1 = arith.constant 0 : i32
    return %c0_i32, %c0_i32_0 : i32, i32
  }
  func.func @transform_3(%arg0: i32) -> (i32, i32) {
    %c0_i32 = arith.constant 0 : i32
    %c0_i32_0 = arith.constant 0 : i32
    %c0_i32_1 = arith.constant 0 : i32
    return %c0_i32, %c0_i32_0 : i32, i32
  }
  func.func @transform_4(%arg0: i32) -> (i32, i32) {
    %c0_i32 = arith.constant 0 : i32
    %c0_i32_0 = arith.constant 0 : i32
    %c0_i32_1 = arith.constant 0 : i32
    return %c0_i32, %c0_i32_0 : i32, i32
  }
  func.func @transform_5(%arg0: i32) -> (i32, i32) {
    %c0_i32 = arith.constant 0 : i32
    %c0_i32_0 = arith.constant 0 : i32
    return %arg0, %c0_i32 : i32, i32
  }
}

module attributes {stable_mosaic.version = 11 : i64} {
  func.func @_head_kernel(%arg0: memref<2x4x128xbf16, #tpu.memory_space<vmem>>, %arg1: memref<128x128xbf16, #tpu.memory_space<vmem>>, %arg2: memref<1x128xf32, #tpu.memory_space<vmem>>, %arg3: memref<128x128xbf16, #tpu.memory_space<vmem>>, %arg4: memref<1x128xf32, #tpu.memory_space<vmem>>, %arg5: memref<2x128xf32, #tpu.memory_space<vmem>>) attributes {dimension_semantics = [], scalar_prefetch = 0 : i64, scratch_operands = 0 : i64, tpu.core_type = #tpu.core_type<tc>} {
    %c0 = arith.constant 0 : index
    %c0_0 = arith.constant 0 : index
    %c0_1 = arith.constant 0 : index
    %0 = vector.load %arg0[%c0, %c0_0, %c0_1] : memref<2x4x128xbf16, #tpu.memory_space<vmem>>, vector<2x4x128xbf16>
    %1 = arith.extf %0 : vector<2x4x128xbf16> to vector<2x4x128xf32>
    %cst = arith.constant dense<0.000000e+00> : vector<2x128xf32>
    %2 = vector.multi_reduction <add>, %1, %cst [1] : vector<2x4x128xf32> to vector<2x128xf32>
    %cst_2 = arith.constant 2.500000e-01 : f32
    %3 = vector.broadcast %cst_2 : f32 to vector<2x128xf32>
    %4 = arith.mulf %2, %3 : vector<2x128xf32>
    %5 = arith.truncf %4 : vector<2x128xf32> to vector<2x128xbf16>
    %c0_3 = arith.constant 0 : index
    %c0_4 = arith.constant 0 : index
    %6 = vector.load %arg1[%c0_3, %c0_4] : memref<128x128xbf16, #tpu.memory_space<vmem>>, vector<128x128xbf16>
    %cst_5 = arith.constant dense<0.000000e+00> : vector<2x128xf32>
    %7 = tpu.matmul %5, %6, %cst_5 {dimension_numbers = #tpu.dot_dimension_numbers<[1], [0], [0], [1], [0, 0, 1, 1], [], []>} : vector<2x128xbf16>, vector<128x128xbf16>, vector<2x128xf32> -> vector<2x128xf32>
    %c0_6 = arith.constant 0 : index
    %c0_7 = arith.constant 0 : index
    %8 = vector.load %arg2[%c0_6, %c0_7] : memref<1x128xf32, #tpu.memory_space<vmem>>, vector<1x128xf32>
    %9 = vector.broadcast %8 : vector<1x128xf32> to vector<2x128xf32>
    %10 = arith.addf %7, %9 : vector<2x128xf32>
    %cst_8 = arith.constant 0.000000e+00 : f32
    %11 = vector.broadcast %cst_8 : f32 to vector<2x128xf32>
    %12 = arith.maximumf %10, %11 : vector<2x128xf32>
    %13 = arith.truncf %12 : vector<2x128xf32> to vector<2x128xbf16>
    %c0_9 = arith.constant 0 : index
    %c0_10 = arith.constant 0 : index
    %14 = vector.load %arg3[%c0_9, %c0_10] : memref<128x128xbf16, #tpu.memory_space<vmem>>, vector<128x128xbf16>
    %cst_11 = arith.constant dense<0.000000e+00> : vector<2x128xf32>
    %15 = tpu.matmul %13, %14, %cst_11 {dimension_numbers = #tpu.dot_dimension_numbers<[1], [0], [0], [1], [0, 0, 1, 1], [], []>} : vector<2x128xbf16>, vector<128x128xbf16>, vector<2x128xf32> -> vector<2x128xf32>
    %c0_12 = arith.constant 0 : index
    %c0_13 = arith.constant 0 : index
    %16 = vector.load %arg4[%c0_12, %c0_13] : memref<1x128xf32, #tpu.memory_space<vmem>>, vector<1x128xf32>
    %17 = vector.broadcast %16 : vector<1x128xf32> to vector<2x128xf32>
    %18 = arith.addf %15, %17 : vector<2x128xf32>
    %c0_14 = arith.constant 0 : index
    %c0_15 = arith.constant 0 : index
    %19 = vector.load %arg5[%c0_14, %c0_15] : memref<2x128xf32, #tpu.memory_space<vmem>>, vector<2x128xf32>
    tpu.vector_store %arg5[%c0_14, %c0_15], %18 {strides = array<i32>} : memref<2x128xf32, #tpu.memory_space<vmem>>, vector<2x128xf32>,
    return
  }
}

</mosaic_0001>

<llo_original>
// kernel: osnet_forward.6
$region0: #{osnet_forward.6}
  #allocation0 [shape = 'u32[]', space=smem, size = 0x4, offset = 0x4, fixed_abs, tag = 'smem constant byte address 0x4 - core index']
  #allocation1 [shape = 'u32[144,128]{1,0:T(1,128)}', space=vmem, size = 0x12000, scoped, tag = 'internal scratch']
  %s0 = inlined_call_operand.vmem [shape: bf16[2,19,19,12], index: 0, kind: input, shape index: {}]
  %s1 = inlined_call_operand.vmem [shape: bf16[4,4,12,128], index: 1, kind: input, shape index: {}]
  %s2 = inlined_call_operand.vmem [shape: f32[1,128], index: 2, kind: input, shape index: {}]
  %s3 = inlined_call_operand.vmem [shape: bf16[2,256,128], index: 3, kind: output, shape index: {}]
  %s4 = sld [smem:[#allocation0]]
  $region45: #{osnet_forward.6} parent=0
    _
  %s6 = ssub.s32 1, %s4
  %s7 = scalar_select 0, %s6, %s4
  loop: start=0, step=1, limit=4
  $region2: #{osnet_forward.6} parent=0 // loop_pre_header
    _
  $region3: #{osnet_forward.6} parent=0 // loop_header
    %s9 = sphi 0, %s13
    %p10 = scmp.ge.s32.totalorder %s9, 4
    %s19 = sphi 0, %s21
    %s22 = sphi 0, %s19
    %s23 = sphi 0, %s22
    %s39 = sphi 0, %s23
    %s43 = sphi 0, %s43
    %s45 = sphi 0, %s43
    %s46 = sphi 0, %s45
    %s60 = sphi 0, %s46
    %s64 = sphi 0, %s64
    %s66 = sphi 0, %s64
    %s67 = sphi 0, %s66
    %s81 = sphi 0, %s67
    %s87 = sphi 0, %s89
    %s90 = sphi 0, %s87
    %s91 = sphi 0, %s90
    %s107 = sphi 0, %s91
  $region4: #{osnet_forward.6} parent=0 // loop_header_branch
    %12 = sbr.rel (%p10) target = $region8
  $region5: #{osnet_forward.6} parent=0 // loop_body
    %s14 = ssub.s32 %s9, 1
    %s15 = ssub.s32 %s9, 2
    %s16 = sadd.s32 %s9, 1
    %s17 = ssub.s32 %s9, %s16
    %p18 = scmp.eq.s32.totalorder %s17, 0
    %s20 = sadd.s32 %s19, 1
    %s21 = scalar_select %p18, %s19, %s20
    %p24 = pneg %p18
    %p25 = scmp.eq.s32.totalorder %s9, 1
    %p26 = por %p24, %p25
    %p27 = scmp.ne.s32.totalorder %s19, %s22
    %p28 = scmp.eq.s32.totalorder %s9, 0
    %p29 = por %p27, %p28
    %p30 = scmp.ne.s32.totalorder %s19, %s22
    %p31 = scmp.eq.s32.totalorder %s14, 1
    %p32 = por %p30, %p31
    %p33 = scmp.ne.s32.totalorder %s22, %s23
    %p34 = scmp.eq.s32.totalorder %s14, 0
    %p35 = por %p33, %p34
    %p36 = scmp.ne.s32.totalorder %s22, %s23
    %p37 = scmp.eq.s32.totalorder %s15, 1
    %p38 = por %p36, %p37
    %p40 = scmp.ne.s32.totalorder %s23, %s39
    %p41 = scmp.eq.s32.totalorder %s15, 0
    %p42 = por %p40, %p41
    %s44 = sadd.s32 %s43, 1
    %p47 = scmp.eq.s32.totalorder %s9, 1
    %p48 = scmp.ne.s32.totalorder %s43, %s45
    %p49 = scmp.eq.s32.totalorder %s9, 0
    %p50 = por %p48, %p49
    %p51 = scmp.ne.s32.totalorder %s43, %s45
    %p52 = scmp.eq.s32.totalorder %s14, 1
    %p53 = por %p51, %p52
    %p54 = scmp.ne.s32.totalorder %s45, %s46
    %p55 = scmp.eq.s32.totalorder %s14, 0
    %p56 = por %p54, %p55
    %p57 = scmp.ne.s32.totalorder %s45, %s46
    %p58 = scmp.eq.s32.totalorder %s15, 1
    %p59 = por %p57, %p58
    %p61 = scmp.ne.s32.totalorder %s46, %s60
    %p62 = scmp.eq.s32.totalorder %s15, 0
    %p63 = por %p61, %p62
    %s65 = sadd.s32 %s64, 1
    %p68 = scmp.eq.s32.totalorder %s9, 1
    %p69 = scmp.ne.s32.totalorder %s64, %s66
    %p70 = scmp.eq.s32.totalorder %s9, 0
    %p71 = por %p69, %p70
    %p72 = scmp.ne.s32.totalorder %s64, %s66
    %p73 = scmp.eq.s32.totalorder %s14, 1
    %p74 = por %p72, %p73
    %p75 = scmp.ne.s32.totalorder %s66, %s67
    %p76 = scmp.eq.s32.totalorder %s14, 0
    %p77 = por %p75, %p76
    %p78 = scmp.ne.s32.totalorder %s66, %s67
    %p79 = scmp.eq.s32.totalorder %s15, 1
    %p80 = por %p78, %p79
    %p82 = scmp.ne.s32.totalorder %s67, %s81
    %p83 = scmp.eq.s32.totalorder %s15, 0
    %p84 = por %p82, %p83
    %s85 = ssub.s32 %s9, %s16
    %p86 = scmp.eq.s32.totalorder %s85, 0
    %s88 = sadd.s32 %s87, 1
    %s89 = scalar_select %p86, %s87, %s88
    %p92 = pneg %p86
    %p93 = scmp.eq.s32.totalorder %s9, 1
    %p94 = por %p92, %p93
    %p95 = scmp.ne.s32.totalorder %s87, %s90
    %p96 = scmp.eq.s32.totalorder %s9, 0
    %p97 = por %p95, %p96
    %p98 = scmp.ne.s32.totalorder %s87, %s90
    %p99 = scmp.eq.s32.totalorder %s14, 1
    %p100 = por %p98, %p99
    %p101 = scmp.ne.s32.totalorder %s90, %s91
    %p102 = scmp.eq.s32.totalorder %s14, 0
    %p103 = por %p101, %p102
    %p104 = scmp.ne.s32.totalorder %s90, %s91
    %p105 = scmp.eq.s32.totalorder %s15, 1
    %p106 = por %p104, %p105
    %p108 = scmp.ne.s32.totalorder %s91, %s107
    %p109 = scmp.eq.s32.totalorder %s15, 0
    %p110 = por %p108, %p109
    %p111 = scmp.le.s32.totalorder 1, %s9
    %p112 = scmp.lt.s32.totalorder %s9, 3
    %p113 = pnand %p111, %p112
    %p114 = pneg %p113
    // Predicated region
    $region9: #{osnet_forward.6} parent=5 // pred_check
      _
    $region10: #{osnet_forward.6} parent=5 // pred_check_branch
      %116 = sbr.rel (%p113) target = $region12
    $region11: #{osnet_forward.6} parent=5 // pred_region
      %s117 = ssub.s32 %s9, 1
      // Predicated region
      $region13: #{osnet_forward.6} parent=11 // pred_check
        %p118 = pneg %p56
      $region14: #{osnet_forward.6} parent=11 // pred_check_branch
        %120 = sbr.rel (%p118) target = $region16
      $region15: #{osnet_forward.6} parent=11 // pred_region
        _
      $region16: #{osnet_forward.6} parent=11 // pred_fallthru
        _
      // Predicated region
      $region17: #{osnet_forward.6} parent=11 // pred_check
        %p121 = pneg %p77
      $region18: #{osnet_forward.6} parent=11 // pred_check_branch
        %123 = sbr.rel (%p121) target = $region20
      $region19: #{osnet_forward.6} parent=11 // pred_region
        _
      $region20: #{osnet_forward.6} parent=11 // pred_fallthru
        _
    $region12: #{osnet_forward.6} parent=5 // pred_fallthru
      _
    %p124 = scmp.lt.s32.totalorder %s9, 2
    // Predicated region
    $region21: #{osnet_forward.6} parent=5 // pred_check
      %p125 = pneg %p124
    $region22: #{osnet_forward.6} parent=5 // pred_check_branch
      %127 = sbr.rel (%p125) target = $region24
    $region23: #{osnet_forward.6} parent=5 // pred_region
      // Predicated region
      $region25: #{osnet_forward.6} parent=23 // pred_check
        %p128 = pneg %p29
      $region26: #{osnet_forward.6} parent=23 // pred_check_branch
        %130 = sbr.rel (%p128) target = $region28
      $region27: #{osnet_forward.6} parent=23 // pred_region
        %p131 = scmp.lt.s32.totalorder %s9, 1
        %s132 = scalar_select %p131, %s9, 1
        %s133 = smul.addr %s132, 57
        %s134 = smul.addr %s133, 4
        %s135 = scalar_lea.vmem %s0, %s134
      $region28: #{osnet_forward.6} parent=23 // pred_fallthru
        _
    $region24: #{osnet_forward.6} parent=5 // pred_fallthru
      _
    %p136 = scmp.le.s32.totalorder 1, %s9
    %p137 = scmp.lt.s32.totalorder %s9, 3
    %p138 = pnand %p136, %p137
    %p139 = pneg %p138
    // Predicated region
    $region29: #{osnet_forward.6} parent=5 // pred_check
      _
    $region30: #{osnet_forward.6} parent=5 // pred_check_branch
      %141 = sbr.rel (%p138) target = $region32
    $region31: #{osnet_forward.6} parent=5 // pred_region
      %s142 = ssub.s32 %s9, 1
      %p143 = scmp.lt.s32.totalorder %s14, 1
      %s144 = scalar_select %p143, %s14, 1
      %s145 = smul.addr %s144, 57
      %s146 = smul.addr %s145, 4
      %s147 = scalar_lea.vmem %s0, %s146
      %p148 = pneg %p35
      %p149 = pneg %p32
      %p150 = pneg %p56
      %p151 = pneg %p53
      %p152 = pneg %p77
      %p153 = pneg %p74
      %p154 = pneg %p103
      %p155 = pneg %p100
      %p156 = scmp.lt.s32.totalorder %s14, 1
      %s157 = scalar_select %p156, %s14, 1
      %s158 = smul.addr %s157, 32
      %s159 = smul.addr %s158, 4
      %s160 = scalar_lea.vmem %s3, %s159
      %p161 = scmp.lt.s32.totalorder %s14, 1
      %s162 = scalar_select %p161, %s14, 1
      %s163 = smul.addr %s162, 57
      %s164 = smul.addr %s163, 4
      %s165 = scalar_lea.vmem %s0, %s164
      %p166 = scmp.lt.s32.totalorder %s14, 1
      %s167 = scalar_select %p166, %s14, 1
      %s168 = smul.addr %s167, 32
      %s169 = smul.addr %s168, 4
      %s170 = scalar_lea.vmem %s3, %s169
      %v172 = vld [vmem:[%s165] sm:$0xf]
      %v173 = vld [vmem:[%s165 + $0x4] sm:$0xf]
      %v174 = vld [vmem:[%s165 + $0x8] sm:$0x3]
      %v175 = vld [vmem:[%s165 + $0xc] sm:$0xf]
      %v176 = vld [vmem:[%s165 + $0x10] sm:$0xf]
      %v177 = vld [vmem:[%s165 + $0x14] sm:$0x3]
      %v178 = vld [vmem:[%s165 + $0x18] sm:$0xf]
      %v179 = vld [vmem:[%s165 + $0x1c] sm:$0xf]
      %v180 = vld [vmem:[%s165 + $0x20] sm:$0x3]
      %v181 = vld [vmem:[%s165 + $0x24] sm:$0xf]
      %v182 = vld [vmem:[%s165 + $0x28] sm:$0xf]
      %v183 = vld [vmem:[%s165 + $0x2c] sm:$0x3]
      %v184 = vld [vmem:[%s165 + $0x30] sm:$0xf]
      %v185 = vld [vmem:[%s165 + $0x34] sm:$0xf]
      %v186 = vld [vmem:[%s165 + $0x38] sm:$0x3]
      %v187 = vld [vmem:[%s165 + $0x3c] sm:$0xf]
      %v188 = vld [vmem:[%s165 + $0x40] sm:$0xf]
      %v189 = vld [vmem:[%s165 + $0x44] sm:$0x3]
      %v190 = vld [vmem:[%s165 + $0x48] sm:$0xf]
      %v191 = vld [vmem:[%s165 + $0x4c] sm:$0xf]
      %v192 = vld [vmem:[%s165 + $0x50] sm:$0x3]
      %v193 = vld [vmem:[%s165 + $0x54] sm:$0xf]
      %v194 = vld [vmem:[%s165 + $0x58] sm:$0xf]
      %v195 = vld [vmem:[%s165 + $0x5c] sm:$0x3]
      %v196 = vld [vmem:[%s165 + $0x60] sm:$0xf]
      %v197 = vld [vmem:[%s165 + $0x64] sm:$0xf]
      %v198 = vld [vmem:[%s165 + $0x68] sm:$0x3]
      %v199 = vld [vmem:[%s165 + $0x6c] sm:$0xf]
      %v200 = vld [vmem:[%s165 + $0x70] sm:$0xf]
      %v201 = vld [vmem:[%s165 + $0x74] sm:$0x3]
      %v202 = vld [vmem:[%s165 + $0x78] sm:$0xf]
      %v203 = vld [vmem:[%s165 + $0x7c] sm:$0xf]
      %v204 = vld [vmem:[%s165 + $0x80] sm:$0x3]
      %v205 = vld [vmem:[%s165 + $0x84] sm:$0xf]
      %v206 = vld [vmem:[%s165 + $0x88] sm:$0xf]
      %v207 = vld [vmem:[%s165 + $0x8c] sm:$0x3]
      %v208 = vld [vmem:[%s165 + $0x90] sm:$0xf]
      %v209 = vld [vmem:[%s165 + $0x94] sm:$0xf]
      %v210 = vld [vmem:[%s165 + $0x98] sm:$0x3]
      %v211 = vld [vmem:[%s165 + $0x9c] sm:$0xf]
      %v212 = vld [vmem:[%s165 + $0xa0] sm:$0xf]
      %v213 = vld [vmem:[%s165 + $0xa4] sm:$0x3]
      %v214 = vld [vmem:[%s165 + $0xa8] sm:$0xf]
      %v215 = vld [vmem:[%s165 + $0xac] sm:$0xf]
      %v216 = vld [vmem:[%s165 + $0xb0] sm:$0x3]
      %v217 = vld [vmem:[%s165 + $0xb4] sm:$0xf]
      %v218 = vld [vmem:[%s165 + $0xb8] sm:$0xf]
      %v219 = vld [vmem:[%s165 + $0xbc] sm:$0x3]
      %v220 = vld [vmem:[%s165 + $0xc0] sm:$0xf]
      %v221 = vld [vmem:[%s165 + $0xc4] sm:$0xf]
      %v222 = vld [vmem:[%s165 + $0xc8] sm:$0x3]
      %v223 = vld [vmem:[%s165 + $0xcc] sm:$0xf]
      %v224 = vld [vmem:[%s165 + $0xd0] sm:$0xf]
      %v225 = vld [vmem:[%s165 + $0xd4] sm:$0x3]
      %v226 = vld [vmem:[%s165 + $0xd8] sm:$0xf]
      %v227 = vld [vmem:[%s165 + $0xdc] sm:$0xf]
      %v228 = vld [vmem:[%s165 + $0xe0] sm:$0x3]
      %v229 = vld [vmem:[%s1] sm:$0xf]
      %v230 = vld [vmem:[%s1 + $0x4] sm:$0x3]
      %s231 = scalar_lea.vmem %s1, 32
      %v232 = vld [vmem:[%s231] sm:$0xf]
      %v233 = vld [vmem:[%s231 + $0x4] sm:$0x3]
      %v266 = vunpack.c.l.b16 %v175
      %v267 = vunpack.c.l.b16 %v176
      %v268 = vunpack.c.l.b16 %v178
      %v269 = vunpack.c.l.b16 %v179
      %v270 = vunpack.c.l.b16 %v181
      %v271 = vunpack.c.l.b16 %v182
      %v272 = vunpack.c.l.b16 %v184
      %v273 = vunpack.c.l.b16 %v185
      %v274 = vunpack.c.l.b16 %v187
      %v275 = vunpack.c.l.b16 %v188
      %v276 = vunpack.c.l.b16 %v190
      %v277 = vunpack.c.l.b16 %v191
      %v278 = vunpack.c.l.b16 %v193
      %v279 = vunpack.c.l.b16 %v194
      %v280 = vunpack.c.l.b16 %v196
      %v281 = vunpack.c.l.b16 %v197
      %v282 = vunpack.c.l.b16 %v199
      %v283 = vunpack.c.l.b16 %v200
      %v284 = vunpack.c.l.b16 %v202
      %v285 = vunpack.c.l.b16 %v203
      %v286 = vunpack.c.l.b16 %v205
      %v287 = vunpack.c.l.b16 %v206
      %v288 = vunpack.c.l.b16 %v208
      %v289 = vunpack.c.l.b16 %v209
      %v290 = vunpack.c.l.b16 %v211
      %v291 = vunpack.c.l.b16 %v212
      %v292 = vunpack.c.l.b16 %v214
      %v293 = vunpack.c.l.b16 %v215
      %v294 = vunpack.c.l.b16 %v217
      %v295 = vunpack.c.l.b16 %v218
      %v296 = vunpack.c.l.b16 %v220
      %v297 = vunpack.c.l.b16 %v221
      %v298 = vpack.c.b16 %v267, %v266
      %v299 = vpack.c.b16 %v269, %v268
      %v300 = vpack.c.b16 %v271, %v270
      %v301 = vpack.c.b16 %v273, %v272
      %v302 = vpack.c.b16 %v275, %v274
      %v303 = vpack.c.b16 %v277, %v276
      %v304 = vpack.c.b16 %v279, %v278
      %v305 = vpack.c.b16 %v281, %v280
      %v306 = vpack.c.b16 %v283, %v282
      %v307 = vpack.c.b16 %v285, %v284
      %v308 = vpack.c.b16 %v287, %v286
      %v309 = vpack.c.b16 %v289, %v288
      %v310 = vpack.c.b16 %v291, %v290
      %v311 = vpack.c.b16 %v293, %v292
      %v312 = vpack.c.b16 %v295, %v294
      %v313 = vpack.c.b16 %v297, %v296
      %v316 = vunpack.c.l.b16 %v232
      %v317 = vunpack.c.l.b16 %v233
      %v318 = vpack.c.b16 %v317, %v316
      %vm319 = vcmask 97280
      %v321 = vsel %vm319, %v298, 0
      %v324 = vsel %vm319, %v299, 0
      %v327 = vsel %vm319, %v300, 0
      %v330 = vsel %vm319, %v301, 0
      %v333 = vsel %vm319, %v302, 0
      %v336 = vsel %vm319, %v303, 0
      %v339 = vsel %vm319, %v304, 0
      %v342 = vsel %vm319, %v305, 0
      %v345 = vsel %vm319, %v306, 0
      %v348 = vsel %vm319, %v307, 0
      %v351 = vsel %vm319, %v308, 0
      %v354 = vsel %vm319, %v309, 0
      %v357 = vsel %vm319, %v310, 0
      %v360 = vsel %vm319, %v311, 0
      %v363 = vsel %vm319, %v312, 0
      %v366 = vsel %vm319, %v313, 0
      %vm368 = vcmask 1045504
      %v370 = vsel %vm368, %v318, 0
      %372 = vmatprep.subr.bf16.mxu0 0
      %373 = vmatpush1.bf16.msra.mxu0 %v370
      %374 = vmatprep.subr.bf16.mxu0 0
      %375 = vmatpush1.bf16.msra.mxu0 0
      %376 = vmatprep.subr.bf16.mxu0 0
      %377 = vmatpush1.bf16.msra.mxu0 0
      %378 = vmatprep.subr.bf16.mxu0 0
      %379 = vmatpush1.bf16.msra.mxu0 0
      %380 = vmatprep.subr.bf16.mxu0 0
      %381 = vmatpush1.bf16.msra.mxu0 0
      %382 = vmatprep.subr.bf16.mxu0 0
      %383 = vmatpush1.bf16.msra.mxu0 0
      %384 = vmatprep.subr.bf16.mxu0 0
      %385 = vmatpush1.bf16.msra.mxu0 0
      %386 = vmatprep.subr.bf16.mxu0 0
      %387 = vmatpush1.bf16.msra.mxu0 0
      %388 = vmatprep.subr.bf16.mxu0 0
      %389 = vmatpush1.bf16.msra.mxu0 0
      %390 = vmatprep.subr.bf16.mxu0 0
      %391 = vmatpush1.bf16.msra.mxu0 0
      %392 = vmatprep.subr.bf16.mxu0 0
      %393 = vmatpush1.bf16.msra.mxu0 0
      %394 = vmatprep.subr.bf16.mxu0 0
      %395 = vmatpush1.bf16.msra.mxu0 0
      %396 = vmatprep.subr.bf16.mxu0 0
      %397 = vmatpush1.bf16.msra.mxu0 0
      %398 = vmatprep.subr.bf16.mxu0 0
      %399 = vmatpush1.bf16.msra.mxu0 0
      %400 = vmatprep.subr.bf16.mxu0 0
      %401 = vmatpush1.bf16.msra.mxu0 0
      %402 = vmatprep.subr.bf16.mxu0 0
      %403 = vmatpush1.bf16.msra.mxu0 0
      %404 = vmatprep.mubr.bf16.mxu0 0
      %405 = vmatmul.mubr.bf16.gmra.mrb[0].mxu0 %v321
      %v406 = vpop.f32.mrb[0].mxu0
      %v407 = vadd.f32 0.0, %v406
      %v408 = vpop.f32.mrb[0].mxu0
      %v409 = vpop.f32.mrb[0].mxu0
      %v410 = vadd.f32 0.0, %v409
      %v411 = vpop.f32.mrb[0].mxu0
      %412 = vmatprep.mubr.bf16.mxu0 0
      %413 = vmatmul.mubr.bf16.gmra.mrb[0].mxu0 %v324
      %v414 = vpop.f32.mrb[0].mxu0
      %v415 = vadd.f32 0.0, %v414
      %v416 = vpop.f32.mrb[0].mxu0
      %v417 = vpop.f32.mrb[0].mxu0
      %v418 = vadd.f32 0.0, %v417
      %v419 = vpop.f32.mrb[0].mxu0
      %420 = vmatprep.mubr.bf16.mxu0 0
      %421 = vmatmul.mubr.bf16.gmra.mrb[0].mxu0 %v327
      %v422 = vpop.f32.mrb[0].mxu0
      %v423 = vadd.f32 0.0, %v422
      %v424 = vpop.f32.mrb[0].mxu0
      %v425 = vpop.f32.mrb[0].mxu0
      %v426 = vadd.f32 0.0, %v425
      %v427 = vpop.f32.mrb[0].mxu0
      %428 = vmatprep.mubr.bf16.mxu0 0
      %429 = vmatmul.mubr.bf16.gmra.mrb[0].mxu0 %v330
      %v430 = vpop.f32.mrb[0].mxu0
      %v431 = vadd.f32 0.0, %v430
      %v432 = vpop.f32.mrb[0].mxu0
      %v433 = vpop.f32.mrb[0].mxu0
      %v434 = vadd.f32 0.0, %v433
      %v435 = vpop.f32.mrb[0].mxu0
      %436 = vmatprep.mubr.bf16.mxu0 0
      %437 = vmatmul.mubr.bf16.gmra.mrb[0].mxu0 %v333
      %v438 = vpop.f32.mrb[0].mxu0
      %v439 = vadd.f32 0.0, %v438
      %v440 = vpop.f32.mrb[0].mxu0
      %v441 = vpop.f32.mrb[0].mxu0
      %v442 = vadd.f32 0.0, %v441
      %v443 = vpop.f32.mrb[0].mxu0
      %444 = vmatprep.mubr.bf16.mxu0 0
      %445 = vmatmul.mubr.bf16.gmra.mrb[0].mxu0 %v336
      %v446 = vpop.f32.mrb[0].mxu0
      %v447 = vadd.f32 0.0, %v446
      %v448 = vpop.f32.mrb[0].mxu0
      %v449 = vpop.f32.mrb[0].mxu0
      %v450 = vadd.f32 0.0, %v449
      %v451 = vpop.f32.mrb[0].mxu0
      %452 = vmatprep.mubr.bf16.mxu0 0
      %453 = vmatmul.mubr.bf16.gmra.mrb[0].mxu0 %v339
      %v454 = vpop.f32.mrb[0].mxu0
      %v455 = vadd.f32 0.0, %v454
      %v456 = vpop.f32.mrb[0].mxu0
      %v457 = vpop.f32.mrb[0].mxu0
      %v458 = vadd.f32 0.0, %v457
      %v459 = vpop.f32.mrb[0].mxu0
      %460 = vmatprep.mubr.bf16.mxu0 0
      %461 = vmatmul.mubr.bf16.gmra.mrb[0].mxu0 %v342
      %v462 = vpop.f32.mrb[0].mxu0
      %v463 = vadd.f32 0.0, %v462
      %v464 = vpop.f32.mrb[0].mxu0
      %v465 = vpop.f32.mrb[0].mxu0
      %v466 = vadd.f32 0.0, %v465
      %v467 = vpop.f32.mrb[0].mxu0
      %468 = vmatprep.mubr.bf16.mxu0 0
      %469 = vmatmul.mubr.bf16.gmra.mrb[0].mxu0 %v345
      %v470 = vpop.f32.mrb[0].mxu0
      %v471 = vadd.f32 0.0, %v470
      %v472 = vpop.f32.mrb[0].mxu0
      %v473 = vpop.f32.mrb[0].mxu0
      %v474 = vadd.f32 0.0, %v473
      %v475 = vpop.f32.mrb[0].mxu0
      %476 = vmatprep.mubr.bf16.mxu0 0
      %477 = vmatmul.mubr.bf16.gmra.mrb[0].mxu0 %v348
      %v478 = vpop.f32.mrb[0].mxu0
      %v479 = vadd.f32 0.0, %v478
      %v480 = vpop.f32.mrb[0].mxu0
      %v481 = vpop.f32.mrb[0].mxu0
      %v482 = vadd.f32 0.0, %v481
      %v483 = vpop.f32.mrb[0].mxu0
      %484 = vmatprep.mubr.bf16.mxu0 0
      %485 = vmatmul.mubr.bf16.gmra.mrb[0].mxu0 %v351
      %v486 = vpop.f32.mrb[0].mxu0
      %v487 = vadd.f32 0.0, %v486
      %v488 = vpop.f32.mrb[0].mxu0
      %v489 = vpop.f32.mrb[0].mxu0
      %v490 = vadd.f32 0.0, %v489
      %v491 = vpop.f32.mrb[0].mxu0
      %492 = vmatprep.mubr.bf16.mxu0 0
      %493 = vmatmul.mubr.bf16.gmra.mrb[0].mxu0 %v354
      %v494 = vpop.f32.mrb[0].mxu0
      %v495 = vadd.f32 0.0, %v494
      %v496 = vpop.f32.mrb[0].mxu0
      %v497 = vpop.f32.mrb[0].mxu0
      %v498 = vadd.f32 0.0, %v497
      %v499 = vpop.f32.mrb[0].mxu0
      %500 = vmatprep.mubr.bf16.mxu0 0
      %501 = vmatmul.mubr.bf16.gmra.mrb[0].mxu0 %v357
      %v502 = vpop.f32.mrb[0].mxu0
      %v503 = vadd.f32 0.0, %v502
      %v504 = vpop.f32.mrb[0].mxu0
      %v505 = vpop.f32.mrb[0].mxu0
      %v506 = vadd.f32 0.0, %v505
      %v507 = vpop.f32.mrb[0].mxu0
      %508 = vmatprep.mubr.bf16.mxu0 0
      %509 = vmatmul.mubr.bf16.gmra.mrb[0].mxu0 %v360
      %v510 = vpop.f32.mrb[0].mxu0
      %v511 = vadd.f32 0.0, %v510
      %v512 = vpop.f32.mrb[0].mxu0
      %v513 = vpop.f32.mrb[0].mxu0
      %v514 = vadd.f32 0.0, %v513
      %v515 = vpop.f32.mrb[0].mxu0
      %516 = vmatprep.mubr.bf16.mxu0 0
      %517 = vmatmul.mubr.bf16.gmra.mrb[0].mxu0 %v363
      %v518 = vpop.f32.mrb[0].mxu0
      %v519 = vadd.f32 0.0, %v518
      %v520 = vpop.f32.mrb[0].mxu0
      %v521 = vpop.f32.mrb[0].mxu0
      %v522 = vadd.f32 0.0, %v521
      %v523 = vpop.f32.mrb[0].mxu0
      %524 = vmatprep.mubr.bf16.mxu0 0
      %525 = vmatmul.mubr.bf16.gmra.mrb[0].mxu0 %v366
      %v526 = vpop.f32.mrb[0].mxu0
      %v527 = vadd.f32 0.0, %v526
      %v528 = vpop.f32.mrb[0].mxu0
      %v529 = vpop.f32.mrb[0].mxu0
      %v530 = vadd.f32 0.0, %v529
      %v531 = vpop.f32.mrb[0].mxu0
      %532 = vdwg.mxu0
      %v535 = vunpack.c.l.b16 %v172
      %v536 = vunpack.c.l.b16 %v173
      %v537 = vpack.c.b16 %v536, %v535
      %v540 = vunpack.c.l.b16 %v229
      %v541 = vunpack.c.l.b16 %v230
      %v542 = vpack.c.b16 %v541, %v540
      %v544 = vsel %vm319, %v537, 0
      %v547 = vsel %vm368, %v542, 0
      %549 = vmatprep.subr.bf16.mxu0 0
      %550 = vmatpush1.bf16.msra.mxu0 %v547
      %551 = vmatprep.subr.bf16.mxu0 0
      %552 = vmatpush1.bf16.msra.mxu0 0
      %553 = vmatprep.subr.bf16.mxu0 0
      %554 = vmatpush1.bf16.msra.mxu0 0
      %555 = vmatprep.subr.bf16.mxu0 0
      %556 = vmatpush1.bf16.msra.mxu0 0
      %557 = vmatprep.subr.bf16.mxu0 0
      %558 = vmatpush1.bf16.msra.mxu0 0
      %559 = vmatprep.subr.bf16.mxu0 0
      %560 = vmatpush1.bf16.msra.mxu0 0
      %561 = vmatprep.subr.bf16.mxu0 0
      %562 = vmatpush1.bf16.msra.mxu0 0
      %563 = vmatprep.subr.bf16.mxu0 0
      %564 = vmatpush1.bf16.msra.mxu0 0
      %565 = vmatprep.subr.bf16.mxu0 0
      %566 = vmatpush1.bf16.msra.mxu0 0
      %567 = vmatprep.subr.bf16.mxu0 0
      %568 = vmatpush1.bf16.msra.mxu0 0
      %569 = vmatprep.subr.bf16.mxu0 0
      %570 = vmatpush1.bf16.msra.mxu0 0
      %571 = vmatprep.subr.bf16.mxu0 0
      %572 = vmatpush1.bf16.msra.mxu0 0
      %573 = vmatprep.subr.bf16.mxu0 0
      %574 = vmatpush1.bf16.msra.mxu0 0
      %575 = vmatprep.subr.bf16.mxu0 0
      %576 = vmatpush1.bf16.msra.mxu0 0
      %577 = vmatprep.subr.bf16.mxu0 0
      %578 = vmatpush1.bf16.msra.mxu0 0
      %579 = vmatprep.subr.bf16.mxu0 0
      %580 = vmatpush1.bf16.msra.mxu0 0
      %581 = vmatprep.mubr.bf16.mxu0 0
      %582 = vmatmul.mubr.bf16.gmra.mrb[0].mxu0 %v544
      %v583 = vpop.f32.mrb[0].mxu0
      %v584 = vadd.f32 %v407, %v583
      %v585 = vpop.f32.mrb[0].mxu0
      %v586 = vpop.f32.mrb[0].mxu0
      %v587 = vadd.f32 %v410, %v586
      %v588 = vpop.f32.mrb[0].mxu0
      %589 = vmatprep.mubr.bf16.mxu0 0
      %590 = vmatmul.mubr.bf16.gmra.mrb[0].mxu0 %v321
      %v591 = vpop.f32.mrb[0].mxu0
      %v592 = vadd.f32 %v415, %v591
      %v593 = vpop.f32.mrb[0].mxu0
      %v594 = vpop.f32.mrb[0].mxu0
      %v595 = vadd.f32 %v418, %v594
      %v596 = vpop.f32.mrb[0].mxu0
      %597 = vmatprep.mubr.bf16.mxu0 0
      %598 = vmatmul.mubr.bf16.gmra.mrb[0].mxu0 %v324
      %v599 = vpop.f32.mrb[0].mxu0
      %v600 = vadd.f32 %v423, %v599
      %v601 = vpop.f32.mrb[0].mxu0
      %v602 = vpop.f32.mrb[0].mxu0
      %v603 = vadd.f32 %v426, %v602
      %v604 = vpop.f32.mrb[0].mxu0
      %605 = vmatprep.mubr.bf16.mxu0 0
      %606 = vmatmul.mubr.bf16.gmra.mrb[0].mxu0 %v327
      %v607 = vpop.f32.mrb[0].mxu0
      %v608 = vadd.f32 %v431, %v607
      %v609 = vpop.f32.mrb[0].mxu0
      %v610 = vpop.f32.mrb[0].mxu0
      %v611 = vadd.f32 %v434, %v610
      %v612 = vpop.f32.mrb[0].mxu0
      %613 = vmatprep.mubr.bf16.mxu0 0
      %614 = vmatmul.mubr.bf16.gmra.mrb[0].mxu0 %v330
      %v615 = vpop.f32.mrb[0].mxu0
      %v616 = vadd.f32 %v439, %v615
      %v617 = vpop.f32.mrb[0].mxu0
      %v618 = vpop.f32.mrb[0].mxu0
      %v619 = vadd.f32 %v442, %v618
      %v620 = vpop.f32.mrb[0].mxu0
      %621 = vmatprep.mubr.bf16.mxu0 0
      %622 = vmatmul.mubr.bf16.gmra.mrb[0].mxu0 %v333
      %v623 = vpop.f32.mrb[0].mxu0
      %v624 = vadd.f32 %v447, %v623
      %v625 = vpop.f32.mrb[0].mxu0
      %v626 = vpop.f32.mrb[0].mxu0
      %v627 = vadd.f32 %v450, %v626
      %v628 = vpop.f32.mrb[0].mxu0
      %629 = vmatprep.mubr.bf16.mxu0 0
      %630 = vmatmul.mubr.bf16.gmra.mrb[0].mxu0 %v336
      %v631 = vpop.f32.mrb[0].mxu0
      %v632 = vadd.f32 %v455, %v631
      %v633 = vpop.f32.mrb[0].mxu0
      %v634 = vpop.f32.mrb[0].mxu0
      %v635 = vadd.f32 %v458, %v634
      %v636 = vpop.f32.mrb[0].mxu0
      %637 = vmatprep.mubr.bf16.mxu0 0
      %638 = vmatmul.mubr.bf16.gmra.mrb[0].mxu0 %v339
      %v639 = vpop.f32.mrb[0].mxu0
      %v640 = vadd.f32 %v463, %v639
      %v641 = vpop.f32.mrb[0].mxu0
      %v642 = vpop.f32.mrb[0].mxu0
      %v643 = vadd.f32 %v466, %v642
      %v644 = vpop.f32.mrb[0].mxu0
      %645 = vmatprep.mubr.bf16.mxu0 0
      %646 = vmatmul.mubr.bf16.gmra.mrb[0].mxu0 %v342
      %v647 = vpop.f32.mrb[0].mxu0
      %v648 = vadd.f32 %v471, %v647
      %v649 = vpop.f32.mrb[0].mxu0
      %v650 = vpop.f32.mrb[0].mxu0
      %v651 = vadd.f32 %v474, %v650
      %v652 = vpop.f32.mrb[0].mxu0
      %653 = vmatprep.mubr.bf16.mxu0 0
      %654 = vmatmul.mubr.bf16.gmra.mrb[0].mxu0 %v345
      %v655 = vpop.f32.mrb[0].mxu0
      %v656 = vadd.f32 %v479, %v655
      %v657 = vpop.f32.mrb[0].mxu0
      %v658 = vpop.f32.mrb[0].mxu0
      %v659 = vadd.f32 %v482, %v658
      %v660 = vpop.f32.mrb[0].mxu0
      %661 = vmatprep.mubr.bf16.mxu0 0
      %662 = vmatmul.mubr.bf16.gmra.mrb[0].mxu0 %v348
      %v663 = vpop.f32.mrb[0].mxu0
      %v664 = vadd.f32 %v487, %v663
      %v665 = vpop.f32.mrb[0].mxu0
      %v666 = vpop.f32.mrb[0].mxu0
      %v667 = vadd.f32 %v490, %v666
      %v668 = vpop.f32.mrb[0].mxu0
      %669 = vmatprep.mubr.bf16.mxu0 0
      %670 = vmatmul.mubr.bf16.gmra.mrb[0].mxu0 %v351
      %v671 = vpop.f32.mrb[0].mxu0
      %v672 = vadd.f32 %v495, %v671
      %v673 = vpop.f32.mrb[0].mxu0
      %v674 = vpop.f32.mrb[0].mxu0
      %v675 = vadd.f32 %v498, %v674
      %v676 = vpop.f32.mrb[0].mxu0
      %677 = vmatprep.mubr.bf16.mxu0 0
      %678 = vmatmul.mubr.bf16.gmra.mrb[0].mxu0 %v354
      %v679 = vpop.f32.mrb[0].mxu0
      %v680 = vadd.f32 %v503, %v679
      %v681 = vpop.f32.mrb[0].mxu0
      %v682 = vpop.f32.mrb[0].mxu0
      %v683 = vadd.f32 %v506, %v682
      %v684 = vpop.f32.mrb[0].mxu0
      %685 = vmatprep.mubr.bf16.mxu0 0
      %686 = vmatmul.mubr.bf16.gmra.mrb[0].mxu0 %v357
      %v687 = vpop.f32.mrb[0].mxu0
      %v688 = vadd.f32 %v511, %v687
      %v689 = vpop.f32.mrb[0].mxu0
      %v690 = vpop.f32.mrb[0].mxu0
      %v691 = vadd.f32 %v514, %v690
      %v692 = vpop.f32.mrb[0].mxu0
      %693 = vmatprep.mubr.bf16.mxu0 0
      %694 = vmatmul.mubr.bf16.gmra.mrb[0].mxu0 %v360
      %v695 = vpop.f32.mrb[0].mxu0
      %v696 = vadd.f32 %v519, %v695
      %v697 = vpop.f32.mrb[0].mxu0
      %v698 = vpop.f32.mrb[0].mxu0
      %v699 = vadd.f32 %v522, %v698
      %v700 = vpop.f32.mrb[0].mxu0
      %701 = vmatprep.mubr.bf16.mxu0 0
      %702 = vmatmul.mubr.bf16.gmra.mrb[0].mxu0 %v363
      %v703 = vpop.f32.mrb[0].mxu0
      %v704 = vadd.f32 %v527, %v703
      %v705 = vpop.f32.mrb[0].mxu0
      %v706 = vpop.f32.mrb[0].mxu0
      %v707 = vadd.f32 %v530, %v706
      %v708 = vpop.f32.mrb[0].mxu0
      %709 = vdwg.mxu0
      %s710 = scalar_lea.vmem %s1, 64
      %v711 = vld [vmem:[%s710] sm:$0xf]
      %v712 = vld [vmem:[%s710 + $0x4] sm:$0x3]
      %v715 = vunpack.c.l.b16 %v223
      %v716 = vunpack.c.l.b16 %v224
      %v717 = vpack.c.b16 %v716, %v715
      %v720 = vunpack.c.l.b16 %v711
      %v721 = vunpack.c.l.b16 %v712
      %v722 = vpack.c.b16 %v721, %v720
      %v724 = vsel %vm319, %v717, 0
      %v727 = vsel %vm368, %v722, 0
      %729 = vmatprep.subr.bf16.mxu0 0
      %730 = vmatpush1.bf16.msra.mxu0 %v727
      %731 = vmatprep.subr.bf16.mxu0 0
      %732 = vmatpush1.bf16.msra.mxu0 0
      %733 = vmatprep.subr.bf16.mxu0 0
      %734 = vmatpush1.bf16.msra.mxu0 0
      %735 = vmatprep.subr.bf16.mxu0 0
      %736 = vmatpush1.bf16.msra.mxu0 0
      %737 = vmatprep.subr.bf16.mxu0 0
      %738 = vmatpush1.bf16.msra.mxu0 0
      %739 = vmatprep.subr.bf16.mxu0 0
      %740 = vmatpush1.bf16.msra.mxu0 0
      %741 = vmatprep.subr.bf16.mxu0 0
      %742 = vmatpush1.bf16.msra.mxu0 0
      %743 = vmatprep.subr.bf16.mxu0 0
      %744 = vmatpush1.bf16.msra.mxu0 0
      %745 = vmatprep.subr.bf16.mxu0 0
      %746 = vmatpush1.bf16.msra.mxu0 0
      %747 = vmatprep.subr.bf16.mxu0 0
      %748 = vmatpush1.bf16.msra.mxu0 0
      %749 = vmatprep.subr.bf16.mxu0 0
      %750 = vmatpush1.bf16.msra.mxu0 0
      %751 = vmatprep.subr.bf16.mxu0 0
      %752 = vmatpush1.bf16.msra.mxu0 0
      %753 = vmatprep.subr.bf16.mxu0 0
      %754 = vmatpush1.bf16.msra.mxu0 0
      %755 = vmatprep.subr.bf16.mxu0 0
      %756 = vmatpush1.bf16.msra.mxu0 0
      %757 = vmatprep.subr.bf16.mxu0 0
      %758 = vmatpush1.bf16.msra.mxu0 0
      %759 = vmatprep.subr.bf16.mxu0 0
      %760 = vmatpush1.bf16.msra.mxu0 0
      %761 = vmatprep.mubr.bf16.mxu0 0
      %762 = vmatmul.mubr.bf16.gmra.mrb[0].mxu0 %v324
      %v763 = vpop.f32.mrb[0].mxu0
      %v764 = vadd.f32 0.0, %v763
      %v765 = vpop.f32.mrb[0].mxu0
      %v766 = vpop.f32.mrb[0].mxu0
      %v767 = vadd.f32 0.0, %v766
      %v768 = vpop.f32.mrb[0].mxu0
      %769 = vmatprep.mubr.bf16.mxu0 0
      %770 = vmatmul.mubr.bf16.gmra.mrb[0].mxu0 %v327
      %v771 = vpop.f32.mrb[0].mxu0
      %v772 = vadd.f32 0.0, %v771
      %v773 = vpop.f32.mrb[0].mxu0
      %v774 = vpop.f32.mrb[0].mxu0
      %v775 = vadd.f32 0.0, %v774
      %v776 = vpop.f32.mrb[0].mxu0
      %777 = vmatprep.mubr.bf16.mxu0 0
      %778 = vmatmul.mubr.bf16.gmra.mrb[0].mxu0 %v330
      %v779 = vpop.f32.mrb[0].mxu0
      %v780 = vadd.f32 0.0, %v779
      %v781 = vpop.f32.mrb[0].mxu0
      %v782 = vpop.f32.mrb[0].mxu0
      %v783 = vadd.f32 0.0, %v782
      %v784 = vpop.f32.mrb[0].mxu0
      %785 = vmatprep.mubr.bf16.mxu0 0
      %786 = vmatmul.mubr.bf16.gmra.mrb[0].mxu0 %v333
      %v787 = vpop.f32.mrb[0].mxu0
      %v788 = vadd.f32 0.0, %v787
      %v789 = vpop.f32.mrb[0].mxu0
      %v790 = vpop.f32.mrb[0].mxu0
      %v791 = vadd.f32 0.0, %v790
      %v792 = vpop.f32.mrb[0].mxu0
      %793 = vmatprep.mubr.bf16.mxu0 0
      %794 = vmatmul.mubr.bf16.gmra.mrb[0].mxu0 %v336
      %v795 = vpop.f32.mrb[0].mxu0
      %v796 = vadd.f32 0.0, %v795
      %v797 = vpop.f32.mrb[0].mxu0
      %v798 = vpop.f32.mrb[0].mxu0
      %v799 = vadd.f32 0.0, %v798
      %v800 = vpop.f32.mrb[0].mxu0
      %801 = vmatprep.mubr.bf16.mxu0 0
      %802 = vmatmul.mubr.bf16.gmra.mrb[0].mxu0 %v339
      %v803 = vpop.f32.mrb[0].mxu0
      %v804 = vadd.f32 0.0, %v803
      %v805 = vpop.f32.mrb[0].mxu0
      %v806 = vpop.f32.mrb[0].mxu0
      %v807 = vadd.f32 0.0, %v806
      %v808 = vpop.f32.mrb[0].mxu0
      %809 = vmatprep.mubr.bf16.mxu0 0
      %810 = vmatmul.mubr.bf16.gmra.mrb[0].mxu0 %v342
      %v811 = vpop.f32.mrb[0].mxu0
      %v812 = vadd.f32 0.0, %v811
      %v813 = vpop.f32.mrb[0].mxu0
      %v814 = vpop.f32.mrb[0].mxu0
      %v815 = vadd.f32 0.0, %v814
      %v816 = vpop.f32.mrb[0].mxu0
      %817 = vmatprep.mubr.bf16.mxu0 0
      %818 = vmatmul.mubr.bf16.gmra.mrb[0].mxu0 %v345
      %v819 = vpop.f32.mrb[0].mxu0
      %v820 = vadd.f32 0.0, %v819
      %v821 = vpop.f32.mrb[0].mxu0
      %v822 = vpop.f32.mrb[0].mxu0
      %v823 = vadd.f32 0.0, %v822
      %v824 = vpop.f32.mrb[0].mxu0
      %825 = vmatprep.mubr.bf16.mxu0 0
      %826 = vmatmul.mubr.bf16.gmra.mrb[0].mxu0 %v348
      %v827 = vpop.f32.mrb[0].mxu0
      %v828 = vadd.f32 0.0, %v827
      %v829 = vpop.f32.mrb[0].mxu0
      %v830 = vpop.f32.mrb[0].mxu0
      %v831 = vadd.f32 0.0, %v830
      %v832 = vpop.f32.mrb[0].mxu0
      %833 = vmatprep.mubr.bf16.mxu0 0
      %834 = vmatmul.mubr.bf16.gmra.mrb[0].mxu0 %v351
      %v835 = vpop.f32.mrb[0].mxu0
      %v836 = vadd.f32 0.0, %v835
      %v837 = vpop.f32.mrb[0].mxu0
      %v838 = vpop.f32.mrb[0].mxu0
      %v839 = vadd.f32 0.0, %v838
      %v840 = vpop.f32.mrb[0].mxu0
      %841 = vmatprep.mubr.bf16.mxu0 0
      %842 = vmatmul.mubr.bf16.gmra.mrb[0].mxu0 %v354
      %v843 = vpop.f32.mrb[0].mxu0
      %v844 = vadd.f32 0.0, %v843
      %v845 = vpop.f32.mrb[0].mxu0
      %v846 = vpop.f32.mrb[0].mxu0
      %v847 = vadd.f32 0.0, %v846
      %v848 = vpop.f32.mrb[0].mxu0
      %849 = vmatprep.mubr.bf16.mxu0 0
      %850 = vmatmul.mubr.bf16.gmra.mrb[0].mxu0 %v357
      %v851 = vpop.f32.mrb[0].mxu0
      %v852 = vadd.f32 0.0, %v851
      %v853 = vpop.f32.mrb[0].mxu0
      %v854 = vpop.f32.mrb[0].mxu0
      %v855 = vadd.f32 0.0, %v854
      %v856 = vpop.f32.mrb[0].mxu0
      %857 = vmatprep.mubr.bf16.mxu0 0
      %858 = vmatmul.mubr.bf16.gmra.mrb[0].mxu0 %v360
      %v859 = vpop.f32.mrb[0].mxu0
      %v860 = vadd.f32 0.0, %v859
      %v861 = vpop.f32.mrb[0].mxu0
      %v862 = vpop.f32.mrb[0].mxu0
      %v863 = vadd.f32 0.0, %v862
      %v864 = vpop.f32.mrb[0].mxu0
      %865 = vmatprep.mubr.bf16.mxu0 0
      %866 = vmatmul.mubr.bf16.gmra.mrb[0].mxu0 %v363
      %v867 = vpop.f32.mrb[0].mxu0
      %v868 = vadd.f32 0.0, %v867
      %v869 = vpop.f32.mrb[0].mxu0
      %v870 = vpop.f32.mrb[0].mxu0
      %v871 = vadd.f32 0.0, %v870
      %v872 = vpop.f32.mrb[0].mxu0
      %873 = vmatprep.mubr.bf16.mxu0 0
      %874 = vmatmul.mubr.bf16.gmra.mrb[0].mxu0 %v366
      %v875 = vpop.f32.mrb[0].mxu0
      %v876 = vadd.f32 0.0, %v875
      %v877 = vpop.f32.mrb[0].mxu0
      %v878 = vpop.f32.mrb[0].mxu0
      %v879 = vadd.f32 0.0, %v878
      %v880 = vpop.f32.mrb[0].mxu0
      %881 = vmatprep.mubr.bf16.mxu0 0
      %882 = vmatmul.mubr.bf16.gmra.mrb[0].mxu0 %v724
      %v883 = vpop.f32.mrb[0].mxu0
      %v884 = vadd.f32 0.0, %v883
      %v885 = vpop.f32.mrb[0].mxu0
      %v886 = vpop.f32.mrb[0].mxu0
      %v887 = vadd.f32 0.0, %v886
      %v888 = vpop.f32.mrb[0].mxu0
      %889 = vdwg.mxu0
      %v890 = vadd.f32 %v584, %v764
      %v891 = vadd.f32 %v587, %v767
      %v892 = vadd.f32 %v592, %v772
      %v893 = vadd.f32 %v595, %v775
      %v894 = vadd.f32 %v600, %v780
      %v895 = vadd.f32 %v603, %v783
      %v896 = vadd.f32 %v608, %v788
      %v897 = vadd.f32 %v611, %v791
      %v898 = vadd.f32 %v616, %v796
      %v899 = vadd.f32 %v619, %v799
      %v900 = vadd.f32 %v624, %v804
      %v901 = vadd.f32 %v627, %v807
      %v902 = vadd.f32 %v632, %v812
      %v903 = vadd.f32 %v635, %v815
      %v904 = vadd.f32 %v640, %v820
      %v905 = vadd.f32 %v643, %v823
      %v906 = vadd.f32 %v648, %v828
      %v907 = vadd.f32 %v651, %v831
      %v908 = vadd.f32 %v656, %v836
      %v909 = vadd.f32 %v659, %v839
      %v910 = vadd.f32 %v664, %v844
      %v911 = vadd.f32 %v667, %v847
      %v912 = vadd.f32 %v672, %v852
      %v913 = vadd.f32 %v675, %v855
      %v914 = vadd.f32 %v680, %v860
      %v915 = vadd.f32 %v683, %v863
      %v916 = vadd.f32 %v688, %v868
      %v917 = vadd.f32 %v691, %v871
      %v918 = vadd.f32 %v696, %v876
      %v919 = vadd.f32 %v699, %v879
      %v920 = vadd.f32 %v704, %v884
      %v921 = vadd.f32 %v707, %v887
      %s922 = scalar_lea.vmem %s1, 96
      %v923 = vld [vmem:[%s922] sm:$0xf]
      %v924 = vld [vmem:[%s922 + $0x4] sm:$0x3]
      %v927 = vunpack.c.l.b16 %v226
      %v928 = vunpack.c.l.b16 %v227
      %v929 = vpack.c.b16 %v928, %v927
      %v932 = vunpack.c.l.b16 %v923
      %v933 = vunpack.c.l.b16 %v924
      %v934 = vpack.c.b16 %v933, %v932
      %v936 = vsel %vm319, %v929, 0
      %v939 = vsel %vm368, %v934, 0
      %941 = vmatprep.subr.bf16.mxu0 0
      %942 = vmatpush1.bf16.msra.mxu0 %v939
      %943 = vmatprep.subr.bf16.mxu0 0
      %944 = vmatpush1.bf16.msra.mxu0 0
      %945 = vmatprep.subr.bf16.mxu0 0
      %946 = vmatpush1.bf16.msra.mxu0 0
      %947 = vmatprep.subr.bf16.mxu0 0
      %948 = vmatpush1.bf16.msra.mxu0 0
      %949 = vmatprep.subr.bf16.mxu0 0
      %950 = vmatpush1.bf16.msra.mxu0 0
      %951 = vmatprep.subr.bf16.mxu0 0
      %952 = vmatpush1.bf16.msra.mxu0 0
      %953 = vmatprep.subr.bf16.mxu0 0
      %954 = vmatpush1.bf16.msra.mxu0 0
      %955 = vmatprep.subr.bf16.mxu0 0
      %956 = vmatpush1.bf16.msra.mxu0 0
      %957 = vmatprep.subr.bf16.mxu0 0
      %958 = vmatpush1.bf16.msra.mxu0 0
      %959 = vmatprep.subr.bf16.mxu0 0
      %960 = vmatpush1.bf16.msra.mxu0 0
      %961 = vmatprep.subr.bf16.mxu0 0
      %962 = vmatpush1.bf16.msra.mxu0 0
      %963 = vmatprep.subr.bf16.mxu0 0
      %964 = vmatpush1.bf16.msra.mxu0 0
      %965 = vmatprep.subr.bf16.mxu0 0
      %966 = vmatpush1.bf16.msra.mxu0 0
      %967 = vmatprep.subr.bf16.mxu0 0
      %968 = vmatpush1.bf16.msra.mxu0 0
      %969 = vmatprep.subr.bf16.mxu0 0
      %970 = vmatpush1.bf16.msra.mxu0 0
      %971 = vmatprep.subr.bf16.mxu0 0
      %972 = vmatpush1.bf16.msra.mxu0 0
      %973 = vmatprep.mubr.bf16.mxu0 0
      %974 = vmatmul.mubr.bf16.gmra.mrb[0].mxu0 %v327
      %v975 = vpop.f32.mrb[0].mxu0
      %v976 = vadd.f32 0.0, %v975
      %v977 = vpop.f32.mrb[0].mxu0
      %v978 = vpop.f32.mrb[0].mxu0
      %v979 = vadd.f32 0.0, %v978
      %v980 = vpop.f32.mrb[0].mxu0
      %981 = vmatprep.mubr.bf16.mxu0 0
      %982 = vmatmul.mubr.bf16.gmra.mrb[0].mxu0 %v330
      %v983 = vpop.f32.mrb[0].mxu0
      %v984 = vadd.f32 0.0, %v983
      %v985 = vpop.f32.mrb[0].mxu0
      %v986 = vpop.f32.mrb[0].mxu0
      %v987 = vadd.f32 0.0, %v986
      %v988 = vpop.f32.mrb[0].mxu0
      %989 = vmatprep.mubr.bf16.mxu0 0
      %990 = vmatmul.mubr.bf16.gmra.mrb[0].mxu0 %v333
      %v991 = vpop.f32.mrb[0].mxu0
      %v992 = vadd.f32 0.0, %v991
      %v993 = vpop.f32.mrb[0].mxu0
      %v994 = vpop.f32.mrb[0].mxu0
      %v995 = vadd.f32 0.0, %v994
      %v996 = vpop.f32.mrb[0].mxu0
      %997 = vmatprep.mubr.bf16.mxu0 0
      %998 = vmatmul.mubr.bf16.gmra.mrb[0].mxu0 %v336
      %v999 = vpop.f32.mrb[0].mxu0
      %v1000 = vadd.f32 0.0, %v999
      %v1001 = vpop.f32.mrb[0].mxu0
      %v1002 = vpop.f32.mrb[0].mxu0
      %v1003 = vadd.f32 0.0, %v1002
      %v1004 = vpop.f32.mrb[0].mxu0
      %1005 = vmatprep.mubr.bf16.mxu0 0
      %1006 = vmatmul.mubr.bf16.gmra.mrb[0].mxu0 %v339
      %v1007 = vpop.f32.mrb[0].mxu0
      %v1008 = vadd.f32 0.0, %v1007
      %v1009 = vpop.f32.mrb[0].mxu0
      %v1010 = vpop.f32.mrb[0].mxu0
      %v1011 = vadd.f32 0.0, %v1010
      %v1012 = vpop.f32.mrb[0].mxu0
      %1013 = vmatprep.mubr.bf16.mxu0 0
      %1014 = vmatmul.mubr.bf16.gmra.mrb[0].mxu0 %v342
      %v1015 = vpop.f32.mrb[0].mxu0
      %v1016 = vadd.f32 0.0, %v1015
      %v1017 = vpop.f32.mrb[0].mxu0
      %v1018 = vpop.f32.mrb[0].mxu0
      %v1019 = vadd.f32 0.0, %v1018
      %v1020 = vpop.f32.mrb[0].mxu0
      %1021 = vmatprep.mubr.bf16.mxu0 0
      %1022 = vmatmul.mubr.bf16.gmra.mrb[0].mxu0 %v345
      %v1023 = vpop.f32.mrb[0].mxu0
      %v1024 = vadd.f32 0.0, %v1023
      %v1025 = vpop.f32.mrb[0].mxu0
      %v1026 = vpop.f32.mrb[0].mxu0
      %v1027 = vadd.f32 0.0, %v1026
      %v1028 = vpop.f32.mrb[0].mxu0
      %1029 = vmatprep.mubr.bf16.mxu0 0
      %1030 = vmatmul.mubr.bf16.gmra.mrb[0].mxu0 %v348
      %v1031 = vpop.f32.mrb[0].mxu0
      %v1032 = vadd.f32 0.0, %v1031
      %v1033 = vpop.f32.mrb[0].mxu0
      %v1034 = vpop.f32.mrb[0].mxu0
      %v1035 = vadd.f32 0.0, %v1034
      %v1036 = vpop.f32.mrb[0].mxu0
      %1037 = vmatprep.mubr.bf16.mxu0 0
      %1038 = vmatmul.mubr.bf16.gmra.mrb[0].mxu0 %v351
      %v1039 = vpop.f32.mrb[0].mxu0
      %v1040 = vadd.f32 0.0, %v1039
      %v1041 = vpop.f32.mrb[0].mxu0
      %v1042 = vpop.f32.mrb[0].mxu0
      %v1043 = vadd.f32 0.0, %v1042
      %v1044 = vpop.f32.mrb[0].mxu0
      %1045 = vmatprep.mubr.bf16.mxu0 0
      %1046 = vmatmul.mubr.bf16.gmra.mrb[0].mxu0 %v354
      %v1047 = vpop.f32.mrb[0].mxu0
      %v1048 = vadd.f32 0.0, %v1047
      %v1049 = vpop.f32.mrb[0].mxu0
      %v1050 = vpop.f32.mrb[0].mxu0
      %v1051 = vadd.f32 0.0, %v1050
      %v1052 = vpop.f32.mrb[0].mxu0
      %1053 = vmatprep.mubr.bf16.mxu0 0
      %1054 = vmatmul.mubr.bf16.gmra.mrb[0].mxu0 %v357
      %v1055 = vpop.f32.mrb[0].mxu0
      %v1056 = vadd.f32 0.0, %v1055
      %v1057 = vpop.f32.mrb[0].mxu0
      %v1058 = vpop.f32.mrb[0].mxu0
      %v1059 = vadd.f32 0.0, %v1058
      %v1060 = vpop.f32.mrb[0].mxu0
      %1061 = vmatprep.mubr.bf16.mxu0 0
      %1062 = vmatmul.mubr.bf16.gmra.mrb[0].mxu0 %v360
      %v1063 = vpop.f32.mrb[0].mxu0
      %v1064 = vadd.f32 0.0, %v1063
      %v1065 = vpop.f32.mrb[0].mxu0
      %v1066 = vpop.f32.mrb[0].mxu0
      %v1067 = vadd.f32 0.0, %v1066
      %v1068 = vpop.f32.mrb[0].mxu0
      %1069 = vmatprep.mubr.bf16.mxu0 0
      %1070 = vmatmul.mubr.bf16.gmra.mrb[0].mxu0 %v363
      %v1071 = vpop.f32.mrb[0].mxu0
      %v1072 = vadd.f32 0.0, %v1071
      %v1073 = vpop.f32.mrb[0].mxu0
      %v1074 = vpop.f32.mrb[0].mxu0
      %v1075 = vadd.f32 0.0, %v1074
      %v1076 = vpop.f32.mrb[0].mxu0
      %1077 = vmatprep.mubr.bf16.mxu0 0
      %1078 = vmatmul.mubr.bf16.gmra.mrb[0].mxu0 %v366
      %v1079 = vpop.f32.mrb[0].mxu0
      %v1080 = vadd.f32 0.0, %v1079
      %v1081 = vpop.f32.mrb[0].mxu0
      %v1082 = vpop.f32.mrb[0].mxu0
      %v1083 = vadd.f32 0.0, %v1082
      %v1084 = vpop.f32.mrb[0].mxu0
      %1085 = vmatprep.mubr.bf16.mxu0 0
      %1086 = vmatmul.mubr.bf16.gmra.mrb[0].mxu0 %v724
      %v1087 = vpop.f32.mrb[0].mxu0
      %v1088 = vadd.f32 0.0, %v1087
      %v1089 = vpop.f32.mrb[0].mxu0
      %v1090 = vpop.f32.mrb[0].mxu0
      %v1091 = vadd.f32 0.0, %v1090
      %v1092 = vpop.f32.mrb[0].mxu0
      %1093 = vmatprep.mubr.bf16.mxu0 0
      %1094 = vmatmul.mubr.bf16.gmra.mrb[0].mxu0 %v936
      %v1095 = vpop.f32.mrb[0].mxu0
      %v1096 = vadd.f32 0.0, %v1095
      %v1097 = vpop.f32.mrb[0].mxu0
      %v1098 = vpop.f32.mrb[0].mxu0
      %v1099 = vadd.f32 0.0, %v1098
      %v1100 = vpop.f32.mrb[0].mxu0
      %1101 = vdwg.mxu0
      %v1102 = vadd.f32 %v890, %v976
      %v1103 = vadd.f32 %v891, %v979
      %v1104 = vadd.f32 %v892, %v984
      %v1105 = vadd.f32 %v893, %v987
      %v1106 = vadd.f32 %v894, %v992
      %v1107 = vadd.f32 %v895, %v995
      %v1108 = vadd.f32 %v896, %v1000
      %v1109 = vadd.f32 %v897, %v1003
      %v1110 = vadd.f32 %v898, %v1008
      %v1111 = vadd.f32 %v899, %v1011
      %v1112 = vadd.f32 %v900, %v1016
      %v1113 = vadd.f32 %v901, %v1019
      %v1114 = vadd.f32 %v902, %v1024
      %v1115 = vadd.f32 %v903, %v1027
      %v1116 = vadd.f32 %v904, %v1032
      %v1117 = vadd.f32 %v905, %v1035
      %v1118 = vadd.f32 %v906, %v1040
      %v1119 = vadd.f32 %v907, %v1043
      %v1120 = vadd.f32 %v908, %v1048
      %v1121 = vadd.f32 %v909, %v1051
      %v1122 = vadd.f32 %v910, %v1056
      %v1123 = vadd.f32 %v911, %v1059
      %v1124 = vadd.f32 %v912, %v1064
      %v1125 = vadd.f32 %v913, %v1067
      %v1126 = vadd.f32 %v914, %v1072
      %v1127 = vadd.f32 %v915, %v1075
      %v1128 = vadd.f32 %v916, %v1080
      %v1129 = vadd.f32 %v917, %v1083
      %v1130 = vadd.f32 %v918, %v1088
      %v1131 = vadd.f32 %v919, %v1091
      %v1132 = vadd.f32 %v920, %v1096
      %v1133 = vadd.f32 %v921, %v1099
      %vm1134 = vsmask.f32 3328
      %vm1135 = vsmask.f32 7440
      %vm1136 = vmor %vm1134, %vm1135
      %v1138 = vshrl.u32 %v172, 16
      %v1140 = vrot.slane %v1138, 4
      %v1141 = vshll.u32 %v172, 16
      %v1143 = vrot.slane %v1141, 5
      %v1144 = vor.u32 %v1140, %v1143
      %v1145 = vrot.slane %v1144, 4
      %v1147 = vshll.u32 %v173, 16
      %v1149 = vrot.slane %v1147, 5
      %v1150 = vsel %vm1136, %v1145, %v1149
      %v1151 = vshrl.u32 %v173, 16
      %v1153 = vrot.slane %v1151, 4
      %v1154 = vor.u32 %v1153, %v1149
      %v1155 = vrot.slane %v1154, 4
      %v1157 = vshll.u32 %v174, 16
      %v1159 = vrot.slane %v1157, 5
      %v1160 = vsel %vm1136, %v1155, %v1159
      %v1162 = vshrl.u32 %v175, 16
      %v1164 = vrot.slane %v1162, 4
      %v1165 = vshll.u32 %v175, 16
      %v1167 = vrot.slane %v1165, 5
      %v1168 = vor.u32 %v1164, %v1167
      %v1169 = vrot.slane %v1168, 4
      %v1171 = vshll.u32 %v176, 16
      %v1173 = vrot.slane %v1171, 5
      %v1174 = vsel %vm1136, %v1169, %v1173
      %v1175 = vshrl.u32 %v176, 16
      %v1177 = vrot.slane %v1175, 4
      %v1178 = vor.u32 %v1177, %v1173
      %v1179 = vrot.slane %v1178, 4
      %v1181 = vshll.u32 %v177, 16
      %v1183 = vrot.slane %v1181, 5
      %v1184 = vsel %vm1136, %v1179, %v1183
      %v1186 = vshrl.u32 %v178, 16
      %v1188 = vrot.slane %v1186, 4
      %v1189 = vshll.u32 %v178, 16
      %v1191 = vrot.slane %v1189, 5
      %v1192 = vor.u32 %v1188, %v1191
      %v1193 = vrot.slane %v1192, 4
      %v1195 = vshll.u32 %v179, 16
      %v1197 = vrot.slane %v1195, 5
      %v1198 = vsel %vm1136, %v1193, %v1197
      %v1199 = vshrl.u32 %v179, 16
      %v1201 = vrot.slane %v1199, 4
      %v1202 = vor.u32 %v1201, %v1197
      %v1203 = vrot.slane %v1202, 4
      %v1205 = vshll.u32 %v180, 16
      %v1207 = vrot.slane %v1205, 5
      %v1208 = vsel %vm1136, %v1203, %v1207
      %v1210 = vshrl.u32 %v181, 16
      %v1212 = vrot.slane %v1210, 4
      %v1213 = vshll.u32 %v181, 16
      %v1215 = vrot.slane %v1213, 5
      %v1216 = vor.u32 %v1212, %v1215
      %v1217 = vrot.slane %v1216, 4
      %v1219 = vshll.u32 %v182, 16
      %v1221 = vrot.slane %v1219, 5
      %v1222 = vsel %vm1136, %v1217, %v1221
      %v1223 = vshrl.u32 %v182, 16
      %v1225 = vrot.slane %v1223, 4
      %v1226 = vor.u32 %v1225, %v1221
      %v1227 = vrot.slane %v1226, 4
      %v1229 = vshll.u32 %v183, 16
      %v1231 = vrot.slane %v1229, 5
      %v1232 = vsel %vm1136, %v1227, %v1231
      %v1234 = vshrl.u32 %v184, 16
      %v1236 = vrot.slane %v1234, 4
      %v1237 = vshll.u32 %v184, 16
      %v1239 = vrot.slane %v1237, 5
      %v1240 = vor.u32 %v1236, %v1239
      %v1241 = vrot.slane %v1240, 4
      %v1243 = vshll.u32 %v185, 16
      %v1245 = vrot.slane %v1243, 5
      %v1246 = vsel %vm1136, %v1241, %v1245
      %v1247 = vshrl.u32 %v185, 16
      %v1249 = vrot.slane %v1247, 4
      %v1250 = vor.u32 %v1249, %v1245
      %v1251 = vrot.slane %v1250, 4
      %v1253 = vshll.u32 %v186, 16
      %v1255 = vrot.slane %v1253, 5
      %v1256 = vsel %vm1136, %v1251, %v1255
      %v1258 = vshrl.u32 %v187, 16
      %v1260 = vrot.slane %v1258, 4
      %v1261 = vshll.u32 %v187, 16
      %v1263 = vrot.slane %v1261, 5
      %v1264 = vor.u32 %v1260, %v1263
      %v1265 = vrot.slane %v1264, 4
      %v1267 = vshll.u32 %v188, 16
      %v1269 = vrot.slane %v1267, 5
      %v1270 = vsel %vm1136, %v1265, %v1269
      %v1271 = vshrl.u32 %v188, 16
      %v1273 = vrot.slane %v1271, 4
      %v1274 = vor.u32 %v1273, %v1269
      %v1275 = vrot.slane %v1274, 4
      %v1277 = vshll.u32 %v189, 16
      %v1279 = vrot.slane %v1277, 5
      %v1280 = vsel %vm1136, %v1275, %v1279
      %v1282 = vshrl.u32 %v190, 16
      %v1284 = vrot.slane %v1282, 4
      %v1285 = vshll.u32 %v190, 16
      %v1287 = vrot.slane %v1285, 5
      %v1288 = vor.u32 %v1284, %v1287
      %v1289 = vrot.slane %v1288, 4
      %v1291 = vshll.u32 %v191, 16
      %v1293 = vrot.slane %v1291, 5
      %v1294 = vsel %vm1136, %v1289, %v1293
      %v1295 = vshrl.u32 %v191, 16
      %v1297 = vrot.slane %v1295, 4
      %v1298 = vor.u32 %v1297, %v1293
      %v1299 = vrot.slane %v1298, 4
      %v1301 = vshll.u32 %v192, 16
      %v1303 = vrot.slane %v1301, 5
      %v1304 = vsel %vm1136, %v1299, %v1303
      %v1306 = vshrl.u32 %v193, 16
      %v1308 = vrot.slane %v1306, 4
      %v1309 = vshll.u32 %v193, 16
      %v1311 = vrot.slane %v1309, 5
      %v1312 = vor.u32 %v1308, %v1311
      %v1313 = vrot.slane %v1312, 4
      %v1315 = vshll.u32 %v194, 16
      %v1317 = vrot.slane %v1315, 5
      %v1318 = vsel %vm1136, %v1313, %v1317
      %v1319 = vshrl.u32 %v194, 16
      %v1321 = vrot.slane %v1319, 4
      %v1322 = vor.u32 %v1321, %v1317
      %v1323 = vrot.slane %v1322, 4
      %v1325 = vshll.u32 %v195, 16
      %v1327 = vrot.slane %v1325, 5
      %v1328 = vsel %vm1136, %v1323, %v1327
      %v1330 = vshrl.u32 %v196, 16
      %v1332 = vrot.slane %v1330, 4
      %v1333 = vshll.u32 %v196, 16
      %v1335 = vrot.slane %v1333, 5
      %v1336 = vor.u32 %v1332, %v1335
      %v1337 = vrot.slane %v1336, 4
      %v1339 = vshll.u32 %v197, 16
      %v1341 = vrot.slane %v1339, 5
      %v1342 = vsel %vm1136, %v1337, %v1341
      %v1343 = vshrl.u32 %v197, 16
      %v1345 = vrot.slane %v1343, 4
      %v1346 = vor.u32 %v1345, %v1341
      %v1347 = vrot.slane %v1346, 4
      %v1349 = vshll.u32 %v198, 16
      %v1351 = vrot.slane %v1349, 5
      %v1352 = vsel %vm1136, %v1347, %v1351
      %v1354 = vshrl.u32 %v199, 16
      %v1356 = vrot.slane %v1354, 4
      %v1357 = vshll.u32 %v199, 16
      %v1359 = vrot.slane %v1357, 5
      %v1360 = vor.u32 %v1356, %v1359
      %v1361 = vrot.slane %v1360, 4
      %v1363 = vshll.u32 %v200, 16
      %v1365 = vrot.slane %v1363, 5
      %v1366 = vsel %vm1136, %v1361, %v1365
      %v1367 = vshrl.u32 %v200, 16
      %v1369 = vrot.slane %v1367, 4
      %v1370 = vor.u32 %v1369, %v1365
      %v1371 = vrot.slane %v1370, 4
      %v1373 = vshll.u32 %v201, 16
      %v1375 = vrot.slane %v1373, 5
      %v1376 = vsel %vm1136, %v1371, %v1375
      %v1378 = vshrl.u32 %v202, 16
      %v1380 = vrot.slane %v1378, 4
      %v1381 = vshll.u32 %v202, 16
      %v1383 = vrot.slane %v1381, 5
      %v1384 = vor.u32 %v1380, %v1383
      %v1385 = vrot.slane %v1384, 4
      %v1387 = vshll.u32 %v203, 16
      %v1389 = vrot.slane %v1387, 5
      %v1390 = vsel %vm1136, %v1385, %v1389
      %v1391 = vshrl.u32 %v203, 16
      %v1393 = vrot.slane %v1391, 4
      %v1394 = vor.u32 %v1393, %v1389
      %v1395 = vrot.slane %v1394, 4
      %v1397 = vshll.u32 %v204, 16
      %v1399 = vrot.slane %v1397, 5
      %v1400 = vsel %vm1136, %v1395, %v1399
      %v1402 = vshrl.u32 %v205, 16
      %v1404 = vrot.slane %v1402, 4
      %v1405 = vshll.u32 %v205, 16
      %v1407 = vrot.slane %v1405, 5
      %v1408 = vor.u32 %v1404, %v1407
      %v1409 = vrot.slane %v1408, 4
      %v1411 = vshll.u32 %v206, 16
      %v1413 = vrot.slane %v1411, 5
      %v1414 = vsel %vm1136, %v1409, %v1413
      %v1415 = vshrl.u32 %v206, 16
      %v1417 = vrot.slane %v1415, 4
      %v1418 = vor.u32 %v1417, %v1413
      %v1419 = vrot.slane %v1418, 4
      %v1421 = vshll.u32 %v207, 16
      %v1423 = vrot.slane %v1421, 5
      %v1424 = vsel %vm1136, %v1419, %v1423
      %v1426 = vshrl.u32 %v208, 16
      %v1428 = vrot.slane %v1426, 4
      %v1429 = vshll.u32 %v208, 16
      %v1431 = vrot.slane %v1429, 5
      %v1432 = vor.u32 %v1428, %v1431
      %v1433 = vrot.slane %v1432, 4
      %v1435 = vshll.u32 %v209, 16
      %v1437 = vrot.slane %v1435, 5
      %v1438 = vsel %vm1136, %v1433, %v1437
      %v1439 = vshrl.u32 %v209, 16
      %v1441 = vrot.slane %v1439, 4
      %v1442 = vor.u32 %v1441, %v1437
      %v1443 = vrot.slane %v1442, 4
      %v1445 = vshll.u32 %v210, 16
      %v1447 = vrot.slane %v1445, 5
      %v1448 = vsel %vm1136, %v1443, %v1447
      %v1450 = vshrl.u32 %v211, 16
      %v1452 = vrot.slane %v1450, 4
      %v1453 = vshll.u32 %v211, 16
      %v1455 = vrot.slane %v1453, 5
      %v1456 = vor.u32 %v1452, %v1455
      %v1457 = vrot.slane %v1456, 4
      %v1459 = vshll.u32 %v212, 16
      %v1461 = vrot.slane %v1459, 5
      %v1462 = vsel %vm1136, %v1457, %v1461
      %v1463 = vshrl.u32 %v212, 16
      %v1465 = vrot.slane %v1463, 4
      %v1466 = vor.u32 %v1465, %v1461
      %v1467 = vrot.slane %v1466, 4
      %v1469 = vshll.u32 %v213, 16
      %v1471 = vrot.slane %v1469, 5
      %v1472 = vsel %vm1136, %v1467, %v1471
      %v1474 = vshrl.u32 %v214, 16
      %v1476 = vrot.slane %v1474, 4
      %v1477 = vshll.u32 %v214, 16
      %v1479 = vrot.slane %v1477, 5
      %v1480 = vor.u32 %v1476, %v1479
      %v1481 = vrot.slane %v1480, 4
      %v1483 = vshll.u32 %v215, 16
      %v1485 = vrot.slane %v1483, 5
      %v1486 = vsel %vm1136, %v1481, %v1485
      %v1487 = vshrl.u32 %v215, 16
      %v1489 = vrot.slane %v1487, 4
      %v1490 = vor.u32 %v1489, %v1485
      %v1491 = vrot.slane %v1490, 4
      %v1493 = vshll.u32 %v216, 16
      %v1495 = vrot.slane %v1493, 5
      %v1496 = vsel %vm1136, %v1491, %v1495
      %v1498 = vshrl.u32 %v217, 16
      %v1500 = vrot.slane %v1498, 4
      %v1501 = vshll.u32 %v217, 16
      %v1503 = vrot.slane %v1501, 5
      %v1504 = vor.u32 %v1500, %v1503
      %v1505 = vrot.slane %v1504, 4
      %v1507 = vshll.u32 %v218, 16
      %v1509 = vrot.slane %v1507, 5
      %v1510 = vsel %vm1136, %v1505, %v1509
      %v1511 = vshrl.u32 %v218, 16
      %v1513 = vrot.slane %v1511, 4
      %v1514 = vor.u32 %v1513, %v1509
      %v1515 = vrot.slane %v1514, 4
      %v1517 = vshll.u32 %v219, 16
      %v1519 = vrot.slane %v1517, 5
      %v1520 = vsel %vm1136, %v1515, %v1519
      %v1522 = vshrl.u32 %v220, 16
      %v1524 = vrot.slane %v1522, 4
      %v1525 = vshll.u32 %v220, 16
      %v1527 = vrot.slane %v1525, 5
      %v1528 = vor.u32 %v1524, %v1527
      %v1529 = vrot.slane %v1528, 4
      %v1531 = vshll.u32 %v221, 16
      %v1533 = vrot.slane %v1531, 5
      %v1534 = vsel %vm1136, %v1529, %v1533
      %v1535 = vshrl.u32 %v221, 16
      %v1537 = vrot.slane %v1535, 4
      %v1538 = vor.u32 %v1537, %v1533
      %v1539 = vrot.slane %v1538, 4
      %v1541 = vshll.u32 %v222, 16
      %v1543 = vrot.slane %v1541, 5
      %v1544 = vsel %vm1136, %v1539, %v1543
      %v1546 = vshrl.u32 %v223, 16
      %v1548 = vrot.slane %v1546, 4
      %v1549 = vshll.u32 %v223, 16
      %v1551 = vrot.slane %v1549, 5
      %v1552 = vor.u32 %v1548, %v1551
      %v1553 = vrot.slane %v1552, 4
      %v1555 = vshll.u32 %v224, 16
      %v1557 = vrot.slane %v1555, 5
      %v1558 = vsel %vm1136, %v1553, %v1557
      %v1559 = vshrl.u32 %v224, 16
      %v1561 = vrot.slane %v1559, 4
      %v1562 = vor.u32 %v1561, %v1557
      %v1563 = vrot.slane %v1562, 4
      %v1565 = vshll.u32 %v225, 16
      %v1567 = vrot.slane %v1565, 5
      %v1568 = vsel %vm1136, %v1563, %v1567
      %v1570 = vshrl.u32 %v226, 16
      %v1572 = vrot.slane %v1570, 4
      %v1573 = vshll.u32 %v226, 16
      %v1575 = vrot.slane %v1573, 5
      %v1576 = vor.u32 %v1572, %v1575
      %v1577 = vrot.slane %v1576, 4
      %v1579 = vshll.u32 %v227, 16
      %v1581 = vrot.slane %v1579, 5
      %v1582 = vsel %vm1136, %v1577, %v1581
      %v1583 = vshrl.u32 %v227, 16
      %v1585 = vrot.slane %v1583, 4
      %v1586 = vor.u32 %v1585, %v1581
      %v1587 = vrot.slane %v1586, 4
      %v1589 = vshll.u32 %v228, 16
      %v1591 = vrot.slane %v1589, 5
      %v1592 = vsel %vm1136, %v1587, %v1591
      %s1593 = scalar_lea.vmem %s1, 8
      %v1594 = vld [vmem:[%s1593] sm:$0xf]
      %v1595 = vld [vmem:[%s1593 + $0x4] sm:$0x3]
      %v1596 = vunpack.c.l.b16 %v1150
      %v1597 = vunpack.c.l.b16 %v1160
      %v1598 = vunpack.c.l.b16 %v1174
      %v1599 = vunpack.c.l.b16 %v1184
      %v1600 = vunpack.c.l.b16 %v1198
      %v1601 = vunpack.c.l.b16 %v1208
      %v1602 = vunpack.c.l.b16 %v1222
      %v1603 = vunpack.c.l.b16 %v1232
      %v1604 = vunpack.c.l.b16 %v1246
      %v1605 = vunpack.c.l.b16 %v1256
      %v1606 = vunpack.c.l.b16 %v1270
      %v1607 = vunpack.c.l.b16 %v1280
      %v1608 = vunpack.c.l.b16 %v1294
      %v1609 = vunpack.c.l.b16 %v1304
      %v1610 = vunpack.c.l.b16 %v1318
      %v1611 = vunpack.c.l.b16 %v1328
      %v1612 = vunpack.c.l.b16 %v1342
      %v1613 = vunpack.c.l.b16 %v1352
      %v1614 = vunpack.c.l.b16 %v1366
      %v1615 = vunpack.c.l.b16 %v1376
      %v1616 = vunpack.c.l.b16 %v1390
      %v1617 = vunpack.c.l.b16 %v1400
      %v1618 = vunpack.c.l.b16 %v1414
      %v1619 = vunpack.c.l.b16 %v1424
      %v1620 = vunpack.c.l.b16 %v1438
      %v1621 = vunpack.c.l.b16 %v1448
      %v1622 = vunpack.c.l.b16 %v1462
      %v1623 = vunpack.c.l.b16 %v1472
      %v1624 = vunpack.c.l.b16 %v1486
      %v1625 = vunpack.c.l.b16 %v1496
      %v1626 = vunpack.c.l.b16 %v1510
      %v1627 = vunpack.c.l.b16 %v1520
      %v1628 = vpack.c.b16 %v1597, %v1596
      %v1629 = vpack.c.b16 %v1599, %v1598
      %v1630 = vpack.c.b16 %v1601, %v1600
      %v1631 = vpack.c.b16 %v1603, %v1602
      %v1632 = vpack.c.b16 %v1605, %v1604
      %v1633 = vpack.c.b16 %v1607, %v1606
      %v1634 = vpack.c.b16 %v1609, %v1608
      %v1635 = vpack.c.b16 %v1611, %v1610
      %v1636 = vpack.c.b16 %v1613, %v1612
      %v1637 = vpack.c.b16 %v1615, %v1614
      %v1638 = vpack.c.b16 %v1617, %v1616
      %v1639 = vpack.c.b16 %v1619, %v1618
      %v1640 = vpack.c.b16 %v1621, %v1620
      %v1641 = vpack.c.b16 %v1623, %v1622
      %v1642 = vpack.c.b16 %v1625, %v1624
      %v1643 = vpack.c.b16 %v1627, %v1626
      %v1646 = vunpack.c.l.b16 %v1594
      %v1647 = vunpack.c.l.b16 %v1595
      %v1648 = vpack.c.b16 %v1647, %v1646
      %v1650 = vsel %vm319, %v1628, 0
      %v1653 = vsel %vm319, %v1629, 0
      %v1656 = vsel %vm319, %v1630, 0
      %v1659 = vsel %vm319, %v1631, 0
      %v1662 = vsel %vm319, %v1632, 0
      %v1665 = vsel %vm319, %v1633, 0
      %v1668 = vsel %vm319, %v1634, 0
      %v1671 = vsel %vm319, %v1635, 0
      %v1674 = vsel %vm319, %v1636, 0
      %v1677 = vsel %vm319, %v1637, 0
      %v1680 = vsel %vm319, %v1638, 0
      %v1683 = vsel %vm319, %v1639, 0
      %v1686 = vsel %vm319, %v1640, 0
      %v1689 = vsel %vm319, %v1641, 0
      %v1692 = vsel %vm319, %v1642, 0
      %v1695 = vsel %vm319, %v1643, 0
      %v1698 = vsel %vm368, %v1648, 0
      %1700 = vmatprep.subr.bf16.mxu0 0
      %1701 = vmatpush1.bf16.msra.mxu0 %v1698
      %1702 = vmatprep.subr.bf16.mxu0 0
      %1703 = vmatpush1.bf16.msra.mxu0 0
      %1704 = vmatprep.subr.bf16.mxu0 0
      %1705 = vmatpush1.bf16.msra.mxu0 0
      %1706 = vmatprep.subr.bf16.mxu0 0
      %1707 = vmatpush1.bf16.msra.mxu0 0
      %1708 = vmatprep.subr.bf16.mxu0 0
      %1709 = vmatpush1.bf16.msra.mxu0 0
      %1710 = vmatprep.subr.bf16.mxu0 0
      %1711 = vmatpush1.bf16.msra.mxu0 0
      %1712 = vmatprep.subr.bf16.mxu0 0
      %1713 = vmatpush1.bf16.msra.mxu0 0
      %1714 = vmatprep.subr.bf16.mxu0 0
      %1715 = vmatpush1.bf16.msra.mxu0 0
      %1716 = vmatprep.subr.bf16.mxu0 0
      %1717 = vmatpush1.bf16.msra.mxu0 0
      %1718 = vmatprep.subr.bf16.mxu0 0
      %1719 = vmatpush1.bf16.msra.mxu0 0
      %1720 = vmatprep.subr.bf16.mxu0 0
      %1721 = vmatpush1.bf16.msra.mxu0 0
      %1722 = vmatprep.subr.bf16.mxu0 0
      %1723 = vmatpush1.bf16.msra.mxu0 0
      %1724 = vmatprep.subr.bf16.mxu0 0
      %1725 = vmatpush1.bf16.msra.mxu0 0
      %1726 = vmatprep.subr.bf16.mxu0 0
      %1727 = vmatpush1.bf16.msra.mxu0 0
      %1728 = vmatprep.subr.bf16.mxu0 0
      %1729 = vmatpush1.bf16.msra.mxu0 0
      %1730 = vmatprep.subr.bf16.mxu0 0
      %1731 = vmatpush1.bf16.msra.mxu0 0
      %1732 = vmatprep.mubr.bf16.mxu0 0
      %1733 = vmatmul.mubr.bf16.gmra.mrb[0].mxu0 %v1650
      %v1734 = vpop.f32.mrb[0].mxu0
      %v1735 = vadd.f32 0.0, %v1734
      %v1736 = vpop.f32.mrb[0].mxu0
      %v1737 = vpop.f32.mrb[0].mxu0
      %v1738 = vadd.f32 0.0, %v1737
      %v1739 = vpop.f32.mrb[0].mxu0
      %1740 = vmatprep.mubr.bf16.mxu0 0
      %1741 = vmatmul.mubr.bf16.gmra.mrb[0].mxu0 %v1653
      %v1742 = vpop.f32.mrb[0].mxu0
      %v1743 = vadd.f32 0.0, %v1742
      %v1744 = vpop.f32.mrb[0].mxu0
      %v1745 = vpop.f32.mrb[0].mxu0
      %v1746 = vadd.f32 0.0, %v1745
      %v1747 = vpop.f32.mrb[0].mxu0
      %1748 = vmatprep.mubr.bf16.mxu0 0
      %1749 = vmatmul.mubr.bf16.gmra.mrb[0].mxu0 %v1656
      %v1750 = vpop.f32.mrb[0].mxu0
      %v1751 = vadd.f32 0.0, %v1750
      %v1752 = vpop.f32.mrb[0].mxu0
      %v1753 = vpop.f32.mrb[0].mxu0
      %v1754 = vadd.f32 0.0, %v1753
      %v1755 = vpop.f32.mrb[0].mxu0
      %1756 = vmatprep.mubr.bf16.mxu0 0
      %1757 = vmatmul.mubr.bf16.gmra.mrb[0].mxu0 %v1659
      %v1758 = vpop.f32.mrb[0].mxu0
      %v1759 = vadd.f32 0.0, %v1758
      %v1760 = vpop.f32.mrb[0].mxu0
      %v1761 = vpop.f32.mrb[0].mxu0
      %v1762 = vadd.f32 0.0, %v1761
      %v1763 = vpop.f32.mrb[0].mxu0
      %1764 = vmatprep.mubr.bf16.mxu0 0
      %1765 = vmatmul.mubr.bf16.gmra.mrb[0].mxu0 %v1662
      %v1766 = vpop.f32.mrb[0].mxu0
      %v1767 = vadd.f32 0.0, %v1766
      %v1768 = vpop.f32.mrb[0].mxu0
      %v1769 = vpop.f32.mrb[0].mxu0
      %v1770 = vadd.f32 0.0, %v1769
      %v1771 = vpop.f32.mrb[0].mxu0
      %1772 = vmatprep.mubr.bf16.mxu0 0
      %1773 = vmatmul.mubr.bf16.gmra.mrb[0].mxu0 %v1665
      %v1774 = vpop.f32.mrb[0].mxu0
      %v1775 = vadd.f32 0.0, %v1774
      %v1776 = vpop.f32.mrb[0].mxu0
      %v1777 = vpop.f32.mrb[0].mxu0
      %v1778 = vadd.f32 0.0, %v1777
      %v1779 = vpop.f32.mrb[0].mxu0
      %1780 = vmatprep.mubr.bf16.mxu0 0
      %1781 = vmatmul.mubr.bf16.gmra.mrb[0].mxu0 %v1668
      %v1782 = vpop.f32.mrb[0].mxu0
      %v1783 = vadd.f32 0.0, %v1782
      %v1784 = vpop.f32.mrb[0].mxu0
      %v1785 = vpop.f32.mrb[0].mxu0
      %v1786 = vadd.f32 0.0, %v1785
      %v1787 = vpop.f32.mrb[0].mxu0
      %1788 = vmatprep.mubr.bf16.mxu0 0
      %1789 = vmatmul.mubr.bf16.gmra.mrb[0].mxu0 %v1671
      %v1790 = vpop.f32.mrb[0].mxu0
      %v1791 = vadd.f32 0.0, %v1790
      %v1792 = vpop.f32.mrb[0].mxu0
      %v1793 = vpop.f32.mrb[0].mxu0
      %v1794 = vadd.f32 0.0, %v1793
      %v1795 = vpop.f32.mrb[0].mxu0
      %1796 = vmatprep.mubr.bf16.mxu0 0
      %1797 = vmatmul.mubr.bf16.gmra.mrb[0].mxu0 %v1674
      %v1798 = vpop.f32.mrb[0].mxu0
      %v1799 = vadd.f32 0.0, %v1798
      %v1800 = vpop.f32.mrb[0].mxu0
      %v1801 = vpop.f32.mrb[0].mxu0
      %v1802 = vadd.f32 0.0, %v1801
      %v1803 = vpop.f32.mrb[0].mxu0
      %1804 = vmatprep.mubr.bf16.mxu0 0
      %1805 = vmatmul.mubr.bf16.gmra.mrb[0].mxu0 %v1677
      %v1806 = vpop.f32.mrb[0].mxu0
      %v1807 = vadd.f32 0.0, %v1806
      %v1808 = vpop.f32.mrb[0].mxu0
      %v1809 = vpop.f32.mrb[0].mxu0
      %v1810 = vadd.f32 0.0, %v1809
      %v1811 = vpop.f32.mrb[0].mxu0
      %1812 = vmatprep.mubr.bf16.mxu0 0
      %1813 = vmatmul.mubr.bf16.gmra.mrb[0].mxu0 %v1680
      %v1814 = vpop.f32.mrb[0].mxu0
      %v1815 = vadd.f32 0.0, %v1814
      %v1816 = vpop.f32.mrb[0].mxu0
      %v1817 = vpop.f32.mrb[0].mxu0
      %v1818 = vadd.f32 0.0, %v1817
      %v1819 = vpop.f32.mrb[0].mxu0
      %1820 = vmatprep.mubr.bf16.mxu0 0
      %1821 = vmatmul.mubr.bf16.gmra.mrb[0].mxu0 %v1683
      %v1822 = vpop.f32.mrb[0].mxu0
      %v1823 = vadd.f32 0.0, %v1822
      %v1824 = vpop.f32.mrb[0].mxu0
      %v1825 = vpop.f32.mrb[0].mxu0
      %v1826 = vadd.f32 0.0, %v1825
      %v1827 = vpop.f32.mrb[0].mxu0
      %1828 = vmatprep.mubr.bf16.mxu0 0
      %1829 = vmatmul.mubr.bf16.gmra.mrb[0].mxu0 %v1686
      %v1830 = vpop.f32.mrb[0].mxu0
      %v1831 = vadd.f32 0.0, %v1830
      %v1832 = vpop.f32.mrb[0].mxu0
      %v1833 = vpop.f32.mrb[0].mxu0
      %v1834 = vadd.f32 0.0, %v1833
      %v1835 = vpop.f32.mrb[0].mxu0
      %1836 = vmatprep.mubr.bf16.mxu0 0
      %1837 = vmatmul.mubr.bf16.gmra.mrb[0].mxu0 %v1689
      %v1838 = vpop.f32.mrb[0].mxu0
      %v1839 = vadd.f32 0.0, %v1838
      %v1840 = vpop.f32.mrb[0].mxu0
      %v1841 = vpop.f32.mrb[0].mxu0
      %v1842 = vadd.f32 0.0, %v1841
      %v1843 = vpop.f32.mrb[0].mxu0
      %1844 = vmatprep.mubr.bf16.mxu0 0
      %1845 = vmatmul.mubr.bf16.gmra.mrb[0].mxu0 %v1692
      %v1846 = vpop.f32.mrb[0].mxu0
      %v1847 = vadd.f32 0.0, %v1846
      %v1848 = vpop.f32.mrb[0].mxu0
      %v1849 = vpop.f32.mrb[0].mxu0
      %v1850 = vadd.f32 0.0, %v1849
      %v1851 = vpop.f32.mrb[0].mxu0
      %1852 = vmatprep.mubr.bf16.mxu0 0
      %1853 = vmatmul.mubr.bf16.gmra.mrb[0].mxu0 %v1695
      %v1854 = vpop.f32.mrb[0].mxu0
      %v1855 = vadd.f32 0.0, %v1854
      %v1856 = vpop.f32.mrb[0].mxu0
      %v1857 = vpop.f32.mrb[0].mxu0
      %v1858 = vadd.f32 0.0, %v1857
      %v1859 = vpop.f32.mrb[0].mxu0
      %1860 = vdwg.mxu0
      %v1861 = vadd.f32 %v1102, %v1735
      %v1862 = vadd.f32 %v1103, %v1738
      %v1863 = vadd.f32 %v1104, %v1743
      %v1864 = vadd.f32 %v1105, %v1746
      %v1865 = vadd.f32 %v1106, %v1751
      %v1866 = vadd.f32 %v1107, %v1754
      %v1867 = vadd.f32 %v1108, %v1759
      %v1868 = vadd.f32 %v1109, %v1762
      %v1869 = vadd.f32 %v1110, %v1767
      %v1870 = vadd.f32 %v1111, %v1770
      %v1871 = vadd.f32 %v1112, %v1775
      %v1872 = vadd.f32 %v1113, %v1778
      %v1873 = vadd.f32 %v1114, %v1783
      %v1874 = vadd.f32 %v1115, %v1786
      %v1875 = vadd.f32 %v1116, %v1791
      %v1876 = vadd.f32 %v1117, %v1794
      %v1877 = vadd.f32 %v1118, %v1799
      %v1878 = vadd.f32 %v1119, %v1802
      %v1879 = vadd.f32 %v1120, %v1807
      %v1880 = vadd.f32 %v1121, %v1810
      %v1881 = vadd.f32 %v1122, %v1815
      %v1882 = vadd.f32 %v1123, %v1818
      %v1883 = vadd.f32 %v1124, %v1823
      %v1884 = vadd.f32 %v1125, %v1826
      %v1885 = vadd.f32 %v1126, %v1831
      %v1886 = vadd.f32 %v1127, %v1834
      %v1887 = vadd.f32 %v1128, %v1839
      %v1888 = vadd.f32 %v1129, %v1842
      %v1889 = vadd.f32 %v1130, %v1847
      %v1890 = vadd.f32 %v1131, %v1850
      %v1891 = vadd.f32 %v1132, %v1855
      %v1892 = vadd.f32 %v1133, %v1858
      %s1893 = scalar_lea.vmem %s1, 40
      %v1894 = vld [vmem:[%s1893] sm:$0xf]
      %v1895 = vld [vmem:[%s1893 + $0x4] sm:$0x3]
      %v1896 = vunpack.c.l.b16 %v1534
      %v1897 = vunpack.c.l.b16 %v1544
      %v1898 = vpack.c.b16 %v1897, %v1896
      %v1901 = vunpack.c.l.b16 %v1894
      %v1902 = vunpack.c.l.b16 %v1895
      %v1903 = vpack.c.b16 %v1902, %v1901
      %v1905 = vsel %vm319, %v1898, 0
      %v1908 = vsel %vm368, %v1903, 0
      %1910 = vmatprep.subr.bf16.mxu0 0
      %1911 = vmatpush1.bf16.msra.mxu0 %v1908
      %1912 = vmatprep.subr.bf16.mxu0 0
      %1913 = vmatpush1.bf16.msra.mxu0 0
      %1914 = vmatprep.subr.bf16.mxu0 0
      %1915 = vmatpush1.bf16.msra.mxu0 0
      %1916 = vmatprep.subr.bf16.mxu0 0
      %1917 = vmatpush1.bf16.msra.mxu0 0
      %1918 = vmatprep.subr.bf16.mxu0 0
      %1919 = vmatpush1.bf16.msra.mxu0 0
      %1920 = vmatprep.subr.bf16.mxu0 0
      %1921 = vmatpush1.bf16.msra.mxu0 0
      %1922 = vmatprep.subr.bf16.mxu0 0
      %1923 = vmatpush1.bf16.msra.mxu0 0
      %1924 = vmatprep.subr.bf16.mxu0 0
      %1925 = vmatpush1.bf16.msra.mxu0 0
      %1926 = vmatprep.subr.bf16.mxu0 0
      %1927 = vmatpush1.bf16.msra.mxu0 0
      %1928 = vmatprep.subr.bf16.mxu0 0
      %1929 = vmatpush1.bf16.msra.mxu0 0
      %1930 = vmatprep.subr.bf16.mxu0 0
      %1931 = vmatpush1.bf16.msra.mxu0 0
      %1932 = vmatprep.subr.bf16.mxu0 0
      %1933 = vmatpush1.bf16.msra.mxu0 0
      %1934 = vmatprep.subr.bf16.mxu0 0
      %1935 = vmatpush1.bf16.msra.mxu0 0
      %1936 = vmatprep.subr.bf16.mxu0 0
      %1937 = vmatpush1.bf16.msra.mxu0 0
      %1938 = vmatprep.subr.bf16.mxu0 0
      %1939 = vmatpush1.bf16.msra.mxu0 0
      %1940 = vmatprep.subr.bf16.mxu0 0
      %1941 = vmatpush1.bf16.msra.mxu0 0
      %1942 = vmatprep.mubr.bf16.mxu0 0
      %1943 = vmatmul.mubr.bf16.gmra.mrb[0].mxu0 %v1653
      %v1944 = vpop.f32.mrb[0].mxu0
      %v1945 = vadd.f32 0.0, %v1944
      %v1946 = vpop.f32.mrb[0].mxu0
      %v1947 = vpop.f32.mrb[0].mxu0
      %v1948 = vadd.f32 0.0, %v1947
      %v1949 = vpop.f32.mrb[0].mxu0
      %1950 = vmatprep.mubr.bf16.mxu0 0
      %1951 = vmatmul.mubr.bf16.gmra.mrb[0].mxu0 %v1656
      %v1952 = vpop.f32.mrb[0].mxu0
      %v1953 = vadd.f32 0.0, %v1952
      %v1954 = vpop.f32.mrb[0].mxu0
      %v1955 = vpop.f32.mrb[0].mxu0
      %v1956 = vadd.f32 0.0, %v1955
      %v1957 = vpop.f32.mrb[0].mxu0
      %1958 = vmatprep.mubr.bf16.mxu0 0
      %1959 = vmatmul.mubr.bf16.gmra.mrb[0].mxu0 %v1659
      %v1960 = vpop.f32.mrb[0].mxu0
      %v1961 = vadd.f32 0.0, %v1960
      %v1962 = vpop.f32.mrb[0].mxu0
      %v1963 = vpop.f32.mrb[0].mxu0
      %v1964 = vadd.f32 0.0, %v1963
      %v1965 = vpop.f32.mrb[0].mxu0
      %1966 = vmatprep.mubr.bf16.mxu0 0
      %1967 = vmatmul.mubr.bf16.gmra.mrb[0].mxu0 %v1662
      %v1968 = vpop.f32.mrb[0].mxu0
      %v1969 = vadd.f32 0.0, %v1968
      %v1970 = vpop.f32.mrb[0].mxu0
      %v1971 = vpop.f32.mrb[0].mxu0
      %v1972 = vadd.f32 0.0, %v1971
      %v1973 = vpop.f32.mrb[0].mxu0
      %1974 = vmatprep.mubr.bf16.mxu0 0
      %1975 = vmatmul.mubr.bf16.gmra.mrb[0].mxu0 %v1665
      %v1976 = vpop.f32.mrb[0].mxu0
      %v1977 = vadd.f32 0.0, %v1976
      %v1978 = vpop.f32.mrb[0].mxu0
      %v1979 = vpop.f32.mrb[0].mxu0
      %v1980 = vadd.f32 0.0, %v1979
      %v1981 = vpop.f32.mrb[0].mxu0
      %1982 = vmatprep.mubr.bf16.mxu0 0
      %1983 = vmatmul.mubr.bf16.gmra.mrb[0].mxu0 %v1668
      %v1984 = vpop.f32.mrb[0].mxu0
      %v1985 = vadd.f32 0.0, %v1984
      %v1986 = vpop.f32.mrb[0].mxu0
      %v1987 = vpop.f32.mrb[0].mxu0
      %v1988 = vadd.f32 0.0, %v1987
      %v1989 = vpop.f32.mrb[0].mxu0
      %1990 = vmatprep.mubr.bf16.mxu0 0
      %1991 = vmatmul.mubr.bf16.gmra.mrb[0].mxu0 %v1671
      %v1992 = vpop.f32.mrb[0].mxu0
      %v1993 = vadd.f32 0.0, %v1992
      %v1994 = vpop.f32.mrb[0].mxu0
      %v1995 = vpop.f32.mrb[0].mxu0
      %v1996 = vadd.f32 0.0, %v1995
      %v1997 = vpop.f32.mrb[0].mxu0
      %1998 = vmatprep.mubr.bf16.mxu0 0
      %1999 = vmatmul.mubr.bf16.gmra.mrb[0].mxu0 %v1674
      %v2000 = vpop.f32.mrb[0].mxu0
      %v2001 = vadd.f32 0.0, %v2000
      %v2002 = vpop.f32.mrb[0].mxu0
      %v2003 = vpop.f32.mrb[0].mxu0
      %v2004 = vadd.f32 0.0, %v2003
      %v2005 = vpop.f32.mrb[0].mxu0
      %2006 = vmatprep.mubr.bf16.mxu0 0
      %2007 = vmatmul.mubr.bf16.gmra.mrb[0].mxu0 %v1677
      %v2008 = vpop.f32.mrb[0].mxu0
      %v2009 = vadd.f32 0.0, %v2008
      %v2010 = vpop.f32.mrb[0].mxu0
      %v2011 = vpop.f32.mrb[0].mxu0
      %v2012 = vadd.f32 0.0, %v2011
      %v2013 = vpop.f32.mrb[0].mxu0
      %2014 = vmatprep.mubr.bf16.mxu0 0
      %2015 = vmatmul.mubr.bf16.gmra.mrb[0].mxu0 %v1680
      %v2016 = vpop.f32.mrb[0].mxu0
      %v2017 = vadd.f32 0.0, %v2016
      %v2018 = vpop.f32.mrb[0].mxu0
      %v2019 = vpop.f32.mrb[0].mxu0
      %v2020 = vadd.f32 0.0, %v2019
      %v2021 = vpop.f32.mrb[0].mxu0
      %2022 = vmatprep.mubr.bf16.mxu0 0
      %2023 = vmatmul.mubr.bf16.gmra.mrb[0].mxu0 %v1683
      %v2024 = vpop.f32.mrb[0].mxu0
      %v2025 = vadd.f32 0.0, %v2024
      %v2026 = vpop.f32.mrb[0].mxu0
      %v2027 = vpop.f32.mrb[0].mxu0
      %v2028 = vadd.f32 0.0, %v2027
      %v2029 = vpop.f32.mrb[0].mxu0
      %2030 = vmatprep.mubr.bf16.mxu0 0
      %2031 = vmatmul.mubr.bf16.gmra.mrb[0].mxu0 %v1686
      %v2032 = vpop.f32.mrb[0].mxu0
      %v2033 = vadd.f32 0.0, %v2032
      %v2034 = vpop.f32.mrb[0].mxu0
      %v2035 = vpop.f32.mrb[0].mxu0
      %v2036 = vadd.f32 0.0, %v2035
      %v2037 = vpop.f32.mrb[0].mxu0
      %2038 = vmatprep.mubr.bf16.mxu0 0
      %2039 = vmatmul.mubr.bf16.gmra.mrb[0].mxu0 %v1689
      %v2040 = vpop.f32.mrb[0].mxu0
      %v2041 = vadd.f32 0.0, %v2040
      %v2042 = vpop.f32.mrb[0].mxu0
      %v2043 = vpop.f32.mrb[0].mxu0
      %v2044 = vadd.f32 0.0, %v2043
      %v2045 = vpop.f32.mrb[0].mxu0
      %2046 = vmatprep.mubr.bf16.mxu0 0
      %2047 = vmatmul.mubr.bf16.gmra.mrb[0].mxu0 %v1692
      %v2048 = vpop.f32.mrb[0].mxu0
      %v2049 = vadd.f32 0.0, %v2048
      %v2050 = vpop.f32.mrb[0].mxu0
      %v2051 = vpop.f32.mrb[0].mxu0
      %v2052 = vadd.f32 0.0, %v2051
      %v2053 = vpop.f32.mrb[0].mxu0
      %2054 = vmatprep.mubr.bf16.mxu0 0
      %2055 = vmatmul.mubr.bf16.gmra.mrb[0].mxu0 %v1695
      %v2056 = vpop.f32.mrb[0].mxu0
      %v2057 = vadd.f32 0.0, %v2056
      %v2058 = vpop.f32.mrb[0].mxu0
      %v2059 = vpop.f32.mrb[0].mxu0
      %v2060 = vadd.f32 0.0, %v2059
      %v2061 = vpop.f32.mrb[0].mxu0
      %2062 = vmatprep.mubr.bf16.mxu0 0
      %2063 = vmatmul.mubr.bf16.gmra.mrb[0].mxu0 %v1905
      %v2064 = vpop.f32.mrb[0].mxu0
      %v2065 = vadd.f32 0.0, %v2064
      %v2066 = vpop.f32.mrb[0].mxu0
      %v2067 = vpop.f32.mrb[0].mxu0
      %v2068 = vadd.f32 0.0, %v2067
      %v2069 = vpop.f32.mrb[0].mxu0
      %2070 = vdwg.mxu0
      %v2071 = vadd.f32 %v1861, %v1945
      %v2072 = vadd.f32 %v1862, %v1948
      %v2073 = vadd.f32 %v1863, %v1953
      %v2074 = vadd.f32 %v1864, %v1956
      %v2075 = vadd.f32 %v1865, %v1961
      %v2076 = vadd.f32 %v1866, %v1964
      %v2077 = vadd.f32 %v1867, %v1969
      %v2078 = vadd.f32 %v1868, %v1972
      %v2079 = vadd.f32 %v1869, %v1977
      %v2080 = vadd.f32 %v1870, %v1980
      %v2081 = vadd.f32 %v1871, %v1985
      %v2082 = vadd.f32 %v1872, %v1988
      %v2083 = vadd.f32 %v1873, %v1993
      %v2084 = vadd.f32 %v1874, %v1996
      %v2085 = vadd.f32 %v1875, %v2001
      %v2086 = vadd.f32 %v1876, %v2004
      %v2087 = vadd.f32 %v1877, %v2009
      %v2088 = vadd.f32 %v1878, %v2012
      %v2089 = vadd.f32 %v1879, %v2017
      %v2090 = vadd.f32 %v1880, %v2020
      %v2091 = vadd.f32 %v1881, %v2025
      %v2092 = vadd.f32 %v1882, %v2028
      %v2093 = vadd.f32 %v1883, %v2033
      %v2094 = vadd.f32 %v1884, %v2036
      %v2095 = vadd.f32 %v1885, %v2041
      %v2096 = vadd.f32 %v1886, %v2044
      %v2097 = vadd.f32 %v1887, %v2049
      %v2098 = vadd.f32 %v1888, %v2052
      %v2099 = vadd.f32 %v1889, %v2057
      %v2100 = vadd.f32 %v1890, %v2060
      %v2101 = vadd.f32 %v1891, %v2065
      %v2102 = vadd.f32 %v1892, %v2068
      %s2103 = scalar_lea.vmem %s1, 72
      %v2104 = vld [vmem:[%s2103] sm:$0xf]
      %v2105 = vld [vmem:[%s2103 + $0x4] sm:$0x3]
      %v2106 = vunpack.c.l.b16 %v1558
      %v2107 = vunpack.c.l.b16 %v1568
      %v2108 = vpack.c.b16 %v2107, %v2106
      %v2111 = vunpack.c.l.b16 %v2104
      %v2112 = vunpack.c.l.b16 %v2105
      %v2113 = vpack.c.b16 %v2112, %v2111
      %v2115 = vsel %vm319, %v2108, 0
      %v2118 = vsel %vm368, %v2113, 0
      %2120 = vmatprep.subr.bf16.mxu0 0
      %2121 = vmatpush1.bf16.msra.mxu0 %v2118
      %2122 = vmatprep.subr.bf16.mxu0 0
      %2123 = vmatpush1.bf16.msra.mxu0 0
      %2124 = vmatprep.subr.bf16.mxu0 0
      %2125 = vmatpush1.bf16.msra.mxu0 0
      %2126 = vmatprep.subr.bf16.mxu0 0
      %2127 = vmatpush1.bf16.msra.mxu0 0
      %2128 = vmatprep.subr.bf16.mxu0 0
      %2129 = vmatpush1.bf16.msra.mxu0 0
      %2130 = vmatprep.subr.bf16.mxu0 0
      %2131 = vmatpush1.bf16.msra.mxu0 0
      %2132 = vmatprep.subr.bf16.mxu0 0
      %2133 = vmatpush1.bf16.msra.mxu0 0
      %2134 = vmatprep.subr.bf16.mxu0 0
      %2135 = vmatpush1.bf16.msra.mxu0 0
      %2136 = vmatprep.subr.bf16.mxu0 0
      %2137 = vmatpush1.bf16.msra.mxu0 0
      %2138 = vmatprep.subr.bf16.mxu0 0
      %2139 = vmatpush1.bf16.msra.mxu0 0
      %2140 = vmatprep.subr.bf16.mxu0 0
      %2141 = vmatpush1.bf16.msra.mxu0 0
      %2142 = vmatprep.subr.bf16.mxu0 0
      %2143 = vmatpush1.bf16.msra.mxu0 0
      %2144 = vmatprep.subr.bf16.mxu0 0
      %2145 = vmatpush1.bf16.msra.mxu0 0
      %2146 = vmatprep.subr.bf16.mxu0 0
      %2147 = vmatpush1.bf16.msra.mxu0 0
      %2148 = vmatprep.subr.bf16.mxu0 0
      %2149 = vmatpush1.bf16.msra.mxu0 0
      %2150 = vmatprep.subr.bf16.mxu0 0
      %2151 = vmatpush1.bf16.msra.mxu0 0
      %2152 = vmatprep.mubr.bf16.mxu0 0
      %2153 = vmatmul.mubr.bf16.gmra.mrb[0].mxu0 %v1656
      %v2154 = vpop.f32.mrb[0].mxu0
      %v2155 = vadd.f32 0.0, %v2154
      %v2156 = vpop.f32.mrb[0].mxu0
      %v2157 = vpop.f32.mrb[0].mxu0
      %v2158 = vadd.f32 0.0, %v2157
      %v2159 = vpop.f32.mrb[0].mxu0
      %2160 = vmatprep.mubr.bf16.mxu0 0
      %2161 = vmatmul.mubr.bf16.gmra.mrb[0].mxu0 %v1659
      %v2162 = vpop.f32.mrb[0].mxu0
      %v2163 = vadd.f32 0.0, %v2162
      %v2164 = vpop.f32.mrb[0].mxu0
      %v2165 = vpop.f32.mrb[0].mxu0
      %v2166 = vadd.f32 0.0, %v2165
      %v2167 = vpop.f32.mrb[0].mxu0
      %2168 = vmatprep.mubr.bf16.mxu0 0
      %2169 = vmatmul.mubr.bf16.gmra.mrb[0].mxu0 %v1662
      %v2170 = vpop.f32.mrb[0].mxu0
      %v2171 = vadd.f32 0.0, %v2170
      %v2172 = vpop.f32.mrb[0].mxu0
      %v2173 = vpop.f32.mrb[0].mxu0
      %v2174 = vadd.f32 0.0, %v2173
      %v2175 = vpop.f32.mrb[0].mxu0
      %2176 = vmatprep.mubr.bf16.mxu0 0
      %2177 = vmatmul.mubr.bf16.gmra.mrb[0].mxu0 %v1665
      %v2178 = vpop.f32.mrb[0].mxu0
      %v2179 = vadd.f32 0.0, %v2178
      %v2180 = vpop.f32.mrb[0].mxu0
      %v2181 = vpop.f32.mrb[0].mxu0
      %v2182 = vadd.f32 0.0, %v2181
      %v2183 = vpop.f32.mrb[0].mxu0
      %2184 = vmatprep.mubr.bf16.mxu0 0
      %2185 = vmatmul.mubr.bf16.gmra.mrb[0].mxu0 %v1668
      %v2186 = vpop.f32.mrb[0].mxu0
      %v2187 = vadd.f32 0.0, %v2186
      %v2188 = vpop.f32.mrb[0].mxu0
      %v2189 = vpop.f32.mrb[0].mxu0
      %v2190 = vadd.f32 0.0, %v2189
      %v2191 = vpop.f32.mrb[0].mxu0
      %2192 = vmatprep.mubr.bf16.mxu0 0
      %2193 = vmatmul.mubr.bf16.gmra.mrb[0].mxu0 %v1671
      %v2194 = vpop.f32.mrb[0].mxu0
      %v2195 = vadd.f32 0.0, %v2194
      %v2196 = vpop.f32.mrb[0].mxu0
      %v2197 = vpop.f32.mrb[0].mxu0
      %v2198 = vadd.f32 0.0, %v2197
      %v2199 = vpop.f32.mrb[0].mxu0
      %2200 = vmatprep.mubr.bf16.mxu0 0
      %2201 = vmatmul.mubr.bf16.gmra.mrb[0].mxu0 %v1674
      %v2202 = vpop.f32.mrb[0].mxu0
      %v2203 = vadd.f32 0.0, %v2202
      %v2204 = vpop.f32.mrb[0].mxu0
      %v2205 = vpop.f32.mrb[0].mxu0
      %v2206 = vadd.f32 0.0, %v2205
      %v2207 = vpop.f32.mrb[0].mxu0
      %2208 = vmatprep.mubr.bf16.mxu0 0
      %2209 = vmatmul.mubr.bf16.gmra.mrb[0].mxu0 %v1677
      %v2210 = vpop.f32.mrb[0].mxu0
      %v2211 = vadd.f32 0.0, %v2210
      %v2212 = vpop.f32.mrb[0].mxu0
      %v2213 = vpop.f32.mrb[0].mxu0
      %v2214 = vadd.f32 0.0, %v2213
      %v2215 = vpop.f32.mrb[0].mxu0
      %2216 = vmatprep.mubr.bf16.mxu0 0
      %2217 = vmatmul.mubr.bf16.gmra.mrb[0].mxu0 %v1680
      %v2218 = vpop.f32.mrb[0].mxu0
      %v2219 = vadd.f32 0.0, %v2218
      %v2220 = vpop.f32.mrb[0].mxu0
      %v2221 = vpop.f32.mrb[0].mxu0
      %v2222 = vadd.f32 0.0, %v2221
      %v2223 = vpop.f32.mrb[0].mxu0
      %2224 = vmatprep.mubr.bf16.mxu0 0
      %2225 = vmatmul.mubr.bf16.gmra.mrb[0].mxu0 %v1683
      %v2226 = vpop.f32.mrb[0].mxu0
      %v2227 = vadd.f32 0.0, %v2226
      %v2228 = vpop.f32.mrb[0].mxu0
      %v2229 = vpop.f32.mrb[0].mxu0
      %v2230 = vadd.f32 0.0, %v2229
      %v2231 = vpop.f32.mrb[0].mxu0
      %2232 = vmatprep.mubr.bf16.mxu0 0
      %2233 = vmatmul.mubr.bf16.gmra.mrb[0].mxu0 %v1686
      %v2234 = vpop.f32.mrb[0].mxu0
      %v2235 = vadd.f32 0.0, %v2234
      %v2236 = vpop.f32.mrb[0].mxu0
      %v2237 = vpop.f32.mrb[0].mxu0
      %v2238 = vadd.f32 0.0, %v2237
      %v2239 = vpop.f32.mrb[0].mxu0
      %2240 = vmatprep.mubr.bf16.mxu0 0
      %2241 = vmatmul.mubr.bf16.gmra.mrb[0].mxu0 %v1689
      %v2242 = vpop.f32.mrb[0].mxu0
      %v2243 = vadd.f32 0.0, %v2242
      %v2244 = vpop.f32.mrb[0].mxu0
      %v2245 = vpop.f32.mrb[0].mxu0
      %v2246 = vadd.f32 0.0, %v2245
      %v2247 = vpop.f32.mrb[0].mxu0
      %2248 = vmatprep.mubr.bf16.mxu0 0
      %2249 = vmatmul.mubr.bf16.gmra.mrb[0].mxu0 %v1692
      %v2250 = vpop.f32.mrb[0].mxu0
      %v2251 = vadd.f32 0.0, %v2250
      %v2252 = vpop.f32.mrb[0].mxu0
      %v2253 = vpop.f32.mrb[0].mxu0
      %v2254 = vadd.f32 0.0, %v2253
      %v2255 = vpop.f32.mrb[0].mxu0
      %2256 = vmatprep.mubr.bf16.mxu0 0
      %2257 = vmatmul.mubr.bf16.gmra.mrb[0].mxu0 %v1695
      %v2258 = vpop.f32.mrb[0].mxu0
      %v2259 = vadd.f32 0.0, %v2258
      %v2260 = vpop.f32.mrb[0].mxu0
      %v2261 = vpop.f32.mrb[0].mxu0
      %v2262 = vadd.f32 0.0, %v2261
      %v2263 = vpop.f32.mrb[0].mxu0
      %2264 = vmatprep.mubr.bf16.mxu0 0
      %2265 = vmatmul.mubr.bf16.gmra.mrb[0].mxu0 %v1905
      %v2266 = vpop.f32.mrb[0].mxu0
      %v2267 = vadd.f32 0.0, %v2266
      %v2268 = vpop.f32.mrb[0].mxu0
      %v2269 = vpop.f32.mrb[0].mxu0
      %v2270 = vadd.f32 0.0, %v2269
      %v2271 = vpop.f32.mrb[0].mxu0
      %2272 = vmatprep.mubr.bf16.mxu0 0
      %2273 = vmatmul.mubr.bf16.gmra.mrb[0].mxu0 %v2115
      %v2274 = vpop.f32.mrb[0].mxu0
      %v2275 = vadd.f32 0.0, %v2274
      %v2276 = vpop.f32.mrb[0].mxu0
      %v2277 = vpop.f32.mrb[0].mxu0
      %v2278 = vadd.f32 0.0, %v2277
      %v2279 = vpop.f32.mrb[0].mxu0
      %2280 = vdwg.mxu0
      %v2281 = vadd.f32 %v2071, %v2155
      %v2282 = vadd.f32 %v2072, %v2158
      %v2283 = vadd.f32 %v2073, %v2163
      %v2284 = vadd.f32 %v2074, %v2166
      %v2285 = vadd.f32 %v2075, %v2171
      %v2286 = vadd.f32 %v2076, %v2174
      %v2287 = vadd.f32 %v2077, %v2179
      %v2288 = vadd.f32 %v2078, %v2182
      %v2289 = vadd.f32 %v2079, %v2187
      %v2290 = vadd.f32 %v2080, %v2190
      %v2291 = vadd.f32 %v2081, %v2195
      %v2292 = vadd.f32 %v2082, %v2198
      %v2293 = vadd.f32 %v2083, %v2203
      %v2294 = vadd.f32 %v2084, %v2206
      %v2295 = vadd.f32 %v2085, %v2211
      %v2296 = vadd.f32 %v2086, %v2214
      %v2297 = vadd.f32 %v2087, %v2219
      %v2298 = vadd.f32 %v2088, %v2222
      %v2299 = vadd.f32 %v2089, %v2227
      %v2300 = vadd.f32 %v2090, %v2230
      %v2301 = vadd.f32 %v2091, %v2235
      %v2302 = vadd.f32 %v2092, %v2238
      %v2303 = vadd.f32 %v2093, %v2243
      %v2304 = vadd.f32 %v2094, %v2246
      %v2305 = vadd.f32 %v2095, %v2251
      %v2306 = vadd.f32 %v2096, %v2254
      %v2307 = vadd.f32 %v2097, %v2259
      %v2308 = vadd.f32 %v2098, %v2262
      %v2309 = vadd.f32 %v2099, %v2267
      %v2310 = vadd.f32 %v2100, %v2270
      %v2311 = vadd.f32 %v2101, %v2275
      %v2312 = vadd.f32 %v2102, %v2278
      %s2313 = scalar_lea.vmem %s1, 104
      %v2314 = vld [vmem:[%s2313] sm:$0xf]
      %v2315 = vld [vmem:[%s2313 + $0x4] sm:$0x3]
      %v2316 = vunpack.c.l.b16 %v1582
      %v2317 = vunpack.c.l.b16 %v1592
      %v2318 = vpack.c.b16 %v2317, %v2316
      %v2321 = vunpack.c.l.b16 %v2314
      %v2322 = vunpack.c.l.b16 %v2315
      %v2323 = vpack.c.b16 %v2322, %v2321
      %v2325 = vsel %vm319, %v2318, 0
      %v2328 = vsel %vm368, %v2323, 0
      %2330 = vmatprep.subr.bf16.mxu0 0
      %2331 = vmatpush1.bf16.msra.mxu0 %v2328
      %2332 = vmatprep.subr.bf16.mxu0 0
      %2333 = vmatpush1.bf16.msra.mxu0 0
      %2334 = vmatprep.subr.bf16.mxu0 0
      %2335 = vmatpush1.bf16.msra.mxu0 0
      %2336 = vmatprep.subr.bf16.mxu0 0
      %2337 = vmatpush1.bf16.msra.mxu0 0
      %2338 = vmatprep.subr.bf16.mxu0 0
      %2339 = vmatpush1.bf16.msra.mxu0 0
      %2340 = vmatprep.subr.bf16.mxu0 0
      %2341 = vmatpush1.bf16.msra.mxu0 0
      %2342 = vmatprep.subr.bf16.mxu0 0
      %2343 = vmatpush1.bf16.msra.mxu0 0
      %2344 = vmatprep.subr.bf16.mxu0 0
      %2345 = vmatpush1.bf16.msra.mxu0 0
      %2346 = vmatprep.subr.bf16.mxu0 0
      %2347 = vmatpush1.bf16.msra.mxu0 0
      %2348 = vmatprep.subr.bf16.mxu0 0
      %2349 = vmatpush1.bf16.msra.mxu0 0
      %2350 = vmatprep.subr.bf16.mxu0 0
      %2351 = vmatpush1.bf16.msra.mxu0 0
      %2352 = vmatprep.subr.bf16.mxu0 0
      %2353 = vmatpush1.bf16.msra.mxu0 0
      %2354 = vmatprep.subr.bf16.mxu0 0
      %2355 = vmatpush1.bf16.msra.mxu0 0
      %2356 = vmatprep.subr.bf16.mxu0 0
      %2357 = vmatpush1.bf16.msra.mxu0 0
      %2358 = vmatprep.subr.bf16.mxu0 0
      %2359 = vmatpush1.bf16.msra.mxu0 0
      %2360 = vmatprep.subr.bf16.mxu0 0
      %2361 = vmatpush1.bf16.msra.mxu0 0
      %2362 = vmatprep.mubr.bf16.mxu0 0
      %2363 = vmatmul.mubr.bf16.gmra.mrb[0].mxu0 %v1659
      %v2364 = vpop.f32.mrb[0].mxu0
      %v2365 = vadd.f32 0.0, %v2364
      %v2366 = vpop.f32.mrb[0].mxu0
      %v2367 = vpop.f32.mrb[0].mxu0
      %v2368 = vadd.f32 0.0, %v2367
      %v2369 = vpop.f32.mrb[0].mxu0
      %2370 = vmatprep.mubr.bf16.mxu0 0
      %2371 = vmatmul.mubr.bf16.gmra.mrb[0].mxu0 %v1662
      %v2372 = vpop.f32.mrb[0].mxu0
      %v2373 = vadd.f32 0.0, %v2372
      %v2374 = vpop.f32.mrb[0].mxu0
      %v2375 = vpop.f32.mrb[0].mxu0
      %v2376 = vadd.f32 0.0, %v2375
      %v2377 = vpop.f32.mrb[0].mxu0
      %2378 = vmatprep.mubr.bf16.mxu0 0
      %2379 = vmatmul.mubr.bf16.gmra.mrb[0].mxu0 %v1665
      %v2380 = vpop.f32.mrb[0].mxu0
      %v2381 = vadd.f32 0.0, %v2380
      %v2382 = vpop.f32.mrb[0].mxu0
      %v2383 = vpop.f32.mrb[0].mxu0
      %v2384 = vadd.f32 0.0, %v2383
      %v2385 = vpop.f32.mrb[0].mxu0
      %2386 = vmatprep.mubr.bf16.mxu0 0
      %2387 = vmatmul.mubr.bf16.gmra.mrb[0].mxu0 %v1668
      %v2388 = vpop.f32.mrb[0].mxu0
      %v2389 = vadd.f32 0.0, %v2388
      %v2390 = vpop.f32.mrb[0].mxu0
      %v2391 = vpop.f32.mrb[0].mxu0
      %v2392 = vadd.f32 0.0, %v2391
      %v2393 = vpop.f32.mrb[0].mxu0
      %2394 = vmatprep.mubr.bf16.mxu0 0
      %2395 = vmatmul.mubr.bf16.gmra.mrb[0].mxu0 %v1671
      %v2396 = vpop.f32.mrb[0].mxu0
      %v2397 = vadd.f32 0.0, %v2396
      %v2398 = vpop.f32.mrb[0].mxu0
      %v2399 = vpop.f32.mrb[0].mxu0
      %v2400 = vadd.f32 0.0, %v2399
      %v2401 = vpop.f32.mrb[0].mxu0
      %2402 = vmatprep.mubr.bf16.mxu0 0
      %2403 = vmatmul.mubr.bf16.gmra.mrb[0].mxu0 %v1674
      %v2404 = vpop.f32.mrb[0].mxu0
      %v2405 = vadd.f32 0.0, %v2404
      %v2406 = vpop.f32.mrb[0].mxu0
      %v2407 = vpop.f32.mrb[0].mxu0
      %v2408 = vadd.f32 0.0, %v2407
      %v2409 = vpop.f32.mrb[0].mxu0
      %2410 = vmatprep.mubr.bf16.mxu0 0
      %2411 = vmatmul.mubr.bf16.gmra.mrb[0].mxu0 %v1677
      %v2412 = vpop.f32.mrb[0].mxu0
      %v2413 = vadd.f32 0.0, %v2412
      %v2414 = vpop.f32.mrb[0].mxu0
      %v2415 = vpop.f32.mrb[0].mxu0
      %v2416 = vadd.f32 0.0, %v2415
      %v2417 = vpop.f32.mrb[0].mxu0
      %2418 = vmatprep.mubr.bf16.mxu0 0
      %2419 = vmatmul.mubr.bf16.gmra.mrb[0].mxu0 %v1680
      %v2420 = vpop.f32.mrb[0].mxu0
      %v2421 = vadd.f32 0.0, %v2420
      %v2422 = vpop.f32.mrb[0].mxu0
      %v2423 = vpop.f32.mrb[0].mxu0
      %v2424 = vadd.f32 0.0, %v2423
      %v2425 = vpop.f32.mrb[0].mxu0
      %2426 = vmatprep.mubr.bf16.mxu0 0
      %2427 = vmatmul.mubr.bf16.gmra.mrb[0].mxu0 %v1683
      %v2428 = vpop.f32.mrb[0].mxu0
      %v2429 = vadd.f32 0.0, %v2428
      %v2430 = vpop.f32.mrb[0].mxu0
      %v2431 = vpop.f32.mrb[0].mxu0
      %v2432 = vadd.f32 0.0, %v2431
      %v2433 = vpop.f32.mrb[0].mxu0
      %2434 = vmatprep.mubr.bf16.mxu0 0
      %2435 = vmatmul.mubr.bf16.gmra.mrb[0].mxu0 %v1686
      %v2436 = vpop.f32.mrb[0].mxu0
      %v2437 = vadd.f32 0.0, %v2436
      %v2438 = vpop.f32.mrb[0].mxu0
      %v2439 = vpop.f32.mrb[0].mxu0
      %v2440 = vadd.f32 0.0, %v2439
      %v2441 = vpop.f32.mrb[0].mxu0
      %2442 = vmatprep.mubr.bf16.mxu0 0
      %2443 = vmatmul.mubr.bf16.gmra.mrb[0].mxu0 %v1689
      %v2444 = vpop.f32.mrb[0].mxu0
      %v2445 = vadd.f32 0.0, %v2444
      %v2446 = vpop.f32.mrb[0].mxu0
      %v2447 = vpop.f32.mrb[0].mxu0
      %v2448 = vadd.f32 0.0, %v2447
      %v2449 = vpop.f32.mrb[0].mxu0
      %2450 = vmatprep.mubr.bf16.mxu0 0
      %2451 = vmatmul.mubr.bf16.gmra.mrb[0].mxu0 %v1692
      %v2452 = vpop.f32.mrb[0].mxu0
      %v2453 = vadd.f32 0.0, %v2452
      %v2454 = vpop.f32.mrb[0].mxu0
      %v2455 = vpop.f32.mrb[0].mxu0
      %v2456 = vadd.f32 0.0, %v2455
      %v2457 = vpop.f32.mrb[0].mxu0
      %2458 = vmatprep.mubr.bf16.mxu0 0
      %2459 = vmatmul.mubr.bf16.gmra.mrb[0].mxu0 %v1695
      %v2460 = vpop.f32.mrb[0].mxu0
      %v2461 = vadd.f32 0.0, %v2460
      %v2462 = vpop.f32.mrb[0].mxu0
      %v2463 = vpop.f32.mrb[0].mxu0
      %v2464 = vadd.f32 0.0, %v2463
      %v2465 = vpop.f32.mrb[0].mxu0
      %2466 = vmatprep.mubr.bf16.mxu0 0
      %2467 = vmatmul.mubr.bf16.gmra.mrb[0].mxu0 %v1905
      %v2468 = vpop.f32.mrb[0].mxu0
      %v2469 = vadd.f32 0.0, %v2468
      %v2470 = vpop.f32.mrb[0].mxu0
      %v2471 = vpop.f32.mrb[0].mxu0
      %v2472 = vadd.f32 0.0, %v2471
      %v2473 = vpop.f32.mrb[0].mxu0
      %2474 = vmatprep.mubr.bf16.mxu0 0
      %2475 = vmatmul.mubr.bf16.gmra.mrb[0].mxu0 %v2115
      %v2476 = vpop.f32.mrb[0].mxu0
      %v2477 = vadd.f32 0.0, %v2476
      %v2478 = vpop.f32.mrb[0].mxu0
      %v2479 = vpop.f32.mrb[0].mxu0
      %v2480 = vadd.f32 0.0, %v2479
      %v2481 = vpop.f32.mrb[0].mxu0
      %2482 = vmatprep.mubr.bf16.mxu0 0
      %2483 = vmatmul.mubr.bf16.gmra.mrb[0].mxu0 %v2325
      %v2484 = vpop.f32.mrb[0].mxu0
      %v2485 = vadd.f32 0.0, %v2484
      %v2486 = vpop.f32.mrb[0].mxu0
      %v2487 = vpop.f32.mrb[0].mxu0
      %v2488 = vadd.f32 0.0, %v2487
      %v2489 = vpop.f32.mrb[0].mxu0
      %2490 = vdwg.mxu0
      %v2491 = vadd.f32 %v2281, %v2365
      %v2492 = vadd.f32 %v2282, %v2368
      %v2493 = vadd.f32 %v2283, %v2373
      %v2494 = vadd.f32 %v2284, %v2376
      %v2495 = vadd.f32 %v2285, %v2381
      %v2496 = vadd.f32 %v2286, %v2384
      %v2497 = vadd.f32 %v2287, %v2389
      %v2498 = vadd.f32 %v2288, %v2392
      %v2499 = vadd.f32 %v2289, %v2397
      %v2500 = vadd.f32 %v2290, %v2400
      %v2501 = vadd.f32 %v2291, %v2405
      %v2502 = vadd.f32 %v2292, %v2408
      %v2503 = vadd.f32 %v2293, %v2413
      %v2504 = vadd.f32 %v2294, %v2416
      %v2505 = vadd.f32 %v2295, %v2421
      %v2506 = vadd.f32 %v2296, %v2424
      %v2507 = vadd.f32 %v2297, %v2429
      %v2508 = vadd.f32 %v2298, %v2432
      %v2509 = vadd.f32 %v2299, %v2437
      %v2510 = vadd.f32 %v2300, %v2440
      %v2511 = vadd.f32 %v2301, %v2445
      %v2512 = vadd.f32 %v2302, %v2448
      %v2513 = vadd.f32 %v2303, %v2453
      %v2514 = vadd.f32 %v2304, %v2456
      %v2515 = vadd.f32 %v2305, %v2461
      %v2516 = vadd.f32 %v2306, %v2464
      %v2517 = vadd.f32 %v2307, %v2469
      %v2518 = vadd.f32 %v2308, %v2472
      %v2519 = vadd.f32 %v2309, %v2477
      %v2520 = vadd.f32 %v2310, %v2480
      %v2521 = vadd.f32 %v2311, %v2485
      %v2522 = vadd.f32 %v2312, %v2488
      %vm2542 = vcmask 1042432
      %vm2543 = vcmask 1046532
      %vm2544 = vmor %vm2542, %vm2543
      %v2545 = vrot.slane %v172, 5
      %v2546 = vrot.slane %v2545, 4
      %v2547 = vrot.slane %v173, 5
      %v2548 = vsel %vm2544, %v2546, %v2547
      %v2549 = vrot.slane %v2547, 4
      %v2550 = vrot.slane %v174, 5
      %v2551 = vsel %vm2544, %v2549, %v2550
      %v2552 = vrot.slane %v175, 5
      %v2553 = vrot.slane %v2552, 4
      %v2554 = vrot.slane %v176, 5
      %v2555 = vsel %vm2544, %v2553, %v2554
      %v2556 = vrot.slane %v2554, 4
      %v2557 = vrot.slane %v177, 5
      %v2558 = vsel %vm2544, %v2556, %v2557
      %v2559 = vrot.slane %v178, 5
      %v2560 = vrot.slane %v2559, 4
      %v2561 = vrot.slane %v179, 5
      %v2562 = vsel %vm2544, %v2560, %v2561
      %v2563 = vrot.slane %v2561, 4
      %v2564 = vrot.slane %v180, 5
      %v2565 = vsel %vm2544, %v2563, %v2564
      %v2566 = vrot.slane %v181, 5
      %v2567 = vrot.slane %v2566, 4
      %v2568 = vrot.slane %v182, 5
      %v2569 = vsel %vm2544, %v2567, %v2568
      %v2570 = vrot.slane %v2568, 4
      %v2571 = vrot.slane %v183, 5
      %v2572 = vsel %vm2544, %v2570, %v2571
      %v2573 = vrot.slane %v184, 5
      %v2574 = vrot.slane %v2573, 4
      %v2575 = vrot.slane %v185, 5
      %v2576 = vsel %vm2544, %v2574, %v2575
      %v2577 = vrot.slane %v2575, 4
      %v2578 = vrot.slane %v186, 5
      %v2579 = vsel %vm2544, %v2577, %v2578
      %v2580 = vrot.slane %v187, 5
      %v2581 = vrot.slane %v2580, 4
      %v2582 = vrot.slane %v188, 5
      %v2583 = vsel %vm2544, %v2581, %v2582
      %v2584 = vrot.slane %v2582, 4
      %v2585 = vrot.slane %v189, 5
      %v2586 = vsel %vm2544, %v2584, %v2585
      %v2587 = vrot.slane %v190, 5
      %v2588 = vrot.slane %v2587, 4
      %v2589 = vrot.slane %v191, 5
      %v2590 = vsel %vm2544, %v2588, %v2589
      %v2591 = vrot.slane %v2589, 4
      %v2592 = vrot.slane %v192, 5
      %v2593 = vsel %vm2544, %v2591, %v2592
      %v2594 = vrot.slane %v193, 5
      %v2595 = vrot.slane %v2594, 4
      %v2596 = vrot.slane %v194, 5
      %v2597 = vsel %vm2544, %v2595, %v2596
      %v2598 = vrot.slane %v2596, 4
      %v2599 = vrot.slane %v195, 5
      %v2600 = vsel %vm2544, %v2598, %v2599
      %v2601 = vrot.slane %v196, 5
      %v2602 = vrot.slane %v2601, 4
      %v2603 = vrot.slane %v197, 5
      %v2604 = vsel %vm2544, %v2602, %v2603
      %v2605 = vrot.slane %v2603, 4
      %v2606 = vrot.slane %v198, 5
      %v2607 = vsel %vm2544, %v2605, %v2606
      %v2608 = vrot.slane %v199, 5
      %v2609 = vrot.slane %v2608, 4
      %v2610 = vrot.slane %v200, 5
      %v2611 = vsel %vm2544, %v2609, %v2610
      %v2612 = vrot.slane %v2610, 4
      %v2613 = vrot.slane %v201, 5
      %v2614 = vsel %vm2544, %v2612, %v2613
      %v2615 = vrot.slane %v202, 5
      %v2616 = vrot.slane %v2615, 4
      %v2617 = vrot.slane %v203, 5
      %v2618 = vsel %vm2544, %v2616, %v2617
      %v2619 = vrot.slane %v2617, 4
      %v2620 = vrot.slane %v204, 5
      %v2621 = vsel %vm2544, %v2619, %v2620
      %v2622 = vrot.slane %v205, 5
      %v2623 = vrot.slane %v2622, 4
      %v2624 = vrot.slane %v206, 5
      %v2625 = vsel %vm2544, %v2623, %v2624
      %v2626 = vrot.slane %v2624, 4
      %v2627 = vrot.slane %v207, 5
      %v2628 = vsel %vm2544, %v2626, %v2627
      %v2629 = vrot.slane %v208, 5
      %v2630 = vrot.slane %v2629, 4
      %v2631 = vrot.slane %v209, 5
      %v2632 = vsel %vm2544, %v2630, %v2631
      %v2633 = vrot.slane %v2631, 4
      %v2634 = vrot.slane %v210, 5
      %v2635 = vsel %vm2544, %v2633, %v2634
      %v2636 = vrot.slane %v211, 5
      %v2637 = vrot.slane %v2636, 4
      %v2638 = vrot.slane %v212, 5
      %v2639 = vsel %vm2544, %v2637, %v2638
      %v2640 = vrot.slane %v2638, 4
      %v2641 = vrot.slane %v213, 5
      %v2642 = vsel %vm2544, %v2640, %v2641
      %v2643 = vrot.slane %v214, 5
      %v2644 = vrot.slane %v2643, 4
      %v2645 = vrot.slane %v215, 5
      %v2646 = vsel %vm2544, %v2644, %v2645
      %v2647 = vrot.slane %v2645, 4
      %v2648 = vrot.slane %v216, 5
      %v2649 = vsel %vm2544, %v2647, %v2648
      %v2650 = vrot.slane %v217, 5
      %v2651 = vrot.slane %v2650, 4
      %v2652 = vrot.slane %v218, 5
      %v2653 = vsel %vm2544, %v2651, %v2652
      %v2654 = vrot.slane %v2652, 4
      %v2655 = vrot.slane %v219, 5
      %v2656 = vsel %vm2544, %v2654, %v2655
      %v2657 = vrot.slane %v220, 5
      %v2658 = vrot.slane %v2657, 4
      %v2659 = vrot.slane %v221, 5
      %v2660 = vsel %vm2544, %v2658, %v2659
      %v2661 = vrot.slane %v2659, 4
      %v2662 = vrot.slane %v222, 5
      %v2663 = vsel %vm2544, %v2661, %v2662
      %v2664 = vrot.slane %v223, 5
      %v2665 = vrot.slane %v2664, 4
      %v2666 = vrot.slane %v224, 5
      %v2667 = vsel %vm2544, %v2665, %v2666
      %v2668 = vrot.slane %v2666, 4
      %v2669 = vrot.slane %v225, 5
      %v2670 = vsel %vm2544, %v2668, %v2669
      %v2671 = vrot.slane %v226, 5
      %v2672 = vrot.slane %v2671, 4
      %v2673 = vrot.slane %v227, 5
      %v2674 = vsel %vm2544, %v2672, %v2673
      %v2675 = vrot.slane %v2673, 4
      %v2676 = vrot.slane %v228, 5
      %v2677 = vsel %vm2544, %v2675, %v2676
      %s2678 = scalar_lea.vmem %s1, 16
      %v2679 = vld [vmem:[%s2678] sm:$0xf]
      %v2680 = vld [vmem:[%s2678 + $0x4] sm:$0x3]
      %v2681 = vunpack.c.l.b16 %v2548
      %v2682 = vunpack.c.l.b16 %v2551
      %v2683 = vunpack.c.l.b16 %v2555
      %v2684 = vunpack.c.l.b16 %v2558
      %v2685 = vunpack.c.l.b16 %v2562
      %v2686 = vunpack.c.l.b16 %v2565
      %v2687 = vunpack.c.l.b16 %v2569
      %v2688 = vunpack.c.l.b16 %v2572
      %v2689 = vunpack.c.l.b16 %v2576
      %v2690 = vunpack.c.l.b16 %v2579
      %v2691 = vunpack.c.l.b16 %v2583
      %v2692 = vunpack.c.l.b16 %v2586
      %v2693 = vunpack.c.l.b16 %v2590
      %v2694 = vunpack.c.l.b16 %v2593
      %v2695 = vunpack.c.l.b16 %v2597
      %v2696 = vunpack.c.l.b16 %v2600
      %v2697 = vunpack.c.l.b16 %v2604
      %v2698 = vunpack.c.l.b16 %v2607
      %v2699 = vunpack.c.l.b16 %v2611
      %v2700 = vunpack.c.l.b16 %v2614
      %v2701 = vunpack.c.l.b16 %v2618
      %v2702 = vunpack.c.l.b16 %v2621
      %v2703 = vunpack.c.l.b16 %v2625
      %v2704 = vunpack.c.l.b16 %v2628
      %v2705 = vunpack.c.l.b16 %v2632
      %v2706 = vunpack.c.l.b16 %v2635
      %v2707 = vunpack.c.l.b16 %v2639
      %v2708 = vunpack.c.l.b16 %v2642
      %v2709 = vunpack.c.l.b16 %v2646
      %v2710 = vunpack.c.l.b16 %v2649
      %v2711 = vunpack.c.l.b16 %v2653
      %v2712 = vunpack.c.l.b16 %v2656
      %v2713 = vpack.c.b16 %v2682, %v2681
      %v2714 = vpack.c.b16 %v2684, %v2683
      %v2715 = vpack.c.b16 %v2686, %v2685
      %v2716 = vpack.c.b16 %v2688, %v2687
      %v2717 = vpack.c.b16 %v2690, %v2689
      %v2718 = vpack.c.b16 %v2692, %v2691
      %v2719 = vpack.c.b16 %v2694, %v2693
      %v2720 = vpack.c.b16 %v2696, %v2695
      %v2721 = vpack.c.b16 %v2698, %v2697
      %v2722 = vpack.c.b16 %v2700, %v2699
      %v2723 = vpack.c.b16 %v2702, %v2701
      %v2724 = vpack.c.b16 %v2704, %v2703
      %v2725 = vpack.c.b16 %v2706, %v2705
      %v2726 = vpack.c.b16 %v2708, %v2707
      %v2727 = vpack.c.b16 %v2710, %v2709
      %v2728 = vpack.c.b16 %v2712, %v2711
      %v2731 = vunpack.c.l.b16 %v2679
      %v2732 = vunpack.c.l.b16 %v2680
      %v2733 = vpack.c.b16 %v2732, %v2731
      %v2735 = vsel %vm319, %v2713, 0
      %v2738 = vsel %vm319, %v2714, 0
      %v2741 = vsel %vm319, %v2715, 0
      %v2744 = vsel %vm319, %v2716, 0
      %v2747 = vsel %vm319, %v2717, 0
      %v2750 = vsel %vm319, %v2718, 0
      %v2753 = vsel %vm319, %v2719, 0
      %v2756 = vsel %vm319, %v2720, 0
      %v2759 = vsel %vm319, %v2721, 0
      %v2762 = vsel %vm319, %v2722, 0
      %v2765 = vsel %vm319, %v2723, 0
      %v2768 = vsel %vm319, %v2724, 0
      %v2771 = vsel %vm319, %v2725, 0
      %v2774 = vsel %vm319, %v2726, 0
      %v2777 = vsel %vm319, %v2727, 0
      %v2780 = vsel %vm319, %v2728, 0
      %v2783 = vsel %vm368, %v2733, 0
      %2785 = vmatprep.subr.bf16.mxu0 0
      %2786 = vmatpush1.bf16.msra.mxu0 %v2783
      %2787 = vmatprep.subr.bf16.mxu0 0
      %2788 = vmatpush1.bf16.msra.mxu0 0
      %2789 = vmatprep.subr.bf16.mxu0 0
      %2790 = vmatpush1.bf16.msra.mxu0 0
      %2791 = vmatprep.subr.bf16.mxu0 0
      %2792 = vmatpush1.bf16.msra.mxu0 0
      %2793 = vmatprep.subr.bf16.mxu0 0
      %2794 = vmatpush1.bf16.msra.mxu0 0
      %2795 = vmatprep.subr.bf16.mxu0 0
      %2796 = vmatpush1.bf16.msra.mxu0 0
      %2797 = vmatprep.subr.bf16.mxu0 0
      %2798 = vmatpush1.bf16.msra.mxu0 0
      %2799 = vmatprep.subr.bf16.mxu0 0
      %2800 = vmatpush1.bf16.msra.mxu0 0
      %2801 = vmatprep.subr.bf16.mxu0 0
      %2802 = vmatpush1.bf16.msra.mxu0 0
      %2803 = vmatprep.subr.bf16.mxu0 0
      %2804 = vmatpush1.bf16.msra.mxu0 0
      %2805 = vmatprep.subr.bf16.mxu0 0
      %2806 = vmatpush1.bf16.msra.mxu0 0
      %2807 = vmatprep.subr.bf16.mxu0 0
      %2808 = vmatpush1.bf16.msra.mxu0 0
      %2809 = vmatprep.subr.bf16.mxu0 0
      %2810 = vmatpush1.bf16.msra.mxu0 0
      %2811 = vmatprep.subr.bf16.mxu0 0
      %2812 = vmatpush1.bf16.msra.mxu0 0
      %2813 = vmatprep.subr.bf16.mxu0 0
      %2814 = vmatpush1.bf16.msra.mxu0 0
      %2815 = vmatprep.subr.bf16.mxu0 0
      %2816 = vmatpush1.bf16.msra.mxu0 0
      %2817 = vmatprep.mubr.bf16.mxu0 0
      %2818 = vmatmul.mubr.bf16.gmra.mrb[0].mxu0 %v2735
      %v2819 = vpop.f32.mrb[0].mxu0
      %v2820 = vadd.f32 0.0, %v2819
      %v2821 = vpop.f32.mrb[0].mxu0
      %v2822 = vpop.f32.mrb[0].mxu0
      %v2823 = vadd.f32 0.0, %v2822
      %v2824 = vpop.f32.mrb[0].mxu0
      %2825 = vmatprep.mubr.bf16.mxu0 0
      %2826 = vmatmul.mubr.bf16.gmra.mrb[0].mxu0 %v2738
      %v2827 = vpop.f32.mrb[0].mxu0
      %v2828 = vadd.f32 0.0, %v2827
      %v2829 = vpop.f32.mrb[0].mxu0
      %v2830 = vpop.f32.mrb[0].mxu0
      %v2831 = vadd.f32 0.0, %v2830
      %v2832 = vpop.f32.mrb[0].mxu0
      %2833 = vmatprep.mubr.bf16.mxu0 0
      %2834 = vmatmul.mubr.bf16.gmra.mrb[0].mxu0 %v2741
      %v2835 = vpop.f32.mrb[0].mxu0
      %v2836 = vadd.f32 0.0, %v2835
      %v2837 = vpop.f32.mrb[0].mxu0
      %v2838 = vpop.f32.mrb[0].mxu0
      %v2839 = vadd.f32 0.0, %v2838
      %v2840 = vpop.f32.mrb[0].mxu0
      %2841 = vmatprep.mubr.bf16.mxu0 0
      %2842 = vmatmul.mubr.bf16.gmra.mrb[0].mxu0 %v2744
      %v2843 = vpop.f32.mrb[0].mxu0
      %v2844 = vadd.f32 0.0, %v2843
      %v2845 = vpop.f32.mrb[0].mxu0
      %v2846 = vpop.f32.mrb[0].mxu0
      %v2847 = vadd.f32 0.0, %v2846
      %v2848 = vpop.f32.mrb[0].mxu0
      %2849 = vmatprep.mubr.bf16.mxu0 0
      %2850 = vmatmul.mubr.bf16.gmra.mrb[0].mxu0 %v2747
      %v2851 = vpop.f32.mrb[0].mxu0
      %v2852 = vadd.f32 0.0, %v2851
      %v2853 = vpop.f32.mrb[0].mxu0
      %v2854 = vpop.f32.mrb[0].mxu0
      %v2855 = vadd.f32 0.0, %v2854
      %v2856 = vpop.f32.mrb[0].mxu0
      %2857 = vmatprep.mubr.bf16.mxu0 0
      %2858 = vmatmul.mubr.bf16.gmra.mrb[0].mxu0 %v2750
      %v2859 = vpop.f32.mrb[0].mxu0
      %v2860 = vadd.f32 0.0, %v2859
      %v2861 = vpop.f32.mrb[0].mxu0
      %v2862 = vpop.f32.mrb[0].mxu0
      %v2863 = vadd.f32 0.0, %v2862
      %v2864 = vpop.f32.mrb[0].mxu0
      %2865 = vmatprep.mubr.bf16.mxu0 0
      %2866 = vmatmul.mubr.bf16.gmra.mrb[0].mxu0 %v2753
      %v2867 = vpop.f32.mrb[0].mxu0
      %v2868 = vadd.f32 0.0, %v2867
      %v2869 = vpop.f32.mrb[0].mxu0
      %v2870 = vpop.f32.mrb[0].mxu0
      %v2871 = vadd.f32 0.0, %v2870
      %v2872 = vpop.f32.mrb[0].mxu0
      %2873 = vmatprep.mubr.bf16.mxu0 0
      %2874 = vmatmul.mubr.bf16.gmra.mrb[0].mxu0 %v2756
      %v2875 = vpop.f32.mrb[0].mxu0
      %v2876 = vadd.f32 0.0, %v2875
      %v2877 = vpop.f32.mrb[0].mxu0
      %v2878 = vpop.f32.mrb[0].mxu0
      %v2879 = vadd.f32 0.0, %v2878
      %v2880 = vpop.f32.mrb[0].mxu0
      %2881 = vmatprep.mubr.bf16.mxu0 0
      %2882 = vmatmul.mubr.bf16.gmra.mrb[0].mxu0 %v2759
      %v2883 = vpop.f32.mrb[0].mxu0
      %v2884 = vadd.f32 0.0, %v2883
      %v2885 = vpop.f32.mrb[0].mxu0
      %v2886 = vpop.f32.mrb[0].mxu0
      %v2887 = vadd.f32 0.0, %v2886
      %v2888 = vpop.f32.mrb[0].mxu0
      %2889 = vmatprep.mubr.bf16.mxu0 0
      %2890 = vmatmul.mubr.bf16.gmra.mrb[0].mxu0 %v2762
      %v2891 = vpop.f32.mrb[0].mxu0
      %v2892 = vadd.f32 0.0, %v2891
      %v2893 = vpop.f32.mrb[0].mxu0
      %v2894 = vpop.f32.mrb[0].mxu0
      %v2895 = vadd.f32 0.0, %v2894
      %v2896 = vpop.f32.mrb[0].mxu0
      %2897 = vmatprep.mubr.bf16.mxu0 0
      %2898 = vmatmul.mubr.bf16.gmra.mrb[0].mxu0 %v2765
      %v2899 = vpop.f32.mrb[0].mxu0
      %v2900 = vadd.f32 0.0, %v2899
      %v2901 = vpop.f32.mrb[0].mxu0
      %v2902 = vpop.f32.mrb[0].mxu0
      %v2903 = vadd.f32 0.0, %v2902
      %v2904 = vpop.f32.mrb[0].mxu0
      %2905 = vmatprep.mubr.bf16.mxu0 0
      %2906 = vmatmul.mubr.bf16.gmra.mrb[0].mxu0 %v2768
      %v2907 = vpop.f32.mrb[0].mxu0
      %v2908 = vadd.f32 0.0, %v2907
      %v2909 = vpop.f32.mrb[0].mxu0
      %v2910 = vpop.f32.mrb[0].mxu0
      %v2911 = vadd.f32 0.0, %v2910
      %v2912 = vpop.f32.mrb[0].mxu0
      %2913 = vmatprep.mubr.bf16.mxu0 0
      %2914 = vmatmul.mubr.bf16.gmra.mrb[0].mxu0 %v2771
      %v2915 = vpop.f32.mrb[0].mxu0
      %v2916 = vadd.f32 0.0, %v2915
      %v2917 = vpop.f32.mrb[0].mxu0
      %v2918 = vpop.f32.mrb[0].mxu0
      %v2919 = vadd.f32 0.0, %v2918
      %v2920 = vpop.f32.mrb[0].mxu0
      %2921 = vmatprep.mubr.bf16.mxu0 0
      %2922 = vmatmul.mubr.bf16.gmra.mrb[0].mxu0 %v2774
      %v2923 = vpop.f32.mrb[0].mxu0
      %v2924 = vadd.f32 0.0, %v2923
      %v2925 = vpop.f32.mrb[0].mxu0
      %v2926 = vpop.f32.mrb[0].mxu0
      %v2927 = vadd.f32 0.0, %v2926
      %v2928 = vpop.f32.mrb[0].mxu0
      %2929 = vmatprep.mubr.bf16.mxu0 0
      %2930 = vmatmul.mubr.bf16.gmra.mrb[0].mxu0 %v2777
      %v2931 = vpop.f32.mrb[0].mxu0
      %v2932 = vadd.f32 0.0, %v2931
      %v2933 = vpop.f32.mrb[0].mxu0
      %v2934 = vpop.f32.mrb[0].mxu0
      %v2935 = vadd.f32 0.0, %v2934
      %v2936 = vpop.f32.mrb[0].mxu0
      %2937 = vmatprep.mubr.bf16.mxu0 0
      %2938 = vmatmul.mubr.bf16.gmra.mrb[0].mxu0 %v2780
      %v2939 = vpop.f32.mrb[0].mxu0
      %v2940 = vadd.f32 0.0, %v2939
      %v2941 = vpop.f32.mrb[0].mxu0
      %v2942 = vpop.f32.mrb[0].mxu0
      %v2943 = vadd.f32 0.0, %v2942
      %v2944 = vpop.f32.mrb[0].mxu0
      %2945 = vdwg.mxu0
      %v2946 = vadd.f32 %v2491, %v2820
      %v2947 = vadd.f32 %v2492, %v2823
      %v2948 = vadd.f32 %v2493, %v2828
      %v2949 = vadd.f32 %v2494, %v2831
      %v2950 = vadd.f32 %v2495, %v2836
      %v2951 = vadd.f32 %v2496, %v2839
      %v2952 = vadd.f32 %v2497, %v2844
      %v2953 = vadd.f32 %v2498, %v2847
      %v2954 = vadd.f32 %v2499, %v2852
      %v2955 = vadd.f32 %v2500, %v2855
      %v2956 = vadd.f32 %v2501, %v2860
      %v2957 = vadd.f32 %v2502, %v2863
      %v2958 = vadd.f32 %v2503, %v2868
      %v2959 = vadd.f32 %v2504, %v2871
      %v2960 = vadd.f32 %v2505, %v2876
      %v2961 = vadd.f32 %v2506, %v2879
      %v2962 = vadd.f32 %v2507, %v2884
      %v2963 = vadd.f32 %v2508, %v2887
      %v2964 = vadd.f32 %v2509, %v2892
      %v2965 = vadd.f32 %v2510, %v2895
      %v2966 = vadd.f32 %v2511, %v2900
      %v2967 = vadd.f32 %v2512, %v2903
      %v2968 = vadd.f32 %v2513, %v2908
      %v2969 = vadd.f32 %v2514, %v2911
      %v2970 = vadd.f32 %v2515, %v2916
      %v2971 = vadd.f32 %v2516, %v2919
      %v2972 = vadd.f32 %v2517, %v2924
      %v2973 = vadd.f32 %v2518, %v2927
      %v2974 = vadd.f32 %v2519, %v2932
      %v2975 = vadd.f32 %v2520, %v2935
      %v2976 = vadd.f32 %v2521, %v2940
      %v2977 = vadd.f32 %v2522, %v2943
      %s2978 = scalar_lea.vmem %s1, 48
      %v2979 = vld [vmem:[%s2978] sm:$0xf]
      %v2980 = vld [vmem:[%s2978 + $0x4] sm:$0x3]
      %v2981 = vunpack.c.l.b16 %v2660
      %v2982 = vunpack.c.l.b16 %v2663
      %v2983 = vpack.c.b16 %v2982, %v2981
      %v2986 = vunpack.c.l.b16 %v2979
      %v2987 = vunpack.c.l.b16 %v2980
      %v2988 = vpack.c.b16 %v2987, %v2986
      %v2990 = vsel %vm319, %v2983, 0
      %v2993 = vsel %vm368, %v2988, 0
      %2995 = vmatprep.subr.bf16.mxu0 0
      %2996 = vmatpush1.bf16.msra.mxu0 %v2993
      %2997 = vmatprep.subr.bf16.mxu0 0
      %2998 = vmatpush1.bf16.msra.mxu0 0
      %2999 = vmatprep.subr.bf16.mxu0 0
      %3000 = vmatpush1.bf16.msra.mxu0 0
      %3001 = vmatprep.subr.bf16.mxu0 0
      %3002 = vmatpush1.bf16.msra.mxu0 0
      %3003 = vmatprep.subr.bf16.mxu0 0
      %3004 = vmatpush1.bf16.msra.mxu0 0
      %3005 = vmatprep.subr.bf16.mxu0 0
      %3006 = vmatpush1.bf16.msra.mxu0 0
      %3007 = vmatprep.subr.bf16.mxu0 0
      %3008 = vmatpush1.bf16.msra.mxu0 0
      %3009 = vmatprep.subr.bf16.mxu0 0
      %3010 = vmatpush1.bf16.msra.mxu0 0
      %3011 = vmatprep.subr.bf16.mxu0 0
      %3012 = vmatpush1.bf16.msra.mxu0 0
      %3013 = vmatprep.subr.bf16.mxu0 0
      %3014 = vmatpush1.bf16.msra.mxu0 0
      %3015 = vmatprep.subr.bf16.mxu0 0
      %3016 = vmatpush1.bf16.msra.mxu0 0
      %3017 = vmatprep.subr.bf16.mxu0 0
      %3018 = vmatpush1.bf16.msra.mxu0 0
      %3019 = vmatprep.subr.bf16.mxu0 0
      %3020 = vmatpush1.bf16.msra.mxu0 0
      %3021 = vmatprep.subr.bf16.mxu0 0
      %3022 = vmatpush1.bf16.msra.mxu0 0
      %3023 = vmatprep.subr.bf16.mxu0 0
      %3024 = vmatpush1.bf16.msra.mxu0 0
      %3025 = vmatprep.subr.bf16.mxu0 0
      %3026 = vmatpush1.bf16.msra.mxu0 0
      %3027 = vmatprep.mubr.bf16.mxu0 0
      %3028 = vmatmul.mubr.bf16.gmra.mrb[0].mxu0 %v2738
      %v3029 = vpop.f32.mrb[0].mxu0
      %v3030 = vadd.f32 0.0, %v3029
      %v3031 = vpop.f32.mrb[0].mxu0
      %v3032 = vpop.f32.mrb[0].mxu0
      %v3033 = vadd.f32 0.0, %v3032
      %v3034 = vpop.f32.mrb[0].mxu0
      %3035 = vmatprep.mubr.bf16.mxu0 0
      %3036 = vmatmul.mubr.bf16.gmra.mrb[0].mxu0 %v2741
      %v3037 = vpop.f32.mrb[0].mxu0
      %v3038 = vadd.f32 0.0, %v3037
      %v3039 = vpop.f32.mrb[0].mxu0
      %v3040 = vpop.f32.mrb[0].mxu0
      %v3041 = vadd.f32 0.0, %v3040
      %v3042 = vpop.f32.mrb[0].mxu0
      %3043 = vmatprep.mubr.bf16.mxu0 0
      %3044 = vmatmul.mubr.bf16.gmra.mrb[0].mxu0 %v2744
      %v3045 = vpop.f32.mrb[0].mxu0
      %v3046 = vadd.f32 0.0, %v3045
      %v3047 = vpop.f32.mrb[0].mxu0
      %v3048 = vpop.f32.mrb[0].mxu0
      %v3049 = vadd.f32 0.0, %v3048
      %v3050 = vpop.f32.mrb[0].mxu0
      %3051 = vmatprep.mubr.bf16.mxu0 0
      %3052 = vmatmul.mubr.bf16.gmra.mrb[0].mxu0 %v2747
      %v3053 = vpop.f32.mrb[0].mxu0
      %v3054 = vadd.f32 0.0, %v3053
      %v3055 = vpop.f32.mrb[0].mxu0
      %v3056 = vpop.f32.mrb[0].mxu0
      %v3057 = vadd.f32 0.0, %v3056
      %v3058 = vpop.f32.mrb[0].mxu0
      %3059 = vmatprep.mubr.bf16.mxu0 0
      %3060 = vmatmul.mubr.bf16.gmra.mrb[0].mxu0 %v2750
      %v3061 = vpop.f32.mrb[0].mxu0
      %v3062 = vadd.f32 0.0, %v3061
      %v3063 = vpop.f32.mrb[0].mxu0
      %v3064 = vpop.f32.mrb[0].mxu0
      %v3065 = vadd.f32 0.0, %v3064
      %v3066 = vpop.f32.mrb[0].mxu0
      %3067 = vmatprep.mubr.bf16.mxu0 0
      %3068 = vmatmul.mubr.bf16.gmra.mrb[0].mxu0 %v2753
      %v3069 = vpop.f32.mrb[0].mxu0
      %v3070 = vadd.f32 0.0, %v3069
      %v3071 = vpop.f32.mrb[0].mxu0
      %v3072 = vpop.f32.mrb[0].mxu0
      %v3073 = vadd.f32 0.0, %v3072
      %v3074 = vpop.f32.mrb[0].mxu0
      %3075 = vmatprep.mubr.bf16.mxu0 0
      %3076 = vmatmul.mubr.bf16.gmra.mrb[0].mxu0 %v2756
      %v3077 = vpop.f32.mrb[0].mxu0
      %v3078 = vadd.f32 0.0, %v3077
      %v3079 = vpop.f32.mrb[0].mxu0
      %v3080 = vpop.f32.mrb[0].mxu0
      %v3081 = vadd.f32 0.0, %v3080
      %v3082 = vpop.f32.mrb[0].mxu0
      %3083 = vmatprep.mubr.bf16.mxu0 0
      %3084 = vmatmul.mubr.bf16.gmra.mrb[0].mxu0 %v2759
      %v3085 = vpop.f32.mrb[0].mxu0
      %v3086 = vadd.f32 0.0, %v3085
      %v3087 = vpop.f32.mrb[0].mxu0
      %v3088 = vpop.f32.mrb[0].mxu0
      %v3089 = vadd.f32 0.0, %v3088
      %v3090 = vpop.f32.mrb[0].mxu0
      %3091 = vmatprep.mubr.bf16.mxu0 0
      %3092 = vmatmul.mubr.bf16.gmra.mrb[0].mxu0 %v2762
      %v3093 = vpop.f32.mrb[0].mxu0
      %v3094 = vadd.f32 0.0, %v3093
      %v3095 = vpop.f32.mrb[0].mxu0
      %v3096 = vpop.f32.mrb[0].mxu0
      %v3097 = vadd.f32 0.0, %v3096
      %v3098 = vpop.f32.mrb[0].mxu0
      %3099 = vmatprep.mubr.bf16.mxu0 0
      %3100 = vmatmul.mubr.bf16.gmra.mrb[0].mxu0 %v2765
      %v3101 = vpop.f32.mrb[0].mxu0
      %v3102 = vadd.f32 0.0, %v3101
      %v3103 = vpop.f32.mrb[0].mxu0
      %v3104 = vpop.f32.mrb[0].mxu0
      %v3105 = vadd.f32 0.0, %v3104
      %v3106 = vpop.f32.mrb[0].mxu0
      %3107 = vmatprep.mubr.bf16.mxu0 0
      %3108 = vmatmul.mubr.bf16.gmra.mrb[0].mxu0 %v2768
      %v3109 = vpop.f32.mrb[0].mxu0
      %v3110 = vadd.f32 0.0, %v3109
      %v3111 = vpop.f32.mrb[0].mxu0
      %v3112 = vpop.f32.mrb[0].mxu0
      %v3113 = vadd.f32 0.0, %v3112
      %v3114 = vpop.f32.mrb[0].mxu0
      %3115 = vmatprep.mubr.bf16.mxu0 0
      %3116 = vmatmul.mubr.bf16.gmra.mrb[0].mxu0 %v2771
      %v3117 = vpop.f32.mrb[0].mxu0
      %v3118 = vadd.f32 0.0, %v3117
      %v3119 = vpop.f32.mrb[0].mxu0
      %v3120 = vpop.f32.mrb[0].mxu0
      %v3121 = vadd.f32 0.0, %v3120
      %v3122 = vpop.f32.mrb[0].mxu0
      %3123 = vmatprep.mubr.bf16.mxu0 0
      %3124 = vmatmul.mubr.bf16.gmra.mrb[0].mxu0 %v2774
      %v3125 = vpop.f32.mrb[0].mxu0
      %v3126 = vadd.f32 0.0, %v3125
      %v3127 = vpop.f32.mrb[0].mxu0
      %v3128 = vpop.f32.mrb[0].mxu0
      %v3129 = vadd.f32 0.0, %v3128
      %v3130 = vpop.f32.mrb[0].mxu0
      %3131 = vmatprep.mubr.bf16.mxu0 0
      %3132 = vmatmul.mubr.bf16.gmra.mrb[0].mxu0 %v2777
      %v3133 = vpop.f32.mrb[0].mxu0
      %v3134 = vadd.f32 0.0, %v3133
      %v3135 = vpop.f32.mrb[0].mxu0
      %v3136 = vpop.f32.mrb[0].mxu0
      %v3137 = vadd.f32 0.0, %v3136
      %v3138 = vpop.f32.mrb[0].mxu0
      %3139 = vmatprep.mubr.bf16.mxu0 0
      %3140 = vmatmul.mubr.bf16.gmra.mrb[0].mxu0 %v2780
      %v3141 = vpop.f32.mrb[0].mxu0
      %v3142 = vadd.f32 0.0, %v3141
      %v3143 = vpop.f32.mrb[0].mxu0
      %v3144 = vpop.f32.mrb[0].mxu0
      %v3145 = vadd.f32 0.0, %v3144
      %v3146 = vpop.f32.mrb[0].mxu0
      %3147 = vmatprep.mubr.bf16.mxu0 0
      %3148 = vmatmul.mubr.bf16.gmra.mrb[0].mxu0 %v2990
      %v3149 = vpop.f32.mrb[0].mxu0
      %v3150 = vadd.f32 0.0, %v3149
      %v3151 = vpop.f32.mrb[0].mxu0
      %v3152 = vpop.f32.mrb[0].mxu0
      %v3153 = vadd.f32 0.0, %v3152
      %v3154 = vpop.f32.mrb[0].mxu0
      %3155 = vdwg.mxu0
      %v3156 = vadd.f32 %v2946, %v3030
      %v3157 = vadd.f32 %v2947, %v3033
      %v3158 = vadd.f32 %v2948, %v3038
      %v3159 = vadd.f32 %v2949, %v3041
      %v3160 = vadd.f32 %v2950, %v3046
      %v3161 = vadd.f32 %v2951, %v3049
      %v3162 = vadd.f32 %v2952, %v3054
      %v3163 = vadd.f32 %v2953, %v3057
      %v3164 = vadd.f32 %v2954, %v3062
      %v3165 = vadd.f32 %v2955, %v3065
      %v3166 = vadd.f32 %v2956, %v3070
      %v3167 = vadd.f32 %v2957, %v3073
      %v3168 = vadd.f32 %v2958, %v3078
      %v3169 = vadd.f32 %v2959, %v3081
      %v3170 = vadd.f32 %v2960, %v3086
      %v3171 = vadd.f32 %v2961, %v3089
      %v3172 = vadd.f32 %v2962, %v3094
      %v3173 = vadd.f32 %v2963, %v3097
      %v3174 = vadd.f32 %v2964, %v3102
      %v3175 = vadd.f32 %v2965, %v3105
      %v3176 = vadd.f32 %v2966, %v3110
      %v3177 = vadd.f32 %v2967, %v3113
      %v3178 = vadd.f32 %v2968, %v3118
      %v3179 = vadd.f32 %v2969, %v3121
      %v3180 = vadd.f32 %v2970, %v3126
      %v3181 = vadd.f32 %v2971, %v3129
      %v3182 = vadd.f32 %v2972, %v3134
      %v3183 = vadd.f32 %v2973, %v3137
      %v3184 = vadd.f32 %v2974, %v3142
      %v3185 = vadd.f32 %v2975, %v3145
      %v3186 = vadd.f32 %v2976, %v3150
      %v3187 = vadd.f32 %v2977, %v3153
      %s3188 = scalar_lea.vmem %s1, 80
      %v3189 = vld [vmem:[%s3188] sm:$0xf]
      %v3190 = vld [vmem:[%s3188 + $0x4] sm:$0x3]
      %v3191 = vunpack.c.l.b16 %v2667
      %v3192 = vunpack.c.l.b16 %v2670
      %v3193 = vpack.c.b16 %v3192, %v3191
      %v3196 = vunpack.c.l.b16 %v3189
      %v3197 = vunpack.c.l.b16 %v3190
      %v3198 = vpack.c.b16 %v3197, %v3196
      %v3200 = vsel %vm319, %v3193, 0
      %v3203 = vsel %vm368, %v3198, 0
      %3205 = vmatprep.subr.bf16.mxu0 0
      %3206 = vmatpush1.bf16.msra.mxu0 %v3203
      %3207 = vmatprep.subr.bf16.mxu0 0
      %3208 = vmatpush1.bf16.msra.mxu0 0
      %3209 = vmatprep.subr.bf16.mxu0 0
      %3210 = vmatpush1.bf16.msra.mxu0 0
      %3211 = vmatprep.subr.bf16.mxu0 0
      %3212 = vmatpush1.bf16.msra.mxu0 0
      %3213 = vmatprep.subr.bf16.mxu0 0
      %3214 = vmatpush1.bf16.msra.mxu0 0
      %3215 = vmatprep.subr.bf16.mxu0 0
      %3216 = vmatpush1.bf16.msra.mxu0 0
      %3217 = vmatprep.subr.bf16.mxu0 0
      %3218 = vmatpush1.bf16.msra.mxu0 0
      %3219 = vmatprep.subr.bf16.mxu0 0
      %3220 = vmatpush1.bf16.msra.mxu0 0
      %3221 = vmatprep.subr.bf16.mxu0 0
      %3222 = vmatpush1.bf16.msra.mxu0 0
      %3223 = vmatprep.subr.bf16.mxu0 0
      %3224 = vmatpush1.bf16.msra.mxu0 0
      %3225 = vmatprep.subr.bf16.mxu0 0
      %3226 = vmatpush1.bf16.msra.mxu0 0
      %3227 = vmatprep.subr.bf16.mxu0 0
      %3228 = vmatpush1.bf16.msra.mxu0 0
      %3229 = vmatprep.subr.bf16.mxu0 0
      %3230 = vmatpush1.bf16.msra.mxu0 0
      %3231 = vmatprep.subr.bf16.mxu0 0
      %3232 = vmatpush1.bf16.msra.mxu0 0
      %3233 = vmatprep.subr.bf16.mxu0 0
      %3234 = vmatpush1.bf16.msra.mxu0 0
      %3235 = vmatprep.subr.bf16.mxu0 0
      %3236 = vmatpush1.bf16.msra.mxu0 0
      %3237 = vmatprep.mubr.bf16.mxu0 0
      %3238 = vmatmul.mubr.bf16.gmra.mrb[0].mxu0 %v2741
      %v3239 = vpop.f32.mrb[0].mxu0
      %v3240 = vadd.f32 0.0, %v3239
      %v3241 = vpop.f32.mrb[0].mxu0
      %v3242 = vpop.f32.mrb[0].mxu0
      %v3243 = vadd.f32 0.0, %v3242
      %v3244 = vpop.f32.mrb[0].mxu0
      %3245 = vmatprep.mubr.bf16.mxu0 0
      %3246 = vmatmul.mubr.bf16.gmra.mrb[0].mxu0 %v2744
      %v3247 = vpop.f32.mrb[0].mxu0
      %v3248 = vadd.f32 0.0, %v3247
      %v3249 = vpop.f32.mrb[0].mxu0
      %v3250 = vpop.f32.mrb[0].mxu0
      %v3251 = vadd.f32 0.0, %v3250
      %v3252 = vpop.f32.mrb[0].mxu0
      %3253 = vmatprep.mubr.bf16.mxu0 0
      %3254 = vmatmul.mubr.bf16.gmra.mrb[0].mxu0 %v2747
      %v3255 = vpop.f32.mrb[0].mxu0
      %v3256 = vadd.f32 0.0, %v3255
      %v3257 = vpop.f32.mrb[0].mxu0
      %v3258 = vpop.f32.mrb[0].mxu0
      %v3259 = vadd.f32 0.0, %v3258
      %v3260 = vpop.f32.mrb[0].mxu0
      %3261 = vmatprep.mubr.bf16.mxu0 0
      %3262 = vmatmul.mubr.bf16.gmra.mrb[0].mxu0 %v2750
      %v3263 = vpop.f32.mrb[0].mxu0
      %v3264 = vadd.f32 0.0, %v3263
      %v3265 = vpop.f32.mrb[0].mxu0
      %v3266 = vpop.f32.mrb[0].mxu0
      %v3267 = vadd.f32 0.0, %v3266
      %v3268 = vpop.f32.mrb[0].mxu0
      %3269 = vmatprep.mubr.bf16.mxu0 0
      %3270 = vmatmul.mubr.bf16.gmra.mrb[0].mxu0 %v2753
      %v3271 = vpop.f32.mrb[0].mxu0
      %v3272 = vadd.f32 0.0, %v3271
      %v3273 = vpop.f32.mrb[0].mxu0
      %v3274 = vpop.f32.mrb[0].mxu0
      %v3275 = vadd.f32 0.0, %v3274
      %v3276 = vpop.f32.mrb[0].mxu0
      %3277 = vmatprep.mubr.bf16.mxu0 0
      %3278 = vmatmul.mubr.bf16.gmra.mrb[0].mxu0 %v2756
      %v3279 = vpop.f32.mrb[0].mxu0
      %v3280 = vadd.f32 0.0, %v3279
      %v3281 = vpop.f32.mrb[0].mxu0
      %v3282 = vpop.f32.mrb[0].mxu0
      %v3283 = vadd.f32 0.0, %v3282
      %v3284 = vpop.f32.mrb[0].mxu0
      %3285 = vmatprep.mubr.bf16.mxu0 0
      %3286 = vmatmul.mubr.bf16.gmra.mrb[0].mxu0 %v2759
      %v3287 = vpop.f32.mrb[0].mxu0
      %v3288 = vadd.f32 0.0, %v3287
      %v3289 = vpop.f32.mrb[0].mxu0
      %v3290 = vpop.f32.mrb[0].mxu0
      %v3291 = vadd.f32 0.0, %v3290
      %v3292 = vpop.f32.mrb[0].mxu0
      %3293 = vmatprep.mubr.bf16.mxu0 0
      %3294 = vmatmul.mubr.bf16.gmra.mrb[0].mxu0 %v2762
      %v3295 = vpop.f32.mrb[0].mxu0
      %v3296 = vadd.f32 0.0, %v3295
      %v3297 = vpop.f32.mrb[0].mxu0
      %v3298 = vpop.f32.mrb[0].mxu0
      %v3299 = vadd.f32 0.0, %v3298
      %v3300 = vpop.f32.mrb[0].mxu0
      %3301 = vmatprep.mubr.bf16.mxu0 0
      %3302 = vmatmul.mubr.bf16.gmra.mrb[0].mxu0 %v2765
      %v3303 = vpop.f32.mrb[0].mxu0
      %v3304 = vadd.f32 0.0, %v3303
      %v3305 = vpop.f32.mrb[0].mxu0
      %v3306 = vpop.f32.mrb[0].mxu0
      %v3307 = vadd.f32 0.0, %v3306
      %v3308 = vpop.f32.mrb[0].mxu0
      %3309 = vmatprep.mubr.bf16.mxu0 0
      %3310 = vmatmul.mubr.bf16.gmra.mrb[0].mxu0 %v2768
      %v3311 = vpop.f32.mrb[0].mxu0
      %v3312 = vadd.f32 0.0, %v3311
      %v3313 = vpop.f32.mrb[0].mxu0
      %v3314 = vpop.f32.mrb[0].mxu0
      %v3315 = vadd.f32 0.0, %v3314
      %v3316 = vpop.f32.mrb[0].mxu0
      %3317 = vmatprep.mubr.bf16.mxu0 0
      %3318 = vmatmul.mubr.bf16.gmra.mrb[0].mxu0 %v2771
      %v3319 = vpop.f32.mrb[0].mxu0
      %v3320 = vadd.f32 0.0, %v3319
      %v3321 = vpop.f32.mrb[0].mxu0
      %v3322 = vpop.f32.mrb[0].mxu0
      %v3323 = vadd.f32 0.0, %v3322
      %v3324 = vpop.f32.mrb[0].mxu0
      %3325 = vmatprep.mubr.bf16.mxu0 0
      %3326 = vmatmul.mubr.bf16.gmra.mrb[0].mxu0 %v2774
      %v3327 = vpop.f32.mrb[0].mxu0
      %v3328 = vadd.f32 0.0, %v3327
      %v3329 = vpop.f32.mrb[0].mxu0
      %v3330 = vpop.f32.mrb[0].mxu0
      %v3331 = vadd.f32 0.0, %v3330
      %v3332 = vpop.f32.mrb[0].mxu0
      %3333 = vmatprep.mubr.bf16.mxu0 0
      %3334 = vmatmul.mubr.bf16.gmra.mrb[0].mxu0 %v2777
      %v3335 = vpop.f32.mrb[0].mxu0
      %v3336 = vadd.f32 0.0, %v3335
      %v3337 = vpop.f32.mrb[0].mxu0
      %v3338 = vpop.f32.mrb[0].mxu0
      %v3339 = vadd.f32 0.0, %v3338
      %v3340 = vpop.f32.mrb[0].mxu0
      %3341 = vmatprep.mubr.bf16.mxu0 0
      %3342 = vmatmul.mubr.bf16.gmra.mrb[0].mxu0 %v2780
      %v3343 = vpop.f32.mrb[0].mxu0
      %v3344 = vadd.f32 0.0, %v3343
      %v3345 = vpop.f32.mrb[0].mxu0
      %v3346 = vpop.f32.mrb[0].mxu0
      %v3347 = vadd.f32 0.0, %v3346
      %v3348 = vpop.f32.mrb[0].mxu0
      %3349 = vmatprep.mubr.bf16.mxu0 0
      %3350 = vmatmul.mubr.bf16.gmra.mrb[0].mxu0 %v2990
      %v3351 = vpop.f32.mrb[0].mxu0
      %v3352 = vadd.f32 0.0, %v3351
      %v3353 = vpop.f32.mrb[0].mxu0
      %v3354 = vpop.f32.mrb[0].mxu0
      %v3355 = vadd.f32 0.0, %v3354
      %v3356 = vpop.f32.mrb[0].mxu0
      %3357 = vmatprep.mubr.bf16.mxu0 0
      %3358 = vmatmul.mubr.bf16.gmra.mrb[0].mxu0 %v3200
      %v3359 = vpop.f32.mrb[0].mxu0
      %v3360 = vadd.f32 0.0, %v3359
      %v3361 = vpop.f32.mrb[0].mxu0
      %v3362 = vpop.f32.mrb[0].mxu0
      %v3363 = vadd.f32 0.0, %v3362
      %v3364 = vpop.f32.mrb[0].mxu0
      %3365 = vdwg.mxu0
      %v3366 = vadd.f32 %v3156, %v3240
      %v3367 = vadd.f32 %v3157, %v3243
      %v3368 = vadd.f32 %v3158, %v3248
      %v3369 = vadd.f32 %v3159, %v3251
      %v3370 = vadd.f32 %v3160, %v3256
      %v3371 = vadd.f32 %v3161, %v3259
      %v3372 = vadd.f32 %v3162, %v3264
      %v3373 = vadd.f32 %v3163, %v3267
      %v3374 = vadd.f32 %v3164, %v3272
      %v3375 = vadd.f32 %v3165, %v3275
      %v3376 = vadd.f32 %v3166, %v3280
      %v3377 = vadd.f32 %v3167, %v3283
      %v3378 = vadd.f32 %v3168, %v3288
      %v3379 = vadd.f32 %v3169, %v3291
      %v3380 = vadd.f32 %v3170, %v3296
      %v3381 = vadd.f32 %v3171, %v3299
      %v3382 = vadd.f32 %v3172, %v3304
      %v3383 = vadd.f32 %v3173, %v3307
      %v3384 = vadd.f32 %v3174, %v3312
      %v3385 = vadd.f32 %v3175, %v3315
      %v3386 = vadd.f32 %v3176, %v3320
      %v3387 = vadd.f32 %v3177, %v3323
      %v3388 = vadd.f32 %v3178, %v3328
      %v3389 = vadd.f32 %v3179, %v3331
      %v3390 = vadd.f32 %v3180, %v3336
      %v3391 = vadd.f32 %v3181, %v3339
      %v3392 = vadd.f32 %v3182, %v3344
      %v3393 = vadd.f32 %v3183, %v3347
      %v3394 = vadd.f32 %v3184, %v3352
      %v3395 = vadd.f32 %v3185, %v3355
      %v3396 = vadd.f32 %v3186, %v3360
      %v3397 = vadd.f32 %v3187, %v3363
      %s3398 = scalar_lea.vmem %s1, 112
      %v3399 = vld [vmem:[%s3398] sm:$0xf]
      %v3400 = vld [vmem:[%s3398 + $0x4] sm:$0x3]
      %v3401 = vunpack.c.l.b16 %v2674
      %v3402 = vunpack.c.l.b16 %v2677
      %v3403 = vpack.c.b16 %v3402, %v3401
      %v3406 = vunpack.c.l.b16 %v3399
      %v3407 = vunpack.c.l.b16 %v3400
      %v3408 = vpack.c.b16 %v3407, %v3406
      %v3410 = vsel %vm319, %v3403, 0
      %v3413 = vsel %vm368, %v3408, 0
      %3415 = vmatprep.subr.bf16.mxu0 0
      %3416 = vmatpush1.bf16.msra.mxu0 %v3413
      %3417 = vmatprep.subr.bf16.mxu0 0
      %3418 = vmatpush1.bf16.msra.mxu0 0
      %3419 = vmatprep.subr.bf16.mxu0 0
      %3420 = vmatpush1.bf16.msra.mxu0 0
      %3421 = vmatprep.subr.bf16.mxu0 0
      %3422 = vmatpush1.bf16.msra.mxu0 0
      %3423 = vmatprep.subr.bf16.mxu0 0
      %3424 = vmatpush1.bf16.msra.mxu0 0
      %3425 = vmatprep.subr.bf16.mxu0 0
      %3426 = vmatpush1.bf16.msra.mxu0 0
      %3427 = vmatprep.subr.bf16.mxu0 0
      %3428 = vmatpush1.bf16.msra.mxu0 0
      %3429 = vmatprep.subr.bf16.mxu0 0
      %3430 = vmatpush1.bf16.msra.mxu0 0
      %3431 = vmatprep.subr.bf16.mxu0 0
      %3432 = vmatpush1.bf16.msra.mxu0 0
      %3433 = vmatprep.subr.bf16.mxu0 0
      %3434 = vmatpush1.bf16.msra.mxu0 0
      %3435 = vmatprep.subr.bf16.mxu0 0
      %3436 = vmatpush1.bf16.msra.mxu0 0
      %3437 = vmatprep.subr.bf16.mxu0 0
      %3438 = vmatpush1.bf16.msra.mxu0 0
      %3439 = vmatprep.subr.bf16.mxu0 0
      %3440 = vmatpush1.bf16.msra.mxu0 0
      %3441 = vmatprep.subr.bf16.mxu0 0
      %3442 = vmatpush1.bf16.msra.mxu0 0
      %3443 = vmatprep.subr.bf16.mxu0 0
      %3444 = vmatpush1.bf16.msra.mxu0 0
      %3445 = vmatprep.subr.bf16.mxu0 0
      %3446 = vmatpush1.bf16.msra.mxu0 0
      %3447 = vmatprep.mubr.bf16.mxu0 0
      %3448 = vmatmul.mubr.bf16.gmra.mrb[0].mxu0 %v2744
      %v3449 = vpop.f32.mrb[0].mxu0
      %v3450 = vadd.f32 0.0, %v3449
      %v3451 = vpop.f32.mrb[0].mxu0
      %v3452 = vpop.f32.mrb[0].mxu0
      %v3453 = vadd.f32 0.0, %v3452
      %v3454 = vpop.f32.mrb[0].mxu0
      %3455 = vmatprep.mubr.bf16.mxu0 0
      %3456 = vmatmul.mubr.bf16.gmra.mrb[0].mxu0 %v2747
      %v3457 = vpop.f32.mrb[0].mxu0
      %v3458 = vadd.f32 0.0, %v3457
      %v3459 = vpop.f32.mrb[0].mxu0
      %v3460 = vpop.f32.mrb[0].mxu0
      %v3461 = vadd.f32 0.0, %v3460
      %v3462 = vpop.f32.mrb[0].mxu0
      %3463 = vmatprep.mubr.bf16.mxu0 0
      %3464 = vmatmul.mubr.bf16.gmra.mrb[0].mxu0 %v2750
      %v3465 = vpop.f32.mrb[0].mxu0
      %v3466 = vadd.f32 0.0, %v3465
      %v3467 = vpop.f32.mrb[0].mxu0
      %v3468 = vpop.f32.mrb[0].mxu0
      %v3469 = vadd.f32 0.0, %v3468
      %v3470 = vpop.f32.mrb[0].mxu0
      %3471 = vmatprep.mubr.bf16.mxu0 0
      %3472 = vmatmul.mubr.bf16.gmra.mrb[0].mxu0 %v2753
      %v3473 = vpop.f32.mrb[0].mxu0
      %v3474 = vadd.f32 0.0, %v3473
      %v3475 = vpop.f32.mrb[0].mxu0
      %v3476 = vpop.f32.mrb[0].mxu0
      %v3477 = vadd.f32 0.0, %v3476
      %v3478 = vpop.f32.mrb[0].mxu0
      %3479 = vmatprep.mubr.bf16.mxu0 0
      %3480 = vmatmul.mubr.bf16.gmra.mrb[0].mxu0 %v2756
      %v3481 = vpop.f32.mrb[0].mxu0
      %v3482 = vadd.f32 0.0, %v3481
      %v3483 = vpop.f32.mrb[0].mxu0
      %v3484 = vpop.f32.mrb[0].mxu0
      %v3485 = vadd.f32 0.0, %v3484
      %v3486 = vpop.f32.mrb[0].mxu0
      %3487 = vmatprep.mubr.bf16.mxu0 0
      %3488 = vmatmul.mubr.bf16.gmra.mrb[0].mxu0 %v2759
      %v3489 = vpop.f32.mrb[0].mxu0
      %v3490 = vadd.f32 0.0, %v3489
      %v3491 = vpop.f32.mrb[0].mxu0
      %v3492 = vpop.f32.mrb[0].mxu0
      %v3493 = vadd.f32 0.0, %v3492
      %v3494 = vpop.f32.mrb[0].mxu0
      %3495 = vmatprep.mubr.bf16.mxu0 0
      %3496 = vmatmul.mubr.bf16.gmra.mrb[0].mxu0 %v2762
      %v3497 = vpop.f32.mrb[0].mxu0
      %v3498 = vadd.f32 0.0, %v3497
      %v3499 = vpop.f32.mrb[0].mxu0
      %v3500 = vpop.f32.mrb[0].mxu0
      %v3501 = vadd.f32 0.0, %v3500
      %v3502 = vpop.f32.mrb[0].mxu0
      %3503 = vmatprep.mubr.bf16.mxu0 0
      %3504 = vmatmul.mubr.bf16.gmra.mrb[0].mxu0 %v2765
      %v3505 = vpop.f32.mrb[0].mxu0
      %v3506 = vadd.f32 0.0, %v3505
      %v3507 = vpop.f32.mrb[0].mxu0
      %v3508 = vpop.f32.mrb[0].mxu0
      %v3509 = vadd.f32 0.0, %v3508
      %v3510 = vpop.f32.mrb[0].mxu0
      %3511 = vmatprep.mubr.bf16.mxu0 0
      %3512 = vmatmul.mubr.bf16.gmra.mrb[0].mxu0 %v2768
      %v3513 = vpop.f32.mrb[0].mxu0
      %v3514 = vadd.f32 0.0, %v3513
      %v3515 = vpop.f32.mrb[0].mxu0
      %v3516 = vpop.f32.mrb[0].mxu0
      %v3517 = vadd.f32 0.0, %v3516
      %v3518 = vpop.f32.mrb[0].mxu0
      %3519 = vmatprep.mubr.bf16.mxu0 0
      %3520 = vmatmul.mubr.bf16.gmra.mrb[0].mxu0 %v2771
      %v3521 = vpop.f32.mrb[0].mxu0
      %v3522 = vadd.f32 0.0, %v3521
      %v3523 = vpop.f32.mrb[0].mxu0
      %v3524 = vpop.f32.mrb[0].mxu0
      %v3525 = vadd.f32 0.0, %v3524
      %v3526 = vpop.f32.mrb[0].mxu0
      %3527 = vmatprep.mubr.bf16.mxu0 0
      %3528 = vmatmul.mubr.bf16.gmra.mrb[0].mxu0 %v2774
      %v3529 = vpop.f32.mrb[0].mxu0
      %v3530 = vadd.f32 0.0, %v3529
      %v3531 = vpop.f32.mrb[0].mxu0
      %v3532 = vpop.f32.mrb[0].mxu0
      %v3533 = vadd.f32 0.0, %v3532
      %v3534 = vpop.f32.mrb[0].mxu0
      %3535 = vmatprep.mubr.bf16.mxu0 0
      %3536 = vmatmul.mubr.bf16.gmra.mrb[0].mxu0 %v2777
      %v3537 = vpop.f32.mrb[0].mxu0
      %v3538 = vadd.f32 0.0, %v3537
      %v3539 = vpop.f32.mrb[0].mxu0
      %v3540 = vpop.f32.mrb[0].mxu0
      %v3541 = vadd.f32 0.0, %v3540
      %v3542 = vpop.f32.mrb[0].mxu0
      %3543 = vmatprep.mubr.bf16.mxu0 0
      %3544 = vmatmul.mubr.bf16.gmra.mrb[0].mxu0 %v2780
      %v3545 = vpop.f32.mrb[0].mxu0
      %v3546 = vadd.f32 0.0, %v3545
      %v3547 = vpop.f32.mrb[0].mxu0
      %v3548 = vpop.f32.mrb[0].mxu0
      %v3549 = vadd.f32 0.0, %v3548
      %v3550 = vpop.f32.mrb[0].mxu0
      %3551 = vmatprep.mubr.bf16.mxu0 0
      %3552 = vmatmul.mubr.bf16.gmra.mrb[0].mxu0 %v2990
      %v3553 = vpop.f32.mrb[0].mxu0
      %v3554 = vadd.f32 0.0, %v3553
      %v3555 = vpop.f32.mrb[0].mxu0
      %v3556 = vpop.f32.mrb[0].mxu0
      %v3557 = vadd.f32 0.0, %v3556
      %v3558 = vpop.f32.mrb[0].mxu0
      %3559 = vmatprep.mubr.bf16.mxu0 0
      %3560 = vmatmul.mubr.bf16.gmra.mrb[0].mxu0 %v3200
      %v3561 = vpop.f32.mrb[0].mxu0
      %v3562 = vadd.f32 0.0, %v3561
      %v3563 = vpop.f32.mrb[0].mxu0
      %v3564 = vpop.f32.mrb[0].mxu0
      %v3565 = vadd.f32 0.0, %v3564
      %v3566 = vpop.f32.mrb[0].mxu0
      %3567 = vmatprep.mubr.bf16.mxu0 0
      %3568 = vmatmul.mubr.bf16.gmra.mrb[0].mxu0 %v3410
      %v3569 = vpop.f32.mrb[0].mxu0
      %v3570 = vadd.f32 0.0, %v3569
      %v3571 = vpop.f32.mrb[0].mxu0
      %v3572 = vpop.f32.mrb[0].mxu0
      %v3573 = vadd.f32 0.0, %v3572
      %v3574 = vpop.f32.mrb[0].mxu0
      %3575 = vdwg.mxu0
      %v3576 = vadd.f32 %v3366, %v3450
      %v3577 = vadd.f32 %v3367, %v3453
      %v3578 = vadd.f32 %v3368, %v3458
      %v3579 = vadd.f32 %v3369, %v3461
      %v3580 = vadd.f32 %v3370, %v3466
      %v3581 = vadd.f32 %v3371, %v3469
      %v3582 = vadd.f32 %v3372, %v3474
      %v3583 = vadd.f32 %v3373, %v3477
      %v3584 = vadd.f32 %v3374, %v3482
      %v3585 = vadd.f32 %v3375, %v3485
      %v3586 = vadd.f32 %v3376, %v3490
      %v3587 = vadd.f32 %v3377, %v3493
      %v3588 = vadd.f32 %v3378, %v3498
      %v3589 = vadd.f32 %v3379, %v3501
      %v3590 = vadd.f32 %v3380, %v3506
      %v3591 = vadd.f32 %v3381, %v3509
      %v3592 = vadd.f32 %v3382, %v3514
      %v3593 = vadd.f32 %v3383, %v3517
      %v3594 = vadd.f32 %v3384, %v3522
      %v3595 = vadd.f32 %v3385, %v3525
      %v3596 = vadd.f32 %v3386, %v3530
      %v3597 = vadd.f32 %v3387, %v3533
      %v3598 = vadd.f32 %v3388, %v3538
      %v3599 = vadd.f32 %v3389, %v3541
      %v3600 = vadd.f32 %v3390, %v3546
      %v3601 = vadd.f32 %v3391, %v3549
      %v3602 = vadd.f32 %v3392, %v3554
      %v3603 = vadd.f32 %v3393, %v3557
      %v3604 = vadd.f32 %v3394, %v3562
      %v3605 = vadd.f32 %v3395, %v3565
      %v3606 = vadd.f32 %v3396, %v3570
      %v3607 = vadd.f32 %v3397, %v3573
      %vm3608 = vsmask.f32 2304
      %vm3609 = vsmask.f32 6416
      %vm3610 = vmor %vm3608, %vm3609
      %v3611 = vrot.slane %v1138, 5
      %v3612 = vrot.slane %v1141, 6
      %v3613 = vor.u32 %v3611, %v3612
      %v3614 = vrot.slane %v3613, 4
      %v3615 = vrot.slane %v1151, 5
      %v3616 = vrot.slane %v1147, 6
      %v3617 = vor.u32 %v3615, %v3616
      %v3618 = vsel %vm3610, %v3614, %v3617
      %v3619 = vrot.slane %v3617, 4
      %v3620 = vshrl.u32 %v174, 16
      %v3622 = vrot.slane %v3620, 5
      %v3623 = vrot.slane %v1157, 6
      %v3624 = vor.u32 %v3622, %v3623
      %v3625 = vsel %vm3610, %v3619, %v3624
      %v3626 = vrot.slane %v1162, 5
      %v3627 = vrot.slane %v1165, 6
      %v3628 = vor.u32 %v3626, %v3627
      %v3629 = vrot.slane %v3628, 4
      %v3630 = vrot.slane %v1175, 5
      %v3631 = vrot.slane %v1171, 6
      %v3632 = vor.u32 %v3630, %v3631
      %v3633 = vsel %vm3610, %v3629, %v3632
      %v3634 = vrot.slane %v3632, 4
      %v3635 = vshrl.u32 %v177, 16
      %v3637 = vrot.slane %v3635, 5
      %v3638 = vrot.slane %v1181, 6
      %v3639 = vor.u32 %v3637, %v3638
      %v3640 = vsel %vm3610, %v3634, %v3639
      %v3641 = vrot.slane %v1186, 5
      %v3642 = vrot.slane %v1189, 6
      %v3643 = vor.u32 %v3641, %v3642
      %v3644 = vrot.slane %v3643, 4
      %v3645 = vrot.slane %v1199, 5
      %v3646 = vrot.slane %v1195, 6
      %v3647 = vor.u32 %v3645, %v3646
      %v3648 = vsel %vm3610, %v3644, %v3647
      %v3649 = vrot.slane %v3647, 4
      %v3650 = vshrl.u32 %v180, 16
      %v3652 = vrot.slane %v3650, 5
      %v3653 = vrot.slane %v1205, 6
      %v3654 = vor.u32 %v3652, %v3653
      %v3655 = vsel %vm3610, %v3649, %v3654
      %v3656 = vrot.slane %v1210, 5
      %v3657 = vrot.slane %v1213, 6
      %v3658 = vor.u32 %v3656, %v3657
      %v3659 = vrot.slane %v3658, 4
      %v3660 = vrot.slane %v1223, 5
      %v3661 = vrot.slane %v1219, 6
      %v3662 = vor.u32 %v3660, %v3661
      %v3663 = vsel %vm3610, %v3659, %v3662
      %v3664 = vrot.slane %v3662, 4
      %v3665 = vshrl.u32 %v183, 16
      %v3667 = vrot.slane %v3665, 5
      %v3668 = vrot.slane %v1229, 6
      %v3669 = vor.u32 %v3667, %v3668
      %v3670 = vsel %vm3610, %v3664, %v3669
      %v3671 = vrot.slane %v1234, 5
      %v3672 = vrot.slane %v1237, 6
      %v3673 = vor.u32 %v3671, %v3672
      %v3674 = vrot.slane %v3673, 4
      %v3675 = vrot.slane %v1247, 5
      %v3676 = vrot.slane %v1243, 6
      %v3677 = vor.u32 %v3675, %v3676
      %v3678 = vsel %vm3610, %v3674, %v3677
      %v3679 = vrot.slane %v3677, 4
      %v3680 = vshrl.u32 %v186, 16
      %v3682 = vrot.slane %v3680, 5
      %v3683 = vrot.slane %v1253, 6
      %v3684 = vor.u32 %v3682, %v3683
      %v3685 = vsel %vm3610, %v3679, %v3684
      %v3686 = vrot.slane %v1258, 5
      %v3687 = vrot.slane %v1261, 6
      %v3688 = vor.u32 %v3686, %v3687
      %v3689 = vrot.slane %v3688, 4
      %v3690 = vrot.slane %v1271, 5
      %v3691 = vrot.slane %v1267, 6
      %v3692 = vor.u32 %v3690, %v3691
      %v3693 = vsel %vm3610, %v3689, %v3692
      %v3694 = vrot.slane %v3692, 4
      %v3695 = vshrl.u32 %v189, 16
      %v3697 = vrot.slane %v3695, 5
      %v3698 = vrot.slane %v1277, 6
      %v3699 = vor.u32 %v3697, %v3698
      %v3700 = vsel %vm3610, %v3694, %v3699
      %v3701 = vrot.slane %v1282, 5
      %v3702 = vrot.slane %v1285, 6
      %v3703 = vor.u32 %v3701, %v3702
      %v3704 = vrot.slane %v3703, 4
      %v3705 = vrot.slane %v1295, 5
      %v3706 = vrot.slane %v1291, 6
      %v3707 = vor.u32 %v3705, %v3706
      %v3708 = vsel %vm3610, %v3704, %v3707
      %v3709 = vrot.slane %v3707, 4
      %v3710 = vshrl.u32 %v192, 16
      %v3712 = vrot.slane %v3710, 5
      %v3713 = vrot.slane %v1301, 6
      %v3714 = vor.u32 %v3712, %v3713
      %v3715 = vsel %vm3610, %v3709, %v3714
      %v3716 = vrot.slane %v1306, 5
      %v3717 = vrot.slane %v1309, 6
      %v3718 = vor.u32 %v3716, %v3717
      %v3719 = vrot.slane %v3718, 4
      %v3720 = vrot.slane %v1319, 5
      %v3721 = vrot.slane %v1315, 6
      %v3722 = vor.u32 %v3720, %v3721
      %v3723 = vsel %vm3610, %v3719, %v3722
      %v3724 = vrot.slane %v3722, 4
      %v3725 = vshrl.u32 %v195, 16
      %v3727 = vrot.slane %v3725, 5
      %v3728 = vrot.slane %v1325, 6
      %v3729 = vor.u32 %v3727, %v3728
      %v3730 = vsel %vm3610, %v3724, %v3729
      %v3731 = vrot.slane %v1330, 5
      %v3732 = vrot.slane %v1333, 6
      %v3733 = vor.u32 %v3731, %v3732
      %v3734 = vrot.slane %v3733, 4
      %v3735 = vrot.slane %v1343, 5
      %v3736 = vrot.slane %v1339, 6
      %v3737 = vor.u32 %v3735, %v3736
      %v3738 = vsel %vm3610, %v3734, %v3737
      %v3739 = vrot.slane %v3737, 4
      %v3740 = vshrl.u32 %v198, 16
      %v3742 = vrot.slane %v3740, 5
      %v3743 = vrot.slane %v1349, 6
      %v3744 = vor.u32 %v3742, %v3743
      %v3745 = vsel %vm3610, %v3739, %v3744
      %v3746 = vrot.slane %v1354, 5
      %v3747 = vrot.slane %v1357, 6
      %v3748 = vor.u32 %v3746, %v3747
      %v3749 = vrot.slane %v3748, 4
      %v3750 = vrot.slane %v1367, 5
      %v3751 = vrot.slane %v1363, 6
      %v3752 = vor.u32 %v3750, %v3751
      %v3753 = vsel %vm3610, %v3749, %v3752
      %v3754 = vrot.slane %v3752, 4
      %v3755 = vshrl.u32 %v201, 16
      %v3757 = vrot.slane %v3755, 5
      %v3758 = vrot.slane %v1373, 6
      %v3759 = vor.u32 %v3757, %v3758
      %v3760 = vsel %vm3610, %v3754, %v3759
      %v3761 = vrot.slane %v1378, 5
      %v3762 = vrot.slane %v1381, 6
      %v3763 = vor.u32 %v3761, %v3762
      %v3764 = vrot.slane %v3763, 4
      %v3765 = vrot.slane %v1391, 5
      %v3766 = vrot.slane %v1387, 6
      %v3767 = vor.u32 %v3765, %v3766
      %v3768 = vsel %vm3610, %v3764, %v3767
      %v3769 = vrot.slane %v3767, 4
      %v3770 = vshrl.u32 %v204, 16
      %v3772 = vrot.slane %v3770, 5
      %v3773 = vrot.slane %v1397, 6
      %v3774 = vor.u32 %v3772, %v3773
      %v3775 = vsel %vm3610, %v3769, %v3774
      %v3776 = vrot.slane %v1402, 5
      %v3777 = vrot.slane %v1405, 6
      %v3778 = vor.u32 %v3776, %v3777
      %v3779 = vrot.slane %v3778, 4
      %v3780 = vrot.slane %v1415, 5
      %v3781 = vrot.slane %v1411, 6
      %v3782 = vor.u32 %v3780, %v3781
      %v3783 = vsel %vm3610, %v3779, %v3782
      %v3784 = vrot.slane %v3782, 4
      %v3785 = vshrl.u32 %v207, 16
      %v3787 = vrot.slane %v3785, 5
      %v3788 = vrot.slane %v1421, 6
      %v3789 = vor.u32 %v3787, %v3788
      %v3790 = vsel %vm3610, %v3784, %v3789
      %v3791 = vrot.slane %v1426, 5
      %v3792 = vrot.slane %v1429, 6
      %v3793 = vor.u32 %v3791, %v3792
      %v3794 = vrot.slane %v3793, 4
      %v3795 = vrot.slane %v1439, 5
      %v3796 = vrot.slane %v1435, 6
      %v3797 = vor.u32 %v3795, %v3796
      %v3798 = vsel %vm3610, %v3794, %v3797
      %v3799 = vrot.slane %v3797, 4
      %v3800 = vshrl.u32 %v210, 16
      %v3802 = vrot.slane %v3800, 5
      %v3803 = vrot.slane %v1445, 6
      %v3804 = vor.u32 %v3802, %v3803
      %v3805 = vsel %vm3610, %v3799, %v3804
      %v3806 = vrot.slane %v1450, 5
      %v3807 = vrot.slane %v1453, 6
      %v3808 = vor.u32 %v3806, %v3807
      %v3809 = vrot.slane %v3808, 4
      %v3810 = vrot.slane %v1463, 5
      %v3811 = vrot.slane %v1459, 6
      %v3812 = vor.u32 %v3810, %v3811
      %v3813 = vsel %vm3610, %v3809, %v3812
      %v3814 = vrot.slane %v3812, 4
      %v3815 = vshrl.u32 %v213, 16
      %v3817 = vrot.slane %v3815, 5
      %v3818 = vrot.slane %v1469, 6
      %v3819 = vor.u32 %v3817, %v3818
      %v3820 = vsel %vm3610, %v3814, %v3819
      %v3821 = vrot.slane %v1474, 5
      %v3822 = vrot.slane %v1477, 6
      %v3823 = vor.u32 %v3821, %v3822
      %v3824 = vrot.slane %v3823, 4
      %v3825 = vrot.slane %v1487, 5
      %v3826 = vrot.slane %v1483, 6
      %v3827 = vor.u32 %v3825, %v3826
      %v3828 = vsel %vm3610, %v3824, %v3827
      %v3829 = vrot.slane %v3827, 4
      %v3830 = vshrl.u32 %v216, 16
      %v3832 = vrot.slane %v3830, 5
      %v3833 = vrot.slane %v1493, 6
      %v3834 = vor.u32 %v3832, %v3833
      %v3835 = vsel %vm3610, %v3829, %v3834
      %v3836 = vrot.slane %v1498, 5
      %v3837 = vrot.slane %v1501, 6
      %v3838 = vor.u32 %v3836, %v3837
      %v3839 = vrot.slane %v3838, 4
      %v3840 = vrot.slane %v1511, 5
      %v3841 = vrot.slane %v1507, 6
      %v3842 = vor.u32 %v3840, %v3841
      %v3843 = vsel %vm3610, %v3839, %v3842
      %v3844 = vrot.slane %v3842, 4
      %v3845 = vshrl.u32 %v219, 16
      %v3847 = vrot.slane %v3845, 5
      %v3848 = vrot.slane %v1517, 6
      %v3849 = vor.u32 %v3847, %v3848
      %v3850 = vsel %vm3610, %v3844, %v3849
      %v3851 = vrot.slane %v1522, 5
      %v3852 = vrot.slane %v1525, 6
      %v3853 = vor.u32 %v3851, %v3852
      %v3854 = vrot.slane %v3853, 4
      %v3855 = vrot.slane %v1535, 5
      %v3856 = vrot.slane %v1531, 6
      %v3857 = vor.u32 %v3855, %v3856
      %v3858 = vsel %vm3610, %v3854, %v3857
      %v3859 = vrot.slane %v3857, 4
      %v3860 = vshrl.u32 %v222, 16
      %v3862 = vrot.slane %v3860, 5
      %v3863 = vrot.slane %v1541, 6
      %v3864 = vor.u32 %v3862, %v3863
      %v3865 = vsel %vm3610, %v3859, %v3864
      %v3866 = vrot.slane %v1546, 5
      %v3867 = vrot.slane %v1549, 6
      %v3868 = vor.u32 %v3866, %v3867
      %v3869 = vrot.slane %v3868, 4
      %v3870 = vrot.slane %v1559, 5
      %v3871 = vrot.slane %v1555, 6
      %v3872 = vor.u32 %v3870, %v3871
      %v3873 = vsel %vm3610, %v3869, %v3872
      %v3874 = vrot.slane %v3872, 4
      %v3875 = vshrl.u32 %v225, 16
      %v3877 = vrot.slane %v3875, 5
      %v3878 = vrot.slane %v1565, 6
      %v3879 = vor.u32 %v3877, %v3878
      %v3880 = vsel %vm3610, %v3874, %v3879
      %v3881 = vrot.slane %v1570, 5
      %v3882 = vrot.slane %v1573, 6
      %v3883 = vor.u32 %v3881, %v3882
      %v3884 = vrot.slane %v3883, 4
      %v3885 = vrot.slane %v1583, 5
      %v3886 = vrot.slane %v1579, 6
      %v3887 = vor.u32 %v3885, %v3886
      %v3888 = vsel %vm3610, %v3884, %v3887
      %v3889 = vrot.slane %v3887, 4
      %v3890 = vshrl.u32 %v228, 16
      %v3892 = vrot.slane %v3890, 5
      %v3893 = vrot.slane %v1589, 6
      %v3894 = vor.u32 %v3892, %v3893
      %v3895 = vsel %vm3610, %v3889, %v3894
      %s3896 = scalar_lea.vmem %s1, 24
      %v3897 = vld [vmem:[%s3896] sm:$0xf]
      %v3898 = vld [vmem:[%s3896 + $0x4] sm:$0x3]
      %v3899 = vunpack.c.l.b16 %v3618
      %v3900 = vunpack.c.l.b16 %v3625
      %v3901 = vunpack.c.l.b16 %v3633
      %v3902 = vunpack.c.l.b16 %v3640
      %v3903 = vunpack.c.l.b16 %v3648
      %v3904 = vunpack.c.l.b16 %v3655
      %v3905 = vunpack.c.l.b16 %v3663
      %v3906 = vunpack.c.l.b16 %v3670
      %v3907 = vunpack.c.l.b16 %v3678
      %v3908 = vunpack.c.l.b16 %v3685
      %v3909 = vunpack.c.l.b16 %v3693
      %v3910 = vunpack.c.l.b16 %v3700
      %v3911 = vunpack.c.l.b16 %v3708
      %v3912 = vunpack.c.l.b16 %v3715
      %v3913 = vunpack.c.l.b16 %v3723
      %v3914 = vunpack.c.l.b16 %v3730
      %v3915 = vunpack.c.l.b16 %v3738
      %v3916 = vunpack.c.l.b16 %v3745
      %v3917 = vunpack.c.l.b16 %v3753
      %v3918 = vunpack.c.l.b16 %v3760
      %v3919 = vunpack.c.l.b16 %v3768
      %v3920 = vunpack.c.l.b16 %v3775
      %v3921 = vunpack.c.l.b16 %v3783
      %v3922 = vunpack.c.l.b16 %v3790
      %v3923 = vunpack.c.l.b16 %v3798
      %v3924 = vunpack.c.l.b16 %v3805
      %v3925 = vunpack.c.l.b16 %v3813
      %v3926 = vunpack.c.l.b16 %v3820
      %v3927 = vunpack.c.l.b16 %v3828
      %v3928 = vunpack.c.l.b16 %v3835
      %v3929 = vunpack.c.l.b16 %v3843
      %v3930 = vunpack.c.l.b16 %v3850
      %v3931 = vpack.c.b16 %v3900, %v3899
      %v3932 = vpack.c.b16 %v3902, %v3901
      %v3933 = vpack.c.b16 %v3904, %v3903
      %v3934 = vpack.c.b16 %v3906, %v3905
      %v3935 = vpack.c.b16 %v3908, %v3907
      %v3936 = vpack.c.b16 %v3910, %v3909
      %v3937 = vpack.c.b16 %v3912, %v3911
      %v3938 = vpack.c.b16 %v3914, %v3913
      %v3939 = vpack.c.b16 %v3916, %v3915
      %v3940 = vpack.c.b16 %v3918, %v3917
      %v3941 = vpack.c.b16 %v3920, %v3919
      %v3942 = vpack.c.b16 %v3922, %v3921
      %v3943 = vpack.c.b16 %v3924, %v3923
      %v3944 = vpack.c.b16 %v3926, %v3925
      %v3945 = vpack.c.b16 %v3928, %v3927
      %v3946 = vpack.c.b16 %v3930, %v3929
      %v3949 = vunpack.c.l.b16 %v3897
      %v3950 = vunpack.c.l.b16 %v3898
      %v3951 = vpack.c.b16 %v3950, %v3949
      %v3953 = vsel %vm319, %v3931, 0
      %v3956 = vsel %vm319, %v3932, 0
      %v3959 = vsel %vm319, %v3933, 0
      %v3962 = vsel %vm319, %v3934, 0
      %v3965 = vsel %vm319, %v3935, 0
      %v3968 = vsel %vm319, %v3936, 0
      %v3971 = vsel %vm319, %v3937, 0
      %v3974 = vsel %vm319, %v3938, 0
      %v3977 = vsel %vm319, %v3939, 0
      %v3980 = vsel %vm319, %v3940, 0
      %v3983 = vsel %vm319, %v3941, 0
      %v3986 = vsel %vm319, %v3942, 0
      %v3989 = vsel %vm319, %v3943, 0
      %v3992 = vsel %vm319, %v3944, 0
      %v3995 = vsel %vm319, %v3945, 0
      %v3998 = vsel %vm319, %v3946, 0
      %v4001 = vsel %vm368, %v3951, 0
      %4003 = vmatprep.subr.bf16.mxu0 0
      %4004 = vmatpush1.bf16.msra.mxu0 %v4001
      %4005 = vmatprep.subr.bf16.mxu0 0
      %4006 = vmatpush1.bf16.msra.mxu0 0
      %4007 = vmatprep.subr.bf16.mxu0 0
      %4008 = vmatpush1.bf16.msra.mxu0 0
      %4009 = vmatprep.subr.bf16.mxu0 0
      %4010 = vmatpush1.bf16.msra.mxu0 0
      %4011 = vmatprep.subr.bf16.mxu0 0
      %4012 = vmatpush1.bf16.msra.mxu0 0
      %4013 = vmatprep.subr.bf16.mxu0 0
      %4014 = vmatpush1.bf16.msra.mxu0 0
      %4015 = vmatprep.subr.bf16.mxu0 0
      %4016 = vmatpush1.bf16.msra.mxu0 0
      %4017 = vmatprep.subr.bf16.mxu0 0
      %4018 = vmatpush1.bf16.msra.mxu0 0
      %4019 = vmatprep.subr.bf16.mxu0 0
      %4020 = vmatpush1.bf16.msra.mxu0 0
      %4021 = vmatprep.subr.bf16.mxu0 0
      %4022 = vmatpush1.bf16.msra.mxu0 0
      %4023 = vmatprep.subr.bf16.mxu0 0
      %4024 = vmatpush1.bf16.msra.mxu0 0
      %4025 = vmatprep.subr.bf16.mxu0 0
      %4026 = vmatpush1.bf16.msra.mxu0 0
      %4027 = vmatprep.subr.bf16.mxu0 0
      %4028 = vmatpush1.bf16.msra.mxu0 0
      %4029 = vmatprep.subr.bf16.mxu0 0
      %4030 = vmatpush1.bf16.msra.mxu0 0
      %4031 = vmatprep.subr.bf16.mxu0 0
      %4032 = vmatpush1.bf16.msra.mxu0 0
      %4033 = vmatprep.subr.bf16.mxu0 0
      %4034 = vmatpush1.bf16.msra.mxu0 0
      %4035 = vmatprep.mubr.bf16.mxu0 0
      %4036 = vmatmul.mubr.bf16.gmra.mrb[0].mxu0 %v3953
      %v4037 = vpop.f32.mrb[0].mxu0
      %v4038 = vadd.f32 0.0, %v4037
      %v4039 = vpop.f32.mrb[0].mxu0
      %v4040 = vpop.f32.mrb[0].mxu0
      %v4041 = vadd.f32 0.0, %v4040
      %v4042 = vpop.f32.mrb[0].mxu0
      %4043 = vmatprep.mubr.bf16.mxu0 0
      %4044 = vmatmul.mubr.bf16.gmra.mrb[0].mxu0 %v3956
      %v4045 = vpop.f32.mrb[0].mxu0
      %v4046 = vadd.f32 0.0, %v4045
      %v4047 = vpop.f32.mrb[0].mxu0
      %v4048 = vpop.f32.mrb[0].mxu0
      %v4049 = vadd.f32 0.0, %v4048
      %v4050 = vpop.f32.mrb[0].mxu0
      %4051 = vmatprep.mubr.bf16.mxu0 0
      %4052 = vmatmul.mubr.bf16.gmra.mrb[0].mxu0 %v3959
      %v4053 = vpop.f32.mrb[0].mxu0
      %v4054 = vadd.f32 0.0, %v4053
      %v4055 = vpop.f32.mrb[0].mxu0
      %v4056 = vpop.f32.mrb[0].mxu0
      %v4057 = vadd.f32 0.0, %v4056
      %v4058 = vpop.f32.mrb[0].mxu0
      %4059 = vmatprep.mubr.bf16.mxu0 0
      %4060 = vmatmul.mubr.bf16.gmra.mrb[0].mxu0 %v3962
      %v4061 = vpop.f32.mrb[0].mxu0
      %v4062 = vadd.f32 0.0, %v4061
      %v4063 = vpop.f32.mrb[0].mxu0
      %v4064 = vpop.f32.mrb[0].mxu0
      %v4065 = vadd.f32 0.0, %v4064
      %v4066 = vpop.f32.mrb[0].mxu0
      %4067 = vmatprep.mubr.bf16.mxu0 0
      %4068 = vmatmul.mubr.bf16.gmra.mrb[0].mxu0 %v3965
      %v4069 = vpop.f32.mrb[0].mxu0
      %v4070 = vadd.f32 0.0, %v4069
      %v4071 = vpop.f32.mrb[0].mxu0
      %v4072 = vpop.f32.mrb[0].mxu0
      %v4073 = vadd.f32 0.0, %v4072
      %v4074 = vpop.f32.mrb[0].mxu0
      %4075 = vmatprep.mubr.bf16.mxu0 0
      %4076 = vmatmul.mubr.bf16.gmra.mrb[0].mxu0 %v3968
      %v4077 = vpop.f32.mrb[0].mxu0
      %v4078 = vadd.f32 0.0, %v4077
      %v4079 = vpop.f32.mrb[0].mxu0
      %v4080 = vpop.f32.mrb[0].mxu0
      %v4081 = vadd.f32 0.0, %v4080
      %v4082 = vpop.f32.mrb[0].mxu0
      %4083 = vmatprep.mubr.bf16.mxu0 0
      %4084 = vmatmul.mubr.bf16.gmra.mrb[0].mxu0 %v3971
      %v4085 = vpop.f32.mrb[0].mxu0
      %v4086 = vadd.f32 0.0, %v4085
      %v4087 = vpop.f32.mrb[0].mxu0
      %v4088 = vpop.f32.mrb[0].mxu0
      %v4089 = vadd.f32 0.0, %v4088
      %v4090 = vpop.f32.mrb[0].mxu0
      %4091 = vmatprep.mubr.bf16.mxu0 0
      %4092 = vmatmul.mubr.bf16.gmra.mrb[0].mxu0 %v3974
      %v4093 = vpop.f32.mrb[0].mxu0
      %v4094 = vadd.f32 0.0, %v4093
      %v4095 = vpop.f32.mrb[0].mxu0
      %v4096 = vpop.f32.mrb[0].mxu0
      %v4097 = vadd.f32 0.0, %v4096
      %v4098 = vpop.f32.mrb[0].mxu0
      %4099 = vmatprep.mubr.bf16.mxu0 0
      %4100 = vmatmul.mubr.bf16.gmra.mrb[0].mxu0 %v3977
      %v4101 = vpop.f32.mrb[0].mxu0
      %v4102 = vadd.f32 0.0, %v4101
      %v4103 = vpop.f32.mrb[0].mxu0
      %v4104 = vpop.f32.mrb[0].mxu0
      %v4105 = vadd.f32 0.0, %v4104
      %v4106 = vpop.f32.mrb[0].mxu0
      %4107 = vmatprep.mubr.bf16.mxu0 0
      %4108 = vmatmul.mubr.bf16.gmra.mrb[0].mxu0 %v3980
      %v4109 = vpop.f32.mrb[0].mxu0
      %v4110 = vadd.f32 0.0, %v4109
      %v4111 = vpop.f32.mrb[0].mxu0
      %v4112 = vpop.f32.mrb[0].mxu0
      %v4113 = vadd.f32 0.0, %v4112
      %v4114 = vpop.f32.mrb[0].mxu0
      %4115 = vmatprep.mubr.bf16.mxu0 0
      %4116 = vmatmul.mubr.bf16.gmra.mrb[0].mxu0 %v3983
      %v4117 = vpop.f32.mrb[0].mxu0
      %v4118 = vadd.f32 0.0, %v4117
      %v4119 = vpop.f32.mrb[0].mxu0
      %v4120 = vpop.f32.mrb[0].mxu0
      %v4121 = vadd.f32 0.0, %v4120
      %v4122 = vpop.f32.mrb[0].mxu0
      %4123 = vmatprep.mubr.bf16.mxu0 0
      %4124 = vmatmul.mubr.bf16.gmra.mrb[0].mxu0 %v3986
      %v4125 = vpop.f32.mrb[0].mxu0
      %v4126 = vadd.f32 0.0, %v4125
      %v4127 = vpop.f32.mrb[0].mxu0
      %v4128 = vpop.f32.mrb[0].mxu0
      %v4129 = vadd.f32 0.0, %v4128
      %v4130 = vpop.f32.mrb[0].mxu0
      %4131 = vmatprep.mubr.bf16.mxu0 0
      %4132 = vmatmul.mubr.bf16.gmra.mrb[0].mxu0 %v3989
      %v4133 = vpop.f32.mrb[0].mxu0
      %v4134 = vadd.f32 0.0, %v4133
      %v4135 = vpop.f32.mrb[0].mxu0
      %v4136 = vpop.f32.mrb[0].mxu0
      %v4137 = vadd.f32 0.0, %v4136
      %v4138 = vpop.f32.mrb[0].mxu0
      %4139 = vmatprep.mubr.bf16.mxu0 0
      %4140 = vmatmul.mubr.bf16.gmra.mrb[0].mxu0 %v3992
      %v4141 = vpop.f32.mrb[0].mxu0
      %v4142 = vadd.f32 0.0, %v4141
      %v4143 = vpop.f32.mrb[0].mxu0
      %v4144 = vpop.f32.mrb[0].mxu0
      %v4145 = vadd.f32 0.0, %v4144
      %v4146 = vpop.f32.mrb[0].mxu0
      %4147 = vmatprep.mubr.bf16.mxu0 0
      %4148 = vmatmul.mubr.bf16.gmra.mrb[0].mxu0 %v3995
      %v4149 = vpop.f32.mrb[0].mxu0
      %v4150 = vadd.f32 0.0, %v4149
      %v4151 = vpop.f32.mrb[0].mxu0
      %v4152 = vpop.f32.mrb[0].mxu0
      %v4153 = vadd.f32 0.0, %v4152
      %v4154 = vpop.f32.mrb[0].mxu0
      %4155 = vmatprep.mubr.bf16.mxu0 0
      %4156 = vmatmul.mubr.bf16.gmra.mrb[0].mxu0 %v3998
      %v4157 = vpop.f32.mrb[0].mxu0
      %v4158 = vadd.f32 0.0, %v4157
      %v4159 = vpop.f32.mrb[0].mxu0
      %v4160 = vpop.f32.mrb[0].mxu0
      %v4161 = vadd.f32 0.0, %v4160
      %v4162 = vpop.f32.mrb[0].mxu0
      %4163 = vdwg.mxu0
      %v4164 = vadd.f32 %v3576, %v4038
      %v4165 = vadd.f32 %v3577, %v4041
      %v4166 = vadd.f32 %v3578, %v4046
      %v4167 = vadd.f32 %v3579, %v4049
      %v4168 = vadd.f32 %v3580, %v4054
      %v4169 = vadd.f32 %v3581, %v4057
      %v4170 = vadd.f32 %v3582, %v4062
      %v4171 = vadd.f32 %v3583, %v4065
      %v4172 = vadd.f32 %v3584, %v4070
      %v4173 = vadd.f32 %v3585, %v4073
      %v4174 = vadd.f32 %v3586, %v4078
      %v4175 = vadd.f32 %v3587, %v4081
      %v4176 = vadd.f32 %v3588, %v4086
      %v4177 = vadd.f32 %v3589, %v4089
      %v4178 = vadd.f32 %v3590, %v4094
      %v4179 = vadd.f32 %v3591, %v4097
      %v4180 = vadd.f32 %v3592, %v4102
      %v4181 = vadd.f32 %v3593, %v4105
      %v4182 = vadd.f32 %v3594, %v4110
      %v4183 = vadd.f32 %v3595, %v4113
      %v4184 = vadd.f32 %v3596, %v4118
      %v4185 = vadd.f32 %v3597, %v4121
      %v4186 = vadd.f32 %v3598, %v4126
      %v4187 = vadd.f32 %v3599, %v4129
      %v4188 = vadd.f32 %v3600, %v4134
      %v4189 = vadd.f32 %v3601, %v4137
      %v4190 = vadd.f32 %v3602, %v4142
      %v4191 = vadd.f32 %v3603, %v4145
      %v4192 = vadd.f32 %v3604, %v4150
      %v4193 = vadd.f32 %v3605, %v4153
      %v4194 = vadd.f32 %v3606, %v4158
      %v4195 = vadd.f32 %v3607, %v4161
      %s4196 = scalar_lea.vmem %s1, 56
      %v4197 = vld [vmem:[%s4196] sm:$0xf]
      %v4198 = vld [vmem:[%s4196 + $0x4] sm:$0x3]
      %v4199 = vunpack.c.l.b16 %v3858
      %v4200 = vunpack.c.l.b16 %v3865
      %v4201 = vpack.c.b16 %v4200, %v4199
      %v4204 = vunpack.c.l.b16 %v4197
      %v4205 = vunpack.c.l.b16 %v4198
      %v4206 = vpack.c.b16 %v4205, %v4204
      %v4208 = vsel %vm319, %v4201, 0
      %v4211 = vsel %vm368, %v4206, 0
      %4213 = vmatprep.subr.bf16.mxu0 0
      %4214 = vmatpush1.bf16.msra.mxu0 %v4211
      %4215 = vmatprep.subr.bf16.mxu0 0
      %4216 = vmatpush1.bf16.msra.mxu0 0
      %4217 = vmatprep.subr.bf16.mxu0 0
      %4218 = vmatpush1.bf16.msra.mxu0 0
      %4219 = vmatprep.subr.bf16.mxu0 0
      %4220 = vmatpush1.bf16.msra.mxu0 0
      %4221 = vmatprep.subr.bf16.mxu0 0
      %4222 = vmatpush1.bf16.msra.mxu0 0
      %4223 = vmatprep.subr.bf16.mxu0 0
      %4224 = vmatpush1.bf16.msra.mxu0 0
      %4225 = vmatprep.subr.bf16.mxu0 0
      %4226 = vmatpush1.bf16.msra.mxu0 0
      %4227 = vmatprep.subr.bf16.mxu0 0
      %4228 = vmatpush1.bf16.msra.mxu0 0
      %4229 = vmatprep.subr.bf16.mxu0 0
      %4230 = vmatpush1.bf16.msra.mxu0 0
      %4231 = vmatprep.subr.bf16.mxu0 0
      %4232 = vmatpush1.bf16.msra.mxu0 0
      %4233 = vmatprep.subr.bf16.mxu0 0
      %4234 = vmatpush1.bf16.msra.mxu0 0
      %4235 = vmatprep.subr.bf16.mxu0 0
      %4236 = vmatpush1.bf16.msra.mxu0 0
      %4237 = vmatprep.subr.bf16.mxu0 0
      %4238 = vmatpush1.bf16.msra.mxu0 0
      %4239 = vmatprep.subr.bf16.mxu0 0
      %4240 = vmatpush1.bf16.msra.mxu0 0
      %4241 = vmatprep.subr.bf16.mxu0 0
      %4242 = vmatpush1.bf16.msra.mxu0 0
      %4243 = vmatprep.subr.bf16.mxu0 0
      %4244 = vmatpush1.bf16.msra.mxu0 0
      %4245 = vmatprep.mubr.bf16.mxu0 0
      %4246 = vmatmul.mubr.bf16.gmra.mrb[0].mxu0 %v3956
      %v4247 = vpop.f32.mrb[0].mxu0
      %v4248 = vadd.f32 0.0, %v4247
      %v4249 = vpop.f32.mrb[0].mxu0
      %v4250 = vpop.f32.mrb[0].mxu0
      %v4251 = vadd.f32 0.0, %v4250
      %v4252 = vpop.f32.mrb[0].mxu0
      %4253 = vmatprep.mubr.bf16.mxu0 0
      %4254 = vmatmul.mubr.bf16.gmra.mrb[0].mxu0 %v3959
      %v4255 = vpop.f32.mrb[0].mxu0
      %v4256 = vadd.f32 0.0, %v4255
      %v4257 = vpop.f32.mrb[0].mxu0
      %v4258 = vpop.f32.mrb[0].mxu0
      %v4259 = vadd.f32 0.0, %v4258
      %v4260 = vpop.f32.mrb[0].mxu0
      %4261 = vmatprep.mubr.bf16.mxu0 0
      %4262 = vmatmul.mubr.bf16.gmra.mrb[0].mxu0 %v3962
      %v4263 = vpop.f32.mrb[0].mxu0
      %v4264 = vadd.f32 0.0, %v4263
      %v4265 = vpop.f32.mrb[0].mxu0
      %v4266 = vpop.f32.mrb[0].mxu0
      %v4267 = vadd.f32 0.0, %v4266
      %v4268 = vpop.f32.mrb[0].mxu0
      %4269 = vmatprep.mubr.bf16.mxu0 0
      %4270 = vmatmul.mubr.bf16.gmra.mrb[0].mxu0 %v3965
      %v4271 = vpop.f32.mrb[0].mxu0
      %v4272 = vadd.f32 0.0, %v4271
      %v4273 = vpop.f32.mrb[0].mxu0
      %v4274 = vpop.f32.mrb[0].mxu0
      %v4275 = vadd.f32 0.0, %v4274
      %v4276 = vpop.f32.mrb[0].mxu0
      %4277 = vmatprep.mubr.bf16.mxu0 0
      %4278 = vmatmul.mubr.bf16.gmra.mrb[0].mxu0 %v3968
      %v4279 = vpop.f32.mrb[0].mxu0
      %v4280 = vadd.f32 0.0, %v4279
      %v4281 = vpop.f32.mrb[0].mxu0
      %v4282 = vpop.f32.mrb[0].mxu0
      %v4283 = vadd.f32 0.0, %v4282
      %v4284 = vpop.f32.mrb[0].mxu0
      %4285 = vmatprep.mubr.bf16.mxu0 0
      %4286 = vmatmul.mubr.bf16.gmra.mrb[0].mxu0 %v3971
      %v4287 = vpop.f32.mrb[0].mxu0
      %v4288 = vadd.f32 0.0, %v4287
      %v4289 = vpop.f32.mrb[0].mxu0
      %v4290 = vpop.f32.mrb[0].mxu0
      %v4291 = vadd.f32 0.0, %v4290
      %v4292 = vpop.f32.mrb[0].mxu0
      %4293 = vmatprep.mubr.bf16.mxu0 0
      %4294 = vmatmul.mubr.bf16.gmra.mrb[0].mxu0 %v3974
      %v4295 = vpop.f32.mrb[0].mxu0
      %v4296 = vadd.f32 0.0, %v4295
      %v4297 = vpop.f32.mrb[0].mxu0
      %v4298 = vpop.f32.mrb[0].mxu0
      %v4299 = vadd.f32 0.0, %v4298
      %v4300 = vpop.f32.mrb[0].mxu0
      %4301 = vmatprep.mubr.bf16.mxu0 0
      %4302 = vmatmul.mubr.bf16.gmra.mrb[0].mxu0 %v3977
      %v4303 = vpop.f32.mrb[0].mxu0
      %v4304 = vadd.f32 0.0, %v4303
      %v4305 = vpop.f32.mrb[0].mxu0
      %v4306 = vpop.f32.mrb[0].mxu0
      %v4307 = vadd.f32 0.0, %v4306
      %v4308 = vpop.f32.mrb[0].mxu0
      %4309 = vmatprep.mubr.bf16.mxu0 0
      %4310 = vmatmul.mubr.bf16.gmra.mrb[0].mxu0 %v3980
      %v4311 = vpop.f32.mrb[0].mxu0
      %v4312 = vadd.f32 0.0, %v4311
      %v4313 = vpop.f32.mrb[0].mxu0
      %v4314 = vpop.f32.mrb[0].mxu0
      %v4315 = vadd.f32 0.0, %v4314
      %v4316 = vpop.f32.mrb[0].mxu0
      %4317 = vmatprep.mubr.bf16.mxu0 0
      %4318 = vmatmul.mubr.bf16.gmra.mrb[0].mxu0 %v3983
      %v4319 = vpop.f32.mrb[0].mxu0
      %v4320 = vadd.f32 0.0, %v4319
      %v4321 = vpop.f32.mrb[0].mxu0
      %v4322 = vpop.f32.mrb[0].mxu0
      %v4323 = vadd.f32 0.0, %v4322
      %v4324 = vpop.f32.mrb[0].mxu0
      %4325 = vmatprep.mubr.bf16.mxu0 0
      %4326 = vmatmul.mubr.bf16.gmra.mrb[0].mxu0 %v3986
      %v4327 = vpop.f32.mrb[0].mxu0
      %v4328 = vadd.f32 0.0, %v4327
      %v4329 = vpop.f32.mrb[0].mxu0
      %v4330 = vpop.f32.mrb[0].mxu0
      %v4331 = vadd.f32 0.0, %v4330
      %v4332 = vpop.f32.mrb[0].mxu0
      %4333 = vmatprep.mubr.bf16.mxu0 0
      %4334 = vmatmul.mubr.bf16.gmra.mrb[0].mxu0 %v3989
      %v4335 = vpop.f32.mrb[0].mxu0
      %v4336 = vadd.f32 0.0, %v4335
      %v4337 = vpop.f32.mrb[0].mxu0
      %v4338 = vpop.f32.mrb[0].mxu0
      %v4339 = vadd.f32 0.0, %v4338
      %v4340 = vpop.f32.mrb[0].mxu0
      %4341 = vmatprep.mubr.bf16.mxu0 0
      %4342 = vmatmul.mubr.bf16.gmra.mrb[0].mxu0 %v3992
      %v4343 = vpop.f32.mrb[0].mxu0
      %v4344 = vadd.f32 0.0, %v4343
      %v4345 = vpop.f32.mrb[0].mxu0
      %v4346 = vpop.f32.mrb[0].mxu0
      %v4347 = vadd.f32 0.0, %v4346
      %v4348 = vpop.f32.mrb[0].mxu0
      %4349 = vmatprep.mubr.bf16.mxu0 0
      %4350 = vmatmul.mubr.bf16.gmra.mrb[0].mxu0 %v3995
      %v4351 = vpop.f32.mrb[0].mxu0
      %v4352 = vadd.f32 0.0, %v4351
      %v4353 = vpop.f32.mrb[0].mxu0
      %v4354 = vpop.f32.mrb[0].mxu0
      %v4355 = vadd.f32 0.0, %v4354
      %v4356 = vpop.f32.mrb[0].mxu0
      %4357 = vmatprep.mubr.bf16.mxu0 0
      %4358 = vmatmul.mubr.bf16.gmra.mrb[0].mxu0 %v3998
      %v4359 = vpop.f32.mrb[0].mxu0
      %v4360 = vadd.f32 0.0, %v4359
      %v4361 = vpop.f32.mrb[0].mxu0
      %v4362 = vpop.f32.mrb[0].mxu0
      %v4363 = vadd.f32 0.0, %v4362
      %v4364 = vpop.f32.mrb[0].mxu0
      %4365 = vmatprep.mubr.bf16.mxu0 0
      %4366 = vmatmul.mubr.bf16.gmra.mrb[0].mxu0 %v4208
      %v4367 = vpop.f32.mrb[0].mxu0
      %v4368 = vadd.f32 0.0, %v4367
      %v4369 = vpop.f32.mrb[0].mxu0
      %v4370 = vpop.f32.mrb[0].mxu0
      %v4371 = vadd.f32 0.0, %v4370
      %v4372 = vpop.f32.mrb[0].mxu0
      %4373 = vdwg.mxu0
      %v4374 = vadd.f32 %v4164, %v4248
      %v4375 = vadd.f32 %v4165, %v4251
      %v4376 = vadd.f32 %v4166, %v4256
      %v4377 = vadd.f32 %v4167, %v4259
      %v4378 = vadd.f32 %v4168, %v4264
      %v4379 = vadd.f32 %v4169, %v4267
      %v4380 = vadd.f32 %v4170, %v4272
      %v4381 = vadd.f32 %v4171, %v4275
      %v4382 = vadd.f32 %v4172, %v4280
      %v4383 = vadd.f32 %v4173, %v4283
      %v4384 = vadd.f32 %v4174, %v4288
      %v4385 = vadd.f32 %v4175, %v4291
      %v4386 = vadd.f32 %v4176, %v4296
      %v4387 = vadd.f32 %v4177, %v4299
      %v4388 = vadd.f32 %v4178, %v4304
      %v4389 = vadd.f32 %v4179, %v4307
      %v4390 = vadd.f32 %v4180, %v4312
      %v4391 = vadd.f32 %v4181, %v4315
      %v4392 = vadd.f32 %v4182, %v4320
      %v4393 = vadd.f32 %v4183, %v4323
      %v4394 = vadd.f32 %v4184, %v4328
      %v4395 = vadd.f32 %v4185, %v4331
      %v4396 = vadd.f32 %v4186, %v4336
      %v4397 = vadd.f32 %v4187, %v4339
      %v4398 = vadd.f32 %v4188, %v4344
      %v4399 = vadd.f32 %v4189, %v4347
      %v4400 = vadd.f32 %v4190, %v4352
      %v4401 = vadd.f32 %v4191, %v4355
      %v4402 = vadd.f32 %v4192, %v4360
      %v4403 = vadd.f32 %v4193, %v4363
      %v4404 = vadd.f32 %v4194, %v4368
      %v4405 = vadd.f32 %v4195, %v4371
      %s4406 = scalar_lea.vmem %s1, 88
      %v4407 = vld [vmem:[%s4406] sm:$0xf]
      %v4408 = vld [vmem:[%s4406 + $0x4] sm:$0x3]
      %v4409 = vunpack.c.l.b16 %v3873
      %v4410 = vunpack.c.l.b16 %v3880
      %v4411 = vpack.c.b16 %v4410, %v4409
      %v4414 = vunpack.c.l.b16 %v4407
      %v4415 = vunpack.c.l.b16 %v4408
      %v4416 = vpack.c.b16 %v4415, %v4414
      %v4418 = vsel %vm319, %v4411, 0
      %v4421 = vsel %vm368, %v4416, 0
      %4423 = vmatprep.subr.bf16.mxu0 0
      %4424 = vmatpush1.bf16.msra.mxu0 %v4421
      %4425 = vmatprep.subr.bf16.mxu0 0
      %4426 = vmatpush1.bf16.msra.mxu0 0
      %4427 = vmatprep.subr.bf16.mxu0 0
      %4428 = vmatpush1.bf16.msra.mxu0 0
      %4429 = vmatprep.subr.bf16.mxu0 0
      %4430 = vmatpush1.bf16.msra.mxu0 0
      %4431 = vmatprep.subr.bf16.mxu0 0
      %4432 = vmatpush1.bf16.msra.mxu0 0
      %4433 = vmatprep.subr.bf16.mxu0 0
      %4434 = vmatpush1.bf16.msra.mxu0 0
      %4435 = vmatprep.subr.bf16.mxu0 0
      %4436 = vmatpush1.bf16.msra.mxu0 0
      %4437 = vmatprep.subr.bf16.mxu0 0
      %4438 = vmatpush1.bf16.msra.mxu0 0
      %4439 = vmatprep.subr.bf16.mxu0 0
      %4440 = vmatpush1.bf16.msra.mxu0 0
      %4441 = vmatprep.subr.bf16.mxu0 0
      %4442 = vmatpush1.bf16.msra.mxu0 0
      %4443 = vmatprep.subr.bf16.mxu0 0
      %4444 = vmatpush1.bf16.msra.mxu0 0
      %4445 = vmatprep.subr.bf16.mxu0 0
      %4446 = vmatpush1.bf16.msra.mxu0 0
      %4447 = vmatprep.subr.bf16.mxu0 0
      %4448 = vmatpush1.bf16.msra.mxu0 0
      %4449 = vmatprep.subr.bf16.mxu0 0
      %4450 = vmatpush1.bf16.msra.mxu0 0
      %4451 = vmatprep.subr.bf16.mxu0 0
      %4452 = vmatpush1.bf16.msra.mxu0 0
      %4453 = vmatprep.subr.bf16.mxu0 0
      %4454 = vmatpush1.bf16.msra.mxu0 0
      %4455 = vmatprep.mubr.bf16.mxu0 0
      %4456 = vmatmul.mubr.bf16.gmra.mrb[0].mxu0 %v3959
      %v4457 = vpop.f32.mrb[0].mxu0
      %v4458 = vadd.f32 0.0, %v4457
      %v4459 = vpop.f32.mrb[0].mxu0
      %v4460 = vpop.f32.mrb[0].mxu0
      %v4461 = vadd.f32 0.0, %v4460
      %v4462 = vpop.f32.mrb[0].mxu0
      %4463 = vmatprep.mubr.bf16.mxu0 0
      %4464 = vmatmul.mubr.bf16.gmra.mrb[0].mxu0 %v3962
      %v4465 = vpop.f32.mrb[0].mxu0
      %v4466 = vadd.f32 0.0, %v4465
      %v4467 = vpop.f32.mrb[0].mxu0
      %v4468 = vpop.f32.mrb[0].mxu0
      %v4469 = vadd.f32 0.0, %v4468
      %v4470 = vpop.f32.mrb[0].mxu0
      %4471 = vmatprep.mubr.bf16.mxu0 0
      %4472 = vmatmul.mubr.bf16.gmra.mrb[0].mxu0 %v3965
      %v4473 = vpop.f32.mrb[0].mxu0
      %v4474 = vadd.f32 0.0, %v4473
      %v4475 = vpop.f32.mrb[0].mxu0
      %v4476 = vpop.f32.mrb[0].mxu0
      %v4477 = vadd.f32 0.0, %v4476
      %v4478 = vpop.f32.mrb[0].mxu0
      %4479 = vmatprep.mubr.bf16.mxu0 0
      %4480 = vmatmul.mubr.bf16.gmra.mrb[0].mxu0 %v3968
      %v4481 = vpop.f32.mrb[0].mxu0
      %v4482 = vadd.f32 0.0, %v4481
      %v4483 = vpop.f32.mrb[0].mxu0
      %v4484 = vpop.f32.mrb[0].mxu0
      %v4485 = vadd.f32 0.0, %v4484
      %v4486 = vpop.f32.mrb[0].mxu0
      %4487 = vmatprep.mubr.bf16.mxu0 0
      %4488 = vmatmul.mubr.bf16.gmra.mrb[0].mxu0 %v3971
      %v4489 = vpop.f32.mrb[0].mxu0
      %v4490 = vadd.f32 0.0, %v4489
      %v4491 = vpop.f32.mrb[0].mxu0
      %v4492 = vpop.f32.mrb[0].mxu0
      %v4493 = vadd.f32 0.0, %v4492
      %v4494 = vpop.f32.mrb[0].mxu0
      %4495 = vmatprep.mubr.bf16.mxu0 0
      %4496 = vmatmul.mubr.bf16.gmra.mrb[0].mxu0 %v3974
      %v4497 = vpop.f32.mrb[0].mxu0
      %v4498 = vadd.f32 0.0, %v4497
      %v4499 = vpop.f32.mrb[0].mxu0
      %v4500 = vpop.f32.mrb[0].mxu0
      %v4501 = vadd.f32 0.0, %v4500
      %v4502 = vpop.f32.mrb[0].mxu0
      %4503 = vmatprep.mubr.bf16.mxu0 0
      %4504 = vmatmul.mubr.bf16.gmra.mrb[0].mxu0 %v3977
      %v4505 = vpop.f32.mrb[0].mxu0
      %v4506 = vadd.f32 0.0, %v4505
      %v4507 = vpop.f32.mrb[0].mxu0
      %v4508 = vpop.f32.mrb[0].mxu0
      %v4509 = vadd.f32 0.0, %v4508
      %v4510 = vpop.f32.mrb[0].mxu0
      %4511 = vmatprep.mubr.bf16.mxu0 0
      %4512 = vmatmul.mubr.bf16.gmra.mrb[0].mxu0 %v3980
      %v4513 = vpop.f32.mrb[0].mxu0
      %v4514 = vadd.f32 0.0, %v4513
      %v4515 = vpop.f32.mrb[0].mxu0
      %v4516 = vpop.f32.mrb[0].mxu0
      %v4517 = vadd.f32 0.0, %v4516
      %v4518 = vpop.f32.mrb[0].mxu0
      %4519 = vmatprep.mubr.bf16.mxu0 0
      %4520 = vmatmul.mubr.bf16.gmra.mrb[0].mxu0 %v3983
      %v4521 = vpop.f32.mrb[0].mxu0
      %v4522 = vadd.f32 0.0, %v4521
      %v4523 = vpop.f32.mrb[0].mxu0
      %v4524 = vpop.f32.mrb[0].mxu0
      %v4525 = vadd.f32 0.0, %v4524
      %v4526 = vpop.f32.mrb[0].mxu0
      %4527 = vmatprep.mubr.bf16.mxu0 0
      %4528 = vmatmul.mubr.bf16.gmra.mrb[0].mxu0 %v3986
      %v4529 = vpop.f32.mrb[0].mxu0
      %v4530 = vadd.f32 0.0, %v4529
      %v4531 = vpop.f32.mrb[0].mxu0
      %v4532 = vpop.f32.mrb[0].mxu0
      %v4533 = vadd.f32 0.0, %v4532
      %v4534 = vpop.f32.mrb[0].mxu0
      %4535 = vmatprep.mubr.bf16.mxu0 0
      %4536 = vmatmul.mubr.bf16.gmra.mrb[0].mxu0 %v3989
      %v4537 = vpop.f32.mrb[0].mxu0
      %v4538 = vadd.f32 0.0, %v4537
      %v4539 = vpop.f32.mrb[0].mxu0
      %v4540 = vpop.f32.mrb[0].mxu0
      %v4541 = vadd.f32 0.0, %v4540
      %v4542 = vpop.f32.mrb[0].mxu0
      %4543 = vmatprep.mubr.bf16.mxu0 0
      %4544 = vmatmul.mubr.bf16.gmra.mrb[0].mxu0 %v3992
      %v4545 = vpop.f32.mrb[0].mxu0
      %v4546 = vadd.f32 0.0, %v4545
      %v4547 = vpop.f32.mrb[0].mxu0
      %v4548 = vpop.f32.mrb[0].mxu0
      %v4549 = vadd.f32 0.0, %v4548
      %v4550 = vpop.f32.mrb[0].mxu0
      %4551 = vmatprep.mubr.bf16.mxu0 0
      %4552 = vmatmul.mubr.bf16.gmra.mrb[0].mxu0 %v3995
      %v4553 = vpop.f32.mrb[0].mxu0
      %v4554 = vadd.f32 0.0, %v4553
      %v4555 = vpop.f32.mrb[0].mxu0
      %v4556 = vpop.f32.mrb[0].mxu0
      %v4557 = vadd.f32 0.0, %v4556
      %v4558 = vpop.f32.mrb[0].mxu0
      %4559 = vmatprep.mubr.bf16.mxu0 0
      %4560 = vmatmul.mubr.bf16.gmra.mrb[0].mxu0 %v3998
      %v4561 = vpop.f32.mrb[0].mxu0
      %v4562 = vadd.f32 0.0, %v4561
      %v4563 = vpop.f32.mrb[0].mxu0
      %v4564 = vpop.f32.mrb[0].mxu0
      %v4565 = vadd.f32 0.0, %v4564
      %v4566 = vpop.f32.mrb[0].mxu0
      %4567 = vmatprep.mubr.bf16.mxu0 0
      %4568 = vmatmul.mubr.bf16.gmra.mrb[0].mxu0 %v4208
      %v4569 = vpop.f32.mrb[0].mxu0
      %v4570 = vadd.f32 0.0, %v4569
      %v4571 = vpop.f32.mrb[0].mxu0
      %v4572 = vpop.f32.mrb[0].mxu0
      %v4573 = vadd.f32 0.0, %v4572
      %v4574 = vpop.f32.mrb[0].mxu0
      %4575 = vmatprep.mubr.bf16.mxu0 0
      %4576 = vmatmul.mubr.bf16.gmra.mrb[0].mxu0 %v4418
      %v4577 = vpop.f32.mrb[0].mxu0
      %v4578 = vadd.f32 0.0, %v4577
      %v4579 = vpop.f32.mrb[0].mxu0
      %v4580 = vpop.f32.mrb[0].mxu0
      %v4581 = vadd.f32 0.0, %v4580
      %v4582 = vpop.f32.mrb[0].mxu0
      %4583 = vdwg.mxu0
      %v4584 = vadd.f32 %v4374, %v4458
      %v4585 = vadd.f32 %v4375, %v4461
      %v4586 = vadd.f32 %v4376, %v4466
      %v4587 = vadd.f32 %v4377, %v4469
      %v4588 = vadd.f32 %v4378, %v4474
      %v4589 = vadd.f32 %v4379, %v4477
      %v4590 = vadd.f32 %v4380, %v4482
      %v4591 = vadd.f32 %v4381, %v4485
      %v4592 = vadd.f32 %v4382, %v4490
      %v4593 = vadd.f32 %v4383, %v4493
      %v4594 = vadd.f32 %v4384, %v4498
      %v4595 = vadd.f32 %v4385, %v4501
      %v4596 = vadd.f32 %v4386, %v4506
      %v4597 = vadd.f32 %v4387, %v4509
      %v4598 = vadd.f32 %v4388, %v4514
      %v4599 = vadd.f32 %v4389, %v4517
      %v4600 = vadd.f32 %v4390, %v4522
      %v4601 = vadd.f32 %v4391, %v4525
      %v4602 = vadd.f32 %v4392, %v4530
      %v4603 = vadd.f32 %v4393, %v4533
      %v4604 = vadd.f32 %v4394, %v4538
      %v4605 = vadd.f32 %v4395, %v4541
      %v4606 = vadd.f32 %v4396, %v4546
      %v4607 = vadd.f32 %v4397, %v4549
      %v4608 = vadd.f32 %v4398, %v4554
      %v4609 = vadd.f32 %v4399, %v4557
      %v4610 = vadd.f32 %v4400, %v4562
      %v4611 = vadd.f32 %v4401, %v4565
      %v4612 = vadd.f32 %v4402, %v4570
      %v4613 = vadd.f32 %v4403, %v4573
      %v4614 = vadd.f32 %v4404, %v4578
      %v4615 = vadd.f32 %v4405, %v4581
      %s4616 = scalar_lea.vmem %s1, 120
      %v4617 = vld [vmem:[%s4616] sm:$0xf]
      %v4618 = vld [vmem:[%s4616 + $0x4] sm:$0x3]
      %v4619 = vunpack.c.l.b16 %v3888
      %v4620 = vunpack.c.l.b16 %v3895
      %v4621 = vpack.c.b16 %v4620, %v4619
      %v4624 = vunpack.c.l.b16 %v4617
      %v4625 = vunpack.c.l.b16 %v4618
      %v4626 = vpack.c.b16 %v4625, %v4624
      %v4628 = vsel %vm319, %v4621, 0
      %v4631 = vsel %vm368, %v4626, 0
      %4633 = vmatprep.subr.bf16.mxu0 0
      %4634 = vmatpush1.bf16.msra.mxu0 %v4631
      %4635 = vmatprep.subr.bf16.mxu0 0
      %4636 = vmatpush1.bf16.msra.mxu0 0
      %4637 = vmatprep.subr.bf16.mxu0 0
      %4638 = vmatpush1.bf16.msra.mxu0 0
      %4639 = vmatprep.subr.bf16.mxu0 0
      %4640 = vmatpush1.bf16.msra.mxu0 0
      %4641 = vmatprep.subr.bf16.mxu0 0
      %4642 = vmatpush1.bf16.msra.mxu0 0
      %4643 = vmatprep.subr.bf16.mxu0 0
      %4644 = vmatpush1.bf16.msra.mxu0 0
      %4645 = vmatprep.subr.bf16.mxu0 0
      %4646 = vmatpush1.bf16.msra.mxu0 0
      %4647 = vmatprep.subr.bf16.mxu0 0
      %4648 = vmatpush1.bf16.msra.mxu0 0
      %4649 = vmatprep.subr.bf16.mxu0 0
      %4650 = vmatpush1.bf16.msra.mxu0 0
      %4651 = vmatprep.subr.bf16.mxu0 0
      %4652 = vmatpush1.bf16.msra.mxu0 0
      %4653 = vmatprep.subr.bf16.mxu0 0
      %4654 = vmatpush1.bf16.msra.mxu0 0
      %4655 = vmatprep.subr.bf16.mxu0 0
      %4656 = vmatpush1.bf16.msra.mxu0 0
      %4657 = vmatprep.subr.bf16.mxu0 0
      %4658 = vmatpush1.bf16.msra.mxu0 0
      %4659 = vmatprep.subr.bf16.mxu0 0
      %4660 = vmatpush1.bf16.msra.mxu0 0
      %4661 = vmatprep.subr.bf16.mxu0 0
      %4662 = vmatpush1.bf16.msra.mxu0 0
      %4663 = vmatprep.subr.bf16.mxu0 0
      %4664 = vmatpush1.bf16.msra.mxu0 0
      %4665 = vmatprep.mubr.bf16.mxu0 0
      %4666 = vmatmul.mubr.bf16.gmra.mrb[0].mxu0 %v3962
      %v4667 = vpop.f32.mrb[0].mxu0
      %v4668 = vadd.f32 0.0, %v4667
      %v4669 = vpop.f32.mrb[0].mxu0
      %v4670 = vpop.f32.mrb[0].mxu0
      %v4671 = vadd.f32 0.0, %v4670
      %v4672 = vpop.f32.mrb[0].mxu0
      %4673 = vmatprep.mubr.bf16.mxu0 0
      %4674 = vmatmul.mubr.bf16.gmra.mrb[0].mxu0 %v3965
      %v4675 = vpop.f32.mrb[0].mxu0
      %v4676 = vadd.f32 0.0, %v4675
      %v4677 = vpop.f32.mrb[0].mxu0
      %v4678 = vpop.f32.mrb[0].mxu0
      %v4679 = vadd.f32 0.0, %v4678
      %v4680 = vpop.f32.mrb[0].mxu0
      %4681 = vmatprep.mubr.bf16.mxu0 0
      %4682 = vmatmul.mubr.bf16.gmra.mrb[0].mxu0 %v3968
      %v4683 = vpop.f32.mrb[0].mxu0
      %v4684 = vadd.f32 0.0, %v4683
      %v4685 = vpop.f32.mrb[0].mxu0
      %v4686 = vpop.f32.mrb[0].mxu0
      %v4687 = vadd.f32 0.0, %v4686
      %v4688 = vpop.f32.mrb[0].mxu0
      %4689 = vmatprep.mubr.bf16.mxu0 0
      %4690 = vmatmul.mubr.bf16.gmra.mrb[0].mxu0 %v3971
      %v4691 = vpop.f32.mrb[0].mxu0
      %v4692 = vadd.f32 0.0, %v4691
      %v4693 = vpop.f32.mrb[0].mxu0
      %v4694 = vpop.f32.mrb[0].mxu0
      %v4695 = vadd.f32 0.0, %v4694
      %v4696 = vpop.f32.mrb[0].mxu0
      %4697 = vmatprep.mubr.bf16.mxu0 0
      %4698 = vmatmul.mubr.bf16.gmra.mrb[0].mxu0 %v3974
      %v4699 = vpop.f32.mrb[0].mxu0
      %v4700 = vadd.f32 0.0, %v4699
      %v4701 = vpop.f32.mrb[0].mxu0
      %v4702 = vpop.f32.mrb[0].mxu0
      %v4703 = vadd.f32 0.0, %v4702
      %v4704 = vpop.f32.mrb[0].mxu0
      %4705 = vmatprep.mubr.bf16.mxu0 0
      %4706 = vmatmul.mubr.bf16.gmra.mrb[0].mxu0 %v3977
      %v4707 = vpop.f32.mrb[0].mxu0
      %v4708 = vadd.f32 0.0, %v4707
      %v4709 = vpop.f32.mrb[0].mxu0
      %v4710 = vpop.f32.mrb[0].mxu0
      %v4711 = vadd.f32 0.0, %v4710
      %v4712 = vpop.f32.mrb[0].mxu0
      %4713 = vmatprep.mubr.bf16.mxu0 0
      %4714 = vmatmul.mubr.bf16.gmra.mrb[0].mxu0 %v3980
      %v4715 = vpop.f32.mrb[0].mxu0
      %v4716 = vadd.f32 0.0, %v4715
      %v4717 = vpop.f32.mrb[0].mxu0
      %v4718 = vpop.f32.mrb[0].mxu0
      %v4719 = vadd.f32 0.0, %v4718
      %v4720 = vpop.f32.mrb[0].mxu0
      %4721 = vmatprep.mubr.bf16.mxu0 0
      %4722 = vmatmul.mubr.bf16.gmra.mrb[0].mxu0 %v3983
      %v4723 = vpop.f32.mrb[0].mxu0
      %v4724 = vadd.f32 0.0, %v4723
      %v4725 = vpop.f32.mrb[0].mxu0
      %v4726 = vpop.f32.mrb[0].mxu0
      %v4727 = vadd.f32 0.0, %v4726
      %v4728 = vpop.f32.mrb[0].mxu0
      %4729 = vmatprep.mubr.bf16.mxu0 0
      %4730 = vmatmul.mubr.bf16.gmra.mrb[0].mxu0 %v3986
      %v4731 = vpop.f32.mrb[0].mxu0
      %v4732 = vadd.f32 0.0, %v4731
      %v4733 = vpop.f32.mrb[0].mxu0
      %v4734 = vpop.f32.mrb[0].mxu0
      %v4735 = vadd.f32 0.0, %v4734
      %v4736 = vpop.f32.mrb[0].mxu0
      %4737 = vmatprep.mubr.bf16.mxu0 0
      %4738 = vmatmul.mubr.bf16.gmra.mrb[0].mxu0 %v3989
      %v4739 = vpop.f32.mrb[0].mxu0
      %v4740 = vadd.f32 0.0, %v4739
      %v4741 = vpop.f32.mrb[0].mxu0
      %v4742 = vpop.f32.mrb[0].mxu0
      %v4743 = vadd.f32 0.0, %v4742
      %v4744 = vpop.f32.mrb[0].mxu0
      %4745 = vmatprep.mubr.bf16.mxu0 0
      %4746 = vmatmul.mubr.bf16.gmra.mrb[0].mxu0 %v3992
      %v4747 = vpop.f32.mrb[0].mxu0
      %v4748 = vadd.f32 0.0, %v4747
      %v4749 = vpop.f32.mrb[0].mxu0
      %v4750 = vpop.f32.mrb[0].mxu0
      %v4751 = vadd.f32 0.0, %v4750
      %v4752 = vpop.f32.mrb[0].mxu0
      %4753 = vmatprep.mubr.bf16.mxu0 0
      %4754 = vmatmul.mubr.bf16.gmra.mrb[0].mxu0 %v3995
      %v4755 = vpop.f32.mrb[0].mxu0
      %v4756 = vadd.f32 0.0, %v4755
      %v4757 = vpop.f32.mrb[0].mxu0
      %v4758 = vpop.f32.mrb[0].mxu0
      %v4759 = vadd.f32 0.0, %v4758
      %v4760 = vpop.f32.mrb[0].mxu0
      %4761 = vmatprep.mubr.bf16.mxu0 0
      %4762 = vmatmul.mubr.bf16.gmra.mrb[0].mxu0 %v3998
      %v4763 = vpop.f32.mrb[0].mxu0
      %v4764 = vadd.f32 0.0, %v4763
      %v4765 = vpop.f32.mrb[0].mxu0
      %v4766 = vpop.f32.mrb[0].mxu0
      %v4767 = vadd.f32 0.0, %v4766
      %v4768 = vpop.f32.mrb[0].mxu0
      %4769 = vmatprep.mubr.bf16.mxu0 0
      %4770 = vmatmul.mubr.bf16.gmra.mrb[0].mxu0 %v4208
      %v4771 = vpop.f32.mrb[0].mxu0
      %v4772 = vadd.f32 0.0, %v4771
      %v4773 = vpop.f32.mrb[0].mxu0
      %v4774 = vpop.f32.mrb[0].mxu0
      %v4775 = vadd.f32 0.0, %v4774
      %v4776 = vpop.f32.mrb[0].mxu0
      %4777 = vmatprep.mubr.bf16.mxu0 0
      %4778 = vmatmul.mubr.bf16.gmra.mrb[0].mxu0 %v4418
      %v4779 = vpop.f32.mrb[0].mxu0
      %v4780 = vadd.f32 0.0, %v4779
      %v4781 = vpop.f32.mrb[0].mxu0
      %v4782 = vpop.f32.mrb[0].mxu0
      %v4783 = vadd.f32 0.0, %v4782
      %v4784 = vpop.f32.mrb[0].mxu0
      %4785 = vmatprep.mubr.bf16.mxu0 0
      %4786 = vmatmul.mubr.bf16.gmra.mrb[0].mxu0 %v4628
      %v4787 = vpop.f32.mrb[0].mxu0
      %v4788 = vadd.f32 0.0, %v4787
      %v4789 = vpop.f32.mrb[0].mxu0
      %v4790 = vpop.f32.mrb[0].mxu0
      %v4791 = vadd.f32 0.0, %v4790
      %v4792 = vpop.f32.mrb[0].mxu0
      %4793 = vdwg.mxu0
      %v4794 = vadd.f32 %v4584, %v4668
      %v4795 = vadd.f32 %v4585, %v4671
      %v4796 = vadd.f32 %v4586, %v4676
      %v4797 = vadd.f32 %v4587, %v4679
      %v4798 = vadd.f32 %v4588, %v4684
      %v4799 = vadd.f32 %v4589, %v4687
      %v4800 = vadd.f32 %v4590, %v4692
      %v4801 = vadd.f32 %v4591, %v4695
      %v4802 = vadd.f32 %v4592, %v4700
      %v4803 = vadd.f32 %v4593, %v4703
      %v4804 = vadd.f32 %v4594, %v4708
      %v4805 = vadd.f32 %v4595, %v4711
      %v4806 = vadd.f32 %v4596, %v4716
      %v4807 = vadd.f32 %v4597, %v4719
      %v4808 = vadd.f32 %v4598, %v4724
      %v4809 = vadd.f32 %v4599, %v4727
      %v4810 = vadd.f32 %v4600, %v4732
      %v4811 = vadd.f32 %v4601, %v4735
      %v4812 = vadd.f32 %v4602, %v4740
      %v4813 = vadd.f32 %v4603, %v4743
      %v4814 = vadd.f32 %v4604, %v4748
      %v4815 = vadd.f32 %v4605, %v4751
      %v4816 = vadd.f32 %v4606, %v4756
      %v4817 = vadd.f32 %v4607, %v4759
      %v4818 = vadd.f32 %v4608, %v4764
      %v4819 = vadd.f32 %v4609, %v4767
      %v4820 = vadd.f32 %v4610, %v4772
      %v4821 = vadd.f32 %v4611, %v4775
      %v4822 = vadd.f32 %v4612, %v4780
      %v4823 = vadd.f32 %v4613, %v4783
      %v4824 = vadd.f32 %v4614, %v4788
      %v4825 = vadd.f32 %v4615, %v4791
      %v4826 = vld [vmem:[%s2] sm:$0x1]
      %v4828 = vlaneseq
      %v4829 = vshrl.u32 %v4828, 7
      %v4830 = vsub.s32 0, %v4829
      %v4831 = vrot.slane %v4826, %v4830
      %v4833 = vadd.f32 %v4794, %v4831
      %v4834 = vadd.f32 %v4795, %v4831
      %v4835 = vadd.f32 %v4796, %v4831
      %v4836 = vadd.f32 %v4797, %v4831
      %v4837 = vadd.f32 %v4798, %v4831
      %v4838 = vadd.f32 %v4799, %v4831
      %v4839 = vadd.f32 %v4800, %v4831
      %v4840 = vadd.f32 %v4801, %v4831
      %v4841 = vadd.f32 %v4802, %v4831
      %v4842 = vadd.f32 %v4803, %v4831
      %v4843 = vadd.f32 %v4804, %v4831
      %v4844 = vadd.f32 %v4805, %v4831
      %v4845 = vadd.f32 %v4806, %v4831
      %v4846 = vadd.f32 %v4807, %v4831
      %v4847 = vadd.f32 %v4808, %v4831
      %v4848 = vadd.f32 %v4809, %v4831
      %v4849 = vadd.f32 %v4810, %v4831
      %v4850 = vadd.f32 %v4811, %v4831
      %v4851 = vadd.f32 %v4812, %v4831
      %v4852 = vadd.f32 %v4813, %v4831
      %v4853 = vadd.f32 %v4814, %v4831
      %v4854 = vadd.f32 %v4815, %v4831
      %v4855 = vadd.f32 %v4816, %v4831
      %v4856 = vadd.f32 %v4817, %v4831
      %v4857 = vadd.f32 %v4818, %v4831
      %v4858 = vadd.f32 %v4819, %v4831
      %v4859 = vadd.f32 %v4820, %v4831
      %v4860 = vadd.f32 %v4821, %v4831
      %v4861 = vadd.f32 %v4822, %v4831
      %v4862 = vadd.f32 %v4823, %v4831
      %v4863 = vadd.f32 %v4824, %v4831
      %v4864 = vadd.f32 %v4825, %v4831
      %v4865 = vmax.f32 %v4833, 0.0
      %v4866 = vmax.f32 %v4834, 0.0
      %v4867 = vmax.f32 %v4835, 0.0
      %v4868 = vmax.f32 %v4836, 0.0
      %v4869 = vmax.f32 %v4837, 0.0
      %v4870 = vmax.f32 %v4838, 0.0
      %v4871 = vmax.f32 %v4839, 0.0
      %v4872 = vmax.f32 %v4840, 0.0
      %v4873 = vmax.f32 %v4841, 0.0
      %v4874 = vmax.f32 %v4842, 0.0
      %v4875 = vmax.f32 %v4843, 0.0
      %v4876 = vmax.f32 %v4844, 0.0
      %v4877 = vmax.f32 %v4845, 0.0
      %v4878 = vmax.f32 %v4846, 0.0
      %v4879 = vmax.f32 %v4847, 0.0
      %v4880 = vmax.f32 %v4848, 0.0
      %v4881 = vmax.f32 %v4849, 0.0
      %v4882 = vmax.f32 %v4850, 0.0
      %v4883 = vmax.f32 %v4851, 0.0
      %v4884 = vmax.f32 %v4852, 0.0
      %v4885 = vmax.f32 %v4853, 0.0
      %v4886 = vmax.f32 %v4854, 0.0
      %v4887 = vmax.f32 %v4855, 0.0
      %v4888 = vmax.f32 %v4856, 0.0
      %v4889 = vmax.f32 %v4857, 0.0
      %v4890 = vmax.f32 %v4858, 0.0
      %v4891 = vmax.f32 %v4859, 0.0
      %v4892 = vmax.f32 %v4860, 0.0
      %v4893 = vmax.f32 %v4861, 0.0
      %v4894 = vmax.f32 %v4862, 0.0
      %v4895 = vmax.f32 %v4863, 0.0
      %v4896 = vmax.f32 %v4864, 0.0
      %v4897 = vpack.c.bf16 %v4866, %v4865
      %v4898 = vpack.c.bf16 %v4868, %v4867
      %v4899 = vpack.c.bf16 %v4870, %v4869
      %v4900 = vpack.c.bf16 %v4872, %v4871
      %v4901 = vpack.c.bf16 %v4874, %v4873
      %v4902 = vpack.c.bf16 %v4876, %v4875
      %v4903 = vpack.c.bf16 %v4878, %v4877
      %v4904 = vpack.c.bf16 %v4880, %v4879
      %v4905 = vpack.c.bf16 %v4882, %v4881
      %v4906 = vpack.c.bf16 %v4884, %v4883
      %v4907 = vpack.c.bf16 %v4886, %v4885
      %v4908 = vpack.c.bf16 %v4888, %v4887
      %v4909 = vpack.c.bf16 %v4890, %v4889
      %v4910 = vpack.c.bf16 %v4892, %v4891
      %v4911 = vpack.c.bf16 %v4894, %v4893
      %v4912 = vpack.c.bf16 %v4896, %v4895
      %v4929 = vunpack.c.l.b16 %v4897
      %v4930 = vunpack.c.h.b16 %v4897
      %v4931 = vunpack.c.l.b16 %v4898
      %v4932 = vunpack.c.h.b16 %v4898
      %v4933 = vunpack.c.l.b16 %v4899
      %v4934 = vunpack.c.h.b16 %v4899
      %v4935 = vunpack.c.l.b16 %v4900
      %v4936 = vunpack.c.h.b16 %v4900
      %v4937 = vunpack.c.l.b16 %v4901
      %v4938 = vunpack.c.h.b16 %v4901
      %v4939 = vunpack.c.l.b16 %v4902
      %v4940 = vunpack.c.h.b16 %v4902
      %v4941 = vunpack.c.l.b16 %v4903
      %v4942 = vunpack.c.h.b16 %v4903
      %v4943 = vunpack.c.l.b16 %v4904
      %v4944 = vunpack.c.h.b16 %v4904
      %v4945 = vunpack.c.l.b16 %v4905
      %v4946 = vunpack.c.h.b16 %v4905
      %v4947 = vunpack.c.l.b16 %v4906
      %v4948 = vunpack.c.h.b16 %v4906
      %v4949 = vunpack.c.l.b16 %v4907
      %v4950 = vunpack.c.h.b16 %v4907
      %v4951 = vunpack.c.l.b16 %v4908
      %v4952 = vunpack.c.h.b16 %v4908
      %v4953 = vunpack.c.l.b16 %v4909
      %v4954 = vunpack.c.h.b16 %v4909
      %v4955 = vunpack.c.l.b16 %v4910
      %v4956 = vunpack.c.h.b16 %v4910
      %v4957 = vunpack.c.l.b16 %v4911
      %v4958 = vunpack.c.h.b16 %v4911
      %v4959 = vunpack.c.l.b16 %v4912
      %v4960 = vunpack.c.h.b16 %v4912
      %v4961 = vpack.c.b16 %v4929, %v4929
      %v4962 = vpack.c.b16 %v4930, %v4930
      %v4963 = vpack.c.b16 %v4931, %v4931
      %v4964 = vpack.c.b16 %v4932, %v4932
      %v4965 = vpack.c.b16 %v4933, %v4933
      %v4966 = vpack.c.b16 %v4934, %v4934
      %v4967 = vpack.c.b16 %v4935, %v4935
      %v4968 = vpack.c.b16 %v4936, %v4936
      %v4969 = vpack.c.b16 %v4937, %v4937
      %v4970 = vpack.c.b16 %v4938, %v4938
      %v4971 = vpack.c.b16 %v4939, %v4939
      %v4972 = vpack.c.b16 %v4940, %v4940
      %v4973 = vpack.c.b16 %v4941, %v4941
      %v4974 = vpack.c.b16 %v4942, %v4942
      %v4975 = vpack.c.b16 %v4943, %v4943
      %v4976 = vpack.c.b16 %v4944, %v4944
      %v4977 = vpack.c.b16 %v4945, %v4945
      %v4978 = vpack.c.b16 %v4946, %v4946
      %v4979 = vpack.c.b16 %v4947, %v4947
      %v4980 = vpack.c.b16 %v4948, %v4948
      %v4981 = vpack.c.b16 %v4949, %v4949
      %v4982 = vpack.c.b16 %v4950, %v4950
      %v4983 = vpack.c.b16 %v4951, %v4951
      %v4984 = vpack.c.b16 %v4952, %v4952
      %v4985 = vpack.c.b16 %v4953, %v4953
      %v4986 = vpack.c.b16 %v4954, %v4954
      %v4987 = vpack.c.b16 %v4955, %v4955
      %v4988 = vpack.c.b16 %v4956, %v4956
      %v4989 = vpack.c.b16 %v4957, %v4957
      %v4990 = vpack.c.b16 %v4958, %v4958
      %v4991 = vpack.c.b16 %v4959, %v4959
      %v4992 = vpack.c.b16 %v4960, %v4960
      %5025 = vst [vmem:[%s170] sm:$0xf] %v4961
      %5026 = vst [vmem:[%s170 + $0x4] sm:$0xf] %v4962
      %5027 = vst [vmem:[%s170 + $0x8] sm:$0xf] %v4963
      %5028 = vst [vmem:[%s170 + $0xc] sm:$0xf] %v4964
      %5029 = vst [vmem:[%s170 + $0x10] sm:$0xf] %v4965
      %5030 = vst [vmem:[%s170 + $0x14] sm:$0xf] %v4966
      %5031 = vst [vmem:[%s170 + $0x18] sm:$0xf] %v4967
      %5032 = vst [vmem:[%s170 + $0x1c] sm:$0xf] %v4968
      %5033 = vst [vmem:[%s170 + $0x20] sm:$0xf] %v4969
      %5034 = vst [vmem:[%s170 + $0x24] sm:$0xf] %v4970
      %5035 = vst [vmem:[%s170 + $0x28] sm:$0xf] %v4971
      %5036 = vst [vmem:[%s170 + $0x2c] sm:$0xf] %v4972
      %5037 = vst [vmem:[%s170 + $0x30] sm:$0xf] %v4973
      %5038 = vst [vmem:[%s170 + $0x34] sm:$0xf] %v4974
      %5039 = vst [vmem:[%s170 + $0x38] sm:$0xf] %v4975
      %5040 = vst [vmem:[%s170 + $0x3c] sm:$0xf] %v4976
      %5041 = vst [vmem:[%s170 + $0x40] sm:$0xf] %v4977
      %5042 = vst [vmem:[%s170 + $0x44] sm:$0xf] %v4978
      %5043 = vst [vmem:[%s170 + $0x48] sm:$0xf] %v4979
      %5044 = vst [vmem:[%s170 + $0x4c] sm:$0xf] %v4980
      %5045 = vst [vmem:[%s170 + $0x50] sm:$0xf] %v4981
      %5046 = vst [vmem:[%s170 + $0x54] sm:$0xf] %v4982
      %5047 = vst [vmem:[%s170 + $0x58] sm:$0xf] %v4983
      %5048 = vst [vmem:[%s170 + $0x5c] sm:$0xf] %v4984
      %5049 = vst [vmem:[%s170 + $0x60] sm:$0xf] %v4985
      %5050 = vst [vmem:[%s170 + $0x64] sm:$0xf] %v4986
      %5051 = vst [vmem:[%s170 + $0x68] sm:$0xf] %v4987
      %5052 = vst [vmem:[%s170 + $0x6c] sm:$0xf] %v4988
      %5053 = vst [vmem:[%s170 + $0x70] sm:$0xf] %v4989
      %5054 = vst [vmem:[%s170 + $0x74] sm:$0xf] %v4990
      %5055 = vst [vmem:[%s170 + $0x78] sm:$0xf] %v4991
      %5056 = vst [vmem:[%s170 + $0x7c] sm:$0xf] %v4992
      %p5057 = scmp.lt.s32.totalorder %s14, 1
      %s5058 = scalar_select %p5057, %s14, 1
      %s5059 = smul.addr %s5058, 32
      %s5060 = smul.addr %s5059, 4
      %s5061 = scalar_lea.vmem %s3, %s5060
      // Predicated region
      $region33: #{osnet_forward.6} parent=31 // pred_check
        %p5062 = pneg %p100
      $region34: #{osnet_forward.6} parent=31 // pred_check_branch
        %5064 = sbr.rel (%p5062) target = $region36
      $region35: #{osnet_forward.6} parent=31 // pred_region
        _
      $region36: #{osnet_forward.6} parent=31 // pred_fallthru
        _
    $region32: #{osnet_forward.6} parent=5 // pred_fallthru
      _
    %p5065 = scmp.le.s32.totalorder 2, %s9
    // Predicated region
    $region37: #{osnet_forward.6} parent=5 // pred_check
      %p5066 = pneg %p5065
    $region38: #{osnet_forward.6} parent=5 // pred_check_branch
      %5068 = sbr.rel (%p5066) target = $region40
    $region39: #{osnet_forward.6} parent=5 // pred_region
      %s5069 = ssub.s32 %s9, 2
      // Predicated region
      $region41: #{osnet_forward.6} parent=39 // pred_check
        %p5070 = pneg %p106
      $region42: #{osnet_forward.6} parent=39 // pred_check_branch
        %5072 = sbr.rel (%p5070) target = $region44
      $region43: #{osnet_forward.6} parent=39 // pred_region
        %p5073 = scmp.lt.s32.totalorder %s15, 1
        %s5074 = scalar_select %p5073, %s15, 1
        %s5075 = smul.addr %s5074, 32
        %s5076 = smul.addr %s5075, 4
        %s5077 = scalar_lea.vmem %s3, %s5076
      $region44: #{osnet_forward.6} parent=39 // pred_fallthru
        _
    $region40: #{osnet_forward.6} parent=5 // pred_fallthru
      _
  $region6: #{osnet_forward.6} parent=0 // loop_footer
    %s13 = sadd.s32 1, %s9
  $region7: #{osnet_forward.6} parent=0 // loop_footer_branch
    %8 = sbr.rel target = $region3
  $region8: #{osnet_forward.6} parent=0 // loop_exit
    _

// kernel: osnet_forward.7
$region0: #{osnet_forward.7}
  #allocation0 [shape = 'u32[]', space=smem, size = 0x4, offset = 0x4, fixed_abs, tag = 'smem constant byte address 0x4 - core index']
  #allocation1 [shape = 'u32[144,128]{1,0:T(1,128)}', space=vmem, size = 0x12000, scoped, tag = 'internal scratch']
  %s0 = inlined_call_operand.vmem [shape: bf16[2,9,9,512], index: 0, kind: input, shape index: {}]
  %s1 = inlined_call_operand.vmem [shape: bf16[2,8,8,128], index: 1, kind: output, shape index: {}]
  %s2 = sld [smem:[#allocation0]]
  $region37: #{osnet_forward.7} parent=0
    _
  %s4 = ssub.s32 1, %s2
  %s5 = scalar_select 0, %s4, %s2
  loop: start=0, step=1, limit=4
  $region2: #{osnet_forward.7} parent=0 // loop_pre_header
    _
  $region3: #{osnet_forward.7} parent=0 // loop_header
    %s7 = sphi 0, %s11
    %p8 = scmp.ge.s32.totalorder %s7, 4
    %s17 = sphi 0, %s19
    %s20 = sphi 0, %s17
    %s21 = sphi 0, %s20
    %s37 = sphi 0, %s21
    %s43 = sphi 0, %s45
    %s46 = sphi 0, %s43
    %s47 = sphi 0, %s46
    %s63 = sphi 0, %s47
  $region4: #{osnet_forward.7} parent=0 // loop_header_branch
    %10 = sbr.rel (%p8) target = $region8
  $region5: #{osnet_forward.7} parent=0 // loop_body
    %s12 = ssub.s32 %s7, 1
    %s13 = ssub.s32 %s7, 2
    %s14 = sadd.s32 %s7, 1
    %s15 = ssub.s32 %s7, %s14
    %p16 = scmp.eq.s32.totalorder %s15, 0
    %s18 = sadd.s32 %s17, 1
    %s19 = scalar_select %p16, %s17, %s18
    %p22 = pneg %p16
    %p23 = scmp.eq.s32.totalorder %s7, 1
    %p24 = por %p22, %p23
    %p25 = scmp.ne.s32.totalorder %s17, %s20
    %p26 = scmp.eq.s32.totalorder %s7, 0
    %p27 = por %p25, %p26
    %p28 = scmp.ne.s32.totalorder %s17, %s20
    %p29 = scmp.eq.s32.totalorder %s12, 1
    %p30 = por %p28, %p29
    %p31 = scmp.ne.s32.totalorder %s20, %s21
    %p32 = scmp.eq.s32.totalorder %s12, 0
    %p33 = por %p31, %p32
    %p34 = scmp.ne.s32.totalorder %s20, %s21
    %p35 = scmp.eq.s32.totalorder %s13, 1
    %p36 = por %p34, %p35
    %p38 = scmp.ne.s32.totalorder %s21, %s37
    %p39 = scmp.eq.s32.totalorder %s13, 0
    %p40 = por %p38, %p39
    %s41 = ssub.s32 %s7, %s14
    %p42 = scmp.eq.s32.totalorder %s41, 0
    %s44 = sadd.s32 %s43, 1
    %s45 = scalar_select %p42, %s43, %s44
    %p48 = pneg %p42
    %p49 = scmp.eq.s32.totalorder %s7, 1
    %p50 = por %p48, %p49
    %p51 = scmp.ne.s32.totalorder %s43, %s46
    %p52 = scmp.eq.s32.totalorder %s7, 0
    %p53 = por %p51, %p52
    %p54 = scmp.ne.s32.totalorder %s43, %s46
    %p55 = scmp.eq.s32.totalorder %s12, 1
    %p56 = por %p54, %p55
    %p57 = scmp.ne.s32.totalorder %s46, %s47
    %p58 = scmp.eq.s32.totalorder %s12, 0
    %p59 = por %p57, %p58
    %p60 = scmp.ne.s32.totalorder %s46, %s47
    %p61 = scmp.eq.s32.totalorder %s13, 1
    %p62 = por %p60, %p61
    %p64 = scmp.ne.s32.totalorder %s47, %s63
    %p65 = scmp.eq.s32.totalorder %s13, 0
    %p66 = por %p64, %p65
    %p67 = scmp.le.s32.totalorder 1, %s7
    %p68 = scmp.lt.s32.totalorder %s7, 3
    %p69 = pnand %p67, %p68
    %p70 = pneg %p69
    // Predicated region
    $region9: #{osnet_forward.7} parent=5 // pred_check
      _
    $region10: #{osnet_forward.7} parent=5 // pred_check_branch
      %72 = sbr.rel (%p69) target = $region12
    $region11: #{osnet_forward.7} parent=5 // pred_region
      %s73 = ssub.s32 %s7, 1
    $region12: #{osnet_forward.7} parent=5 // pred_fallthru
      _
    %p74 = scmp.lt.s32.totalorder %s7, 2
    // Predicated region
    $region13: #{osnet_forward.7} parent=5 // pred_check
      %p75 = pneg %p74
    $region14: #{osnet_forward.7} parent=5 // pred_check_branch
      %77 = sbr.rel (%p75) target = $region16
    $region15: #{osnet_forward.7} parent=5 // pred_region
      // Predicated region
      $region17: #{osnet_forward.7} parent=15 // pred_check
        %p78 = pneg %p27
      $region18: #{osnet_forward.7} parent=15 // pred_check_branch
        %80 = sbr.rel (%p78) target = $region20
      $region19: #{osnet_forward.7} parent=15 // pred_region
        %p81 = scmp.lt.s32.totalorder %s7, 1
        %s82 = scalar_select %p81, %s7, 1
        %s83 = smul.addr %s82, 72
        %s84 = smul.addr %s83, 4
        %s85 = scalar_lea.vmem %s0, %s84
      $region20: #{osnet_forward.7} parent=15 // pred_fallthru
        _
    $region16: #{osnet_forward.7} parent=5 // pred_fallthru
      _
    %p86 = scmp.le.s32.totalorder 1, %s7
    %p87 = scmp.lt.s32.totalorder %s7, 3
    %p88 = pnand %p86, %p87
    %p89 = pneg %p88
    // Predicated region
    $region21: #{osnet_forward.7} parent=5 // pred_check
      _
    $region22: #{osnet_forward.7} parent=5 // pred_check_branch
      %91 = sbr.rel (%p88) target = $region24
    $region23: #{osnet_forward.7} parent=5 // pred_region
      %s92 = ssub.s32 %s7, 1
      %p93 = scmp.lt.s32.totalorder %s12, 1
      %s94 = scalar_select %p93, %s12, 1
      %s95 = smul.addr %s94, 72
      %s96 = smul.addr %s95, 4
      %s97 = scalar_lea.vmem %s0, %s96
      %p98 = pneg %p33
      %p99 = pneg %p30
      %p100 = pneg %p59
      %p101 = pneg %p56
      %p102 = scmp.lt.s32.totalorder %s12, 1
      %s103 = scalar_select %p102, %s12, 1
      %s104 = smul.addr %s103, 8
      %s105 = smul.addr %s104, 4
      %s106 = scalar_lea.vmem %s1, %s105
      %p107 = scmp.lt.s32.totalorder %s12, 1
      %s108 = scalar_select %p107, %s12, 1
      %s109 = smul.addr %s108, 72
      %s110 = smul.addr %s109, 4
      %s111 = scalar_lea.vmem %s0, %s110
      %p112 = scmp.lt.s32.totalorder %s12, 1
      %s113 = scalar_select %p112, %s12, 1
      %s114 = smul.addr %s113, 8
      %s115 = smul.addr %s114, 4
      %s116 = scalar_lea.vmem %s1, %s115
      %v117 = vld [vmem:[%s111] sm:$0xff]
      %v118 = vld [vmem:[%s111 + $0x8] sm:$0xff]
      %v119 = vld [vmem:[%s111 + $0x10] sm:$0x11]
      %v120 = vld [vmem:[%s111 + $0x18] sm:$0x11]
      %v121 = vld [vmem:[%s111 + $0x20] sm:$0xff]
      %v122 = vld [vmem:[%s111 + $0x28] sm:$0xff]
      %v123 = vld [vmem:[%s111 + $0x30] sm:$0x11]
      %v124 = vld [vmem:[%s111 + $0x38] sm:$0x11]
      %v125 = vld [vmem:[%s111 + $0x40] sm:$0xff]
      %v126 = vld [vmem:[%s111 + $0x48] sm:$0xff]
      %v127 = vld [vmem:[%s111 + $0x50] sm:$0x11]
      %v128 = vld [vmem:[%s111 + $0x58] sm:$0x11]
      %v129 = vld [vmem:[%s111 + $0x60] sm:$0xff]
      %v130 = vld [vmem:[%s111 + $0x68] sm:$0xff]
      %v131 = vld [vmem:[%s111 + $0x70] sm:$0x11]
      %v132 = vld [vmem:[%s111 + $0x78] sm:$0x11]
      %v133 = vld [vmem:[%s111 + $0x80] sm:$0xff]
      %v134 = vld [vmem:[%s111 + $0x88] sm:$0xff]
      %v135 = vld [vmem:[%s111 + $0x90] sm:$0x11]
      %v136 = vld [vmem:[%s111 + $0x98] sm:$0x11]
      %v137 = vld [vmem:[%s111 + $0xa0] sm:$0xff]
      %v138 = vld [vmem:[%s111 + $0xa8] sm:$0xff]
      %v139 = vld [vmem:[%s111 + $0xb0] sm:$0x11]
      %v140 = vld [vmem:[%s111 + $0xb8] sm:$0x11]
      %v141 = vld [vmem:[%s111 + $0xc0] sm:$0xff]
      %v142 = vld [vmem:[%s111 + $0xc8] sm:$0xff]
      %v143 = vld [vmem:[%s111 + $0xd0] sm:$0x11]
      %v144 = vld [vmem:[%s111 + $0xd8] sm:$0x11]
      %v145 = vld [vmem:[%s111 + $0xe0] sm:$0xff]
      %v146 = vld [vmem:[%s111 + $0xe8] sm:$0xff]
      %v147 = vld [vmem:[%s111 + $0xf0] sm:$0x11]
      %v148 = vld [vmem:[%s111 + $0xf8] sm:$0x11]
      %v149 = vld [vmem:[%s111 + $0x100] sm:$0xff]
      %v150 = vld [vmem:[%s111 + $0x110] sm:$0x11]
      %v159 = vrot.slane %v117, 4
      %v160 = vrot.slane %v121, 4
      %v161 = vrot.slane %v125, 4
      %v162 = vrot.slane %v129, 4
      %v163 = vrot.slane %v133, 4
      %v164 = vrot.slane %v137, 4
      %v165 = vrot.slane %v141, 4
      %v166 = vrot.slane %v145, 4
      %v175 = vmax.bf16 %v117, %v159
      %v176 = vmax.bf16 %v121, %v160
      %v177 = vmax.bf16 %v125, %v161
      %v178 = vmax.bf16 %v129, %v162
      %v179 = vmax.bf16 %v133, %v163
      %v180 = vmax.bf16 %v137, %v164
      %v181 = vmax.bf16 %v141, %v165
      %v182 = vmax.bf16 %v145, %v166
      %v183 = vmax.bf16 %v175, %v118
      %v184 = vmax.bf16 %v176, %v122
      %v185 = vmax.bf16 %v177, %v126
      %v186 = vmax.bf16 %v178, %v130
      %v187 = vmax.bf16 %v179, %v134
      %v188 = vmax.bf16 %v180, %v138
      %v189 = vmax.bf16 %v181, %v142
      %v190 = vmax.bf16 %v182, %v146
      %v199 = vrot.slane %v118, 4
      %v200 = vrot.slane %v122, 4
      %v201 = vrot.slane %v126, 4
      %v202 = vrot.slane %v130, 4
      %v203 = vrot.slane %v134, 4
      %v204 = vrot.slane %v138, 4
      %v205 = vrot.slane %v142, 4
      %v206 = vrot.slane %v146, 4
      %v215 = vmax.bf16 %v183, %v199
      %v216 = vmax.bf16 %v184, %v200
      %v217 = vmax.bf16 %v185, %v201
      %v218 = vmax.bf16 %v186, %v202
      %v219 = vmax.bf16 %v187, %v203
      %v220 = vmax.bf16 %v188, %v204
      %v221 = vmax.bf16 %v189, %v205
      %v222 = vmax.bf16 %v190, %v206
      %vm223 = vsmask.f32 3328
      %vm224 = vsmask.f32 7440
      %vm225 = vmor %vm223, %vm224
      %v227 = vshrl.u32 %v117, 16
      %v229 = vrot.slane %v227, 4
      %v230 = vshll.u32 %v117, 16
      %v232 = vrot.slane %v230, 5
      %v233 = vor.u32 %v229, %v232
      %v234 = vrot.slane %v233, 4
      %v236 = vshll.u32 %v119, 16
      %v238 = vrot.slane %v236, 5
      %v239 = vsel %vm225, %v234, %v238
      %v241 = vshrl.u32 %v121, 16
      %v243 = vrot.slane %v241, 4
      %v244 = vshll.u32 %v121, 16
      %v246 = vrot.slane %v244, 5
      %v247 = vor.u32 %v243, %v246
      %v248 = vrot.slane %v247, 4
      %v250 = vshll.u32 %v123, 16
      %v252 = vrot.slane %v250, 5
      %v253 = vsel %vm225, %v248, %v252
      %v255 = vshrl.u32 %v125, 16
      %v257 = vrot.slane %v255, 4
      %v258 = vshll.u32 %v125, 16
      %v260 = vrot.slane %v258, 5
      %v261 = vor.u32 %v257, %v260
      %v262 = vrot.slane %v261, 4
      %v264 = vshll.u32 %v127, 16
      %v266 = vrot.slane %v264, 5
      %v267 = vsel %vm225, %v262, %v266
      %v269 = vshrl.u32 %v129, 16
      %v271 = vrot.slane %v269, 4
      %v272 = vshll.u32 %v129, 16
      %v274 = vrot.slane %v272, 5
      %v275 = vor.u32 %v271, %v274
      %v276 = vrot.slane %v275, 4
      %v278 = vshll.u32 %v131, 16
      %v280 = vrot.slane %v278, 5
      %v281 = vsel %vm225, %v276, %v280
      %v283 = vshrl.u32 %v133, 16
      %v285 = vrot.slane %v283, 4
      %v286 = vshll.u32 %v133, 16
      %v288 = vrot.slane %v286, 5
      %v289 = vor.u32 %v285, %v288
      %v290 = vrot.slane %v289, 4
      %v292 = vshll.u32 %v135, 16
      %v294 = vrot.slane %v292, 5
      %v295 = vsel %vm225, %v290, %v294
      %v297 = vshrl.u32 %v137, 16
      %v299 = vrot.slane %v297, 4
      %v300 = vshll.u32 %v137, 16
      %v302 = vrot.slane %v300, 5
      %v303 = vor.u32 %v299, %v302
      %v304 = vrot.slane %v303, 4
      %v306 = vshll.u32 %v139, 16
      %v308 = vrot.slane %v306, 5
      %v309 = vsel %vm225, %v304, %v308
      %v311 = vshrl.u32 %v141, 16
      %v313 = vrot.slane %v311, 4
      %v314 = vshll.u32 %v141, 16
      %v316 = vrot.slane %v314, 5
      %v317 = vor.u32 %v313, %v316
      %v318 = vrot.slane %v317, 4
      %v320 = vshll.u32 %v143, 16
      %v322 = vrot.slane %v320, 5
      %v323 = vsel %vm225, %v318, %v322
      %v325 = vshrl.u32 %v145, 16
      %v327 = vrot.slane %v325, 4
      %v328 = vshll.u32 %v145, 16
      %v330 = vrot.slane %v328, 5
      %v331 = vor.u32 %v327, %v330
      %v332 = vrot.slane %v331, 4
      %v334 = vshll.u32 %v147, 16
      %v336 = vrot.slane %v334, 5
      %v337 = vsel %vm225, %v332, %v336
      %v346 = vmax.bf16 %v215, %v239
      %v347 = vmax.bf16 %v216, %v253
      %v348 = vmax.bf16 %v217, %v267
      %v349 = vmax.bf16 %v218, %v281
      %v350 = vmax.bf16 %v219, %v295
      %v351 = vmax.bf16 %v220, %v309
      %v352 = vmax.bf16 %v221, %v323
      %v353 = vmax.bf16 %v222, %v337
      %v355 = vshrl.u32 %v118, 16
      %v357 = vrot.slane %v355, 4
      %v358 = vshll.u32 %v118, 16
      %v360 = vrot.slane %v358, 5
      %v361 = vor.u32 %v357, %v360
      %v362 = vrot.slane %v361, 4
      %v364 = vshll.u32 %v120, 16
      %v366 = vrot.slane %v364, 5
      %v367 = vsel %vm225, %v362, %v366
      %v369 = vshrl.u32 %v122, 16
      %v371 = vrot.slane %v369, 4
      %v372 = vshll.u32 %v122, 16
      %v374 = vrot.slane %v372, 5
      %v375 = vor.u32 %v371, %v374
      %v376 = vrot.slane %v375, 4
      %v378 = vshll.u32 %v124, 16
      %v380 = vrot.slane %v378, 5
      %v381 = vsel %vm225, %v376, %v380
      %v383 = vshrl.u32 %v126, 16
      %v385 = vrot.slane %v383, 4
      %v386 = vshll.u32 %v126, 16
      %v388 = vrot.slane %v386, 5
      %v389 = vor.u32 %v385, %v388
      %v390 = vrot.slane %v389, 4
      %v392 = vshll.u32 %v128, 16
      %v394 = vrot.slane %v392, 5
      %v395 = vsel %vm225, %v390, %v394
      %v397 = vshrl.u32 %v130, 16
      %v399 = vrot.slane %v397, 4
      %v400 = vshll.u32 %v130, 16
      %v402 = vrot.slane %v400, 5
      %v403 = vor.u32 %v399, %v402
      %v404 = vrot.slane %v403, 4
      %v406 = vshll.u32 %v132, 16
      %v408 = vrot.slane %v406, 5
      %v409 = vsel %vm225, %v404, %v408
      %v411 = vshrl.u32 %v134, 16
      %v413 = vrot.slane %v411, 4
      %v414 = vshll.u32 %v134, 16
      %v416 = vrot.slane %v414, 5
      %v417 = vor.u32 %v413, %v416
      %v418 = vrot.slane %v417, 4
      %v420 = vshll.u32 %v136, 16
      %v422 = vrot.slane %v420, 5
      %v423 = vsel %vm225, %v418, %v422
      %v425 = vshrl.u32 %v138, 16
      %v427 = vrot.slane %v425, 4
      %v428 = vshll.u32 %v138, 16
      %v430 = vrot.slane %v428, 5
      %v431 = vor.u32 %v427, %v430
      %v432 = vrot.slane %v431, 4
      %v434 = vshll.u32 %v140, 16
      %v436 = vrot.slane %v434, 5
      %v437 = vsel %vm225, %v432, %v436
      %v439 = vshrl.u32 %v142, 16
      %v441 = vrot.slane %v439, 4
      %v442 = vshll.u32 %v142, 16
      %v444 = vrot.slane %v442, 5
      %v445 = vor.u32 %v441, %v444
      %v446 = vrot.slane %v445, 4
      %v448 = vshll.u32 %v144, 16
      %v450 = vrot.slane %v448, 5
      %v451 = vsel %vm225, %v446, %v450
      %v453 = vshrl.u32 %v146, 16
      %v455 = vrot.slane %v453, 4
      %v456 = vshll.u32 %v146, 16
      %v458 = vrot.slane %v456, 5
      %v459 = vor.u32 %v455, %v458
      %v460 = vrot.slane %v459, 4
      %v462 = vshll.u32 %v148, 16
      %v464 = vrot.slane %v462, 5
      %v465 = vsel %vm225, %v460, %v464
      %v474 = vmax.bf16 %v346, %v367
      %v475 = vmax.bf16 %v347, %v381
      %v476 = vmax.bf16 %v348, %v395
      %v477 = vmax.bf16 %v349, %v409
      %v478 = vmax.bf16 %v350, %v423
      %v479 = vmax.bf16 %v351, %v437
      %v480 = vmax.bf16 %v352, %v451
      %v481 = vmax.bf16 %v353, %v465
      %v482 = vmax.bf16 %v474, %v121
      %v483 = vmax.bf16 %v475, %v125
      %v484 = vmax.bf16 %v476, %v129
      %v485 = vmax.bf16 %v477, %v133
      %v486 = vmax.bf16 %v478, %v137
      %v487 = vmax.bf16 %v479, %v141
      %v488 = vmax.bf16 %v480, %v145
      %v489 = vmax.bf16 %v481, %v149
      %v491 = vrot.slane %v149, 4
      %v493 = vmax.bf16 %v482, %v160
      %v494 = vmax.bf16 %v483, %v161
      %v495 = vmax.bf16 %v484, %v162
      %v496 = vmax.bf16 %v485, %v163
      %v497 = vmax.bf16 %v486, %v164
      %v498 = vmax.bf16 %v487, %v165
      %v499 = vmax.bf16 %v488, %v166
      %v500 = vmax.bf16 %v489, %v491
      %v502 = vshrl.u32 %v149, 16
      %v504 = vrot.slane %v502, 4
      %v505 = vshll.u32 %v149, 16
      %v507 = vrot.slane %v505, 5
      %v508 = vor.u32 %v504, %v507
      %v509 = vrot.slane %v508, 4
      %v511 = vshll.u32 %v150, 16
      %v513 = vrot.slane %v511, 5
      %v514 = vsel %vm225, %v509, %v513
      %v516 = vmax.bf16 %v493, %v253
      %v517 = vmax.bf16 %v494, %v267
      %v518 = vmax.bf16 %v495, %v281
      %v519 = vmax.bf16 %v496, %v295
      %v520 = vmax.bf16 %v497, %v309
      %v521 = vmax.bf16 %v498, %v323
      %v522 = vmax.bf16 %v499, %v337
      %v523 = vmax.bf16 %v500, %v514
      %524 = vst [vmem:[%s116] sm:$0xf] %v516
      %525 = vst [vmem:[%s116 + $0x4] sm:$0xf] %v517
      %526 = vst [vmem:[%s116 + $0x8] sm:$0xf] %v518
      %527 = vst [vmem:[%s116 + $0xc] sm:$0xf] %v519
      %528 = vst [vmem:[%s116 + $0x10] sm:$0xf] %v520
      %529 = vst [vmem:[%s116 + $0x14] sm:$0xf] %v521
      %530 = vst [vmem:[%s116 + $0x18] sm:$0xf] %v522
      %531 = vst [vmem:[%s116 + $0x1c] sm:$0xf] %v523
      %p532 = scmp.lt.s32.totalorder %s12, 1
      %s533 = scalar_select %p532, %s12, 1
      %s534 = smul.addr %s533, 8
      %s535 = smul.addr %s534, 4
      %s536 = scalar_lea.vmem %s1, %s535
      // Predicated region
      $region25: #{osnet_forward.7} parent=23 // pred_check
        %p537 = pneg %p56
      $region26: #{osnet_forward.7} parent=23 // pred_check_branch
        %539 = sbr.rel (%p537) target = $region28
      $region27: #{osnet_forward.7} parent=23 // pred_region
        _
      $region28: #{osnet_forward.7} parent=23 // pred_fallthru
        _
    $region24: #{osnet_forward.7} parent=5 // pred_fallthru
      _
    %p540 = scmp.le.s32.totalorder 2, %s7
    // Predicated region
    $region29: #{osnet_forward.7} parent=5 // pred_check
      %p541 = pneg %p540
    $region30: #{osnet_forward.7} parent=5 // pred_check_branch
      %543 = sbr.rel (%p541) target = $region32
    $region31: #{osnet_forward.7} parent=5 // pred_region
      %s544 = ssub.s32 %s7, 2
      // Predicated region
      $region33: #{osnet_forward.7} parent=31 // pred_check
        %p545 = pneg %p62
      $region34: #{osnet_forward.7} parent=31 // pred_check_branch
        %547 = sbr.rel (%p545) target = $region36
      $region35: #{osnet_forward.7} parent=31 // pred_region
        %p548 = scmp.lt.s32.totalorder %s13, 1
        %s549 = scalar_select %p548, %s13, 1
        %s550 = smul.addr %s549, 8
        %s551 = smul.addr %s550, 4
        %s552 = scalar_lea.vmem %s1, %s551
      $region36: #{osnet_forward.7} parent=31 // pred_fallthru
        _
    $region32: #{osnet_forward.7} parent=5 // pred_fallthru
      _
  $region6: #{osnet_forward.7} parent=0 // loop_footer
    %s11 = sadd.s32 1, %s7
  $region7: #{osnet_forward.7} parent=0 // loop_footer_branch
    %6 = sbr.rel target = $region3
  $region8: #{osnet_forward.7} parent=0 // loop_exit
    _

// kernel: osnet_forward.8
$region0: #{osnet_forward.8}
  #allocation0 [shape = 'u32[]', space=smem, size = 0x4, offset = 0x4, fixed_abs, tag = 'smem constant byte address 0x4 - core index']
  #allocation1 [shape = 'u32[144,128]{1,0:T(1,128)}', space=vmem, size = 0x12000, scoped, tag = 'internal scratch']
  %s0 = inlined_call_operand.vmem [shape: bf16[32,512], index: 0, kind: input, shape index: {}]
  %s1 = inlined_call_operand.vmem [shape: bf16[128,128], index: 1, kind: input, shape index: {}]
  %s2 = inlined_call_operand.vmem [shape: f32[1,128], index: 2, kind: input, shape index: {}]
  %s3 = inlined_call_operand.vmem [shape: bf16[128,128], index: 3, kind: input, shape index: {}]
  %s4 = inlined_call_operand.vmem [shape: f32[1,128], index: 4, kind: input, shape index: {}]
  %s5 = inlined_call_operand.vmem [shape: bf16[32,128], index: 5, kind: output, shape index: {}]
  %s6 = sld [smem:[#allocation0]]
  $region53: #{osnet_forward.8} parent=0
    _
  %s8 = ssub.s32 1, %s6
  %s9 = scalar_select 0, %s8, %s6
  loop: start=0, step=1, limit=4
  $region2: #{osnet_forward.8} parent=0 // loop_pre_header
    _
  $region3: #{osnet_forward.8} parent=0 // loop_header
    %s11 = sphi 0, %s15
    %p12 = scmp.ge.s32.totalorder %s11, 4
    %s21 = sphi 0, %s23
    %s24 = sphi 0, %s21
    %s25 = sphi 0, %s24
    %s41 = sphi 0, %s25
    %s45 = sphi 0, %s45
    %s47 = sphi 0, %s45
    %s48 = sphi 0, %s47
    %s62 = sphi 0, %s48
    %s66 = sphi 0, %s66
    %s68 = sphi 0, %s66
    %s69 = sphi 0, %s68
    %s83 = sphi 0, %s69
    %s87 = sphi 0, %s87
    %s89 = sphi 0, %s87
    %s90 = sphi 0, %s89
    %s104 = sphi 0, %s90
    %s108 = sphi 0, %s108
    %s110 = sphi 0, %s108
    %s111 = sphi 0, %s110
    %s125 = sphi 0, %s111
    %s131 = sphi 0, %s133
    %s134 = sphi 0, %s131
    %s135 = sphi 0, %s134
    %s151 = sphi 0, %s135
  $region4: #{osnet_forward.8} parent=0 // loop_header_branch
    %14 = sbr.rel (%p12) target = $region8
  $region5: #{osnet_forward.8} parent=0 // loop_body
    %s16 = ssub.s32 %s11, 1
    %s17 = ssub.s32 %s11, 2
    %s18 = sadd.s32 %s11, 1
    %s19 = ssub.s32 %s11, %s18
    %p20 = scmp.eq.s32.totalorder %s19, 0
    %s22 = sadd.s32 %s21, 1
    %s23 = scalar_select %p20, %s21, %s22
    %p26 = pneg %p20
    %p27 = scmp.eq.s32.totalorder %s11, 1
    %p28 = por %p26, %p27
    %p29 = scmp.ne.s32.totalorder %s21, %s24
    %p30 = scmp.eq.s32.totalorder %s11, 0
    %p31 = por %p29, %p30
    %p32 = scmp.ne.s32.totalorder %s21, %s24
    %p33 = scmp.eq.s32.totalorder %s16, 1
    %p34 = por %p32, %p33
    %p35 = scmp.ne.s32.totalorder %s24, %s25
    %p36 = scmp.eq.s32.totalorder %s16, 0
    %p37 = por %p35, %p36
    %p38 = scmp.ne.s32.totalorder %s24, %s25
    %p39 = scmp.eq.s32.totalorder %s17, 1
    %p40 = por %p38, %p39
    %p42 = scmp.ne.s32.totalorder %s25, %s41
    %p43 = scmp.eq.s32.totalorder %s17, 0
    %p44 = por %p42, %p43
    %s46 = sadd.s32 %s45, 1
    %p49 = scmp.eq.s32.totalorder %s11, 1
    %p50 = scmp.ne.s32.totalorder %s45, %s47
    %p51 = scmp.eq.s32.totalorder %s11, 0
    %p52 = por %p50, %p51
    %p53 = scmp.ne.s32.totalorder %s45, %s47
    %p54 = scmp.eq.s32.totalorder %s16, 1
    %p55 = por %p53, %p54
    %p56 = scmp.ne.s32.totalorder %s47, %s48
    %p57 = scmp.eq.s32.totalorder %s16, 0
    %p58 = por %p56, %p57
    %p59 = scmp.ne.s32.totalorder %s47, %s48
    %p60 = scmp.eq.s32.totalorder %s17, 1
    %p61 = por %p59, %p60
    %p63 = scmp.ne.s32.totalorder %s48, %s62
    %p64 = scmp.eq.s32.totalorder %s17, 0
    %p65 = por %p63, %p64
    %s67 = sadd.s32 %s66, 1
    %p70 = scmp.eq.s32.totalorder %s11, 1
    %p71 = scmp.ne.s32.totalorder %s66, %s68
    %p72 = scmp.eq.s32.totalorder %s11, 0
    %p73 = por %p71, %p72
    %p74 = scmp.ne.s32.totalorder %s66, %s68
    %p75 = scmp.eq.s32.totalorder %s16, 1
    %p76 = por %p74, %p75
    %p77 = scmp.ne.s32.totalorder %s68, %s69
    %p78 = scmp.eq.s32.totalorder %s16, 0
    %p79 = por %p77, %p78
    %p80 = scmp.ne.s32.totalorder %s68, %s69
    %p81 = scmp.eq.s32.totalorder %s17, 1
    %p82 = por %p80, %p81
    %p84 = scmp.ne.s32.totalorder %s69, %s83
    %p85 = scmp.eq.s32.totalorder %s17, 0
    %p86 = por %p84, %p85
    %s88 = sadd.s32 %s87, 1
    %p91 = scmp.eq.s32.totalorder %s11, 1
    %p92 = scmp.ne.s32.totalorder %s87, %s89
    %p93 = scmp.eq.s32.totalorder %s11, 0
    %p94 = por %p92, %p93
    %p95 = scmp.ne.s32.totalorder %s87, %s89
    %p96 = scmp.eq.s32.totalorder %s16, 1
    %p97 = por %p95, %p96
    %p98 = scmp.ne.s32.totalorder %s89, %s90
    %p99 = scmp.eq.s32.totalorder %s16, 0
    %p100 = por %p98, %p99
    %p101 = scmp.ne.s32.totalorder %s89, %s90
    %p102 = scmp.eq.s32.totalorder %s17, 1
    %p103 = por %p101, %p102
    %p105 = scmp.ne.s32.totalorder %s90, %s104
    %p106 = scmp.eq.s32.totalorder %s17, 0
    %p107 = por %p105, %p106
    %s109 = sadd.s32 %s108, 1
    %p112 = scmp.eq.s32.totalorder %s11, 1
    %p113 = scmp.ne.s32.totalorder %s108, %s110
    %p114 = scmp.eq.s32.totalorder %s11, 0
    %p115 = por %p113, %p114
    %p116 = scmp.ne.s32.totalorder %s108, %s110
    %p117 = scmp.eq.s32.totalorder %s16, 1
    %p118 = por %p116, %p117
    %p119 = scmp.ne.s32.totalorder %s110, %s111
    %p120 = scmp.eq.s32.totalorder %s16, 0
    %p121 = por %p119, %p120
    %p122 = scmp.ne.s32.totalorder %s110, %s111
    %p123 = scmp.eq.s32.totalorder %s17, 1
    %p124 = por %p122, %p123
    %p126 = scmp.ne.s32.totalorder %s111, %s125
    %p127 = scmp.eq.s32.totalorder %s17, 0
    %p128 = por %p126, %p127
    %s129 = ssub.s32 %s11, %s18
    %p130 = scmp.eq.s32.totalorder %s129, 0
    %s132 = sadd.s32 %s131, 1
    %s133 = scalar_select %p130, %s131, %s132
    %p136 = pneg %p130
    %p137 = scmp.eq.s32.totalorder %s11, 1
    %p138 = por %p136, %p137
    %p139 = scmp.ne.s32.totalorder %s131, %s134
    %p140 = scmp.eq.s32.totalorder %s11, 0
    %p141 = por %p139, %p140
    %p142 = scmp.ne.s32.totalorder %s131, %s134
    %p143 = scmp.eq.s32.totalorder %s16, 1
    %p144 = por %p142, %p143
    %p145 = scmp.ne.s32.totalorder %s134, %s135
    %p146 = scmp.eq.s32.totalorder %s16, 0
    %p147 = por %p145, %p146
    %p148 = scmp.ne.s32.totalorder %s134, %s135
    %p149 = scmp.eq.s32.totalorder %s17, 1
    %p150 = por %p148, %p149
    %p152 = scmp.ne.s32.totalorder %s135, %s151
    %p153 = scmp.eq.s32.totalorder %s17, 0
    %p154 = por %p152, %p153
    %p155 = scmp.le.s32.totalorder 1, %s11
    %p156 = scmp.lt.s32.totalorder %s11, 3
    %p157 = pnand %p155, %p156
    %p158 = pneg %p157
    // Predicated region
    $region9: #{osnet_forward.8} parent=5 // pred_check
      _
    $region10: #{osnet_forward.8} parent=5 // pred_check_branch
      %160 = sbr.rel (%p157) target = $region12
    $region11: #{osnet_forward.8} parent=5 // pred_region
      %s161 = ssub.s32 %s11, 1
      // Predicated region
      $region13: #{osnet_forward.8} parent=11 // pred_check
        %p162 = pneg %p58
      $region14: #{osnet_forward.8} parent=11 // pred_check_branch
        %164 = sbr.rel (%p162) target = $region16
      $region15: #{osnet_forward.8} parent=11 // pred_region
        _
      $region16: #{osnet_forward.8} parent=11 // pred_fallthru
        _
      // Predicated region
      $region17: #{osnet_forward.8} parent=11 // pred_check
        %p165 = pneg %p79
      $region18: #{osnet_forward.8} parent=11 // pred_check_branch
        %167 = sbr.rel (%p165) target = $region20
      $region19: #{osnet_forward.8} parent=11 // pred_region
        _
      $region20: #{osnet_forward.8} parent=11 // pred_fallthru
        _
      // Predicated region
      $region21: #{osnet_forward.8} parent=11 // pred_check
        %p168 = pneg %p100
      $region22: #{osnet_forward.8} parent=11 // pred_check_branch
        %170 = sbr.rel (%p168) target = $region24
      $region23: #{osnet_forward.8} parent=11 // pred_region
        _
      $region24: #{osnet_forward.8} parent=11 // pred_fallthru
        _
      // Predicated region
      $region25: #{osnet_forward.8} parent=11 // pred_check
        %p171 = pneg %p121
      $region26: #{osnet_forward.8} parent=11 // pred_check_branch
        %173 = sbr.rel (%p171) target = $region28
      $region27: #{osnet_forward.8} parent=11 // pred_region
        _
      $region28: #{osnet_forward.8} parent=11 // pred_fallthru
        _
    $region12: #{osnet_forward.8} parent=5 // pred_fallthru
      _
    %p174 = scmp.lt.s32.totalorder %s11, 2
    // Predicated region
    $region29: #{osnet_forward.8} parent=5 // pred_check
      %p175 = pneg %p174
    $region30: #{osnet_forward.8} parent=5 // pred_check_branch
      %177 = sbr.rel (%p175) target = $region32
    $region31: #{osnet_forward.8} parent=5 // pred_region
      // Predicated region
      $region33: #{osnet_forward.8} parent=31 // pred_check
        %p178 = pneg %p31
      $region34: #{osnet_forward.8} parent=31 // pred_check_branch
        %180 = sbr.rel (%p178) target = $region36
      $region35: #{osnet_forward.8} parent=31 // pred_region
        %s181 = smul.u32 2, %s11
        %p182 = scmp.lt.s32.totalorder %s181, 3
        %s183 = scalar_select %p182, %s181, 3
        %s184 = smul.addr %s183, 4
        %s185 = smul.addr %s184, 4
        %s186 = scalar_lea.vmem %s0, %s185
        %s187 = smul.u32 2, %s11
      $region36: #{osnet_forward.8} parent=31 // pred_fallthru
        _
    $region32: #{osnet_forward.8} parent=5 // pred_fallthru
      _
    %p188 = scmp.le.s32.totalorder 1, %s11
    %p189 = scmp.lt.s32.totalorder %s11, 3
    %p190 = pnand %p188, %p189
    %p191 = pneg %p190
    // Predicated region
    $region37: #{osnet_forward.8} parent=5 // pred_check
      _
    $region38: #{osnet_forward.8} parent=5 // pred_check_branch
      %193 = sbr.rel (%p190) target = $region40
    $region39: #{osnet_forward.8} parent=5 // pred_region
      %s194 = ssub.s32 %s11, 1
      %s195 = smul.u32 2, %s16
      %p196 = scmp.lt.s32.totalorder %s195, 3
      %s197 = scalar_select %p196, %s195, 3
      %s198 = smul.addr %s197, 4
      %s199 = smul.addr %s198, 4
      %s200 = scalar_lea.vmem %s0, %s199
      %p201 = pneg %p37
      %p202 = pneg %p34
      %p203 = pneg %p58
      %p204 = pneg %p55
      %p205 = pneg %p79
      %p206 = pneg %p76
      %p207 = pneg %p100
      %p208 = pneg %p97
      %p209 = pneg %p121
      %p210 = pneg %p118
      %p211 = pneg %p147
      %p212 = pneg %p144
      %s213 = smul.u32 2, %s16
      %p214 = scmp.lt.s32.totalorder %s213, 3
      %s215 = scalar_select %p214, %s213, 3
      %s216 = smul.addr %s215, 4
      %s217 = scalar_lea.vmem %s5, %s216
      %s218 = smul.u32 2, %s16
      %p219 = scmp.lt.s32.totalorder %s218, 3
      %s220 = scalar_select %p219, %s218, 3
      %s221 = smul.addr %s220, 4
      %s222 = smul.addr %s221, 4
      %s223 = scalar_lea.vmem %s0, %s222
      %s224 = smul.u32 2, %s16
      %s225 = smul.u32 2, %s16
      %p226 = scmp.lt.s32.totalorder %s225, 3
      %s227 = scalar_select %p226, %s225, 3
      %s228 = smul.addr %s227, 4
      %s229 = scalar_lea.vmem %s5, %s228
      %s230 = smul.u32 2, %s16
      %v232 = vld [vmem:[%s223] sm:$0xf]
      %v233 = vld [vmem:[%s223 + $0x10] sm:$0xf]
      %v234 = vld [vmem:[%s1] sm:$0xf]
      %v235 = vld [vmem:[%s1 + $0x4] sm:$0xf]
      %v236 = vld [vmem:[%s1 + $0x8] sm:$0xf]
      %v237 = vld [vmem:[%s1 + $0xc] sm:$0xf]
      %v238 = vld [vmem:[%s1 + $0x10] sm:$0xf]
      %v239 = vld [vmem:[%s1 + $0x14] sm:$0xf]
      %v240 = vld [vmem:[%s1 + $0x18] sm:$0xf]
      %v241 = vld [vmem:[%s1 + $0x1c] sm:$0xf]
      %v242 = vld [vmem:[%s1 + $0x20] sm:$0xf]
      %v243 = vld [vmem:[%s1 + $0x24] sm:$0xf]
      %v244 = vld [vmem:[%s1 + $0x28] sm:$0xf]
      %v245 = vld [vmem:[%s1 + $0x2c] sm:$0xf]
      %v246 = vld [vmem:[%s1 + $0x30] sm:$0xf]
      %v247 = vld [vmem:[%s1 + $0x34] sm:$0xf]
      %v248 = vld [vmem:[%s1 + $0x38] sm:$0xf]
      %v249 = vld [vmem:[%s1 + $0x3c] sm:$0xf]
      %v250 = vld [vmem:[%s2] sm:$0x1]
      %v252 = vlaneseq
      %v253 = vshrl.u32 %v252, 7
      %v254 = vsub.s32 0, %v253
      %v255 = vrot.slane %v250, %v254
      %v259 = vunpack.c.l.b16 %v232
      %v260 = vunpack.c.l.b16 %v233
      %v261 = vpack.c.b16 %v260, %v259
      %v279 = vunpack.c.l.b16 %v234
      %v280 = vunpack.c.l.b16 %v235
      %v281 = vunpack.c.l.b16 %v236
      %v282 = vunpack.c.l.b16 %v237
      %v283 = vunpack.c.l.b16 %v238
      %v284 = vunpack.c.l.b16 %v239
      %v285 = vunpack.c.l.b16 %v240
      %v286 = vunpack.c.l.b16 %v241
      %v287 = vunpack.c.l.b16 %v242
      %v288 = vunpack.c.l.b16 %v243
      %v289 = vunpack.c.l.b16 %v244
      %v290 = vunpack.c.l.b16 %v245
      %v291 = vunpack.c.l.b16 %v246
      %v292 = vunpack.c.l.b16 %v247
      %v293 = vunpack.c.l.b16 %v248
      %v294 = vunpack.c.l.b16 %v249
      %v295 = vpack.c.b16 %v280, %v279
      %v296 = vpack.c.b16 %v282, %v281
      %v297 = vpack.c.b16 %v284, %v283
      %v298 = vpack.c.b16 %v286, %v285
      %v299 = vpack.c.b16 %v288, %v287
      %v300 = vpack.c.b16 %v290, %v289
      %v301 = vpack.c.b16 %v292, %v291
      %v302 = vpack.c.b16 %v294, %v293
      %311 = vmatprep.subr.bf16.mxu0 0
      %312 = vmatpush1.bf16.msra.mxu0 %v295
      %313 = vmatprep.subr.bf16.mxu0 0
      %314 = vmatpush1.bf16.msra.mxu0 %v296
      %315 = vmatprep.subr.bf16.mxu0 0
      %316 = vmatpush1.bf16.msra.mxu0 %v297
      %317 = vmatprep.subr.bf16.mxu0 0
      %318 = vmatpush1.bf16.msra.mxu0 %v298
      %319 = vmatprep.subr.bf16.mxu0 0
      %320 = vmatpush1.bf16.msra.mxu0 %v299
      %321 = vmatprep.subr.bf16.mxu0 0
      %322 = vmatpush1.bf16.msra.mxu0 %v300
      %323 = vmatprep.subr.bf16.mxu0 0
      %324 = vmatpush1.bf16.msra.mxu0 %v301
      %325 = vmatprep.subr.bf16.mxu0 0
      %326 = vmatpush1.bf16.msra.mxu0 %v302
      %327 = vmatprep.subr.bf16.mxu0 0
      %328 = vmatpush1.bf16.msra.mxu0 0
      %329 = vmatprep.subr.bf16.mxu0 0
      %330 = vmatpush1.bf16.msra.mxu0 0
      %331 = vmatprep.subr.bf16.mxu0 0
      %332 = vmatpush1.bf16.msra.mxu0 0
      %333 = vmatprep.subr.bf16.mxu0 0
      %334 = vmatpush1.bf16.msra.mxu0 0
      %335 = vmatprep.subr.bf16.mxu0 0
      %336 = vmatpush1.bf16.msra.mxu0 0
      %337 = vmatprep.subr.bf16.mxu0 0
      %338 = vmatpush1.bf16.msra.mxu0 0
      %339 = vmatprep.subr.bf16.mxu0 0
      %340 = vmatpush1.bf16.msra.mxu0 0
      %341 = vmatprep.subr.bf16.mxu0 0
      %342 = vmatpush1.bf16.msra.mxu0 0
      %343 = vmatprep.mubr.bf16.mxu0 0
      %344 = vmatmul.mubr.bf16.gmra.mrb[0].mxu0 %v261
      %v345 = vpop.f32.mrb[0].mxu0
      %v346 = vadd.f32 %v255, %v345
      %v347 = vpop.f32.mrb[0].mxu0
      %v348 = vpop.f32.mrb[0].mxu0
      %v349 = vadd.f32 %v255, %v348
      %v350 = vpop.f32.mrb[0].mxu0
      %351 = vdwg.mxu0
      %v352 = vmax.f32 %v346, 0.0
      %v353 = vmax.f32 %v349, 0.0
      %v354 = vpack.c.bf16 %v353, %v352
      %v355 = vld [vmem:[%s3] sm:$0xf]
      %v356 = vld [vmem:[%s3 + $0x4] sm:$0xf]
      %v357 = vld [vmem:[%s3 + $0x8] sm:$0xf]
      %v358 = vld [vmem:[%s3 + $0xc] sm:$0xf]
      %v359 = vld [vmem:[%s3 + $0x10] sm:$0xf]
      %v360 = vld [vmem:[%s3 + $0x14] sm:$0xf]
      %v361 = vld [vmem:[%s3 + $0x18] sm:$0xf]
      %v362 = vld [vmem:[%s3 + $0x1c] sm:$0xf]
      %v363 = vld [vmem:[%s3 + $0x20] sm:$0xf]
      %v364 = vld [vmem:[%s3 + $0x24] sm:$0xf]
      %v365 = vld [vmem:[%s3 + $0x28] sm:$0xf]
      %v366 = vld [vmem:[%s3 + $0x2c] sm:$0xf]
      %v367 = vld [vmem:[%s3 + $0x30] sm:$0xf]
      %v368 = vld [vmem:[%s3 + $0x34] sm:$0xf]
      %v369 = vld [vmem:[%s3 + $0x38] sm:$0xf]
      %v370 = vld [vmem:[%s3 + $0x3c] sm:$0xf]
      %v371 = vld [vmem:[%s4] sm:$0x1]
      %v373 = vlaneseq
      %v374 = vshrl.u32 %v373, 7
      %v375 = vsub.s32 0, %v374
      %v376 = vrot.slane %v371, %v375
      %v394 = vunpack.c.l.b16 %v355
      %v395 = vunpack.c.l.b16 %v356
      %v396 = vunpack.c.l.b16 %v357
      %v397 = vunpack.c.l.b16 %v358
      %v398 = vunpack.c.l.b16 %v359
      %v399 = vunpack.c.l.b16 %v360
      %v400 = vunpack.c.l.b16 %v361
      %v401 = vunpack.c.l.b16 %v362
      %v402 = vunpack.c.l.b16 %v363
      %v403 = vunpack.c.l.b16 %v364
      %v404 = vunpack.c.l.b16 %v365
      %v405 = vunpack.c.l.b16 %v366
      %v406 = vunpack.c.l.b16 %v367
      %v407 = vunpack.c.l.b16 %v368
      %v408 = vunpack.c.l.b16 %v369
      %v409 = vunpack.c.l.b16 %v370
      %v410 = vpack.c.b16 %v395, %v394
      %v411 = vpack.c.b16 %v397, %v396
      %v412 = vpack.c.b16 %v399, %v398
      %v413 = vpack.c.b16 %v401, %v400
      %v414 = vpack.c.b16 %v403, %v402
      %v415 = vpack.c.b16 %v405, %v404
      %v416 = vpack.c.b16 %v407, %v406
      %v417 = vpack.c.b16 %v409, %v408
      %426 = vmatprep.subr.bf16.mxu0 0
      %427 = vmatpush1.bf16.msra.mxu0 %v410
      %428 = vmatprep.subr.bf16.mxu0 0
      %429 = vmatpush1.bf16.msra.mxu0 %v411
      %430 = vmatprep.subr.bf16.mxu0 0
      %431 = vmatpush1.bf16.msra.mxu0 %v412
      %432 = vmatprep.subr.bf16.mxu0 0
      %433 = vmatpush1.bf16.msra.mxu0 %v413
      %434 = vmatprep.subr.bf16.mxu0 0
      %435 = vmatpush1.bf16.msra.mxu0 %v414
      %436 = vmatprep.subr.bf16.mxu0 0
      %437 = vmatpush1.bf16.msra.mxu0 %v415
      %438 = vmatprep.subr.bf16.mxu0 0
      %439 = vmatpush1.bf16.msra.mxu0 %v416
      %440 = vmatprep.subr.bf16.mxu0 0
      %441 = vmatpush1.bf16.msra.mxu0 %v417
      %442 = vmatprep.subr.bf16.mxu0 0
      %443 = vmatpush1.bf16.msra.mxu0 0
      %444 = vmatprep.subr.bf16.mxu0 0
      %445 = vmatpush1.bf16.msra.mxu0 0
      %446 = vmatprep.subr.bf16.mxu0 0
      %447 = vmatpush1.bf16.msra.mxu0 0
      %448 = vmatprep.subr.bf16.mxu0 0
      %449 = vmatpush1.bf16.msra.mxu0 0
      %450 = vmatprep.subr.bf16.mxu0 0
      %451 = vmatpush1.bf16.msra.mxu0 0
      %452 = vmatprep.subr.bf16.mxu0 0
      %453 = vmatpush1.bf16.msra.mxu0 0
      %454 = vmatprep.subr.bf16.mxu0 0
      %455 = vmatpush1.bf16.msra.mxu0 0
      %456 = vmatprep.subr.bf16.mxu0 0
      %457 = vmatpush1.bf16.msra.mxu0 0
      %458 = vmatprep.mubr.bf16.mxu0 0
      %459 = vmatmul.mubr.bf16.gmra.mrb[0].mxu0 %v354
      %v460 = vpop.f32.mrb[0].mxu0
      %v461 = vadd.f32 %v376, %v460
      %v462 = vpop.f32.mrb[0].mxu0
      %v463 = vpop.f32.mrb[0].mxu0
      %v464 = vadd.f32 %v376, %v463
      %v465 = vpop.f32.mrb[0].mxu0
      %466 = vdwg.mxu0
      %v467 = vmax.f32 %v461, 0.0
      %v468 = vmax.f32 %v464, 0.0
      %v469 = vld [vmem:[%s223 + $0x4] sm:$0xf]
      %v470 = vld [vmem:[%s223 + $0x14] sm:$0xf]
      %v473 = vunpack.c.l.b16 %v469
      %v474 = vunpack.c.l.b16 %v470
      %v475 = vpack.c.b16 %v474, %v473
      %477 = vmatprep.subr.bf16.mxu0 0
      %478 = vmatpush1.bf16.msra.mxu0 %v295
      %479 = vmatprep.subr.bf16.mxu0 0
      %480 = vmatpush1.bf16.msra.mxu0 %v296
      %481 = vmatprep.subr.bf16.mxu0 0
      %482 = vmatpush1.bf16.msra.mxu0 %v297
      %483 = vmatprep.subr.bf16.mxu0 0
      %484 = vmatpush1.bf16.msra.mxu0 %v298
      %485 = vmatprep.subr.bf16.mxu0 0
      %486 = vmatpush1.bf16.msra.mxu0 %v299
      %487 = vmatprep.subr.bf16.mxu0 0
      %488 = vmatpush1.bf16.msra.mxu0 %v300
      %489 = vmatprep.subr.bf16.mxu0 0
      %490 = vmatpush1.bf16.msra.mxu0 %v301
      %491 = vmatprep.subr.bf16.mxu0 0
      %492 = vmatpush1.bf16.msra.mxu0 %v302
      %493 = vmatprep.subr.bf16.mxu0 0
      %494 = vmatpush1.bf16.msra.mxu0 0
      %495 = vmatprep.subr.bf16.mxu0 0
      %496 = vmatpush1.bf16.msra.mxu0 0
      %497 = vmatprep.subr.bf16.mxu0 0
      %498 = vmatpush1.bf16.msra.mxu0 0
      %499 = vmatprep.subr.bf16.mxu0 0
      %500 = vmatpush1.bf16.msra.mxu0 0
      %501 = vmatprep.subr.bf16.mxu0 0
      %502 = vmatpush1.bf16.msra.mxu0 0
      %503 = vmatprep.subr.bf16.mxu0 0
      %504 = vmatpush1.bf16.msra.mxu0 0
      %505 = vmatprep.subr.bf16.mxu0 0
      %506 = vmatpush1.bf16.msra.mxu0 0
      %507 = vmatprep.subr.bf16.mxu0 0
      %508 = vmatpush1.bf16.msra.mxu0 0
      %509 = vmatprep.mubr.bf16.mxu0 0
      %510 = vmatmul.mubr.bf16.gmra.mrb[0].mxu0 %v475
      %v511 = vpop.f32.mrb[0].mxu0
      %v512 = vadd.f32 %v255, %v511
      %v513 = vpop.f32.mrb[0].mxu0
      %v514 = vpop.f32.mrb[0].mxu0
      %v515 = vadd.f32 %v255, %v514
      %v516 = vpop.f32.mrb[0].mxu0
      %517 = vdwg.mxu0
      %v518 = vmax.f32 %v512, 0.0
      %v519 = vmax.f32 %v515, 0.0
      %v520 = vpack.c.bf16 %v519, %v518
      %521 = vmatprep.subr.bf16.mxu0 0
      %522 = vmatpush1.bf16.msra.mxu0 %v410
      %523 = vmatprep.subr.bf16.mxu0 0
      %524 = vmatpush1.bf16.msra.mxu0 %v411
      %525 = vmatprep.subr.bf16.mxu0 0
      %526 = vmatpush1.bf16.msra.mxu0 %v412
      %527 = vmatprep.subr.bf16.mxu0 0
      %528 = vmatpush1.bf16.msra.mxu0 %v413
      %529 = vmatprep.subr.bf16.mxu0 0
      %530 = vmatpush1.bf16.msra.mxu0 %v414
      %531 = vmatprep.subr.bf16.mxu0 0
      %532 = vmatpush1.bf16.msra.mxu0 %v415
      %533 = vmatprep.subr.bf16.mxu0 0
      %534 = vmatpush1.bf16.msra.mxu0 %v416
      %535 = vmatprep.subr.bf16.mxu0 0
      %536 = vmatpush1.bf16.msra.mxu0 %v417
      %537 = vmatprep.subr.bf16.mxu0 0
      %538 = vmatpush1.bf16.msra.mxu0 0
      %539 = vmatprep.subr.bf16.mxu0 0
      %540 = vmatpush1.bf16.msra.mxu0 0
      %541 = vmatprep.subr.bf16.mxu0 0
      %542 = vmatpush1.bf16.msra.mxu0 0
      %543 = vmatprep.subr.bf16.mxu0 0
      %544 = vmatpush1.bf16.msra.mxu0 0
      %545 = vmatprep.subr.bf16.mxu0 0
      %546 = vmatpush1.bf16.msra.mxu0 0
      %547 = vmatprep.subr.bf16.mxu0 0
      %548 = vmatpush1.bf16.msra.mxu0 0
      %549 = vmatprep.subr.bf16.mxu0 0
      %550 = vmatpush1.bf16.msra.mxu0 0
      %551 = vmatprep.subr.bf16.mxu0 0
      %552 = vmatpush1.bf16.msra.mxu0 0
      %553 = vmatprep.mubr.bf16.mxu0 0
      %554 = vmatmul.mubr.bf16.gmra.mrb[0].mxu0 %v520
      %v555 = vpop.f32.mrb[0].mxu0
      %v556 = vadd.f32 %v376, %v555
      %v557 = vpop.f32.mrb[0].mxu0
      %v558 = vpop.f32.mrb[0].mxu0
      %v559 = vadd.f32 %v376, %v558
      %v560 = vpop.f32.mrb[0].mxu0
      %561 = vdwg.mxu0
      %v562 = vmax.f32 %v556, 0.0
      %v563 = vmax.f32 %v559, 0.0
      %v564 = vadd.f32 %v467, %v562
      %v565 = vadd.f32 %v468, %v563
      %v566 = vld [vmem:[%s223 + $0x8] sm:$0xf]
      %v567 = vld [vmem:[%s223 + $0x18] sm:$0xf]
      %v570 = vunpack.c.l.b16 %v566
      %v571 = vunpack.c.l.b16 %v567
      %v572 = vpack.c.b16 %v571, %v570
      %574 = vmatprep.subr.bf16.mxu0 0
      %575 = vmatpush1.bf16.msra.mxu0 %v295
      %576 = vmatprep.subr.bf16.mxu0 0
      %577 = vmatpush1.bf16.msra.mxu0 %v296
      %578 = vmatprep.subr.bf16.mxu0 0
      %579 = vmatpush1.bf16.msra.mxu0 %v297
      %580 = vmatprep.subr.bf16.mxu0 0
      %581 = vmatpush1.bf16.msra.mxu0 %v298
      %582 = vmatprep.subr.bf16.mxu0 0
      %583 = vmatpush1.bf16.msra.mxu0 %v299
      %584 = vmatprep.subr.bf16.mxu0 0
      %585 = vmatpush1.bf16.msra.mxu0 %v300
      %586 = vmatprep.subr.bf16.mxu0 0
      %587 = vmatpush1.bf16.msra.mxu0 %v301
      %588 = vmatprep.subr.bf16.mxu0 0
      %589 = vmatpush1.bf16.msra.mxu0 %v302
      %590 = vmatprep.subr.bf16.mxu0 0
      %591 = vmatpush1.bf16.msra.mxu0 0
      %592 = vmatprep.subr.bf16.mxu0 0
      %593 = vmatpush1.bf16.msra.mxu0 0
      %594 = vmatprep.subr.bf16.mxu0 0
      %595 = vmatpush1.bf16.msra.mxu0 0
      %596 = vmatprep.subr.bf16.mxu0 0
      %597 = vmatpush1.bf16.msra.mxu0 0
      %598 = vmatprep.subr.bf16.mxu0 0
      %599 = vmatpush1.bf16.msra.mxu0 0
      %600 = vmatprep.subr.bf16.mxu0 0
      %601 = vmatpush1.bf16.msra.mxu0 0
      %602 = vmatprep.subr.bf16.mxu0 0
      %603 = vmatpush1.bf16.msra.mxu0 0
      %604 = vmatprep.subr.bf16.mxu0 0
      %605 = vmatpush1.bf16.msra.mxu0 0
      %606 = vmatprep.mubr.bf16.mxu0 0
      %607 = vmatmul.mubr.bf16.gmra.mrb[0].mxu0 %v572
      %v608 = vpop.f32.mrb[0].mxu0
      %v609 = vadd.f32 %v255, %v608
      %v610 = vpop.f32.mrb[0].mxu0
      %v611 = vpop.f32.mrb[0].mxu0
      %v612 = vadd.f32 %v255, %v611
      %v613 = vpop.f32.mrb[0].mxu0
      %614 = vdwg.mxu0
      %v615 = vmax.f32 %v609, 0.0
      %v616 = vmax.f32 %v612, 0.0
      %v617 = vpack.c.bf16 %v616, %v615
      %618 = vmatprep.subr.bf16.mxu0 0
      %619 = vmatpush1.bf16.msra.mxu0 %v410
      %620 = vmatprep.subr.bf16.mxu0 0
      %621 = vmatpush1.bf16.msra.mxu0 %v411
      %622 = vmatprep.subr.bf16.mxu0 0
      %623 = vmatpush1.bf16.msra.mxu0 %v412
      %624 = vmatprep.subr.bf16.mxu0 0
      %625 = vmatpush1.bf16.msra.mxu0 %v413
      %626 = vmatprep.subr.bf16.mxu0 0
      %627 = vmatpush1.bf16.msra.mxu0 %v414
      %628 = vmatprep.subr.bf16.mxu0 0
      %629 = vmatpush1.bf16.msra.mxu0 %v415
      %630 = vmatprep.subr.bf16.mxu0 0
      %631 = vmatpush1.bf16.msra.mxu0 %v416
      %632 = vmatprep.subr.bf16.mxu0 0
      %633 = vmatpush1.bf16.msra.mxu0 %v417
      %634 = vmatprep.subr.bf16.mxu0 0
      %635 = vmatpush1.bf16.msra.mxu0 0
      %636 = vmatprep.subr.bf16.mxu0 0
      %637 = vmatpush1.bf16.msra.mxu0 0
      %638 = vmatprep.subr.bf16.mxu0 0
      %639 = vmatpush1.bf16.msra.mxu0 0
      %640 = vmatprep.subr.bf16.mxu0 0
      %641 = vmatpush1.bf16.msra.mxu0 0
      %642 = vmatprep.subr.bf16.mxu0 0
      %643 = vmatpush1.bf16.msra.mxu0 0
      %644 = vmatprep.subr.bf16.mxu0 0
      %645 = vmatpush1.bf16.msra.mxu0 0
      %646 = vmatprep.subr.bf16.mxu0 0
      %647 = vmatpush1.bf16.msra.mxu0 0
      %648 = vmatprep.subr.bf16.mxu0 0
      %649 = vmatpush1.bf16.msra.mxu0 0
      %650 = vmatprep.mubr.bf16.mxu0 0
      %651 = vmatmul.mubr.bf16.gmra.mrb[0].mxu0 %v617
      %v652 = vpop.f32.mrb[0].mxu0
      %v653 = vadd.f32 %v376, %v652
      %v654 = vpop.f32.mrb[0].mxu0
      %v655 = vpop.f32.mrb[0].mxu0
      %v656 = vadd.f32 %v376, %v655
      %v657 = vpop.f32.mrb[0].mxu0
      %658 = vdwg.mxu0
      %v659 = vmax.f32 %v653, 0.0
      %v660 = vmax.f32 %v656, 0.0
      %v661 = vadd.f32 %v564, %v659
      %v662 = vadd.f32 %v565, %v660
      %v663 = vld [vmem:[%s223 + $0xc] sm:$0xf]
      %v664 = vld [vmem:[%s223 + $0x1c] sm:$0xf]
      %v667 = vunpack.c.l.b16 %v663
      %v668 = vunpack.c.l.b16 %v664
      %v669 = vpack.c.b16 %v668, %v667
      %671 = vmatprep.subr.bf16.mxu0 0
      %672 = vmatpush1.bf16.msra.mxu0 %v295
      %673 = vmatprep.subr.bf16.mxu0 0
      %674 = vmatpush1.bf16.msra.mxu0 %v296
      %675 = vmatprep.subr.bf16.mxu0 0
      %676 = vmatpush1.bf16.msra.mxu0 %v297
      %677 = vmatprep.subr.bf16.mxu0 0
      %678 = vmatpush1.bf16.msra.mxu0 %v298
      %679 = vmatprep.subr.bf16.mxu0 0
      %680 = vmatpush1.bf16.msra.mxu0 %v299
      %681 = vmatprep.subr.bf16.mxu0 0
      %682 = vmatpush1.bf16.msra.mxu0 %v300
      %683 = vmatprep.subr.bf16.mxu0 0
      %684 = vmatpush1.bf16.msra.mxu0 %v301
      %685 = vmatprep.subr.bf16.mxu0 0
      %686 = vmatpush1.bf16.msra.mxu0 %v302
      %687 = vmatprep.subr.bf16.mxu0 0
      %688 = vmatpush1.bf16.msra.mxu0 0
      %689 = vmatprep.subr.bf16.mxu0 0
      %690 = vmatpush1.bf16.msra.mxu0 0
      %691 = vmatprep.subr.bf16.mxu0 0
      %692 = vmatpush1.bf16.msra.mxu0 0
      %693 = vmatprep.subr.bf16.mxu0 0
      %694 = vmatpush1.bf16.msra.mxu0 0
      %695 = vmatprep.subr.bf16.mxu0 0
      %696 = vmatpush1.bf16.msra.mxu0 0
      %697 = vmatprep.subr.bf16.mxu0 0
      %698 = vmatpush1.bf16.msra.mxu0 0
      %699 = vmatprep.subr.bf16.mxu0 0
      %700 = vmatpush1.bf16.msra.mxu0 0
      %701 = vmatprep.subr.bf16.mxu0 0
      %702 = vmatpush1.bf16.msra.mxu0 0
      %703 = vmatprep.mubr.bf16.mxu0 0
      %704 = vmatmul.mubr.bf16.gmra.mrb[0].mxu0 %v669
      %v705 = vpop.f32.mrb[0].mxu0
      %v706 = vadd.f32 %v255, %v705
      %v707 = vpop.f32.mrb[0].mxu0
      %v708 = vpop.f32.mrb[0].mxu0
      %v709 = vadd.f32 %v255, %v708
      %v710 = vpop.f32.mrb[0].mxu0
      %711 = vdwg.mxu0
      %v712 = vmax.f32 %v706, 0.0
      %v713 = vmax.f32 %v709, 0.0
      %v714 = vpack.c.bf16 %v713, %v712
      %715 = vmatprep.subr.bf16.mxu0 0
      %716 = vmatpush1.bf16.msra.mxu0 %v410
      %717 = vmatprep.subr.bf16.mxu0 0
      %718 = vmatpush1.bf16.msra.mxu0 %v411
      %719 = vmatprep.subr.bf16.mxu0 0
      %720 = vmatpush1.bf16.msra.mxu0 %v412
      %721 = vmatprep.subr.bf16.mxu0 0
      %722 = vmatpush1.bf16.msra.mxu0 %v413
      %723 = vmatprep.subr.bf16.mxu0 0
      %724 = vmatpush1.bf16.msra.mxu0 %v414
      %725 = vmatprep.subr.bf16.mxu0 0
      %726 = vmatpush1.bf16.msra.mxu0 %v415
      %727 = vmatprep.subr.bf16.mxu0 0
      %728 = vmatpush1.bf16.msra.mxu0 %v416
      %729 = vmatprep.subr.bf16.mxu0 0
      %730 = vmatpush1.bf16.msra.mxu0 %v417
      %731 = vmatprep.subr.bf16.mxu0 0
      %732 = vmatpush1.bf16.msra.mxu0 0
      %733 = vmatprep.subr.bf16.mxu0 0
      %734 = vmatpush1.bf16.msra.mxu0 0
      %735 = vmatprep.subr.bf16.mxu0 0
      %736 = vmatpush1.bf16.msra.mxu0 0
      %737 = vmatprep.subr.bf16.mxu0 0
      %738 = vmatpush1.bf16.msra.mxu0 0
      %739 = vmatprep.subr.bf16.mxu0 0
      %740 = vmatpush1.bf16.msra.mxu0 0
      %741 = vmatprep.subr.bf16.mxu0 0
      %742 = vmatpush1.bf16.msra.mxu0 0
      %743 = vmatprep.subr.bf16.mxu0 0
      %744 = vmatpush1.bf16.msra.mxu0 0
      %745 = vmatprep.subr.bf16.mxu0 0
      %746 = vmatpush1.bf16.msra.mxu0 0
      %747 = vmatprep.mubr.bf16.mxu0 0
      %748 = vmatmul.mubr.bf16.gmra.mrb[0].mxu0 %v714
      %v749 = vpop.f32.mrb[0].mxu0
      %v750 = vadd.f32 %v376, %v749
      %v751 = vpop.f32.mrb[0].mxu0
      %v752 = vpop.f32.mrb[0].mxu0
      %v753 = vadd.f32 %v376, %v752
      %v754 = vpop.f32.mrb[0].mxu0
      %755 = vdwg.mxu0
      %v756 = vmax.f32 %v750, 0.0
      %v757 = vmax.f32 %v753, 0.0
      %v758 = vadd.f32 %v661, %v756
      %v759 = vadd.f32 %v662, %v757
      %v760 = vmul.f32 %v758, 0.25
      %v761 = vmul.f32 %v759, 0.25
      %v762 = vpack.c.bf16 %v761, %v760
      %v764 = vunpack.c.l.b16 %v762
      %v765 = vunpack.c.h.b16 %v762
      %v766 = vpack.c.b16 %v764, %v764
      %v767 = vpack.c.b16 %v765, %v765
      %770 = vst [vmem:[%s229] sm:$0xf] %v766
      %771 = vst [vmem:[%s229 + $0x4] sm:$0xf] %v767
      %s772 = smul.u32 2, %s16
      %p773 = scmp.lt.s32.totalorder %s772, 3
      %s774 = scalar_select %p773, %s772, 3
      %s775 = smul.addr %s774, 4
      %s776 = scalar_lea.vmem %s5, %s775
      // Predicated region
      $region41: #{osnet_forward.8} parent=39 // pred_check
        %p777 = pneg %p144
      $region42: #{osnet_forward.8} parent=39 // pred_check_branch
        %779 = sbr.rel (%p777) target = $region44
      $region43: #{osnet_forward.8} parent=39 // pred_region
        %s780 = smul.u32 2, %s16
      $region44: #{osnet_forward.8} parent=39 // pred_fallthru
        _
    $region40: #{osnet_forward.8} parent=5 // pred_fallthru
      _
    %p781 = scmp.le.s32.totalorder 2, %s11
    // Predicated region
    $region45: #{osnet_forward.8} parent=5 // pred_check
      %p782 = pneg %p781
    $region46: #{osnet_forward.8} parent=5 // pred_check_branch
      %784 = sbr.rel (%p782) target = $region48
    $region47: #{osnet_forward.8} parent=5 // pred_region
      %s785 = ssub.s32 %s11, 2
      // Predicated region
      $region49: #{osnet_forward.8} parent=47 // pred_check
        %p786 = pneg %p150
      $region50: #{osnet_forward.8} parent=47 // pred_check_branch
        %788 = sbr.rel (%p786) target = $region52
      $region51: #{osnet_forward.8} parent=47 // pred_region
        %s789 = smul.u32 2, %s17
        %p790 = scmp.lt.s32.totalorder %s789, 3
        %s791 = scalar_select %p790, %s789, 3
        %s792 = smul.addr %s791, 4
        %s793 = scalar_lea.vmem %s5, %s792
      $region52: #{osnet_forward.8} parent=47 // pred_fallthru
        _
    $region48: #{osnet_forward.8} parent=5 // pred_fallthru
      _
  $region6: #{osnet_forward.8} parent=0 // loop_footer
    %s15 = sadd.s32 1, %s11
  $region7: #{osnet_forward.8} parent=0 // loop_footer_branch
    %10 = sbr.rel target = $region3
  $region8: #{osnet_forward.8} parent=0 // loop_exit
    _

// kernel: osnet_forward.9
$region0: #{osnet_forward.9}
  #allocation0 [shape = 'u32[]', space=smem, size = 0x4, offset = 0x4, fixed_abs, tag = 'smem constant byte address 0x4 - core index']
  #allocation1 [shape = 'u32[144,128]{1,0:T(1,128)}', space=vmem, size = 0x12000, scoped, tag = 'internal scratch']
  %s0 = inlined_call_operand.vmem [shape: bf16[8,512], index: 0, kind: input, shape index: {}]
  %s1 = inlined_call_operand.vmem [shape: bf16[128,128], index: 1, kind: input, shape index: {}]
  %s2 = inlined_call_operand.vmem [shape: f32[1,128], index: 2, kind: input, shape index: {}]
  %s3 = inlined_call_operand.vmem [shape: bf16[128,128], index: 3, kind: input, shape index: {}]
  %s4 = inlined_call_operand.vmem [shape: f32[1,128], index: 4, kind: input, shape index: {}]
  %s5 = inlined_call_operand.vmem [shape: bf16[8,128], index: 5, kind: output, shape index: {}]
  %s6 = sld [smem:[#allocation0]]
  $region30: #{osnet_forward.9} parent=0
    _
  %s8 = ssub.s32 1, %s6
  %s9 = scalar_select 0, %s8, %s6
  // Predicated region
  $region2: #{osnet_forward.9} parent=0 // pred_check
    _
  $region3: #{osnet_forward.9} parent=0 // pred_check_branch
    %11 = sbr.rel (0) target = $region5
  $region4: #{osnet_forward.9} parent=0 // pred_region
    _
  $region5: #{osnet_forward.9} parent=0 // pred_fallthru
    _
  // Predicated region
  $region6: #{osnet_forward.9} parent=0 // pred_check
    _
  $region7: #{osnet_forward.9} parent=0 // pred_check_branch
    %13 = sbr.rel (0) target = $region9
  $region8: #{osnet_forward.9} parent=0 // pred_region
    _
  $region9: #{osnet_forward.9} parent=0 // pred_fallthru
    _
  // Predicated region
  $region10: #{osnet_forward.9} parent=0 // pred_check
    _
  $region11: #{osnet_forward.9} parent=0 // pred_check_branch
    %15 = sbr.rel (0) target = $region13
  $region12: #{osnet_forward.9} parent=0 // pred_region
    _
  $region13: #{osnet_forward.9} parent=0 // pred_fallthru
    _
  // Predicated region
  $region14: #{osnet_forward.9} parent=0 // pred_check
    _
  $region15: #{osnet_forward.9} parent=0 // pred_check_branch
    %17 = sbr.rel (0) target = $region17
  $region16: #{osnet_forward.9} parent=0 // pred_region
    _
  $region17: #{osnet_forward.9} parent=0 // pred_fallthru
    _
  // Predicated region
  $region18: #{osnet_forward.9} parent=0 // pred_check
    _
  $region19: #{osnet_forward.9} parent=0 // pred_check_branch
    %19 = sbr.rel (0) target = $region21
  $region20: #{osnet_forward.9} parent=0 // pred_region
    _
  $region21: #{osnet_forward.9} parent=0 // pred_fallthru
    _
  %v21 = vld [vmem:[%s0] sm:$0xf]
  %v22 = vld [vmem:[%s1] sm:$0xf]
  %v23 = vld [vmem:[%s1 + $0x4] sm:$0xf]
  %v24 = vld [vmem:[%s1 + $0x8] sm:$0xf]
  %v25 = vld [vmem:[%s1 + $0xc] sm:$0xf]
  %v26 = vld [vmem:[%s1 + $0x10] sm:$0xf]
  %v27 = vld [vmem:[%s1 + $0x14] sm:$0xf]
  %v28 = vld [vmem:[%s1 + $0x18] sm:$0xf]
  %v29 = vld [vmem:[%s1 + $0x1c] sm:$0xf]
  %v30 = vld [vmem:[%s1 + $0x20] sm:$0xf]
  %v31 = vld [vmem:[%s1 + $0x24] sm:$0xf]
  %v32 = vld [vmem:[%s1 + $0x28] sm:$0xf]
  %v33 = vld [vmem:[%s1 + $0x2c] sm:$0xf]
  %v34 = vld [vmem:[%s1 + $0x30] sm:$0xf]
  %v35 = vld [vmem:[%s1 + $0x34] sm:$0xf]
  %v36 = vld [vmem:[%s1 + $0x38] sm:$0xf]
  %v37 = vld [vmem:[%s1 + $0x3c] sm:$0xf]
  %v38 = vld [vmem:[%s2] sm:$0x1]
  %v40 = vlaneseq
  %v41 = vshrl.u32 %v40, 7
  %v42 = vsub.s32 0, %v41
  %v43 = vrot.slane %v38, %v42
  %v61 = vunpack.c.l.b16 %v22
  %v62 = vunpack.c.l.b16 %v23
  %v63 = vunpack.c.l.b16 %v24
  %v64 = vunpack.c.l.b16 %v25
  %v65 = vunpack.c.l.b16 %v26
  %v66 = vunpack.c.l.b16 %v27
  %v67 = vunpack.c.l.b16 %v28
  %v68 = vunpack.c.l.b16 %v29
  %v69 = vunpack.c.l.b16 %v30
  %v70 = vunpack.c.l.b16 %v31
  %v71 = vunpack.c.l.b16 %v32
  %v72 = vunpack.c.l.b16 %v33
  %v73 = vunpack.c.l.b16 %v34
  %v74 = vunpack.c.l.b16 %v35
  %v75 = vunpack.c.l.b16 %v36
  %v76 = vunpack.c.l.b16 %v37
  %v77 = vpack.c.b16 %v62, %v61
  %v78 = vpack.c.b16 %v64, %v63
  %v79 = vpack.c.b16 %v66, %v65
  %v80 = vpack.c.b16 %v68, %v67
  %v81 = vpack.c.b16 %v70, %v69
  %v82 = vpack.c.b16 %v72, %v71
  %v83 = vpack.c.b16 %v74, %v73
  %v84 = vpack.c.b16 %v76, %v75
  %93 = vmatprep.subr.bf16.mxu0 0
  %94 = vmatpush1.bf16.msra.mxu0 %v77
  %95 = vmatprep.subr.bf16.mxu0 0
  %96 = vmatpush1.bf16.msra.mxu0 %v78
  %97 = vmatprep.subr.bf16.mxu0 0
  %98 = vmatpush1.bf16.msra.mxu0 %v79
  %99 = vmatprep.subr.bf16.mxu0 0
  %100 = vmatpush1.bf16.msra.mxu0 %v80
  %101 = vmatprep.subr.bf16.mxu0 0
  %102 = vmatpush1.bf16.msra.mxu0 %v81
  %103 = vmatprep.subr.bf16.mxu0 0
  %104 = vmatpush1.bf16.msra.mxu0 %v82
  %105 = vmatprep.subr.bf16.mxu0 0
  %106 = vmatpush1.bf16.msra.mxu0 %v83
  %107 = vmatprep.subr.bf16.mxu0 0
  %108 = vmatpush1.bf16.msra.mxu0 %v84
  %109 = vmatprep.subr.bf16.mxu0 0
  %110 = vmatpush1.bf16.msra.mxu0 0
  %111 = vmatprep.subr.bf16.mxu0 0
  %112 = vmatpush1.bf16.msra.mxu0 0
  %113 = vmatprep.subr.bf16.mxu0 0
  %114 = vmatpush1.bf16.msra.mxu0 0
  %115 = vmatprep.subr.bf16.mxu0 0
  %116 = vmatpush1.bf16.msra.mxu0 0
  %117 = vmatprep.subr.bf16.mxu0 0
  %118 = vmatpush1.bf16.msra.mxu0 0
  %119 = vmatprep.subr.bf16.mxu0 0
  %120 = vmatpush1.bf16.msra.mxu0 0
  %121 = vmatprep.subr.bf16.mxu0 0
  %122 = vmatpush1.bf16.msra.mxu0 0
  %123 = vmatprep.subr.bf16.mxu0 0
  %124 = vmatpush1.bf16.msra.mxu0 0
  %125 = vmatprep.mubr.bf16.mxu0 0
  %126 = vmatmul.mubr.bf16.gmra.mrb[0].mxu0 %v21
  %v127 = vpop.f32.mrb[0].mxu0
  %v128 = vadd.f32 %v43, %v127
  %v129 = vpop.f32.mrb[0].mxu0
  %v130 = vpop.f32.mrb[0].mxu0
  %v131 = vpop.f32.mrb[0].mxu0
  %132 = vdwg.mxu0
  %v133 = vmax.f32 %v128, 0.0
  %v134 = vpack.c.bf16 %v133, %v133
  %v135 = vld [vmem:[%s3] sm:$0xf]
  %v136 = vld [vmem:[%s3 + $0x4] sm:$0xf]
  %v137 = vld [vmem:[%s3 + $0x8] sm:$0xf]
  %v138 = vld [vmem:[%s3 + $0xc] sm:$0xf]
  %v139 = vld [vmem:[%s3 + $0x10] sm:$0xf]
  %v140 = vld [vmem:[%s3 + $0x14] sm:$0xf]
  %v141 = vld [vmem:[%s3 + $0x18] sm:$0xf]
  %v142 = vld [vmem:[%s3 + $0x1c] sm:$0xf]
  %v143 = vld [vmem:[%s3 + $0x20] sm:$0xf]
  %v144 = vld [vmem:[%s3 + $0x24] sm:$0xf]
  %v145 = vld [vmem:[%s3 + $0x28] sm:$0xf]
  %v146 = vld [vmem:[%s3 + $0x2c] sm:$0xf]
  %v147 = vld [vmem:[%s3 + $0x30] sm:$0xf]
  %v148 = vld [vmem:[%s3 + $0x34] sm:$0xf]
  %v149 = vld [vmem:[%s3 + $0x38] sm:$0xf]
  %v150 = vld [vmem:[%s3 + $0x3c] sm:$0xf]
  %v151 = vld [vmem:[%s4] sm:$0x1]
  %v153 = vlaneseq
  %v154 = vshrl.u32 %v153, 7
  %v155 = vsub.s32 0, %v154
  %v156 = vrot.slane %v151, %v155
  %v174 = vunpack.c.l.b16 %v135
  %v175 = vunpack.c.l.b16 %v136
  %v176 = vunpack.c.l.b16 %v137
  %v177 = vunpack.c.l.b16 %v138
  %v178 = vunpack.c.l.b16 %v139
  %v179 = vunpack.c.l.b16 %v140
  %v180 = vunpack.c.l.b16 %v141
  %v181 = vunpack.c.l.b16 %v142
  %v182 = vunpack.c.l.b16 %v143
  %v183 = vunpack.c.l.b16 %v144
  %v184 = vunpack.c.l.b16 %v145
  %v185 = vunpack.c.l.b16 %v146
  %v186 = vunpack.c.l.b16 %v147
  %v187 = vunpack.c.l.b16 %v148
  %v188 = vunpack.c.l.b16 %v149
  %v189 = vunpack.c.l.b16 %v150
  %v190 = vpack.c.b16 %v175, %v174
  %v191 = vpack.c.b16 %v177, %v176
  %v192 = vpack.c.b16 %v179, %v178
  %v193 = vpack.c.b16 %v181, %v180
  %v194 = vpack.c.b16 %v183, %v182
  %v195 = vpack.c.b16 %v185, %v184
  %v196 = vpack.c.b16 %v187, %v186
  %v197 = vpack.c.b16 %v189, %v188
  %206 = vmatprep.subr.bf16.mxu0 0
  %207 = vmatpush1.bf16.msra.mxu0 %v190
  %208 = vmatprep.subr.bf16.mxu0 0
  %209 = vmatpush1.bf16.msra.mxu0 %v191
  %210 = vmatprep.subr.bf16.mxu0 0
  %211 = vmatpush1.bf16.msra.mxu0 %v192
  %212 = vmatprep.subr.bf16.mxu0 0
  %213 = vmatpush1.bf16.msra.mxu0 %v193
  %214 = vmatprep.subr.bf16.mxu0 0
  %215 = vmatpush1.bf16.msra.mxu0 %v194
  %216 = vmatprep.subr.bf16.mxu0 0
  %217 = vmatpush1.bf16.msra.mxu0 %v195
  %218 = vmatprep.subr.bf16.mxu0 0
  %219 = vmatpush1.bf16.msra.mxu0 %v196
  %220 = vmatprep.subr.bf16.mxu0 0
  %221 = vmatpush1.bf16.msra.mxu0 %v197
  %222 = vmatprep.subr.bf16.mxu0 0
  %223 = vmatpush1.bf16.msra.mxu0 0
  %224 = vmatprep.subr.bf16.mxu0 0
  %225 = vmatpush1.bf16.msra.mxu0 0
  %226 = vmatprep.subr.bf16.mxu0 0
  %227 = vmatpush1.bf16.msra.mxu0 0
  %228 = vmatprep.subr.bf16.mxu0 0
  %229 = vmatpush1.bf16.msra.mxu0 0
  %230 = vmatprep.subr.bf16.mxu0 0
  %231 = vmatpush1.bf16.msra.mxu0 0
  %232 = vmatprep.subr.bf16.mxu0 0
  %233 = vmatpush1.bf16.msra.mxu0 0
  %234 = vmatprep.subr.bf16.mxu0 0
  %235 = vmatpush1.bf16.msra.mxu0 0
  %236 = vmatprep.subr.bf16.mxu0 0
  %237 = vmatpush1.bf16.msra.mxu0 0
  %238 = vmatprep.mubr.bf16.mxu0 0
  %239 = vmatmul.mubr.bf16.gmra.mrb[0].mxu0 %v134
  %v240 = vpop.f32.mrb[0].mxu0
  %v241 = vadd.f32 %v156, %v240
  %v242 = vpop.f32.mrb[0].mxu0
  %v243 = vpop.f32.mrb[0].mxu0
  %v244 = vpop.f32.mrb[0].mxu0
  %245 = vdwg.mxu0
  %v246 = vmax.f32 %v241, 0.0
  %v247 = vld [vmem:[%s0 + $0x4] sm:$0xf]
  %248 = vmatprep.subr.bf16.mxu0 0
  %249 = vmatpush1.bf16.msra.mxu0 %v77
  %250 = vmatprep.subr.bf16.mxu0 0
  %251 = vmatpush1.bf16.msra.mxu0 %v78
  %252 = vmatprep.subr.bf16.mxu0 0
  %253 = vmatpush1.bf16.msra.mxu0 %v79
  %254 = vmatprep.subr.bf16.mxu0 0
  %255 = vmatpush1.bf16.msra.mxu0 %v80
  %256 = vmatprep.subr.bf16.mxu0 0
  %257 = vmatpush1.bf16.msra.mxu0 %v81
  %258 = vmatprep.subr.bf16.mxu0 0
  %259 = vmatpush1.bf16.msra.mxu0 %v82
  %260 = vmatprep.subr.bf16.mxu0 0
  %261 = vmatpush1.bf16.msra.mxu0 %v83
  %262 = vmatprep.subr.bf16.mxu0 0
  %263 = vmatpush1.bf16.msra.mxu0 %v84
  %264 = vmatprep.subr.bf16.mxu0 0
  %265 = vmatpush1.bf16.msra.mxu0 0
  %266 = vmatprep.subr.bf16.mxu0 0
  %267 = vmatpush1.bf16.msra.mxu0 0
  %268 = vmatprep.subr.bf16.mxu0 0
  %269 = vmatpush1.bf16.msra.mxu0 0
  %270 = vmatprep.subr.bf16.mxu0 0
  %271 = vmatpush1.bf16.msra.mxu0 0
  %272 = vmatprep.subr.bf16.mxu0 0
  %273 = vmatpush1.bf16.msra.mxu0 0
  %274 = vmatprep.subr.bf16.mxu0 0
  %275 = vmatpush1.bf16.msra.mxu0 0
  %276 = vmatprep.subr.bf16.mxu0 0
  %277 = vmatpush1.bf16.msra.mxu0 0
  %278 = vmatprep.subr.bf16.mxu0 0
  %279 = vmatpush1.bf16.msra.mxu0 0
  %280 = vmatprep.mubr.bf16.mxu0 0
  %281 = vmatmul.mubr.bf16.gmra.mrb[0].mxu0 %v247
  %v282 = vpop.f32.mrb[0].mxu0
  %v283 = vadd.f32 %v43, %v282
  %v284 = vpop.f32.mrb[0].mxu0
  %v285 = vpop.f32.mrb[0].mxu0
  %v286 = vpop.f32.mrb[0].mxu0
  %287 = vdwg.mxu0
  %v288 = vmax.f32 %v283, 0.0
  %v289 = vpack.c.bf16 %v288, %v288
  %290 = vmatprep.subr.bf16.mxu0 0
  %291 = vmatpush1.bf16.msra.mxu0 %v190
  %292 = vmatprep.subr.bf16.mxu0 0
  %293 = vmatpush1.bf16.msra.mxu0 %v191
  %294 = vmatprep.subr.bf16.mxu0 0
  %295 = vmatpush1.bf16.msra.mxu0 %v192
  %296 = vmatprep.subr.bf16.mxu0 0
  %297 = vmatpush1.bf16.msra.mxu0 %v193
  %298 = vmatprep.subr.bf16.mxu0 0
  %299 = vmatpush1.bf16.msra.mxu0 %v194
  %300 = vmatprep.subr.bf16.mxu0 0
  %301 = vmatpush1.bf16.msra.mxu0 %v195
  %302 = vmatprep.subr.bf16.mxu0 0
  %303 = vmatpush1.bf16.msra.mxu0 %v196
  %304 = vmatprep.subr.bf16.mxu0 0
  %305 = vmatpush1.bf16.msra.mxu0 %v197
  %306 = vmatprep.subr.bf16.mxu0 0
  %307 = vmatpush1.bf16.msra.mxu0 0
  %308 = vmatprep.subr.bf16.mxu0 0
  %309 = vmatpush1.bf16.msra.mxu0 0
  %310 = vmatprep.subr.bf16.mxu0 0
  %311 = vmatpush1.bf16.msra.mxu0 0
  %312 = vmatprep.subr.bf16.mxu0 0
  %313 = vmatpush1.bf16.msra.mxu0 0
  %314 = vmatprep.subr.bf16.mxu0 0
  %315 = vmatpush1.bf16.msra.mxu0 0
  %316 = vmatprep.subr.bf16.mxu0 0
  %317 = vmatpush1.bf16.msra.mxu0 0
  %318 = vmatprep.subr.bf16.mxu0 0
  %319 = vmatpush1.bf16.msra.mxu0 0
  %320 = vmatprep.subr.bf16.mxu0 0
  %321 = vmatpush1.bf16.msra.mxu0 0
  %322 = vmatprep.mubr.bf16.mxu0 0
  %323 = vmatmul.mubr.bf16.gmra.mrb[0].mxu0 %v289
  %v324 = vpop.f32.mrb[0].mxu0
  %v325 = vadd.f32 %v156, %v324
  %v326 = vpop.f32.mrb[0].mxu0
  %v327 = vpop.f32.mrb[0].mxu0
  %v328 = vpop.f32.mrb[0].mxu0
  %329 = vdwg.mxu0
  %v330 = vmax.f32 %v325, 0.0
  %v331 = vadd.f32 %v246, %v330
  %v332 = vld [vmem:[%s0 + $0x8] sm:$0xf]
  %333 = vmatprep.subr.bf16.mxu0 0
  %334 = vmatpush1.bf16.msra.mxu0 %v77
  %335 = vmatprep.subr.bf16.mxu0 0
  %336 = vmatpush1.bf16.msra.mxu0 %v78
  %337 = vmatprep.subr.bf16.mxu0 0
  %338 = vmatpush1.bf16.msra.mxu0 %v79
  %339 = vmatprep.subr.bf16.mxu0 0
  %340 = vmatpush1.bf16.msra.mxu0 %v80
  %341 = vmatprep.subr.bf16.mxu0 0
  %342 = vmatpush1.bf16.msra.mxu0 %v81
  %343 = vmatprep.subr.bf16.mxu0 0
  %344 = vmatpush1.bf16.msra.mxu0 %v82
  %345 = vmatprep.subr.bf16.mxu0 0
  %346 = vmatpush1.bf16.msra.mxu0 %v83
  %347 = vmatprep.subr.bf16.mxu0 0
  %348 = vmatpush1.bf16.msra.mxu0 %v84
  %349 = vmatprep.subr.bf16.mxu0 0
  %350 = vmatpush1.bf16.msra.mxu0 0
  %351 = vmatprep.subr.bf16.mxu0 0
  %352 = vmatpush1.bf16.msra.mxu0 0
  %353 = vmatprep.subr.bf16.mxu0 0
  %354 = vmatpush1.bf16.msra.mxu0 0
  %355 = vmatprep.subr.bf16.mxu0 0
  %356 = vmatpush1.bf16.msra.mxu0 0
  %357 = vmatprep.subr.bf16.mxu0 0
  %358 = vmatpush1.bf16.msra.mxu0 0
  %359 = vmatprep.subr.bf16.mxu0 0
  %360 = vmatpush1.bf16.msra.mxu0 0
  %361 = vmatprep.subr.bf16.mxu0 0
  %362 = vmatpush1.bf16.msra.mxu0 0
  %363 = vmatprep.subr.bf16.mxu0 0
  %364 = vmatpush1.bf16.msra.mxu0 0
  %365 = vmatprep.mubr.bf16.mxu0 0
  %366 = vmatmul.mubr.bf16.gmra.mrb[0].mxu0 %v332
  %v367 = vpop.f32.mrb[0].mxu0
  %v368 = vadd.f32 %v43, %v367
  %v369 = vpop.f32.mrb[0].mxu0
  %v370 = vpop.f32.mrb[0].mxu0
  %v371 = vpop.f32.mrb[0].mxu0
  %372 = vdwg.mxu0
  %v373 = vmax.f32 %v368, 0.0
  %v374 = vpack.c.bf16 %v373, %v373
  %375 = vmatprep.subr.bf16.mxu0 0
  %376 = vmatpush1.bf16.msra.mxu0 %v190
  %377 = vmatprep.subr.bf16.mxu0 0
  %378 = vmatpush1.bf16.msra.mxu0 %v191
  %379 = vmatprep.subr.bf16.mxu0 0
  %380 = vmatpush1.bf16.msra.mxu0 %v192
  %381 = vmatprep.subr.bf16.mxu0 0
  %382 = vmatpush1.bf16.msra.mxu0 %v193
  %383 = vmatprep.subr.bf16.mxu0 0
  %384 = vmatpush1.bf16.msra.mxu0 %v194
  %385 = vmatprep.subr.bf16.mxu0 0
  %386 = vmatpush1.bf16.msra.mxu0 %v195
  %387 = vmatprep.subr.bf16.mxu0 0
  %388 = vmatpush1.bf16.msra.mxu0 %v196
  %389 = vmatprep.subr.bf16.mxu0 0
  %390 = vmatpush1.bf16.msra.mxu0 %v197
  %391 = vmatprep.subr.bf16.mxu0 0
  %392 = vmatpush1.bf16.msra.mxu0 0
  %393 = vmatprep.subr.bf16.mxu0 0
  %394 = vmatpush1.bf16.msra.mxu0 0
  %395 = vmatprep.subr.bf16.mxu0 0
  %396 = vmatpush1.bf16.msra.mxu0 0
  %397 = vmatprep.subr.bf16.mxu0 0
  %398 = vmatpush1.bf16.msra.mxu0 0
  %399 = vmatprep.subr.bf16.mxu0 0
  %400 = vmatpush1.bf16.msra.mxu0 0
  %401 = vmatprep.subr.bf16.mxu0 0
  %402 = vmatpush1.bf16.msra.mxu0 0
  %403 = vmatprep.subr.bf16.mxu0 0
  %404 = vmatpush1.bf16.msra.mxu0 0
  %405 = vmatprep.subr.bf16.mxu0 0
  %406 = vmatpush1.bf16.msra.mxu0 0
  %407 = vmatprep.mubr.bf16.mxu0 0
  %408 = vmatmul.mubr.bf16.gmra.mrb[0].mxu0 %v374
  %v409 = vpop.f32.mrb[0].mxu0
  %v410 = vadd.f32 %v156, %v409
  %v411 = vpop.f32.mrb[0].mxu0
  %v412 = vpop.f32.mrb[0].mxu0
  %v413 = vpop.f32.mrb[0].mxu0
  %414 = vdwg.mxu0
  %v415 = vmax.f32 %v410, 0.0
  %v416 = vadd.f32 %v331, %v415
  %v417 = vld [vmem:[%s0 + $0xc] sm:$0xf]
  %418 = vmatprep.subr.bf16.mxu0 0
  %419 = vmatpush1.bf16.msra.mxu0 %v77
  %420 = vmatprep.subr.bf16.mxu0 0
  %421 = vmatpush1.bf16.msra.mxu0 %v78
  %422 = vmatprep.subr.bf16.mxu0 0
  %423 = vmatpush1.bf16.msra.mxu0 %v79
  %424 = vmatprep.subr.bf16.mxu0 0
  %425 = vmatpush1.bf16.msra.mxu0 %v80
  %426 = vmatprep.subr.bf16.mxu0 0
  %427 = vmatpush1.bf16.msra.mxu0 %v81
  %428 = vmatprep.subr.bf16.mxu0 0
  %429 = vmatpush1.bf16.msra.mxu0 %v82
  %430 = vmatprep.subr.bf16.mxu0 0
  %431 = vmatpush1.bf16.msra.mxu0 %v83
  %432 = vmatprep.subr.bf16.mxu0 0
  %433 = vmatpush1.bf16.msra.mxu0 %v84
  %434 = vmatprep.subr.bf16.mxu0 0
  %435 = vmatpush1.bf16.msra.mxu0 0
  %436 = vmatprep.subr.bf16.mxu0 0
  %437 = vmatpush1.bf16.msra.mxu0 0
  %438 = vmatprep.subr.bf16.mxu0 0
  %439 = vmatpush1.bf16.msra.mxu0 0
  %440 = vmatprep.subr.bf16.mxu0 0
  %441 = vmatpush1.bf16.msra.mxu0 0
  %442 = vmatprep.subr.bf16.mxu0 0
  %443 = vmatpush1.bf16.msra.mxu0 0
  %444 = vmatprep.subr.bf16.mxu0 0
  %445 = vmatpush1.bf16.msra.mxu0 0
  %446 = vmatprep.subr.bf16.mxu0 0
  %447 = vmatpush1.bf16.msra.mxu0 0
  %448 = vmatprep.subr.bf16.mxu0 0
  %449 = vmatpush1.bf16.msra.mxu0 0
  %450 = vmatprep.mubr.bf16.mxu0 0
  %451 = vmatmul.mubr.bf16.gmra.mrb[0].mxu0 %v417
  %v452 = vpop.f32.mrb[0].mxu0
  %v453 = vadd.f32 %v43, %v452
  %v454 = vpop.f32.mrb[0].mxu0
  %v455 = vpop.f32.mrb[0].mxu0
  %v456 = vpop.f32.mrb[0].mxu0
  %457 = vdwg.mxu0
  %v458 = vmax.f32 %v453, 0.0
  %v459 = vpack.c.bf16 %v458, %v458
  %460 = vmatprep.subr.bf16.mxu0 0
  %461 = vmatpush1.bf16.msra.mxu0 %v190
  %462 = vmatprep.subr.bf16.mxu0 0
  %463 = vmatpush1.bf16.msra.mxu0 %v191
  %464 = vmatprep.subr.bf16.mxu0 0
  %465 = vmatpush1.bf16.msra.mxu0 %v192
  %466 = vmatprep.subr.bf16.mxu0 0
  %467 = vmatpush1.bf16.msra.mxu0 %v193
  %468 = vmatprep.subr.bf16.mxu0 0
  %469 = vmatpush1.bf16.msra.mxu0 %v194
  %470 = vmatprep.subr.bf16.mxu0 0
  %471 = vmatpush1.bf16.msra.mxu0 %v195
  %472 = vmatprep.subr.bf16.mxu0 0
  %473 = vmatpush1.bf16.msra.mxu0 %v196
  %474 = vmatprep.subr.bf16.mxu0 0
  %475 = vmatpush1.bf16.msra.mxu0 %v197
  %476 = vmatprep.subr.bf16.mxu0 0
  %477 = vmatpush1.bf16.msra.mxu0 0
  %478 = vmatprep.subr.bf16.mxu0 0
  %479 = vmatpush1.bf16.msra.mxu0 0
  %480 = vmatprep.subr.bf16.mxu0 0
  %481 = vmatpush1.bf16.msra.mxu0 0
  %482 = vmatprep.subr.bf16.mxu0 0
  %483 = vmatpush1.bf16.msra.mxu0 0
  %484 = vmatprep.subr.bf16.mxu0 0
  %485 = vmatpush1.bf16.msra.mxu0 0
  %486 = vmatprep.subr.bf16.mxu0 0
  %487 = vmatpush1.bf16.msra.mxu0 0
  %488 = vmatprep.subr.bf16.mxu0 0
  %489 = vmatpush1.bf16.msra.mxu0 0
  %490 = vmatprep.subr.bf16.mxu0 0
  %491 = vmatpush1.bf16.msra.mxu0 0
  %492 = vmatprep.mubr.bf16.mxu0 0
  %493 = vmatmul.mubr.bf16.gmra.mrb[0].mxu0 %v459
  %v494 = vpop.f32.mrb[0].mxu0
  %v495 = vadd.f32 %v156, %v494
  %v496 = vpop.f32.mrb[0].mxu0
  %v497 = vpop.f32.mrb[0].mxu0
  %v498 = vpop.f32.mrb[0].mxu0
  %499 = vdwg.mxu0
  %v500 = vmax.f32 %v495, 0.0
  %v501 = vadd.f32 %v416, %v500
  %v502 = vmul.f32 %v501, 0.25
  %v503 = vpack.c.bf16 %v502, %v502
  %504 = vst [vmem:[%s5] sm:$0xf] %v503
  // Predicated region
  $region22: #{osnet_forward.9} parent=0 // pred_check
    _
  $region23: #{osnet_forward.9} parent=0 // pred_check_branch
    %506 = sbr.rel (0) target = $region25
  $region24: #{osnet_forward.9} parent=0 // pred_region
    _
  $region25: #{osnet_forward.9} parent=0 // pred_fallthru
    _
  // Predicated region
  $region26: #{osnet_forward.9} parent=0 // pred_check
    _
  $region27: #{osnet_forward.9} parent=0 // pred_check_branch
    %508 = sbr.rel (0) target = $region29
  $region28: #{osnet_forward.9} parent=0 // pred_region
    _
  $region29: #{osnet_forward.9} parent=0 // pred_fallthru
    _

// kernel: osnet_forward.10
$region0: #{osnet_forward.10}
  #allocation0 [shape = 'u32[]', space=smem, size = 0x4, offset = 0x4, fixed_abs, tag = 'smem constant byte address 0x4 - core index']
  #allocation1 [shape = 'u32[144,128]{1,0:T(1,128)}', space=vmem, size = 0x12000, scoped, tag = 'internal scratch']
  %s0 = inlined_call_operand.vmem [shape: bf16[8,128], index: 0, kind: input, shape index: {}]
  %s1 = inlined_call_operand.vmem [shape: bf16[128,128], index: 1, kind: input, shape index: {}]
  %s2 = inlined_call_operand.vmem [shape: f32[1,128], index: 2, kind: input, shape index: {}]
  %s3 = inlined_call_operand.vmem [shape: bf16[128,128], index: 3, kind: input, shape index: {}]
  %s4 = inlined_call_operand.vmem [shape: f32[1,128], index: 4, kind: input, shape index: {}]
  %s5 = inlined_call_operand.vmem [shape: bf16[8,128], index: 5, kind: output, shape index: {}]
  %s6 = sld [smem:[#allocation0]]
  $region30: #{osnet_forward.10} parent=0
    _
  %s8 = ssub.s32 1, %s6
  %s9 = scalar_select 0, %s8, %s6
  // Predicated region
  $region2: #{osnet_forward.10} parent=0 // pred_check
    _
  $region3: #{osnet_forward.10} parent=0 // pred_check_branch
    %11 = sbr.rel (0) target = $region5
  $region4: #{osnet_forward.10} parent=0 // pred_region
    _
  $region5: #{osnet_forward.10} parent=0 // pred_fallthru
    _
  // Predicated region
  $region6: #{osnet_forward.10} parent=0 // pred_check
    _
  $region7: #{osnet_forward.10} parent=0 // pred_check_branch
    %13 = sbr.rel (0) target = $region9
  $region8: #{osnet_forward.10} parent=0 // pred_region
    _
  $region9: #{osnet_forward.10} parent=0 // pred_fallthru
    _
  // Predicated region
  $region10: #{osnet_forward.10} parent=0 // pred_check
    _
  $region11: #{osnet_forward.10} parent=0 // pred_check_branch
    %15 = sbr.rel (0) target = $region13
  $region12: #{osnet_forward.10} parent=0 // pred_region
    _
  $region13: #{osnet_forward.10} parent=0 // pred_fallthru
    _
  // Predicated region
  $region14: #{osnet_forward.10} parent=0 // pred_check
    _
  $region15: #{osnet_forward.10} parent=0 // pred_check_branch
    %17 = sbr.rel (0) target = $region17
  $region16: #{osnet_forward.10} parent=0 // pred_region
    _
  $region17: #{osnet_forward.10} parent=0 // pred_fallthru
    _
  // Predicated region
  $region18: #{osnet_forward.10} parent=0 // pred_check
    _
  $region19: #{osnet_forward.10} parent=0 // pred_check_branch
    %19 = sbr.rel (0) target = $region21
  $region20: #{osnet_forward.10} parent=0 // pred_region
    _
  $region21: #{osnet_forward.10} parent=0 // pred_fallthru
    _
  %v21 = vld [vmem:[%s0] sm:$0xf]
  %v22 = vld [vmem:[%s1] sm:$0xf]
  %v23 = vld [vmem:[%s1 + $0x4] sm:$0xf]
  %v24 = vld [vmem:[%s1 + $0x8] sm:$0xf]
  %v25 = vld [vmem:[%s1 + $0xc] sm:$0xf]
  %v26 = vld [vmem:[%s1 + $0x10] sm:$0xf]
  %v27 = vld [vmem:[%s1 + $0x14] sm:$0xf]
  %v28 = vld [vmem:[%s1 + $0x18] sm:$0xf]
  %v29 = vld [vmem:[%s1 + $0x1c] sm:$0xf]
  %v30 = vld [vmem:[%s1 + $0x20] sm:$0xf]
  %v31 = vld [vmem:[%s1 + $0x24] sm:$0xf]
  %v32 = vld [vmem:[%s1 + $0x28] sm:$0xf]
  %v33 = vld [vmem:[%s1 + $0x2c] sm:$0xf]
  %v34 = vld [vmem:[%s1 + $0x30] sm:$0xf]
  %v35 = vld [vmem:[%s1 + $0x34] sm:$0xf]
  %v36 = vld [vmem:[%s1 + $0x38] sm:$0xf]
  %v37 = vld [vmem:[%s1 + $0x3c] sm:$0xf]
  %v38 = vld [vmem:[%s2] sm:$0x1]
  %v40 = vlaneseq
  %v41 = vshrl.u32 %v40, 7
  %v42 = vsub.s32 0, %v41
  %v43 = vrot.slane %v38, %v42
  %v61 = vunpack.c.l.b16 %v22
  %v62 = vunpack.c.l.b16 %v23
  %v63 = vunpack.c.l.b16 %v24
  %v64 = vunpack.c.l.b16 %v25
  %v65 = vunpack.c.l.b16 %v26
  %v66 = vunpack.c.l.b16 %v27
  %v67 = vunpack.c.l.b16 %v28
  %v68 = vunpack.c.l.b16 %v29
  %v69 = vunpack.c.l.b16 %v30
  %v70 = vunpack.c.l.b16 %v31
  %v71 = vunpack.c.l.b16 %v32
  %v72 = vunpack.c.l.b16 %v33
  %v73 = vunpack.c.l.b16 %v34
  %v74 = vunpack.c.l.b16 %v35
  %v75 = vunpack.c.l.b16 %v36
  %v76 = vunpack.c.l.b16 %v37
  %v77 = vpack.c.b16 %v62, %v61
  %v78 = vpack.c.b16 %v64, %v63
  %v79 = vpack.c.b16 %v66, %v65
  %v80 = vpack.c.b16 %v68, %v67
  %v81 = vpack.c.b16 %v70, %v69
  %v82 = vpack.c.b16 %v72, %v71
  %v83 = vpack.c.b16 %v74, %v73
  %v84 = vpack.c.b16 %v76, %v75
  %93 = vmatprep.subr.bf16.mxu0 0
  %94 = vmatpush1.bf16.msra.mxu0 %v77
  %95 = vmatprep.subr.bf16.mxu0 0
  %96 = vmatpush1.bf16.msra.mxu0 %v78
  %97 = vmatprep.subr.bf16.mxu0 0
  %98 = vmatpush1.bf16.msra.mxu0 %v79
  %99 = vmatprep.subr.bf16.mxu0 0
  %100 = vmatpush1.bf16.msra.mxu0 %v80
  %101 = vmatprep.subr.bf16.mxu0 0
  %102 = vmatpush1.bf16.msra.mxu0 %v81
  %103 = vmatprep.subr.bf16.mxu0 0
  %104 = vmatpush1.bf16.msra.mxu0 %v82
  %105 = vmatprep.subr.bf16.mxu0 0
  %106 = vmatpush1.bf16.msra.mxu0 %v83
  %107 = vmatprep.subr.bf16.mxu0 0
  %108 = vmatpush1.bf16.msra.mxu0 %v84
  %109 = vmatprep.subr.bf16.mxu0 0
  %110 = vmatpush1.bf16.msra.mxu0 0
  %111 = vmatprep.subr.bf16.mxu0 0
  %112 = vmatpush1.bf16.msra.mxu0 0
  %113 = vmatprep.subr.bf16.mxu0 0
  %114 = vmatpush1.bf16.msra.mxu0 0
  %115 = vmatprep.subr.bf16.mxu0 0
  %116 = vmatpush1.bf16.msra.mxu0 0
  %117 = vmatprep.subr.bf16.mxu0 0
  %118 = vmatpush1.bf16.msra.mxu0 0
  %119 = vmatprep.subr.bf16.mxu0 0
  %120 = vmatpush1.bf16.msra.mxu0 0
  %121 = vmatprep.subr.bf16.mxu0 0
  %122 = vmatpush1.bf16.msra.mxu0 0
  %123 = vmatprep.subr.bf16.mxu0 0
  %124 = vmatpush1.bf16.msra.mxu0 0
  %125 = vmatprep.mubr.bf16.mxu0 0
  %126 = vmatmul.mubr.bf16.gmra.mrb[0].mxu0 %v21
  %v127 = vpop.f32.mrb[0].mxu0
  %v128 = vadd.f32 %v43, %v127
  %v129 = vpop.f32.mrb[0].mxu0
  %v130 = vpop.f32.mrb[0].mxu0
  %v131 = vpop.f32.mrb[0].mxu0
  %132 = vdwg.mxu0
  %v133 = vmax.f32 %v128, 0.0
  %v134 = vpack.c.bf16 %v133, %v133
  %v135 = vld [vmem:[%s3] sm:$0xf]
  %v136 = vld [vmem:[%s3 + $0x4] sm:$0xf]
  %v137 = vld [vmem:[%s3 + $0x8] sm:$0xf]
  %v138 = vld [vmem:[%s3 + $0xc] sm:$0xf]
  %v139 = vld [vmem:[%s3 + $0x10] sm:$0xf]
  %v140 = vld [vmem:[%s3 + $0x14] sm:$0xf]
  %v141 = vld [vmem:[%s3 + $0x18] sm:$0xf]
  %v142 = vld [vmem:[%s3 + $0x1c] sm:$0xf]
  %v143 = vld [vmem:[%s3 + $0x20] sm:$0xf]
  %v144 = vld [vmem:[%s3 + $0x24] sm:$0xf]
  %v145 = vld [vmem:[%s3 + $0x28] sm:$0xf]
  %v146 = vld [vmem:[%s3 + $0x2c] sm:$0xf]
  %v147 = vld [vmem:[%s3 + $0x30] sm:$0xf]
  %v148 = vld [vmem:[%s3 + $0x34] sm:$0xf]
  %v149 = vld [vmem:[%s3 + $0x38] sm:$0xf]
  %v150 = vld [vmem:[%s3 + $0x3c] sm:$0xf]
  %v151 = vld [vmem:[%s4] sm:$0x1]
  %v153 = vlaneseq
  %v154 = vshrl.u32 %v153, 7
  %v155 = vsub.s32 0, %v154
  %v156 = vrot.slane %v151, %v155
  %v174 = vunpack.c.l.b16 %v135
  %v175 = vunpack.c.l.b16 %v136
  %v176 = vunpack.c.l.b16 %v137
  %v177 = vunpack.c.l.b16 %v138
  %v178 = vunpack.c.l.b16 %v139
  %v179 = vunpack.c.l.b16 %v140
  %v180 = vunpack.c.l.b16 %v141
  %v181 = vunpack.c.l.b16 %v142
  %v182 = vunpack.c.l.b16 %v143
  %v183 = vunpack.c.l.b16 %v144
  %v184 = vunpack.c.l.b16 %v145
  %v185 = vunpack.c.l.b16 %v146
  %v186 = vunpack.c.l.b16 %v147
  %v187 = vunpack.c.l.b16 %v148
  %v188 = vunpack.c.l.b16 %v149
  %v189 = vunpack.c.l.b16 %v150
  %v190 = vpack.c.b16 %v175, %v174
  %v191 = vpack.c.b16 %v177, %v176
  %v192 = vpack.c.b16 %v179, %v178
  %v193 = vpack.c.b16 %v181, %v180
  %v194 = vpack.c.b16 %v183, %v182
  %v195 = vpack.c.b16 %v185, %v184
  %v196 = vpack.c.b16 %v187, %v186
  %v197 = vpack.c.b16 %v189, %v188
  %206 = vmatprep.subr.bf16.mxu0 0
  %207 = vmatpush1.bf16.msra.mxu0 %v190
  %208 = vmatprep.subr.bf16.mxu0 0
  %209 = vmatpush1.bf16.msra.mxu0 %v191
  %210 = vmatprep.subr.bf16.mxu0 0
  %211 = vmatpush1.bf16.msra.mxu0 %v192
  %212 = vmatprep.subr.bf16.mxu0 0
  %213 = vmatpush1.bf16.msra.mxu0 %v193
  %214 = vmatprep.subr.bf16.mxu0 0
  %215 = vmatpush1.bf16.msra.mxu0 %v194
  %216 = vmatprep.subr.bf16.mxu0 0
  %217 = vmatpush1.bf16.msra.mxu0 %v195
  %218 = vmatprep.subr.bf16.mxu0 0
  %219 = vmatpush1.bf16.msra.mxu0 %v196
  %220 = vmatprep.subr.bf16.mxu0 0
  %221 = vmatpush1.bf16.msra.mxu0 %v197
  %222 = vmatprep.subr.bf16.mxu0 0
  %223 = vmatpush1.bf16.msra.mxu0 0
  %224 = vmatprep.subr.bf16.mxu0 0
  %225 = vmatpush1.bf16.msra.mxu0 0
  %226 = vmatprep.subr.bf16.mxu0 0
  %227 = vmatpush1.bf16.msra.mxu0 0
  %228 = vmatprep.subr.bf16.mxu0 0
  %229 = vmatpush1.bf16.msra.mxu0 0
  %230 = vmatprep.subr.bf16.mxu0 0
  %231 = vmatpush1.bf16.msra.mxu0 0
  %232 = vmatprep.subr.bf16.mxu0 0
  %233 = vmatpush1.bf16.msra.mxu0 0
  %234 = vmatprep.subr.bf16.mxu0 0
  %235 = vmatpush1.bf16.msra.mxu0 0
  %236 = vmatprep.subr.bf16.mxu0 0
  %237 = vmatpush1.bf16.msra.mxu0 0
  %238 = vmatprep.mubr.bf16.mxu0 0
  %239 = vmatmul.mubr.bf16.gmra.mrb[0].mxu0 %v134
  %v240 = vpop.f32.mrb[0].mxu0
  %v241 = vadd.f32 %v156, %v240
  %v242 = vpop.f32.mrb[0].mxu0
  %v243 = vpop.f32.mrb[0].mxu0
  %v244 = vpop.f32.mrb[0].mxu0
  %245 = vdwg.mxu0
  %v246 = vmax.f32 %v241, 0.0
  %v247 = vpack.c.bf16 %v246, %v246
  %248 = vst [vmem:[%s5] sm:$0xf] %v247
  // Predicated region
  $region22: #{osnet_forward.10} parent=0 // pred_check
    _
  $region23: #{osnet_forward.10} parent=0 // pred_check_branch
    %250 = sbr.rel (0) target = $region25
  $region24: #{osnet_forward.10} parent=0 // pred_region
    _
  $region25: #{osnet_forward.10} parent=0 // pred_fallthru
    _
  // Predicated region
  $region26: #{osnet_forward.10} parent=0 // pred_check
    _
  $region27: #{osnet_forward.10} parent=0 // pred_check_branch
    %252 = sbr.rel (0) target = $region29
  $region28: #{osnet_forward.10} parent=0 // pred_region
    _
  $region29: #{osnet_forward.10} parent=0 // pred_fallthru
    _

// kernel: osnet_forward.11
$region0: #{osnet_forward.11}
  #allocation0 [shape = 'u32[]', space=smem, size = 0x4, offset = 0x4, fixed_abs, tag = 'smem constant byte address 0x4 - core index']
  #allocation1 [shape = 'u32[144,128]{1,0:T(1,128)}', space=vmem, size = 0x12000, scoped, tag = 'internal scratch']
  %s0 = inlined_call_operand.vmem [shape: bf16[2,4,128], index: 0, kind: input, shape index: {}]
  %s1 = inlined_call_operand.vmem [shape: bf16[128,128], index: 1, kind: input, shape index: {}]
  %s2 = inlined_call_operand.vmem [shape: f32[1,128], index: 2, kind: input, shape index: {}]
  %s3 = inlined_call_operand.vmem [shape: bf16[128,128], index: 3, kind: input, shape index: {}]
  %s4 = inlined_call_operand.vmem [shape: f32[1,128], index: 4, kind: input, shape index: {}]
  %s5 = inlined_call_operand.hbm [shape: f32[2,128], index: 5, kind: output, shape index: {}]
  %s6 = sld [smem:[#allocation0]]
  $region30: #{osnet_forward.11} parent=0
    _
  %s8 = ssub.s32 1, %s6
  %s9 = scalar_select 0, %s8, %s6
  $region1: #{osnet_forward.11} parent=0
    #allocation2 [shape = 'u8[1024]{0}', space=vmem, size = 0x400, scoped, tag = 'output window, operand 0, single buffered']
    #allocation3 [shape = 's32[1]{0}', space=sflag, size = 0x4, scoped, tag = 'scoped memory for osnet_forward.11']
    %10 = vsyncpa [#allocation3], 0
    // Predicated region
    $region2: #{osnet_forward.11} parent=1 // pred_check
      _
    $region3: #{osnet_forward.11} parent=1 // pred_check_branch
      %12 = sbr.rel (0) target = $region5
    $region4: #{osnet_forward.11} parent=1 // pred_region
      _
    $region5: #{osnet_forward.11} parent=1 // pred_fallthru
      _
    // Predicated region
    $region6: #{osnet_forward.11} parent=1 // pred_check
      _
    $region7: #{osnet_forward.11} parent=1 // pred_check_branch
      %14 = sbr.rel (0) target = $region9
    $region8: #{osnet_forward.11} parent=1 // pred_region
      _
    $region9: #{osnet_forward.11} parent=1 // pred_fallthru
      _
    // Predicated region
    $region10: #{osnet_forward.11} parent=1 // pred_check
      _
    $region11: #{osnet_forward.11} parent=1 // pred_check_branch
      %16 = sbr.rel (0) target = $region13
    $region12: #{osnet_forward.11} parent=1 // pred_region
      _
    $region13: #{osnet_forward.11} parent=1 // pred_fallthru
      _
    // Predicated region
    $region14: #{osnet_forward.11} parent=1 // pred_check
      _
    $region15: #{osnet_forward.11} parent=1 // pred_check_branch
      %18 = sbr.rel (0) target = $region17
    $region16: #{osnet_forward.11} parent=1 // pred_region
      _
    $region17: #{osnet_forward.11} parent=1 // pred_fallthru
      _
    // Predicated region
    $region18: #{osnet_forward.11} parent=1 // pred_check
      _
    $region19: #{osnet_forward.11} parent=1 // pred_check_branch
      %20 = sbr.rel (0) target = $region21
    $region20: #{osnet_forward.11} parent=1 // pred_region
      _
    $region21: #{osnet_forward.11} parent=1 // pred_fallthru
      _
    %v22 = vld [vmem:[%s0] sm:$0x3]
    %v23 = vld [vmem:[%s0 + $0x2] sm:$0x3]
    %v24 = vunpack.c.l.bf16 %v22
    %v25 = vunpack.c.l.bf16 %v23
    %vm26 = vcmask 1043456
    %v27 = vsel %vm26, %v24, 0.0
    %v28 = vrot.slane %v27, 4
    %v29 = vadd.f32 %v27, %v28
    %v30 = vrot.slane %v29, 2
    %v31 = vadd.f32 %v29, %v30
    %v32 = vrot.slane %v31, 1
    %v33 = vadd.f32 %v31, %v32
    %v34 = vsel %vm26, %v25, 0.0
    %v35 = vrot.slane %v34, 4
    %v36 = vadd.f32 %v34, %v35
    %v37 = vrot.slane %v36, 2
    %v38 = vadd.f32 %v36, %v37
    %v39 = vrot.slane %v38, 1
    %v40 = vadd.f32 %v38, %v39
    %v41 = vmul.f32 %v33, 0.25
    %v42 = vmul.f32 %v40, 0.25
    %v43 = vpack.c.bf16 %v41, %v41
    %v44 = vpack.c.bf16 %v42, %v42
    %v45 = vld [vmem:[%s1] sm:$0xf]
    %v46 = vld [vmem:[%s1 + $0x4] sm:$0xf]
    %v47 = vld [vmem:[%s1 + $0x8] sm:$0xf]
    %v48 = vld [vmem:[%s1 + $0xc] sm:$0xf]
    %v49 = vld [vmem:[%s1 + $0x10] sm:$0xf]
    %v50 = vld [vmem:[%s1 + $0x14] sm:$0xf]
    %v51 = vld [vmem:[%s1 + $0x18] sm:$0xf]
    %v52 = vld [vmem:[%s1 + $0x1c] sm:$0xf]
    %v53 = vld [vmem:[%s1 + $0x20] sm:$0xf]
    %v54 = vld [vmem:[%s1 + $0x24] sm:$0xf]
    %v55 = vld [vmem:[%s1 + $0x28] sm:$0xf]
    %v56 = vld [vmem:[%s1 + $0x2c] sm:$0xf]
    %v57 = vld [vmem:[%s1 + $0x30] sm:$0xf]
    %v58 = vld [vmem:[%s1 + $0x34] sm:$0xf]
    %v59 = vld [vmem:[%s1 + $0x38] sm:$0xf]
    %v60 = vld [vmem:[%s1 + $0x3c] sm:$0xf]
    %v61 = vld [vmem:[%s2] sm:$0x1]
    %v63 = vlaneseq
    %v64 = vshrl.u32 %v63, 7
    %v65 = vsub.s32 0, %v64
    %v66 = vrot.slane %v61, %v65
    %v70 = vunpack.c.l.b16 %v43
    %v71 = vunpack.c.l.b16 %v44
    %vm72 = vcmask 1041409
    %v73 = vsel %vm72, %v71, %v70
    %v74 = vpack.c.b16 %v73, %v73
    %v92 = vunpack.c.l.b16 %v45
    %v93 = vunpack.c.l.b16 %v46
    %v94 = vunpack.c.l.b16 %v47
    %v95 = vunpack.c.l.b16 %v48
    %v96 = vunpack.c.l.b16 %v49
    %v97 = vunpack.c.l.b16 %v50
    %v98 = vunpack.c.l.b16 %v51
    %v99 = vunpack.c.l.b16 %v52
    %v100 = vunpack.c.l.b16 %v53
    %v101 = vunpack.c.l.b16 %v54
    %v102 = vunpack.c.l.b16 %v55
    %v103 = vunpack.c.l.b16 %v56
    %v104 = vunpack.c.l.b16 %v57
    %v105 = vunpack.c.l.b16 %v58
    %v106 = vunpack.c.l.b16 %v59
    %v107 = vunpack.c.l.b16 %v60
    %v108 = vpack.c.b16 %v93, %v92
    %v109 = vpack.c.b16 %v95, %v94
    %v110 = vpack.c.b16 %v97, %v96
    %v111 = vpack.c.b16 %v99, %v98
    %v112 = vpack.c.b16 %v101, %v100
    %v113 = vpack.c.b16 %v103, %v102
    %v114 = vpack.c.b16 %v105, %v104
    %v115 = vpack.c.b16 %v107, %v106
    %124 = vmatprep.subr.bf16.mxu0 0
    %125 = vmatpush1.bf16.msra.mxu0 %v108
    %126 = vmatprep.subr.bf16.mxu0 0
    %127 = vmatpush1.bf16.msra.mxu0 %v109
    %128 = vmatprep.subr.bf16.mxu0 0
    %129 = vmatpush1.bf16.msra.mxu0 %v110
    %130 = vmatprep.subr.bf16.mxu0 0
    %131 = vmatpush1.bf16.msra.mxu0 %v111
    %132 = vmatprep.subr.bf16.mxu0 0
    %133 = vmatpush1.bf16.msra.mxu0 %v112
    %134 = vmatprep.subr.bf16.mxu0 0
    %135 = vmatpush1.bf16.msra.mxu0 %v113
    %136 = vmatprep.subr.bf16.mxu0 0
    %137 = vmatpush1.bf16.msra.mxu0 %v114
    %138 = vmatprep.subr.bf16.mxu0 0
    %139 = vmatpush1.bf16.msra.mxu0 %v115
    %140 = vmatprep.subr.bf16.mxu0 0
    %141 = vmatpush1.bf16.msra.mxu0 0
    %142 = vmatprep.subr.bf16.mxu0 0
    %143 = vmatpush1.bf16.msra.mxu0 0
    %144 = vmatprep.subr.bf16.mxu0 0
    %145 = vmatpush1.bf16.msra.mxu0 0
    %146 = vmatprep.subr.bf16.mxu0 0
    %147 = vmatpush1.bf16.msra.mxu0 0
    %148 = vmatprep.subr.bf16.mxu0 0
    %149 = vmatpush1.bf16.msra.mxu0 0
    %150 = vmatprep.subr.bf16.mxu0 0
    %151 = vmatpush1.bf16.msra.mxu0 0
    %152 = vmatprep.subr.bf16.mxu0 0
    %153 = vmatpush1.bf16.msra.mxu0 0
    %154 = vmatprep.subr.bf16.mxu0 0
    %155 = vmatpush1.bf16.msra.mxu0 0
    %156 = vmatprep.mubr.bf16.mxu0 0
    %157 = vmatmul.mubr.bf16.gmra.mrb[0].mxu0 %v74
    %v158 = vpop.f32.mrb[0].mxu0
    %v159 = vadd.f32 %v66, %v158
    %v160 = vpop.f32.mrb[0].mxu0
    %v161 = vpop.f32.mrb[0].mxu0
    %v162 = vpop.f32.mrb[0].mxu0
    %163 = vdwg.mxu0
    %v164 = vmax.f32 %v159, 0.0
    %v165 = vpack.c.bf16 %v164, %v164
    %v166 = vld [vmem:[%s3] sm:$0xf]
    %v167 = vld [vmem:[%s3 + $0x4] sm:$0xf]
    %v168 = vld [vmem:[%s3 + $0x8] sm:$0xf]
    %v169 = vld [vmem:[%s3 + $0xc] sm:$0xf]
    %v170 = vld [vmem:[%s3 + $0x10] sm:$0xf]
    %v171 = vld [vmem:[%s3 + $0x14] sm:$0xf]
    %v172 = vld [vmem:[%s3 + $0x18] sm:$0xf]
    %v173 = vld [vmem:[%s3 + $0x1c] sm:$0xf]
    %v174 = vld [vmem:[%s3 + $0x20] sm:$0xf]
    %v175 = vld [vmem:[%s3 + $0x24] sm:$0xf]
    %v176 = vld [vmem:[%s3 + $0x28] sm:$0xf]
    %v177 = vld [vmem:[%s3 + $0x2c] sm:$0xf]
    %v178 = vld [vmem:[%s3 + $0x30] sm:$0xf]
    %v179 = vld [vmem:[%s3 + $0x34] sm:$0xf]
    %v180 = vld [vmem:[%s3 + $0x38] sm:$0xf]
    %v181 = vld [vmem:[%s3 + $0x3c] sm:$0xf]
    %v182 = vld [vmem:[%s4] sm:$0x1]
    %v184 = vlaneseq
    %v185 = vshrl.u32 %v184, 7
    %v186 = vsub.s32 0, %v185
    %v187 = vrot.slane %v182, %v186
    %v205 = vunpack.c.l.b16 %v166
    %v206 = vunpack.c.l.b16 %v167
    %v207 = vunpack.c.l.b16 %v168
    %v208 = vunpack.c.l.b16 %v169
    %v209 = vunpack.c.l.b16 %v170
    %v210 = vunpack.c.l.b16 %v171
    %v211 = vunpack.c.l.b16 %v172
    %v212 = vunpack.c.l.b16 %v173
    %v213 = vunpack.c.l.b16 %v174
    %v214 = vunpack.c.l.b16 %v175
    %v215 = vunpack.c.l.b16 %v176
    %v216 = vunpack.c.l.b16 %v177
    %v217 = vunpack.c.l.b16 %v178
    %v218 = vunpack.c.l.b16 %v179
    %v219 = vunpack.c.l.b16 %v180
    %v220 = vunpack.c.l.b16 %v181
    %v221 = vpack.c.b16 %v206, %v205
    %v222 = vpack.c.b16 %v208, %v207
    %v223 = vpack.c.b16 %v210, %v209
    %v224 = vpack.c.b16 %v212, %v211
    %v225 = vpack.c.b16 %v214, %v213
    %v226 = vpack.c.b16 %v216, %v215
    %v227 = vpack.c.b16 %v218, %v217
    %v228 = vpack.c.b16 %v220, %v219
    %237 = vmatprep.subr.bf16.mxu0 0
    %238 = vmatpush1.bf16.msra.mxu0 %v221
    %239 = vmatprep.subr.bf16.mxu0 0
    %240 = vmatpush1.bf16.msra.mxu0 %v222
    %241 = vmatprep.subr.bf16.mxu0 0
    %242 = vmatpush1.bf16.msra.mxu0 %v223
    %243 = vmatprep.subr.bf16.mxu0 0
    %244 = vmatpush1.bf16.msra.mxu0 %v224
    %245 = vmatprep.subr.bf16.mxu0 0
    %246 = vmatpush1.bf16.msra.mxu0 %v225
    %247 = vmatprep.subr.bf16.mxu0 0
    %248 = vmatpush1.bf16.msra.mxu0 %v226
    %249 = vmatprep.subr.bf16.mxu0 0
    %250 = vmatpush1.bf16.msra.mxu0 %v227
    %251 = vmatprep.subr.bf16.mxu0 0
    %252 = vmatpush1.bf16.msra.mxu0 %v228
    %253 = vmatprep.subr.bf16.mxu0 0
    %254 = vmatpush1.bf16.msra.mxu0 0
    %255 = vmatprep.subr.bf16.mxu0 0
    %256 = vmatpush1.bf16.msra.mxu0 0
    %257 = vmatprep.subr.bf16.mxu0 0
    %258 = vmatpush1.bf16.msra.mxu0 0
    %259 = vmatprep.subr.bf16.mxu0 0
    %260 = vmatpush1.bf16.msra.mxu0 0
    %261 = vmatprep.subr.bf16.mxu0 0
    %262 = vmatpush1.bf16.msra.mxu0 0
    %263 = vmatprep.subr.bf16.mxu0 0
    %264 = vmatpush1.bf16.msra.mxu0 0
    %265 = vmatprep.subr.bf16.mxu0 0
    %266 = vmatpush1.bf16.msra.mxu0 0
    %267 = vmatprep.subr.bf16.mxu0 0
    %268 = vmatpush1.bf16.msra.mxu0 0
    %269 = vmatprep.mubr.bf16.mxu0 0
    %270 = vmatmul.mubr.bf16.gmra.mrb[0].mxu0 %v165
    %v271 = vpop.f32.mrb[0].mxu0
    %v272 = vadd.f32 %v187, %v271
    %v273 = vpop.f32.mrb[0].mxu0
    %v274 = vpop.f32.mrb[0].mxu0
    %v275 = vpop.f32.mrb[0].mxu0
    %276 = vdwg.mxu0
    %277 = vst [vmem:[#allocation2] sm:$0x3] %v272
    // Predicated region
    $region22: #{osnet_forward.11} parent=1 // pred_check
      _
    $region23: #{osnet_forward.11} parent=1 // pred_check_branch
      %279 = sbr.rel (0) target = $region25
    $region24: #{osnet_forward.11} parent=1 // pred_region
      %s281 = ssub.s32 32, 32
      %282 = vsyncadd [#allocation3], %s281
      %s284 = sshll.u32 [#allocation2], 4
      %s285 = int_to_ptr.vmem [resolvable:$true] %s284
      %287 = dma.vmem_to_hbm [thread:$0]  %s285, 32, %s5, [#allocation3]
    $region25: #{osnet_forward.11} parent=1 // pred_fallthru
      _
    // Predicated region
    $region26: #{osnet_forward.11} parent=1 // pred_check
      _
    $region27: #{osnet_forward.11} parent=1 // pred_check_branch
      %289 = sbr.rel (0) target = $region29
    $region28: #{osnet_forward.11} parent=1 // pred_region
      %290 = dma.done [#allocation3], 32
    $region29: #{osnet_forward.11} parent=1 // pred_fallthru
      _
    %291 = vsyncpa [#allocation3], 1

</llo_original>
